<compile_context>
chip_gen: v5e
topology: v5e:2x2
jax: 0.10.0
libtpu: 0.0.40
codegen_flags: <defaults>
</compile_context>

<pallas_src>
import functools

import numpy as np
import jax
import jax.numpy as jnp
from jax.experimental import pallas as pl
from jax.experimental.pallas import tpu as pltpu

# --- model hyper-parameters (SIREN(n_in=3, n_out=3, hidden=[32, 32], w0=30)) ---
N_IN = 3
N_OUT = 3
HIDDEN = 32
W0 = 30.0
WW = 30.0

# --- shared sincos: Cody-Waite pi/2 reduction + cephes polynomials (fp32) ------
_TWO_OVER_PI = float(2.0 / np.pi)
_PIO2_HI = 1.5703125                                          # exact in fp32
_PIO2_MD = float(np.float32(np.pi / 2 - _PIO2_HI))
_PIO2_LO = float(np.pi / 2 - _PIO2_HI - float(np.float32(np.pi / 2 - _PIO2_HI)))
_SIN_C1 = -1.6666654611e-1
_SIN_C2 = 8.3321608736e-3
_SIN_C3 = -1.9515295891e-4
_COS_C1 = 4.166664568298827e-2
_COS_C2 = -1.388731625493765e-3
_COS_C3 = 2.443315711809948e-5


def _sincos(x):
    """(sin(x), cos(x)) with a single shared range reduction.  |x| < ~2^20."""
    kf = jnp.floor(x * _TWO_OVER_PI + 0.5)        # nearest multiple of pi/2
    r = x - kf * _PIO2_HI
    r = r - kf * _PIO2_MD
    r = r - kf * _PIO2_LO                         # r in [-pi/4, pi/4]
    z = r * r
    sin_r = r + r * z * ((_SIN_C3 * z + _SIN_C2) * z + _SIN_C1)
    cos_r = 1.0 - 0.5 * z + z * z * ((_COS_C3 * z + _COS_C2) * z + _COS_C1)
    q = kf - 4.0 * jnp.floor(kf * 0.25)           # quadrant in {0,1,2,3}
    q1 = q == 1.0
    q2 = q == 2.0
    q3 = q == 3.0
    sin_x = jnp.where(q1, cos_r, jnp.where(q2, -sin_r, jnp.where(q3, -cos_r, sin_r)))
    cos_x = jnp.where(q1, -sin_r, jnp.where(q2, -cos_r, jnp.where(q3, sin_r, cos_r)))
    return sin_x, cos_x


def div_siren_kernel(xt_ref, w1b_ref, wbig_ref, wcurl_ref, out_ref):
    """One tile of points on the lane axis: SIREN forward + fused analytic curl."""
    xt = xt_ref[...]                         # (3, TN)   points on lanes
    w1b = w1b_ref[...]                       # (H, 5) = [A1 | a1 | a2]  (w0/ww folded)
    a2w = wbig_ref[0:HIDDEN, :]              # (H, H)   A2 = ww*W2
    wtan = wbig_ref[HIDDEN:4 * HIDDEN, :]    # (3H, H)  [A2*diag(A1[:,0]); ... ; A2*diag(A1[:,2])]
    wcurl = wcurl_ref[...]                   # (3, 3H)  curl-combining matrix (+/- rows of Wo)
    tn = xt.shape[-1]

    # ---- Layer 1: pre1 = A1 x + a1 with VPU broadcast FMAs (K=3 is MXU-hostile).
    pre1 = (w1b[:, 0:1] * xt[0:1, :] + w1b[:, 1:2] * xt[1:2, :]
            + w1b[:, 2:3] * xt[2:3, :] + w1b[:, 3:4])               # (H, TN)
    h1, c1 = _sincos(pre1)                   # h1 = sin(w0*pre1), c1 covers d h1/d pre1

    # ---- Layer 2 pre-activation on the MXU: pre2 = A2 h1 + a2.
    pre2 = jnp.dot(a2w, h1, preferred_element_type=jnp.float32) + w1b[:, 4:5]
    _, c2 = _sincos(pre2)                    # (H, TN)

    # ---- Fused tangents: t2_k = A2 @ (c1 * A1[:,k]) == B_k @ c1 with B_k
    #      pre-built on the host, so one (3H,H)@(H,TN) matmul, no t1 tensor.
    t2 = jnp.dot(wtan, c1, preferred_element_type=jnp.float32)      # (3H, TN)

    # Apply c2 with a layout-preserving split of the sublane axis (no concats).
    prod = (t2.reshape(3, HIDDEN, tn) * c2[None, :, :]).reshape(3 * HIDDEN, tn)

    # Curl of the Jacobian folded into one (3, 3H) @ (3H, TN) matmul.
    out_ref[...] = jnp.dot(wcurl, prod, preferred_element_type=jnp.float32)  # (3, TN)


@functools.partial(jax.jit, static_argnames=("tile_n",))
def div_siren_forward(x, params, tile_n=2048):
    """Returns {'model_in': x, 'model_out': curl(SIREN)(x)}."""
    w1, b1, w2, b2, wo, bo = params  # torch shapes: (H,3),(H,),(H,H),(H,),(3,H),(3,)
    del bo  # output bias does not influence the Jacobian / curl
    n = x.shape[0]

    # Keep the grid >= 2 steps when possible so both v7x TensorCores get work.
    eff_tile = tile_n
    while eff_tile > 512 and (n + eff_tile - 1) // eff_tile < 2:
        eff_tile //= 2
    n_pad = eff_tile * ((n + eff_tile - 1) // eff_tile)

    # Lane-dense input: points on the 128-lane axis.
    xt = x.astype(jnp.float32).T                                   # (3, n)
    if n_pad != n:
        xt = jnp.pad(xt, ((0, 0), (0, n_pad - n)))

    # Fold the SIREN frequencies into the weights (chain rule absorbed exactly).
    a1w = (W0 * w1).astype(jnp.float32)                            # (H, 3)
    a1b = (W0 * b1).astype(jnp.float32)                            # (H,)
    a2w = (WW * w2).astype(jnp.float32)                            # (H, H)
    a2b = (WW * b2).astype(jnp.float32)                            # (H,)

    # Small weight pack: [A1 | a1 | a2] -> single (H, 5) ref.
    w1b = jnp.concatenate([a1w, a1b[:, None], a2b[:, None]], axis=1)

    # Stacked hidden + tangent weights: rows 0..H-1 = A2,
    # rows k*H+H .. : B_k = A2 * A1[:,k]^T  (column scaling == A2 @ diag(A1[:,k])).
    wbig = jnp.concatenate(
        [a2w,
         a2w * a1w[:, 0][None, :],
         a2w * a1w[:, 1][None, :],
         a2w * a1w[:, 2][None, :]], axis=0)                        # (4H, H)

    # Curl-combining matrix: rot = W_curl @ [c2*t2_0; c2*t2_1; c2*t2_2]
    #   rot_x = J[2,1]-J[1,2], rot_y = J[0,2]-J[2,0], rot_z = J[1,0]-J[0,1]
    wo = wo.astype(jnp.float32)
    zh = jnp.zeros((HIDDEN,), jnp.float32)
    w_curl = jnp.stack([
        jnp.concatenate([zh, wo[2], -wo[1]]),
        jnp.concatenate([-wo[2], zh, wo[0]]),
        jnp.concatenate([wo[1], -wo[0], zh]),
    ], axis=0)                                                     # (3, 3H)

    rot_t = pl.pallas_call(
        div_siren_kernel,
        out_shape=jax.ShapeDtypeStruct((N_OUT, n_pad), jnp.float32),
        grid_spec=pltpu.PrefetchScalarGridSpec(
            num_scalar_prefetch=0,
            grid=(n_pad // eff_tile,),
            in_specs=[
                pl.BlockSpec((N_IN, eff_tile), lambda i: (0, i)),
                pl.BlockSpec((HIDDEN, 5), lambda i: (0, 0)),
                pl.BlockSpec((4 * HIDDEN, HIDDEN), lambda i: (0, 0)),
                pl.BlockSpec((N_OUT, 3 * HIDDEN), lambda i: (0, 0)),
            ],
            out_specs=pl.BlockSpec((N_OUT, eff_tile), lambda i: (0, i)),
        ),
        compiler_params=pltpu.CompilerParams(
            dimension_semantics=("parallel",),
            vmem_limit_bytes=32 * 1024 * 1024),
    )(xt, w1b, wbig, w_curl)

    # TODO(synk): consumers that accept a (3, N) layout can skip this transpose.
    rot = rot_t[:, :n].T                                           # (n, 3)
    return {"model_in": x, "model_out": rot}


def init_params(key):
    """Deterministic SIREN init (Sitzmann et al. 2020), mirroring reset_weights()."""
    k1, k2, k3, kb1, kb2, kb3 = jax.random.split(key, 6)
    # first layer: U(-1/n_in, 1/n_in)
    w1 = jax.random.uniform(k1, (HIDDEN, N_IN), jnp.float32, -1.0 / N_IN, 1.0 / N_IN)
    # hidden / output layers: U(-sqrt(6/fan_in)/ww, +sqrt(6/fan_in)/ww)
    lim2 = (6.0 / HIDDEN) ** 0.5 / WW
    w2 = jax.random.uniform(k2, (HIDDEN, HIDDEN), jnp.float32, -lim2, lim2)
    wo = jax.random.uniform(k3, (N_OUT, HIDDEN), jnp.float32, -lim2, lim2)
    # biases: torch nn.Linear default U(-1/sqrt(fan_in), 1/sqrt(fan_in))
    b1 = jax.random.uniform(kb1, (HIDDEN,), jnp.float32, -1.0 / N_IN ** 0.5, 1.0 / N_IN ** 0.5)
    b2 = jax.random.uniform(kb2, (HIDDEN,), jnp.float32, -1.0 / HIDDEN ** 0.5, 1.0 / HIDDEN ** 0.5)
    bo = jax.random.uniform(kb3, (N_OUT,), jnp.float32, -1.0 / HIDDEN ** 0.5, 1.0 / HIDDEN ** 0.5)
    return (w1, b1, w2, b2, wo, bo)


def _siren_ref(params, pt):
    w1, b1, w2, b2, wo, bo = params
    h = jnp.sin(W0 * (pt @ w1.T + b1))
    h = jnp.sin(WW * (h @ w2.T + b2))
    return h @ wo.T + bo


def _curl_ref(params, x):
    J = jax.vmap(jax.jacfwd(lambda p: _siren_ref(params, p)))(x)  # (N, 3, 3)
    return jnp.stack(
        [J[:, 2, 1] - J[:, 1, 2], J[:, 0, 2] - J[:, 2, 0], J[:, 1, 0] - J[:, 0, 1]],
        axis=-1,
    )


if __name__ == "__main__":
    key = jax.random.PRNGKey(0)
    kp, kx = jax.random.split(key)
    params = init_params(kp)

    # N not a multiple of tile_n exercises the pad/slice path; 4 grid steps at
    # tile_n=2048 keeps both v7x TensorCores busy while staying small.
    N = 8000
    x = jax.random.uniform(kx, (N, N_IN), jnp.float32, -1.0, 1.0)

    out = div_siren_forward(x, params, tile_n=2048)
    rot = jax.block_until_ready(out["model_out"])

    # correctness check against a pure-JAX autodiff reference
    rot_ref = _curl_ref(params, x)
    assert rot.shape == (N, N_OUT)
    assert jnp.allclose(rot, rot_ref, rtol=1e-3, atol=1e-3), (
        float(jnp.max(jnp.abs(rot - rot_ref))))

    print("KERNEL_OK")
</pallas_src>

<mosaic_0001>
module attributes {stable_mosaic.version = 11 : i64} {
  func.func @div_siren_kernel(%arg0: i32, %arg1: memref<3x2048xf32, #tpu.memory_space<vmem>>, %arg2: memref<32x5xf32, #tpu.memory_space<vmem>>, %arg3: memref<128x32xf32, #tpu.memory_space<vmem>>, %arg4: memref<3x96xf32, #tpu.memory_space<vmem>>, %arg5: memref<3x2048xf32, #tpu.memory_space<vmem>>) attributes {dimension_semantics = [#tpu.dimension_semantics<parallel>], iteration_bounds = array<i64: 4>, scalar_prefetch = 0 : i64, scratch_operands = 0 : i64, tpu.core_type = #tpu.core_type<tc>, window_params = [{transform_indices = @transform_0, window_bounds = array<i64: 3, 2048>}, {pipeline_mode = #tpu.pipeline_mode<synchronous>, transform_indices = @transform_1, window_bounds = array<i64: 32, 5>}, {pipeline_mode = #tpu.pipeline_mode<synchronous>, transform_indices = @transform_2, window_bounds = array<i64: 128, 32>}, {pipeline_mode = #tpu.pipeline_mode<synchronous>, transform_indices = @transform_3, window_bounds = array<i64: 3, 96>}, {transform_indices = @transform_4, window_bounds = array<i64: 3, 2048>}]} {
    %c0 = arith.constant 0 : index
    %c0_0 = arith.constant 0 : index
    %0 = vector.load %arg1[%c0, %c0_0] : memref<3x2048xf32, #tpu.memory_space<vmem>>, vector<3x2048xf32>
    %c0_1 = arith.constant 0 : index
    %c0_2 = arith.constant 0 : index
    %1 = vector.load %arg2[%c0_1, %c0_2] : memref<32x5xf32, #tpu.memory_space<vmem>>, vector<32x5xf32>
    %c0_3 = arith.constant 0 : index
    %c0_4 = arith.constant 0 : index
    %2 = vector.load %arg3[%c0_3, %c0_4] : memref<128x32xf32, #tpu.memory_space<vmem>>, vector<32x32xf32>
    %c32 = arith.constant 32 : index
    %c0_5 = arith.constant 0 : index
    %3 = vector.load %arg3[%c32, %c0_5] : memref<128x32xf32, #tpu.memory_space<vmem>>, vector<96x32xf32>
    %c0_6 = arith.constant 0 : index
    %c0_7 = arith.constant 0 : index
    %4 = vector.load %arg4[%c0_6, %c0_7] : memref<3x96xf32, #tpu.memory_space<vmem>>, vector<3x96xf32>
    %5 = vector.extract_strided_slice %1 {offsets = [0, 0], sizes = [32, 1], strides = [1, 1]} : vector<32x5xf32> to vector<32x1xf32>
    %6 = vector.extract_strided_slice %0 {offsets = [0, 0], sizes = [1, 2048], strides = [1, 1]} : vector<3x2048xf32> to vector<1x2048xf32>
    %7 = vector.broadcast %5 : vector<32x1xf32> to vector<32x2048xf32>
    %8 = vector.broadcast %6 : vector<1x2048xf32> to vector<32x2048xf32>
    %9 = arith.mulf %7, %8 : vector<32x2048xf32>
    %10 = vector.extract_strided_slice %1 {offsets = [0, 1], sizes = [32, 1], strides = [1, 1]} : vector<32x5xf32> to vector<32x1xf32>
    %11 = vector.extract_strided_slice %0 {offsets = [1, 0], sizes = [1, 2048], strides = [1, 1]} : vector<3x2048xf32> to vector<1x2048xf32>
    %12 = vector.broadcast %10 : vector<32x1xf32> to vector<32x2048xf32>
    %13 = vector.broadcast %11 : vector<1x2048xf32> to vector<32x2048xf32>
    %14 = arith.mulf %12, %13 : vector<32x2048xf32>
    %15 = arith.addf %9, %14 : vector<32x2048xf32>
    %16 = vector.extract_strided_slice %1 {offsets = [0, 2], sizes = [32, 1], strides = [1, 1]} : vector<32x5xf32> to vector<32x1xf32>
    %17 = vector.extract_strided_slice %0 {offsets = [2, 0], sizes = [1, 2048], strides = [1, 1]} : vector<3x2048xf32> to vector<1x2048xf32>
    %18 = vector.broadcast %16 : vector<32x1xf32> to vector<32x2048xf32>
    %19 = vector.broadcast %17 : vector<1x2048xf32> to vector<32x2048xf32>
    %20 = arith.mulf %18, %19 : vector<32x2048xf32>
    %21 = arith.addf %15, %20 : vector<32x2048xf32>
    %22 = vector.extract_strided_slice %1 {offsets = [0, 3], sizes = [32, 1], strides = [1, 1]} : vector<32x5xf32> to vector<32x1xf32>
    %23 = vector.broadcast %22 : vector<32x1xf32> to vector<32x2048xf32>
    %24 = arith.addf %21, %23 : vector<32x2048xf32>
    %cst = arith.constant 0.636619746 : f32
    %25 = vector.broadcast %cst : f32 to vector<32x2048xf32>
    %26 = arith.mulf %24, %25 : vector<32x2048xf32>
    %cst_8 = arith.constant 5.000000e-01 : f32
    %27 = vector.broadcast %cst_8 : f32 to vector<32x2048xf32>
    %28 = arith.addf %26, %27 : vector<32x2048xf32>
    %29 = math.floor %28 : vector<32x2048xf32>
    %cst_9 = arith.constant 1.5703125 : f32
    %30 = vector.broadcast %cst_9 : f32 to vector<32x2048xf32>
    %31 = arith.mulf %29, %30 : vector<32x2048xf32>
    %32 = arith.subf %24, %31 : vector<32x2048xf32>
    %cst_10 = arith.constant 4.83826792E-4 : f32
    %33 = vector.broadcast %cst_10 : f32 to vector<32x2048xf32>
    %34 = arith.mulf %29, %33 : vector<32x2048xf32>
    %35 = arith.subf %32, %34 : vector<32x2048xf32>
    %cst_11 = arith.constant 2.56328292E-12 : f32
    %36 = vector.broadcast %cst_11 : f32 to vector<32x2048xf32>
    %37 = arith.mulf %29, %36 : vector<32x2048xf32>
    %38 = arith.subf %35, %37 : vector<32x2048xf32>
    %39 = arith.mulf %38, %38 : vector<32x2048xf32>
    %40 = arith.mulf %38, %39 : vector<32x2048xf32>
    %cst_12 = arith.constant -1.95152956E-4 : f32
    %41 = vector.broadcast %cst_12 : f32 to vector<32x2048xf32>
    %42 = arith.mulf %41, %39 : vector<32x2048xf32>
    %cst_13 = arith.constant 0.00833216123 : f32
    %43 = vector.broadcast %cst_13 : f32 to vector<32x2048xf32>
    %44 = arith.addf %42, %43 : vector<32x2048xf32>
    %45 = arith.mulf %44, %39 : vector<32x2048xf32>
    %cst_14 = arith.constant -0.166666552 : f32
    %46 = vector.broadcast %cst_14 : f32 to vector<32x2048xf32>
    %47 = arith.addf %45, %46 : vector<32x2048xf32>
    %48 = arith.mulf %40, %47 : vector<32x2048xf32>
    %49 = arith.addf %38, %48 : vector<32x2048xf32>
    %cst_15 = arith.constant 5.000000e-01 : f32
    %50 = vector.broadcast %cst_15 : f32 to vector<32x2048xf32>
    %51 = arith.mulf %50, %39 : vector<32x2048xf32>
    %cst_16 = arith.constant 1.000000e+00 : f32
    %52 = vector.broadcast %cst_16 : f32 to vector<32x2048xf32>
    %53 = arith.subf %52, %51 : vector<32x2048xf32>
    %54 = arith.mulf %39, %39 : vector<32x2048xf32>
    %cst_17 = arith.constant 2.44331568E-5 : f32
    %55 = vector.broadcast %cst_17 : f32 to vector<32x2048xf32>
    %56 = arith.mulf %55, %39 : vector<32x2048xf32>
    %cst_18 = arith.constant -0.00138873165 : f32
    %57 = vector.broadcast %cst_18 : f32 to vector<32x2048xf32>
    %58 = arith.addf %56, %57 : vector<32x2048xf32>
    %59 = arith.mulf %58, %39 : vector<32x2048xf32>
    %cst_19 = arith.constant 0.0416666456 : f32
    %60 = vector.broadcast %cst_19 : f32 to vector<32x2048xf32>
    %61 = arith.addf %59, %60 : vector<32x2048xf32>
    %62 = arith.mulf %54, %61 : vector<32x2048xf32>
    %63 = arith.addf %53, %62 : vector<32x2048xf32>
    %cst_20 = arith.constant 2.500000e-01 : f32
    %64 = vector.broadcast %cst_20 : f32 to vector<32x2048xf32>
    %65 = arith.mulf %29, %64 : vector<32x2048xf32>
    %66 = math.floor %65 : vector<32x2048xf32>
    %cst_21 = arith.constant 4.000000e+00 : f32
    %67 = vector.broadcast %cst_21 : f32 to vector<32x2048xf32>
    %68 = arith.mulf %67, %66 : vector<32x2048xf32>
    %69 = arith.subf %29, %68 : vector<32x2048xf32>
    %cst_22 = arith.constant 1.000000e+00 : f32
    %70 = vector.broadcast %cst_22 : f32 to vector<32x2048xf32>
    %71 = arith.cmpf oeq, %69, %70 : vector<32x2048xf32>
    %cst_23 = arith.constant 2.000000e+00 : f32
    %72 = vector.broadcast %cst_23 : f32 to vector<32x2048xf32>
    %73 = arith.cmpf oeq, %69, %72 : vector<32x2048xf32>
    %cst_24 = arith.constant 3.000000e+00 : f32
    %74 = vector.broadcast %cst_24 : f32 to vector<32x2048xf32>
    %75 = arith.cmpf oeq, %69, %74 : vector<32x2048xf32>
    %cst_25 = arith.constant 0.000000e+00 : f32
    %76 = vector.broadcast %cst_25 : f32 to vector<32x2048xf32>
    %77 = arith.subf %76, %49 : vector<32x2048xf32>
    %cst_26 = arith.constant 0.000000e+00 : f32
    %78 = vector.broadcast %cst_26 : f32 to vector<32x2048xf32>
    %79 = arith.subf %78, %63 : vector<32x2048xf32>
    %80 = arith.select %75, %79, %49 : vector<32x2048xi1>, vector<32x2048xf32>
    %81 = arith.select %73, %77, %80 : vector<32x2048xi1>, vector<32x2048xf32>
    %82 = arith.select %71, %63, %81 : vector<32x2048xi1>, vector<32x2048xf32>
    %cst_27 = arith.constant 0.000000e+00 : f32
    %83 = vector.broadcast %cst_27 : f32 to vector<32x2048xf32>
    %84 = arith.subf %83, %49 : vector<32x2048xf32>
    %cst_28 = arith.constant 0.000000e+00 : f32
    %85 = vector.broadcast %cst_28 : f32 to vector<32x2048xf32>
    %86 = arith.subf %85, %63 : vector<32x2048xf32>
    %87 = arith.select %75, %49, %63 : vector<32x2048xi1>, vector<32x2048xf32>
    %88 = arith.select %73, %86, %87 : vector<32x2048xi1>, vector<32x2048xf32>
    %89 = arith.select %71, %84, %88 : vector<32x2048xi1>, vector<32x2048xf32>
    %cst_29 = arith.constant dense<0.000000e+00> : vector<32x2048xf32>
    %90 = tpu.matmul %2, %82, %cst_29 {dimension_numbers = #tpu.dot_dimension_numbers<[1], [0], [0], [1], [0, 0, 1, 1], [], []>} : vector<32x32xf32>, vector<32x2048xf32>, vector<32x2048xf32> -> vector<32x2048xf32>
    %91 = vector.extract_strided_slice %1 {offsets = [0, 4], sizes = [32, 1], strides = [1, 1]} : vector<32x5xf32> to vector<32x1xf32>
    %92 = vector.broadcast %91 : vector<32x1xf32> to vector<32x2048xf32>
    %93 = arith.addf %90, %92 : vector<32x2048xf32>
    %cst_30 = arith.constant 0.636619746 : f32
    %94 = vector.broadcast %cst_30 : f32 to vector<32x2048xf32>
    %95 = arith.mulf %93, %94 : vector<32x2048xf32>
    %cst_31 = arith.constant 5.000000e-01 : f32
    %96 = vector.broadcast %cst_31 : f32 to vector<32x2048xf32>
    %97 = arith.addf %95, %96 : vector<32x2048xf32>
    %98 = math.floor %97 : vector<32x2048xf32>
    %cst_32 = arith.constant 1.5703125 : f32
    %99 = vector.broadcast %cst_32 : f32 to vector<32x2048xf32>
    %100 = arith.mulf %98, %99 : vector<32x2048xf32>
    %101 = arith.subf %93, %100 : vector<32x2048xf32>
    %cst_33 = arith.constant 4.83826792E-4 : f32
    %102 = vector.broadcast %cst_33 : f32 to vector<32x2048xf32>
    %103 = arith.mulf %98, %102 : vector<32x2048xf32>
    %104 = arith.subf %101, %103 : vector<32x2048xf32>
    %cst_34 = arith.constant 2.56328292E-12 : f32
    %105 = vector.broadcast %cst_34 : f32 to vector<32x2048xf32>
    %106 = arith.mulf %98, %105 : vector<32x2048xf32>
    %107 = arith.subf %104, %106 : vector<32x2048xf32>
    %108 = arith.mulf %107, %107 : vector<32x2048xf32>
    %109 = arith.mulf %107, %108 : vector<32x2048xf32>
    %cst_35 = arith.constant -1.95152956E-4 : f32
    %110 = vector.broadcast %cst_35 : f32 to vector<32x2048xf32>
    %111 = arith.mulf %110, %108 : vector<32x2048xf32>
    %cst_36 = arith.constant 0.00833216123 : f32
    %112 = vector.broadcast %cst_36 : f32 to vector<32x2048xf32>
    %113 = arith.addf %111, %112 : vector<32x2048xf32>
    %114 = arith.mulf %113, %108 : vector<32x2048xf32>
    %cst_37 = arith.constant -0.166666552 : f32
    %115 = vector.broadcast %cst_37 : f32 to vector<32x2048xf32>
    %116 = arith.addf %114, %115 : vector<32x2048xf32>
    %117 = arith.mulf %109, %116 : vector<32x2048xf32>
    %118 = arith.addf %107, %117 : vector<32x2048xf32>
    %cst_38 = arith.constant 5.000000e-01 : f32
    %119 = vector.broadcast %cst_38 : f32 to vector<32x2048xf32>
    %120 = arith.mulf %119, %108 : vector<32x2048xf32>
    %cst_39 = arith.constant 1.000000e+00 : f32
    %121 = vector.broadcast %cst_39 : f32 to vector<32x2048xf32>
    %122 = arith.subf %121, %120 : vector<32x2048xf32>
    %123 = arith.mulf %108, %108 : vector<32x2048xf32>
    %cst_40 = arith.constant 2.44331568E-5 : f32
    %124 = vector.broadcast %cst_40 : f32 to vector<32x2048xf32>
    %125 = arith.mulf %124, %108 : vector<32x2048xf32>
    %cst_41 = arith.constant -0.00138873165 : f32
    %126 = vector.broadcast %cst_41 : f32 to vector<32x2048xf32>
    %127 = arith.addf %125, %126 : vector<32x2048xf32>
    %128 = arith.mulf %127, %108 : vector<32x2048xf32>
    %cst_42 = arith.constant 0.0416666456 : f32
    %129 = vector.broadcast %cst_42 : f32 to vector<32x2048xf32>
    %130 = arith.addf %128, %129 : vector<32x2048xf32>
    %131 = arith.mulf %123, %130 : vector<32x2048xf32>
    %132 = arith.addf %122, %131 : vector<32x2048xf32>
    %cst_43 = arith.constant 2.500000e-01 : f32
    %133 = vector.broadcast %cst_43 : f32 to vector<32x2048xf32>
    %134 = arith.mulf %98, %133 : vector<32x2048xf32>
    %135 = math.floor %134 : vector<32x2048xf32>
    %cst_44 = arith.constant 4.000000e+00 : f32
    %136 = vector.broadcast %cst_44 : f32 to vector<32x2048xf32>
    %137 = arith.mulf %136, %135 : vector<32x2048xf32>
    %138 = arith.subf %98, %137 : vector<32x2048xf32>
    %cst_45 = arith.constant 1.000000e+00 : f32
    %139 = vector.broadcast %cst_45 : f32 to vector<32x2048xf32>
    %140 = arith.cmpf oeq, %138, %139 : vector<32x2048xf32>
    %cst_46 = arith.constant 2.000000e+00 : f32
    %141 = vector.broadcast %cst_46 : f32 to vector<32x2048xf32>
    %142 = arith.cmpf oeq, %138, %141 : vector<32x2048xf32>
    %cst_47 = arith.constant 3.000000e+00 : f32
    %143 = vector.broadcast %cst_47 : f32 to vector<32x2048xf32>
    %144 = arith.cmpf oeq, %138, %143 : vector<32x2048xf32>
    %cst_48 = arith.constant 0.000000e+00 : f32
    %145 = vector.broadcast %cst_48 : f32 to vector<32x2048xf32>
    %146 = arith.subf %145, %118 : vector<32x2048xf32>
    %cst_49 = arith.constant 0.000000e+00 : f32
    %147 = vector.broadcast %cst_49 : f32 to vector<32x2048xf32>
    %148 = arith.subf %147, %132 : vector<32x2048xf32>
    %149 = arith.select %144, %118, %132 : vector<32x2048xi1>, vector<32x2048xf32>
    %150 = arith.select %142, %148, %149 : vector<32x2048xi1>, vector<32x2048xf32>
    %151 = arith.select %140, %146, %150 : vector<32x2048xi1>, vector<32x2048xf32>
    %cst_50 = arith.constant dense<0.000000e+00> : vector<96x2048xf32>
    %152 = tpu.matmul %3, %89, %cst_50 {dimension_numbers = #tpu.dot_dimension_numbers<[1], [0], [0], [1], [0, 0, 1, 1], [], []>} : vector<96x32xf32>, vector<32x2048xf32>, vector<96x2048xf32> -> vector<96x2048xf32>
    %153 = vector.shape_cast %152 : vector<96x2048xf32> to vector<3x32x2048xf32>
    %154 = vector.shape_cast %151 : vector<32x2048xf32> to vector<1x32x2048xf32>
    %155 = vector.broadcast %154 : vector<1x32x2048xf32> to vector<3x32x2048xf32>
    %156 = arith.mulf %153, %155 : vector<3x32x2048xf32>
    %157 = vector.shape_cast %156 : vector<3x32x2048xf32> to vector<96x2048xf32>
    %cst_51 = arith.constant dense<0.000000e+00> : vector<3x2048xf32>
    %158 = tpu.matmul %4, %157, %cst_51 {dimension_numbers = #tpu.dot_dimension_numbers<[1], [0], [0], [1], [0, 0, 1, 1], [], []>} : vector<3x96xf32>, vector<96x2048xf32>, vector<3x2048xf32> -> vector<3x2048xf32>
    %c0_52 = arith.constant 0 : index
    %c0_53 = arith.constant 0 : index
    %159 = vector.load %arg5[%c0_52, %c0_53] : memref<3x2048xf32, #tpu.memory_space<vmem>>, vector<3x2048xf32>
    tpu.vector_store %arg5[%c0_52, %c0_53], %158 {strides = array<i32>} : memref<3x2048xf32, #tpu.memory_space<vmem>>, vector<3x2048xf32>,
    return
  }
  func.func @transform_0(%arg0: i32) -> (i32, i32) {
    %c0_i32 = arith.constant 0 : i32
    %c0_i32_0 = arith.constant 0 : i32
    return %c0_i32, %arg0 : i32, i32
  }
  func.func @transform_1(%arg0: i32) -> (i32, i32) {
    %c0_i32 = arith.constant 0 : i32
    %c0_i32_0 = arith.constant 0 : i32
    %c0_i32_1 = arith.constant 0 : i32
    return %c0_i32, %c0_i32_0 : i32, i32
  }
  func.func @transform_2(%arg0: i32) -> (i32, i32) {
    %c0_i32 = arith.constant 0 : i32
    %c0_i32_0 = arith.constant 0 : i32
    %c0_i32_1 = arith.constant 0 : i32
    return %c0_i32, %c0_i32_0 : i32, i32
  }
  func.func @transform_3(%arg0: i32) -> (i32, i32) {
    %c0_i32 = arith.constant 0 : i32
    %c0_i32_0 = arith.constant 0 : i32
    %c0_i32_1 = arith.constant 0 : i32
    return %c0_i32, %c0_i32_0 : i32, i32
  }
  func.func @transform_4(%arg0: i32) -> (i32, i32) {
    %c0_i32 = arith.constant 0 : i32
    %c0_i32_0 = arith.constant 0 : i32
    return %c0_i32, %arg0 : i32, i32
  }
}

</mosaic_0001>

<llo_original>
// kernel: div_siren_forward.1
$region0: #{div_siren_forward.1}
  #allocation0 [shape = 'u32[]', space=smem, size = 0x4, offset = 0x4, fixed_abs, tag = 'smem constant byte address 0x4 - core index']
  #allocation1 [shape = 'u32[72,128]{1,0:T(1,128)}', space=vmem, size = 0x9000, scoped, tag = 'internal scratch']
  %s0 = inlined_call_operand.vmem [shape: f32[3,8192], index: 0, kind: input, shape index: {}]
  %s1 = inlined_call_operand.vmem [shape: f32[32,5], index: 1, kind: input, shape index: {}]
  %s2 = inlined_call_operand.vmem [shape: f32[128,32], index: 2, kind: input, shape index: {}]
  %s3 = inlined_call_operand.vmem [shape: f32[3,96], index: 3, kind: input, shape index: {}]
  %s4 = inlined_call_operand.vmem [shape: f32[3,8192], index: 4, kind: output, shape index: {}]
  %s5 = sld [smem:[#allocation0]]
  $region49: #{div_siren_forward.1} parent=0
    _
  %s7 = ssub.s32 1, %s5
  %s8 = scalar_select 0, %s7, %s5
  loop: start=0, step=1, limit=6
  $region2: #{div_siren_forward.1} parent=0 // loop_pre_header
    _
  $region3: #{div_siren_forward.1} parent=0 // loop_header
    %s10 = sphi 0, %s14
    %p11 = scmp.ge.s32.totalorder %s10, 6
    %s20 = sphi 0, %s22
    %s23 = sphi 0, %s20
    %s24 = sphi 0, %s23
    %s40 = sphi 0, %s24
    %s44 = sphi 0, %s44
    %s46 = sphi 0, %s44
    %s47 = sphi 0, %s46
    %s61 = sphi 0, %s47
    %s65 = sphi 0, %s65
    %s67 = sphi 0, %s65
    %s68 = sphi 0, %s67
    %s82 = sphi 0, %s68
    %s86 = sphi 0, %s86
    %s88 = sphi 0, %s86
    %s89 = sphi 0, %s88
    %s103 = sphi 0, %s89
    %s109 = sphi 0, %s111
    %s112 = sphi 0, %s109
    %s113 = sphi 0, %s112
    %s129 = sphi 0, %s113
  $region4: #{div_siren_forward.1} parent=0 // loop_header_branch
    %13 = sbr.rel (%p11) target = $region8
  $region5: #{div_siren_forward.1} parent=0 // loop_body
    %s15 = ssub.s32 %s10, 1
    %s16 = ssub.s32 %s10, 2
    %s17 = sadd.s32 %s10, 1
    %s18 = ssub.s32 %s10, %s17
    %p19 = scmp.eq.s32.totalorder %s18, 0
    %s21 = sadd.s32 %s20, 1
    %s22 = scalar_select %p19, %s20, %s21
    %p25 = pneg %p19
    %p26 = scmp.eq.s32.totalorder %s10, 3
    %p27 = por %p25, %p26
    %p28 = scmp.ne.s32.totalorder %s20, %s23
    %p29 = scmp.eq.s32.totalorder %s10, 0
    %p30 = por %p28, %p29
    %p31 = scmp.ne.s32.totalorder %s20, %s23
    %p32 = scmp.eq.s32.totalorder %s15, 3
    %p33 = por %p31, %p32
    %p34 = scmp.ne.s32.totalorder %s23, %s24
    %p35 = scmp.eq.s32.totalorder %s15, 0
    %p36 = por %p34, %p35
    %p37 = scmp.ne.s32.totalorder %s23, %s24
    %p38 = scmp.eq.s32.totalorder %s16, 3
    %p39 = por %p37, %p38
    %p41 = scmp.ne.s32.totalorder %s24, %s40
    %p42 = scmp.eq.s32.totalorder %s16, 0
    %p43 = por %p41, %p42
    %s45 = sadd.s32 %s44, 1
    %p48 = scmp.eq.s32.totalorder %s10, 3
    %p49 = scmp.ne.s32.totalorder %s44, %s46
    %p50 = scmp.eq.s32.totalorder %s10, 0
    %p51 = por %p49, %p50
    %p52 = scmp.ne.s32.totalorder %s44, %s46
    %p53 = scmp.eq.s32.totalorder %s15, 3
    %p54 = por %p52, %p53
    %p55 = scmp.ne.s32.totalorder %s46, %s47
    %p56 = scmp.eq.s32.totalorder %s15, 0
    %p57 = por %p55, %p56
    %p58 = scmp.ne.s32.totalorder %s46, %s47
    %p59 = scmp.eq.s32.totalorder %s16, 3
    %p60 = por %p58, %p59
    %p62 = scmp.ne.s32.totalorder %s47, %s61
    %p63 = scmp.eq.s32.totalorder %s16, 0
    %p64 = por %p62, %p63
    %s66 = sadd.s32 %s65, 1
    %p69 = scmp.eq.s32.totalorder %s10, 3
    %p70 = scmp.ne.s32.totalorder %s65, %s67
    %p71 = scmp.eq.s32.totalorder %s10, 0
    %p72 = por %p70, %p71
    %p73 = scmp.ne.s32.totalorder %s65, %s67
    %p74 = scmp.eq.s32.totalorder %s15, 3
    %p75 = por %p73, %p74
    %p76 = scmp.ne.s32.totalorder %s67, %s68
    %p77 = scmp.eq.s32.totalorder %s15, 0
    %p78 = por %p76, %p77
    %p79 = scmp.ne.s32.totalorder %s67, %s68
    %p80 = scmp.eq.s32.totalorder %s16, 3
    %p81 = por %p79, %p80
    %p83 = scmp.ne.s32.totalorder %s68, %s82
    %p84 = scmp.eq.s32.totalorder %s16, 0
    %p85 = por %p83, %p84
    %s87 = sadd.s32 %s86, 1
    %p90 = scmp.eq.s32.totalorder %s10, 3
    %p91 = scmp.ne.s32.totalorder %s86, %s88
    %p92 = scmp.eq.s32.totalorder %s10, 0
    %p93 = por %p91, %p92
    %p94 = scmp.ne.s32.totalorder %s86, %s88
    %p95 = scmp.eq.s32.totalorder %s15, 3
    %p96 = por %p94, %p95
    %p97 = scmp.ne.s32.totalorder %s88, %s89
    %p98 = scmp.eq.s32.totalorder %s15, 0
    %p99 = por %p97, %p98
    %p100 = scmp.ne.s32.totalorder %s88, %s89
    %p101 = scmp.eq.s32.totalorder %s16, 3
    %p102 = por %p100, %p101
    %p104 = scmp.ne.s32.totalorder %s89, %s103
    %p105 = scmp.eq.s32.totalorder %s16, 0
    %p106 = por %p104, %p105
    %s107 = ssub.s32 %s10, %s17
    %p108 = scmp.eq.s32.totalorder %s107, 0
    %s110 = sadd.s32 %s109, 1
    %s111 = scalar_select %p108, %s109, %s110
    %p114 = pneg %p108
    %p115 = scmp.eq.s32.totalorder %s10, 3
    %p116 = por %p114, %p115
    %p117 = scmp.ne.s32.totalorder %s109, %s112
    %p118 = scmp.eq.s32.totalorder %s10, 0
    %p119 = por %p117, %p118
    %p120 = scmp.ne.s32.totalorder %s109, %s112
    %p121 = scmp.eq.s32.totalorder %s15, 3
    %p122 = por %p120, %p121
    %p123 = scmp.ne.s32.totalorder %s112, %s113
    %p124 = scmp.eq.s32.totalorder %s15, 0
    %p125 = por %p123, %p124
    %p126 = scmp.ne.s32.totalorder %s112, %s113
    %p127 = scmp.eq.s32.totalorder %s16, 3
    %p128 = por %p126, %p127
    %p130 = scmp.ne.s32.totalorder %s113, %s129
    %p131 = scmp.eq.s32.totalorder %s16, 0
    %p132 = por %p130, %p131
    %p133 = scmp.le.s32.totalorder 1, %s10
    %p134 = scmp.lt.s32.totalorder %s10, 5
    %p135 = pnand %p133, %p134
    %p136 = pneg %p135
    // Predicated region
    $region9: #{div_siren_forward.1} parent=5 // pred_check
      _
    $region10: #{div_siren_forward.1} parent=5 // pred_check_branch
      %138 = sbr.rel (%p135) target = $region12
    $region11: #{div_siren_forward.1} parent=5 // pred_region
      %s139 = ssub.s32 %s10, 1
      // Predicated region
      $region13: #{div_siren_forward.1} parent=11 // pred_check
        %p140 = pneg %p57
      $region14: #{div_siren_forward.1} parent=11 // pred_check_branch
        %142 = sbr.rel (%p140) target = $region16
      $region15: #{div_siren_forward.1} parent=11 // pred_region
        _
      $region16: #{div_siren_forward.1} parent=11 // pred_fallthru
        _
      // Predicated region
      $region17: #{div_siren_forward.1} parent=11 // pred_check
        %p143 = pneg %p78
      $region18: #{div_siren_forward.1} parent=11 // pred_check_branch
        %145 = sbr.rel (%p143) target = $region20
      $region19: #{div_siren_forward.1} parent=11 // pred_region
        _
      $region20: #{div_siren_forward.1} parent=11 // pred_fallthru
        _
      // Predicated region
      $region21: #{div_siren_forward.1} parent=11 // pred_check
        %p146 = pneg %p99
      $region22: #{div_siren_forward.1} parent=11 // pred_check_branch
        %148 = sbr.rel (%p146) target = $region24
      $region23: #{div_siren_forward.1} parent=11 // pred_region
        _
      $region24: #{div_siren_forward.1} parent=11 // pred_fallthru
        _
    $region12: #{div_siren_forward.1} parent=5 // pred_fallthru
      _
    %p149 = scmp.lt.s32.totalorder %s10, 4
    // Predicated region
    $region25: #{div_siren_forward.1} parent=5 // pred_check
      %p150 = pneg %p149
    $region26: #{div_siren_forward.1} parent=5 // pred_check_branch
      %152 = sbr.rel (%p150) target = $region28
    $region27: #{div_siren_forward.1} parent=5 // pred_region
      // Predicated region
      $region29: #{div_siren_forward.1} parent=27 // pred_check
        %p153 = pneg %p30
      $region30: #{div_siren_forward.1} parent=27 // pred_check_branch
        %155 = sbr.rel (%p153) target = $region32
      $region31: #{div_siren_forward.1} parent=27 // pred_region
        %s156 = smul.u32 16, %s10
        %p157 = scmp.lt.s32.totalorder %s156, 63
        %s158 = scalar_select %p157, %s156, 63
        %s159 = smul.addr %s158, 4
        %s160 = scalar_lea.vmem %s0, %s159
        %s161 = smul.u32 16, %s10
      $region32: #{div_siren_forward.1} parent=27 // pred_fallthru
        _
    $region28: #{div_siren_forward.1} parent=5 // pred_fallthru
      _
    %p162 = scmp.le.s32.totalorder 1, %s10
    %p163 = scmp.lt.s32.totalorder %s10, 5
    %p164 = pnand %p162, %p163
    %p165 = pneg %p164
    // Predicated region
    $region33: #{div_siren_forward.1} parent=5 // pred_check
      _
    $region34: #{div_siren_forward.1} parent=5 // pred_check_branch
      %167 = sbr.rel (%p164) target = $region36
    $region35: #{div_siren_forward.1} parent=5 // pred_region
      %s168 = ssub.s32 %s10, 1
      %s169 = smul.u32 16, %s15
      %p170 = scmp.lt.s32.totalorder %s169, 63
      %s171 = scalar_select %p170, %s169, 63
      %s172 = smul.addr %s171, 4
      %s173 = scalar_lea.vmem %s0, %s172
      %p174 = pneg %p36
      %p175 = pneg %p33
      %p176 = pneg %p57
      %p177 = pneg %p54
      %p178 = pneg %p78
      %p179 = pneg %p75
      %p180 = pneg %p99
      %p181 = pneg %p96
      %p182 = pneg %p125
      %p183 = pneg %p122
      %s184 = smul.u32 16, %s15
      %p185 = scmp.lt.s32.totalorder %s184, 63
      %s186 = scalar_select %p185, %s184, 63
      %s187 = smul.addr %s186, 4
      %s188 = scalar_lea.vmem %s4, %s187
      %s189 = smul.u32 16, %s15
      %p190 = scmp.lt.s32.totalorder %s189, 63
      %s191 = scalar_select %p190, %s189, 63
      %s192 = smul.addr %s191, 4
      %s193 = scalar_lea.vmem %s0, %s192
      %s194 = smul.u32 16, %s15
      %s195 = smul.u32 16, %s15
      %p196 = scmp.lt.s32.totalorder %s195, 63
      %s197 = scalar_select %p196, %s195, 63
      %s198 = smul.addr %s197, 4
      %s199 = scalar_lea.vmem %s4, %s198
      %s200 = smul.u32 16, %s15
      %v201 = vld [vmem:[%s193] sm:$0x77]
      %v202 = vld [vmem:[%s193 + $0x8] sm:$0x77]
      %v203 = vld [vmem:[%s193 + $0x10] sm:$0x77]
      %v204 = vld [vmem:[%s193 + $0x18] sm:$0x77]
      %v205 = vld [vmem:[%s193 + $0x20] sm:$0x77]
      %v206 = vld [vmem:[%s193 + $0x28] sm:$0x77]
      %v207 = vld [vmem:[%s193 + $0x30] sm:$0x77]
      %v208 = vld [vmem:[%s193 + $0x38] sm:$0x77]
      %v209 = vld [vmem:[%s1] sm:$0xff]
      %v210 = vld [vmem:[%s1 + $0x8] sm:$0xff]
      %v211 = vld [vmem:[%s1 + $0x10] sm:$0xff]
      %v212 = vld [vmem:[%s1 + $0x18] sm:$0xff]
      %v213 = vld [vmem:[%s2] sm:$0xff]
      %v214 = vld [vmem:[%s2 + $0x8] sm:$0xff]
      %v215 = vld [vmem:[%s2 + $0x10] sm:$0xff]
      %v216 = vld [vmem:[%s2 + $0x18] sm:$0xff]
      %v217 = vld [vmem:[%s2 + $0x20] sm:$0xff]
      %v218 = vld [vmem:[%s2 + $0x28] sm:$0xff]
      %v219 = vld [vmem:[%s2 + $0x30] sm:$0xff]
      %v220 = vld [vmem:[%s2 + $0x38] sm:$0xff]
      %v221 = vld [vmem:[%s2 + $0x40] sm:$0xff]
      %v222 = vld [vmem:[%s2 + $0x48] sm:$0xff]
      %v223 = vld [vmem:[%s2 + $0x50] sm:$0xff]
      %v224 = vld [vmem:[%s2 + $0x58] sm:$0xff]
      %v225 = vld [vmem:[%s2 + $0x60] sm:$0xff]
      %v226 = vld [vmem:[%s2 + $0x68] sm:$0xff]
      %v227 = vld [vmem:[%s2 + $0x70] sm:$0xff]
      %v228 = vld [vmem:[%s2 + $0x78] sm:$0xff]
      %v229 = vld [vmem:[%s3] sm:$0x7]
      %231 = vset.pattern.permute.xlu0 0
      %232 = vperm.xlu0 %231, %v209
      %v233 = vpop.permute.xlu0 %232
      %236 = vset.pattern.permute.xlu0 0
      %237 = vperm.xlu0 %236, %v210
      %v238 = vpop.permute.xlu0 %237
      %241 = vset.pattern.permute.xlu0 0
      %242 = vperm.xlu0 %241, %v211
      %v243 = vpop.permute.xlu0 %242
      %246 = vset.pattern.permute.xlu0 0
      %247 = vperm.xlu0 %246, %v212
      %v248 = vpop.permute.xlu0 %247
      %v258 = vperm.slane %v201, 0
      %v259 = vperm.slane %v201, 4
      %v260 = vperm.slane %v202, 0
      %v261 = vperm.slane %v202, 4
      %v262 = vperm.slane %v203, 0
      %v263 = vperm.slane %v203, 4
      %v264 = vperm.slane %v204, 0
      %v265 = vperm.slane %v204, 4
      %v266 = vperm.slane %v205, 0
      %v267 = vperm.slane %v205, 4
      %v268 = vperm.slane %v206, 0
      %v269 = vperm.slane %v206, 4
      %v270 = vperm.slane %v207, 0
      %v271 = vperm.slane %v207, 4
      %v272 = vperm.slane %v208, 0
      %v273 = vperm.slane %v208, 4
      %v290 = vperm.slane %v258, 0
      %v291 = vperm.slane %v259, 0
      %v292 = vperm.slane %v260, 0
      %v293 = vperm.slane %v261, 0
      %v294 = vperm.slane %v262, 0
      %v295 = vperm.slane %v263, 0
      %v296 = vperm.slane %v264, 0
      %v297 = vperm.slane %v265, 0
      %v298 = vperm.slane %v266, 0
      %v299 = vperm.slane %v267, 0
      %v300 = vperm.slane %v268, 0
      %v301 = vperm.slane %v269, 0
      %v302 = vperm.slane %v270, 0
      %v303 = vperm.slane %v271, 0
      %v304 = vperm.slane %v272, 0
      %v305 = vperm.slane %v273, 0
      %v306 = vmul.f32 %v233, %v290
      %v307 = vmul.f32 %v233, %v291
      %v308 = vmul.f32 %v233, %v292
      %v309 = vmul.f32 %v233, %v293
      %v310 = vmul.f32 %v233, %v294
      %v311 = vmul.f32 %v233, %v295
      %v312 = vmul.f32 %v233, %v296
      %v313 = vmul.f32 %v233, %v297
      %v314 = vmul.f32 %v233, %v298
      %v315 = vmul.f32 %v233, %v299
      %v316 = vmul.f32 %v233, %v300
      %v317 = vmul.f32 %v233, %v301
      %v318 = vmul.f32 %v233, %v302
      %v319 = vmul.f32 %v233, %v303
      %v320 = vmul.f32 %v233, %v304
      %v321 = vmul.f32 %v233, %v305
      %v322 = vmul.f32 %v238, %v290
      %v323 = vmul.f32 %v238, %v291
      %v324 = vmul.f32 %v238, %v292
      %v325 = vmul.f32 %v238, %v293
      %v326 = vmul.f32 %v238, %v294
      %v327 = vmul.f32 %v238, %v295
      %v328 = vmul.f32 %v238, %v296
      %v329 = vmul.f32 %v238, %v297
      %v330 = vmul.f32 %v238, %v298
      %v331 = vmul.f32 %v238, %v299
      %v332 = vmul.f32 %v238, %v300
      %v333 = vmul.f32 %v238, %v301
      %v334 = vmul.f32 %v238, %v302
      %v335 = vmul.f32 %v238, %v303
      %v336 = vmul.f32 %v238, %v304
      %v337 = vmul.f32 %v238, %v305
      %v338 = vmul.f32 %v243, %v290
      %v339 = vmul.f32 %v243, %v291
      %v340 = vmul.f32 %v243, %v292
      %v341 = vmul.f32 %v243, %v293
      %v342 = vmul.f32 %v243, %v294
      %v343 = vmul.f32 %v243, %v295
      %v344 = vmul.f32 %v243, %v296
      %v345 = vmul.f32 %v243, %v297
      %v346 = vmul.f32 %v243, %v298
      %v347 = vmul.f32 %v243, %v299
      %v348 = vmul.f32 %v243, %v300
      %v349 = vmul.f32 %v243, %v301
      %v350 = vmul.f32 %v243, %v302
      %v351 = vmul.f32 %v243, %v303
      %v352 = vmul.f32 %v243, %v304
      %v353 = vmul.f32 %v243, %v305
      %v354 = vmul.f32 %v248, %v290
      %v355 = vmul.f32 %v248, %v291
      %v356 = vmul.f32 %v248, %v292
      %v357 = vmul.f32 %v248, %v293
      %v358 = vmul.f32 %v248, %v294
      %v359 = vmul.f32 %v248, %v295
      %v360 = vmul.f32 %v248, %v296
      %v361 = vmul.f32 %v248, %v297
      %v362 = vmul.f32 %v248, %v298
      %v363 = vmul.f32 %v248, %v299
      %v364 = vmul.f32 %v248, %v300
      %v365 = vmul.f32 %v248, %v301
      %v366 = vmul.f32 %v248, %v302
      %v367 = vmul.f32 %v248, %v303
      %v368 = vmul.f32 %v248, %v304
      %v369 = vmul.f32 %v248, %v305
      %370 = vset.pattern.permute.xlu0 1
      %371 = vperm.xlu0 %370, %v209
      %v372 = vpop.permute.xlu0 %371
      %374 = vset.pattern.permute.xlu0 1
      %375 = vperm.xlu0 %374, %v210
      %v376 = vpop.permute.xlu0 %375
      %378 = vset.pattern.permute.xlu0 1
      %379 = vperm.xlu0 %378, %v211
      %v380 = vpop.permute.xlu0 %379
      %382 = vset.pattern.permute.xlu0 1
      %383 = vperm.xlu0 %382, %v212
      %v384 = vpop.permute.xlu0 %383
      %v386 = vperm.slane %v201, 1
      %v387 = vperm.slane %v201, 5
      %v388 = vperm.slane %v202, 1
      %v389 = vperm.slane %v202, 5
      %v390 = vperm.slane %v203, 1
      %v391 = vperm.slane %v203, 5
      %v392 = vperm.slane %v204, 1
      %v393 = vperm.slane %v204, 5
      %v394 = vperm.slane %v205, 1
      %v395 = vperm.slane %v205, 5
      %v396 = vperm.slane %v206, 1
      %v397 = vperm.slane %v206, 5
      %v398 = vperm.slane %v207, 1
      %v399 = vperm.slane %v207, 5
      %v400 = vperm.slane %v208, 1
      %v401 = vperm.slane %v208, 5
      %v418 = vperm.slane %v386, 1
      %v419 = vperm.slane %v387, 1
      %v420 = vperm.slane %v388, 1
      %v421 = vperm.slane %v389, 1
      %v422 = vperm.slane %v390, 1
      %v423 = vperm.slane %v391, 1
      %v424 = vperm.slane %v392, 1
      %v425 = vperm.slane %v393, 1
      %v426 = vperm.slane %v394, 1
      %v427 = vperm.slane %v395, 1
      %v428 = vperm.slane %v396, 1
      %v429 = vperm.slane %v397, 1
      %v430 = vperm.slane %v398, 1
      %v431 = vperm.slane %v399, 1
      %v432 = vperm.slane %v400, 1
      %v433 = vperm.slane %v401, 1
      %v434 = vmul.f32 %v372, %v418
      %v435 = vmul.f32 %v372, %v419
      %v436 = vmul.f32 %v372, %v420
      %v437 = vmul.f32 %v372, %v421
      %v438 = vmul.f32 %v372, %v422
      %v439 = vmul.f32 %v372, %v423
      %v440 = vmul.f32 %v372, %v424
      %v441 = vmul.f32 %v372, %v425
      %v442 = vmul.f32 %v372, %v426
      %v443 = vmul.f32 %v372, %v427
      %v444 = vmul.f32 %v372, %v428
      %v445 = vmul.f32 %v372, %v429
      %v446 = vmul.f32 %v372, %v430
      %v447 = vmul.f32 %v372, %v431
      %v448 = vmul.f32 %v372, %v432
      %v449 = vmul.f32 %v372, %v433
      %v450 = vmul.f32 %v376, %v418
      %v451 = vmul.f32 %v376, %v419
      %v452 = vmul.f32 %v376, %v420
      %v453 = vmul.f32 %v376, %v421
      %v454 = vmul.f32 %v376, %v422
      %v455 = vmul.f32 %v376, %v423
      %v456 = vmul.f32 %v376, %v424
      %v457 = vmul.f32 %v376, %v425
      %v458 = vmul.f32 %v376, %v426
      %v459 = vmul.f32 %v376, %v427
      %v460 = vmul.f32 %v376, %v428
      %v461 = vmul.f32 %v376, %v429
      %v462 = vmul.f32 %v376, %v430
      %v463 = vmul.f32 %v376, %v431
      %v464 = vmul.f32 %v376, %v432
      %v465 = vmul.f32 %v376, %v433
      %v466 = vmul.f32 %v380, %v418
      %v467 = vmul.f32 %v380, %v419
      %v468 = vmul.f32 %v380, %v420
      %v469 = vmul.f32 %v380, %v421
      %v470 = vmul.f32 %v380, %v422
      %v471 = vmul.f32 %v380, %v423
      %v472 = vmul.f32 %v380, %v424
      %v473 = vmul.f32 %v380, %v425
      %v474 = vmul.f32 %v380, %v426
      %v475 = vmul.f32 %v380, %v427
      %v476 = vmul.f32 %v380, %v428
      %v477 = vmul.f32 %v380, %v429
      %v478 = vmul.f32 %v380, %v430
      %v479 = vmul.f32 %v380, %v431
      %v480 = vmul.f32 %v380, %v432
      %v481 = vmul.f32 %v380, %v433
      %v482 = vmul.f32 %v384, %v418
      %v483 = vmul.f32 %v384, %v419
      %v484 = vmul.f32 %v384, %v420
      %v485 = vmul.f32 %v384, %v421
      %v486 = vmul.f32 %v384, %v422
      %v487 = vmul.f32 %v384, %v423
      %v488 = vmul.f32 %v384, %v424
      %v489 = vmul.f32 %v384, %v425
      %v490 = vmul.f32 %v384, %v426
      %v491 = vmul.f32 %v384, %v427
      %v492 = vmul.f32 %v384, %v428
      %v493 = vmul.f32 %v384, %v429
      %v494 = vmul.f32 %v384, %v430
      %v495 = vmul.f32 %v384, %v431
      %v496 = vmul.f32 %v384, %v432
      %v497 = vmul.f32 %v384, %v433
      %v498 = vadd.f32 %v306, %v434
      %v499 = vadd.f32 %v307, %v435
      %v500 = vadd.f32 %v308, %v436
      %v501 = vadd.f32 %v309, %v437
      %v502 = vadd.f32 %v310, %v438
      %v503 = vadd.f32 %v311, %v439
      %v504 = vadd.f32 %v312, %v440
      %v505 = vadd.f32 %v313, %v441
      %v506 = vadd.f32 %v314, %v442
      %v507 = vadd.f32 %v315, %v443
      %v508 = vadd.f32 %v316, %v444
      %v509 = vadd.f32 %v317, %v445
      %v510 = vadd.f32 %v318, %v446
      %v511 = vadd.f32 %v319, %v447
      %v512 = vadd.f32 %v320, %v448
      %v513 = vadd.f32 %v321, %v449
      %v514 = vadd.f32 %v322, %v450
      %v515 = vadd.f32 %v323, %v451
      %v516 = vadd.f32 %v324, %v452
      %v517 = vadd.f32 %v325, %v453
      %v518 = vadd.f32 %v326, %v454
      %v519 = vadd.f32 %v327, %v455
      %v520 = vadd.f32 %v328, %v456
      %v521 = vadd.f32 %v329, %v457
      %v522 = vadd.f32 %v330, %v458
      %v523 = vadd.f32 %v331, %v459
      %v524 = vadd.f32 %v332, %v460
      %v525 = vadd.f32 %v333, %v461
      %v526 = vadd.f32 %v334, %v462
      %v527 = vadd.f32 %v335, %v463
      %v528 = vadd.f32 %v336, %v464
      %v529 = vadd.f32 %v337, %v465
      %v530 = vadd.f32 %v338, %v466
      %v531 = vadd.f32 %v339, %v467
      %v532 = vadd.f32 %v340, %v468
      %v533 = vadd.f32 %v341, %v469
      %v534 = vadd.f32 %v342, %v470
      %v535 = vadd.f32 %v343, %v471
      %v536 = vadd.f32 %v344, %v472
      %v537 = vadd.f32 %v345, %v473
      %v538 = vadd.f32 %v346, %v474
      %v539 = vadd.f32 %v347, %v475
      %v540 = vadd.f32 %v348, %v476
      %v541 = vadd.f32 %v349, %v477
      %v542 = vadd.f32 %v350, %v478
      %v543 = vadd.f32 %v351, %v479
      %v544 = vadd.f32 %v352, %v480
      %v545 = vadd.f32 %v353, %v481
      %v546 = vadd.f32 %v354, %v482
      %v547 = vadd.f32 %v355, %v483
      %v548 = vadd.f32 %v356, %v484
      %v549 = vadd.f32 %v357, %v485
      %v550 = vadd.f32 %v358, %v486
      %v551 = vadd.f32 %v359, %v487
      %v552 = vadd.f32 %v360, %v488
      %v553 = vadd.f32 %v361, %v489
      %v554 = vadd.f32 %v362, %v490
      %v555 = vadd.f32 %v363, %v491
      %v556 = vadd.f32 %v364, %v492
      %v557 = vadd.f32 %v365, %v493
      %v558 = vadd.f32 %v366, %v494
      %v559 = vadd.f32 %v367, %v495
      %v560 = vadd.f32 %v368, %v496
      %v561 = vadd.f32 %v369, %v497
      %562 = vset.pattern.permute.xlu0 2
      %563 = vperm.xlu0 %562, %v209
      %v564 = vpop.permute.xlu0 %563
      %566 = vset.pattern.permute.xlu0 2
      %567 = vperm.xlu0 %566, %v210
      %v568 = vpop.permute.xlu0 %567
      %570 = vset.pattern.permute.xlu0 2
      %571 = vperm.xlu0 %570, %v211
      %v572 = vpop.permute.xlu0 %571
      %574 = vset.pattern.permute.xlu0 2
      %575 = vperm.xlu0 %574, %v212
      %v576 = vpop.permute.xlu0 %575
      %v578 = vperm.slane %v201, 2
      %v579 = vperm.slane %v201, 6
      %v580 = vperm.slane %v202, 2
      %v581 = vperm.slane %v202, 6
      %v582 = vperm.slane %v203, 2
      %v583 = vperm.slane %v203, 6
      %v584 = vperm.slane %v204, 2
      %v585 = vperm.slane %v204, 6
      %v586 = vperm.slane %v205, 2
      %v587 = vperm.slane %v205, 6
      %v588 = vperm.slane %v206, 2
      %v589 = vperm.slane %v206, 6
      %v590 = vperm.slane %v207, 2
      %v591 = vperm.slane %v207, 6
      %v592 = vperm.slane %v208, 2
      %v593 = vperm.slane %v208, 6
      %v610 = vperm.slane %v578, 2
      %v611 = vperm.slane %v579, 2
      %v612 = vperm.slane %v580, 2
      %v613 = vperm.slane %v581, 2
      %v614 = vperm.slane %v582, 2
      %v615 = vperm.slane %v583, 2
      %v616 = vperm.slane %v584, 2
      %v617 = vperm.slane %v585, 2
      %v618 = vperm.slane %v586, 2
      %v619 = vperm.slane %v587, 2
      %v620 = vperm.slane %v588, 2
      %v621 = vperm.slane %v589, 2
      %v622 = vperm.slane %v590, 2
      %v623 = vperm.slane %v591, 2
      %v624 = vperm.slane %v592, 2
      %v625 = vperm.slane %v593, 2
      %v626 = vmul.f32 %v564, %v610
      %v627 = vmul.f32 %v564, %v611
      %v628 = vmul.f32 %v564, %v612
      %v629 = vmul.f32 %v564, %v613
      %v630 = vmul.f32 %v564, %v614
      %v631 = vmul.f32 %v564, %v615
      %v632 = vmul.f32 %v564, %v616
      %v633 = vmul.f32 %v564, %v617
      %v634 = vmul.f32 %v564, %v618
      %v635 = vmul.f32 %v564, %v619
      %v636 = vmul.f32 %v564, %v620
      %v637 = vmul.f32 %v564, %v621
      %v638 = vmul.f32 %v564, %v622
      %v639 = vmul.f32 %v564, %v623
      %v640 = vmul.f32 %v564, %v624
      %v641 = vmul.f32 %v564, %v625
      %v642 = vmul.f32 %v568, %v610
      %v643 = vmul.f32 %v568, %v611
      %v644 = vmul.f32 %v568, %v612
      %v645 = vmul.f32 %v568, %v613
      %v646 = vmul.f32 %v568, %v614
      %v647 = vmul.f32 %v568, %v615
      %v648 = vmul.f32 %v568, %v616
      %v649 = vmul.f32 %v568, %v617
      %v650 = vmul.f32 %v568, %v618
      %v651 = vmul.f32 %v568, %v619
      %v652 = vmul.f32 %v568, %v620
      %v653 = vmul.f32 %v568, %v621
      %v654 = vmul.f32 %v568, %v622
      %v655 = vmul.f32 %v568, %v623
      %v656 = vmul.f32 %v568, %v624
      %v657 = vmul.f32 %v568, %v625
      %v658 = vmul.f32 %v572, %v610
      %v659 = vmul.f32 %v572, %v611
      %v660 = vmul.f32 %v572, %v612
      %v661 = vmul.f32 %v572, %v613
      %v662 = vmul.f32 %v572, %v614
      %v663 = vmul.f32 %v572, %v615
      %v664 = vmul.f32 %v572, %v616
      %v665 = vmul.f32 %v572, %v617
      %v666 = vmul.f32 %v572, %v618
      %v667 = vmul.f32 %v572, %v619
      %v668 = vmul.f32 %v572, %v620
      %v669 = vmul.f32 %v572, %v621
      %v670 = vmul.f32 %v572, %v622
      %v671 = vmul.f32 %v572, %v623
      %v672 = vmul.f32 %v572, %v624
      %v673 = vmul.f32 %v572, %v625
      %v674 = vmul.f32 %v576, %v610
      %v675 = vmul.f32 %v576, %v611
      %v676 = vmul.f32 %v576, %v612
      %v677 = vmul.f32 %v576, %v613
      %v678 = vmul.f32 %v576, %v614
      %v679 = vmul.f32 %v576, %v615
      %v680 = vmul.f32 %v576, %v616
      %v681 = vmul.f32 %v576, %v617
      %v682 = vmul.f32 %v576, %v618
      %v683 = vmul.f32 %v576, %v619
      %v684 = vmul.f32 %v576, %v620
      %v685 = vmul.f32 %v576, %v621
      %v686 = vmul.f32 %v576, %v622
      %v687 = vmul.f32 %v576, %v623
      %v688 = vmul.f32 %v576, %v624
      %v689 = vmul.f32 %v576, %v625
      %v690 = vadd.f32 %v498, %v626
      %v691 = vadd.f32 %v499, %v627
      %v692 = vadd.f32 %v500, %v628
      %v693 = vadd.f32 %v501, %v629
      %v694 = vadd.f32 %v502, %v630
      %v695 = vadd.f32 %v503, %v631
      %v696 = vadd.f32 %v504, %v632
      %v697 = vadd.f32 %v505, %v633
      %v698 = vadd.f32 %v506, %v634
      %v699 = vadd.f32 %v507, %v635
      %v700 = vadd.f32 %v508, %v636
      %v701 = vadd.f32 %v509, %v637
      %v702 = vadd.f32 %v510, %v638
      %v703 = vadd.f32 %v511, %v639
      %v704 = vadd.f32 %v512, %v640
      %v705 = vadd.f32 %v513, %v641
      %v706 = vadd.f32 %v514, %v642
      %v707 = vadd.f32 %v515, %v643
      %v708 = vadd.f32 %v516, %v644
      %v709 = vadd.f32 %v517, %v645
      %v710 = vadd.f32 %v518, %v646
      %v711 = vadd.f32 %v519, %v647
      %v712 = vadd.f32 %v520, %v648
      %v713 = vadd.f32 %v521, %v649
      %v714 = vadd.f32 %v522, %v650
      %v715 = vadd.f32 %v523, %v651
      %v716 = vadd.f32 %v524, %v652
      %v717 = vadd.f32 %v525, %v653
      %v718 = vadd.f32 %v526, %v654
      %v719 = vadd.f32 %v527, %v655
      %v720 = vadd.f32 %v528, %v656
      %v721 = vadd.f32 %v529, %v657
      %v722 = vadd.f32 %v530, %v658
      %v723 = vadd.f32 %v531, %v659
      %v724 = vadd.f32 %v532, %v660
      %v725 = vadd.f32 %v533, %v661
      %v726 = vadd.f32 %v534, %v662
      %v727 = vadd.f32 %v535, %v663
      %v728 = vadd.f32 %v536, %v664
      %v729 = vadd.f32 %v537, %v665
      %v730 = vadd.f32 %v538, %v666
      %v731 = vadd.f32 %v539, %v667
      %v732 = vadd.f32 %v540, %v668
      %v733 = vadd.f32 %v541, %v669
      %v734 = vadd.f32 %v542, %v670
      %v735 = vadd.f32 %v543, %v671
      %v736 = vadd.f32 %v544, %v672
      %v737 = vadd.f32 %v545, %v673
      %v738 = vadd.f32 %v546, %v674
      %v739 = vadd.f32 %v547, %v675
      %v740 = vadd.f32 %v548, %v676
      %v741 = vadd.f32 %v549, %v677
      %v742 = vadd.f32 %v550, %v678
      %v743 = vadd.f32 %v551, %v679
      %v744 = vadd.f32 %v552, %v680
      %v745 = vadd.f32 %v553, %v681
      %v746 = vadd.f32 %v554, %v682
      %v747 = vadd.f32 %v555, %v683
      %v748 = vadd.f32 %v556, %v684
      %v749 = vadd.f32 %v557, %v685
      %v750 = vadd.f32 %v558, %v686
      %v751 = vadd.f32 %v559, %v687
      %v752 = vadd.f32 %v560, %v688
      %v753 = vadd.f32 %v561, %v689
      %754 = vset.pattern.permute.xlu0 3
      %755 = vperm.xlu0 %754, %v209
      %v756 = vpop.permute.xlu0 %755
      %758 = vset.pattern.permute.xlu0 3
      %759 = vperm.xlu0 %758, %v210
      %v760 = vpop.permute.xlu0 %759
      %762 = vset.pattern.permute.xlu0 3
      %763 = vperm.xlu0 %762, %v211
      %v764 = vpop.permute.xlu0 %763
      %766 = vset.pattern.permute.xlu0 3
      %767 = vperm.xlu0 %766, %v212
      %v768 = vpop.permute.xlu0 %767
      %v770 = vadd.f32 %v690, %v756
      %v771 = vadd.f32 %v691, %v756
      %v772 = vadd.f32 %v692, %v756
      %v773 = vadd.f32 %v693, %v756
      %v774 = vadd.f32 %v694, %v756
      %v775 = vadd.f32 %v695, %v756
      %v776 = vadd.f32 %v696, %v756
      %v777 = vadd.f32 %v697, %v756
      %v778 = vadd.f32 %v698, %v756
      %v779 = vadd.f32 %v699, %v756
      %v780 = vadd.f32 %v700, %v756
      %v781 = vadd.f32 %v701, %v756
      %v782 = vadd.f32 %v702, %v756
      %v783 = vadd.f32 %v703, %v756
      %v784 = vadd.f32 %v704, %v756
      %v785 = vadd.f32 %v705, %v756
      %v786 = vadd.f32 %v706, %v760
      %v787 = vadd.f32 %v707, %v760
      %v788 = vadd.f32 %v708, %v760
      %v789 = vadd.f32 %v709, %v760
      %v790 = vadd.f32 %v710, %v760
      %v791 = vadd.f32 %v711, %v760
      %v792 = vadd.f32 %v712, %v760
      %v793 = vadd.f32 %v713, %v760
      %v794 = vadd.f32 %v714, %v760
      %v795 = vadd.f32 %v715, %v760
      %v796 = vadd.f32 %v716, %v760
      %v797 = vadd.f32 %v717, %v760
      %v798 = vadd.f32 %v718, %v760
      %v799 = vadd.f32 %v719, %v760
      %v800 = vadd.f32 %v720, %v760
      %v801 = vadd.f32 %v721, %v760
      %v802 = vadd.f32 %v722, %v764
      %v803 = vadd.f32 %v723, %v764
      %v804 = vadd.f32 %v724, %v764
      %v805 = vadd.f32 %v725, %v764
      %v806 = vadd.f32 %v726, %v764
      %v807 = vadd.f32 %v727, %v764
      %v808 = vadd.f32 %v728, %v764
      %v809 = vadd.f32 %v729, %v764
      %v810 = vadd.f32 %v730, %v764
      %v811 = vadd.f32 %v731, %v764
      %v812 = vadd.f32 %v732, %v764
      %v813 = vadd.f32 %v733, %v764
      %v814 = vadd.f32 %v734, %v764
      %v815 = vadd.f32 %v735, %v764
      %v816 = vadd.f32 %v736, %v764
      %v817 = vadd.f32 %v737, %v764
      %v818 = vadd.f32 %v738, %v768
      %v819 = vadd.f32 %v739, %v768
      %v820 = vadd.f32 %v740, %v768
      %v821 = vadd.f32 %v741, %v768
      %v822 = vadd.f32 %v742, %v768
      %v823 = vadd.f32 %v743, %v768
      %v824 = vadd.f32 %v744, %v768
      %v825 = vadd.f32 %v745, %v768
      %v826 = vadd.f32 %v746, %v768
      %v827 = vadd.f32 %v747, %v768
      %v828 = vadd.f32 %v748, %v768
      %v829 = vadd.f32 %v749, %v768
      %v830 = vadd.f32 %v750, %v768
      %v831 = vadd.f32 %v751, %v768
      %v832 = vadd.f32 %v752, %v768
      %v833 = vadd.f32 %v753, %v768
      %v834 = vmul.f32 %v770, 0.63661975
      %v835 = vmul.f32 %v771, 0.63661975
      %v836 = vmul.f32 %v772, 0.63661975
      %v837 = vmul.f32 %v773, 0.63661975
      %v838 = vmul.f32 %v774, 0.63661975
      %v839 = vmul.f32 %v775, 0.63661975
      %v840 = vmul.f32 %v776, 0.63661975
      %v841 = vmul.f32 %v777, 0.63661975
      %v842 = vmul.f32 %v778, 0.63661975
      %v843 = vmul.f32 %v779, 0.63661975
      %v844 = vmul.f32 %v780, 0.63661975
      %v845 = vmul.f32 %v781, 0.63661975
      %v846 = vmul.f32 %v782, 0.63661975
      %v847 = vmul.f32 %v783, 0.63661975
      %v848 = vmul.f32 %v784, 0.63661975
      %v849 = vmul.f32 %v785, 0.63661975
      %v850 = vmul.f32 %v786, 0.63661975
      %v851 = vmul.f32 %v787, 0.63661975
      %v852 = vmul.f32 %v788, 0.63661975
      %v853 = vmul.f32 %v789, 0.63661975
      %v854 = vmul.f32 %v790, 0.63661975
      %v855 = vmul.f32 %v791, 0.63661975
      %v856 = vmul.f32 %v792, 0.63661975
      %v857 = vmul.f32 %v793, 0.63661975
      %v858 = vmul.f32 %v794, 0.63661975
      %v859 = vmul.f32 %v795, 0.63661975
      %v860 = vmul.f32 %v796, 0.63661975
      %v861 = vmul.f32 %v797, 0.63661975
      %v862 = vmul.f32 %v798, 0.63661975
      %v863 = vmul.f32 %v799, 0.63661975
      %v864 = vmul.f32 %v800, 0.63661975
      %v865 = vmul.f32 %v801, 0.63661975
      %v866 = vmul.f32 %v802, 0.63661975
      %v867 = vmul.f32 %v803, 0.63661975
      %v868 = vmul.f32 %v804, 0.63661975
      %v869 = vmul.f32 %v805, 0.63661975
      %v870 = vmul.f32 %v806, 0.63661975
      %v871 = vmul.f32 %v807, 0.63661975
      %v872 = vmul.f32 %v808, 0.63661975
      %v873 = vmul.f32 %v809, 0.63661975
      %v874 = vmul.f32 %v810, 0.63661975
      %v875 = vmul.f32 %v811, 0.63661975
      %v876 = vmul.f32 %v812, 0.63661975
      %v877 = vmul.f32 %v813, 0.63661975
      %v878 = vmul.f32 %v814, 0.63661975
      %v879 = vmul.f32 %v815, 0.63661975
      %v880 = vmul.f32 %v816, 0.63661975
      %v881 = vmul.f32 %v817, 0.63661975
      %v882 = vmul.f32 %v818, 0.63661975
      %v883 = vmul.f32 %v819, 0.63661975
      %v884 = vmul.f32 %v820, 0.63661975
      %v885 = vmul.f32 %v821, 0.63661975
      %v886 = vmul.f32 %v822, 0.63661975
      %v887 = vmul.f32 %v823, 0.63661975
      %v888 = vmul.f32 %v824, 0.63661975
      %v889 = vmul.f32 %v825, 0.63661975
      %v890 = vmul.f32 %v826, 0.63661975
      %v891 = vmul.f32 %v827, 0.63661975
      %v892 = vmul.f32 %v828, 0.63661975
      %v893 = vmul.f32 %v829, 0.63661975
      %v894 = vmul.f32 %v830, 0.63661975
      %v895 = vmul.f32 %v831, 0.63661975
      %v896 = vmul.f32 %v832, 0.63661975
      %v897 = vmul.f32 %v833, 0.63661975
      %v898 = vadd.f32 %v834, 0.5
      %v899 = vadd.f32 %v835, 0.5
      %v900 = vadd.f32 %v836, 0.5
      %v901 = vadd.f32 %v837, 0.5
      %v902 = vadd.f32 %v838, 0.5
      %v903 = vadd.f32 %v839, 0.5
      %v904 = vadd.f32 %v840, 0.5
      %v905 = vadd.f32 %v841, 0.5
      %v906 = vadd.f32 %v842, 0.5
      %v907 = vadd.f32 %v843, 0.5
      %v908 = vadd.f32 %v844, 0.5
      %v909 = vadd.f32 %v845, 0.5
      %v910 = vadd.f32 %v846, 0.5
      %v911 = vadd.f32 %v847, 0.5
      %v912 = vadd.f32 %v848, 0.5
      %v913 = vadd.f32 %v849, 0.5
      %v914 = vadd.f32 %v850, 0.5
      %v915 = vadd.f32 %v851, 0.5
      %v916 = vadd.f32 %v852, 0.5
      %v917 = vadd.f32 %v853, 0.5
      %v918 = vadd.f32 %v854, 0.5
      %v919 = vadd.f32 %v855, 0.5
      %v920 = vadd.f32 %v856, 0.5
      %v921 = vadd.f32 %v857, 0.5
      %v922 = vadd.f32 %v858, 0.5
      %v923 = vadd.f32 %v859, 0.5
      %v924 = vadd.f32 %v860, 0.5
      %v925 = vadd.f32 %v861, 0.5
      %v926 = vadd.f32 %v862, 0.5
      %v927 = vadd.f32 %v863, 0.5
      %v928 = vadd.f32 %v864, 0.5
      %v929 = vadd.f32 %v865, 0.5
      %v930 = vadd.f32 %v866, 0.5
      %v931 = vadd.f32 %v867, 0.5
      %v932 = vadd.f32 %v868, 0.5
      %v933 = vadd.f32 %v869, 0.5
      %v934 = vadd.f32 %v870, 0.5
      %v935 = vadd.f32 %v871, 0.5
      %v936 = vadd.f32 %v872, 0.5
      %v937 = vadd.f32 %v873, 0.5
      %v938 = vadd.f32 %v874, 0.5
      %v939 = vadd.f32 %v875, 0.5
      %v940 = vadd.f32 %v876, 0.5
      %v941 = vadd.f32 %v877, 0.5
      %v942 = vadd.f32 %v878, 0.5
      %v943 = vadd.f32 %v879, 0.5
      %v944 = vadd.f32 %v880, 0.5
      %v945 = vadd.f32 %v881, 0.5
      %v946 = vadd.f32 %v882, 0.5
      %v947 = vadd.f32 %v883, 0.5
      %v948 = vadd.f32 %v884, 0.5
      %v949 = vadd.f32 %v885, 0.5
      %v950 = vadd.f32 %v886, 0.5
      %v951 = vadd.f32 %v887, 0.5
      %v952 = vadd.f32 %v888, 0.5
      %v953 = vadd.f32 %v889, 0.5
      %v954 = vadd.f32 %v890, 0.5
      %v955 = vadd.f32 %v891, 0.5
      %v956 = vadd.f32 %v892, 0.5
      %v957 = vadd.f32 %v893, 0.5
      %v958 = vadd.f32 %v894, 0.5
      %v959 = vadd.f32 %v895, 0.5
      %v960 = vadd.f32 %v896, 0.5
      %v961 = vadd.f32 %v897, 0.5
      %v962 = vfloor.f32 %v898
      %v963 = vfloor.f32 %v899
      %v964 = vfloor.f32 %v900
      %v965 = vfloor.f32 %v901
      %v966 = vfloor.f32 %v902
      %v967 = vfloor.f32 %v903
      %v968 = vfloor.f32 %v904
      %v969 = vfloor.f32 %v905
      %v970 = vfloor.f32 %v906
      %v971 = vfloor.f32 %v907
      %v972 = vfloor.f32 %v908
      %v973 = vfloor.f32 %v909
      %v974 = vfloor.f32 %v910
      %v975 = vfloor.f32 %v911
      %v976 = vfloor.f32 %v912
      %v977 = vfloor.f32 %v913
      %v978 = vfloor.f32 %v914
      %v979 = vfloor.f32 %v915
      %v980 = vfloor.f32 %v916
      %v981 = vfloor.f32 %v917
      %v982 = vfloor.f32 %v918
      %v983 = vfloor.f32 %v919
      %v984 = vfloor.f32 %v920
      %v985 = vfloor.f32 %v921
      %v986 = vfloor.f32 %v922
      %v987 = vfloor.f32 %v923
      %v988 = vfloor.f32 %v924
      %v989 = vfloor.f32 %v925
      %v990 = vfloor.f32 %v926
      %v991 = vfloor.f32 %v927
      %v992 = vfloor.f32 %v928
      %v993 = vfloor.f32 %v929
      %v994 = vfloor.f32 %v930
      %v995 = vfloor.f32 %v931
      %v996 = vfloor.f32 %v932
      %v997 = vfloor.f32 %v933
      %v998 = vfloor.f32 %v934
      %v999 = vfloor.f32 %v935
      %v1000 = vfloor.f32 %v936
      %v1001 = vfloor.f32 %v937
      %v1002 = vfloor.f32 %v938
      %v1003 = vfloor.f32 %v939
      %v1004 = vfloor.f32 %v940
      %v1005 = vfloor.f32 %v941
      %v1006 = vfloor.f32 %v942
      %v1007 = vfloor.f32 %v943
      %v1008 = vfloor.f32 %v944
      %v1009 = vfloor.f32 %v945
      %v1010 = vfloor.f32 %v946
      %v1011 = vfloor.f32 %v947
      %v1012 = vfloor.f32 %v948
      %v1013 = vfloor.f32 %v949
      %v1014 = vfloor.f32 %v950
      %v1015 = vfloor.f32 %v951
      %v1016 = vfloor.f32 %v952
      %v1017 = vfloor.f32 %v953
      %v1018 = vfloor.f32 %v954
      %v1019 = vfloor.f32 %v955
      %v1020 = vfloor.f32 %v956
      %v1021 = vfloor.f32 %v957
      %v1022 = vfloor.f32 %v958
      %v1023 = vfloor.f32 %v959
      %v1024 = vfloor.f32 %v960
      %v1025 = vfloor.f32 %v961
      %v1026 = vmul.f32 %v962, 1.5703125
      %v1027 = vmul.f32 %v963, 1.5703125
      %v1028 = vmul.f32 %v964, 1.5703125
      %v1029 = vmul.f32 %v965, 1.5703125
      %v1030 = vmul.f32 %v966, 1.5703125
      %v1031 = vmul.f32 %v967, 1.5703125
      %v1032 = vmul.f32 %v968, 1.5703125
      %v1033 = vmul.f32 %v969, 1.5703125
      %v1034 = vmul.f32 %v970, 1.5703125
      %v1035 = vmul.f32 %v971, 1.5703125
      %v1036 = vmul.f32 %v972, 1.5703125
      %v1037 = vmul.f32 %v973, 1.5703125
      %v1038 = vmul.f32 %v974, 1.5703125
      %v1039 = vmul.f32 %v975, 1.5703125
      %v1040 = vmul.f32 %v976, 1.5703125
      %v1041 = vmul.f32 %v977, 1.5703125
      %v1042 = vmul.f32 %v978, 1.5703125
      %v1043 = vmul.f32 %v979, 1.5703125
      %v1044 = vmul.f32 %v980, 1.5703125
      %v1045 = vmul.f32 %v981, 1.5703125
      %v1046 = vmul.f32 %v982, 1.5703125
      %v1047 = vmul.f32 %v983, 1.5703125
      %v1048 = vmul.f32 %v984, 1.5703125
      %v1049 = vmul.f32 %v985, 1.5703125
      %v1050 = vmul.f32 %v986, 1.5703125
      %v1051 = vmul.f32 %v987, 1.5703125
      %v1052 = vmul.f32 %v988, 1.5703125
      %v1053 = vmul.f32 %v989, 1.5703125
      %v1054 = vmul.f32 %v990, 1.5703125
      %v1055 = vmul.f32 %v991, 1.5703125
      %v1056 = vmul.f32 %v992, 1.5703125
      %v1057 = vmul.f32 %v993, 1.5703125
      %v1058 = vmul.f32 %v994, 1.5703125
      %v1059 = vmul.f32 %v995, 1.5703125
      %v1060 = vmul.f32 %v996, 1.5703125
      %v1061 = vmul.f32 %v997, 1.5703125
      %v1062 = vmul.f32 %v998, 1.5703125
      %v1063 = vmul.f32 %v999, 1.5703125
      %v1064 = vmul.f32 %v1000, 1.5703125
      %v1065 = vmul.f32 %v1001, 1.5703125
      %v1066 = vmul.f32 %v1002, 1.5703125
      %v1067 = vmul.f32 %v1003, 1.5703125
      %v1068 = vmul.f32 %v1004, 1.5703125
      %v1069 = vmul.f32 %v1005, 1.5703125
      %v1070 = vmul.f32 %v1006, 1.5703125
      %v1071 = vmul.f32 %v1007, 1.5703125
      %v1072 = vmul.f32 %v1008, 1.5703125
      %v1073 = vmul.f32 %v1009, 1.5703125
      %v1074 = vmul.f32 %v1010, 1.5703125
      %v1075 = vmul.f32 %v1011, 1.5703125
      %v1076 = vmul.f32 %v1012, 1.5703125
      %v1077 = vmul.f32 %v1013, 1.5703125
      %v1078 = vmul.f32 %v1014, 1.5703125
      %v1079 = vmul.f32 %v1015, 1.5703125
      %v1080 = vmul.f32 %v1016, 1.5703125
      %v1081 = vmul.f32 %v1017, 1.5703125
      %v1082 = vmul.f32 %v1018, 1.5703125
      %v1083 = vmul.f32 %v1019, 1.5703125
      %v1084 = vmul.f32 %v1020, 1.5703125
      %v1085 = vmul.f32 %v1021, 1.5703125
      %v1086 = vmul.f32 %v1022, 1.5703125
      %v1087 = vmul.f32 %v1023, 1.5703125
      %v1088 = vmul.f32 %v1024, 1.5703125
      %v1089 = vmul.f32 %v1025, 1.5703125
      %v1090 = vsub.f32 %v770, %v1026
      %v1091 = vsub.f32 %v771, %v1027
      %v1092 = vsub.f32 %v772, %v1028
      %v1093 = vsub.f32 %v773, %v1029
      %v1094 = vsub.f32 %v774, %v1030
      %v1095 = vsub.f32 %v775, %v1031
      %v1096 = vsub.f32 %v776, %v1032
      %v1097 = vsub.f32 %v777, %v1033
      %v1098 = vsub.f32 %v778, %v1034
      %v1099 = vsub.f32 %v779, %v1035
      %v1100 = vsub.f32 %v780, %v1036
      %v1101 = vsub.f32 %v781, %v1037
      %v1102 = vsub.f32 %v782, %v1038
      %v1103 = vsub.f32 %v783, %v1039
      %v1104 = vsub.f32 %v784, %v1040
      %v1105 = vsub.f32 %v785, %v1041
      %v1106 = vsub.f32 %v786, %v1042
      %v1107 = vsub.f32 %v787, %v1043
      %v1108 = vsub.f32 %v788, %v1044
      %v1109 = vsub.f32 %v789, %v1045
      %v1110 = vsub.f32 %v790, %v1046
      %v1111 = vsub.f32 %v791, %v1047
      %v1112 = vsub.f32 %v792, %v1048
      %v1113 = vsub.f32 %v793, %v1049
      %v1114 = vsub.f32 %v794, %v1050
      %v1115 = vsub.f32 %v795, %v1051
      %v1116 = vsub.f32 %v796, %v1052
      %v1117 = vsub.f32 %v797, %v1053
      %v1118 = vsub.f32 %v798, %v1054
      %v1119 = vsub.f32 %v799, %v1055
      %v1120 = vsub.f32 %v800, %v1056
      %v1121 = vsub.f32 %v801, %v1057
      %v1122 = vsub.f32 %v802, %v1058
      %v1123 = vsub.f32 %v803, %v1059
      %v1124 = vsub.f32 %v804, %v1060
      %v1125 = vsub.f32 %v805, %v1061
      %v1126 = vsub.f32 %v806, %v1062
      %v1127 = vsub.f32 %v807, %v1063
      %v1128 = vsub.f32 %v808, %v1064
      %v1129 = vsub.f32 %v809, %v1065
      %v1130 = vsub.f32 %v810, %v1066
      %v1131 = vsub.f32 %v811, %v1067
      %v1132 = vsub.f32 %v812, %v1068
      %v1133 = vsub.f32 %v813, %v1069
      %v1134 = vsub.f32 %v814, %v1070
      %v1135 = vsub.f32 %v815, %v1071
      %v1136 = vsub.f32 %v816, %v1072
      %v1137 = vsub.f32 %v817, %v1073
      %v1138 = vsub.f32 %v818, %v1074
      %v1139 = vsub.f32 %v819, %v1075
      %v1140 = vsub.f32 %v820, %v1076
      %v1141 = vsub.f32 %v821, %v1077
      %v1142 = vsub.f32 %v822, %v1078
      %v1143 = vsub.f32 %v823, %v1079
      %v1144 = vsub.f32 %v824, %v1080
      %v1145 = vsub.f32 %v825, %v1081
      %v1146 = vsub.f32 %v826, %v1082
      %v1147 = vsub.f32 %v827, %v1083
      %v1148 = vsub.f32 %v828, %v1084
      %v1149 = vsub.f32 %v829, %v1085
      %v1150 = vsub.f32 %v830, %v1086
      %v1151 = vsub.f32 %v831, %v1087
      %v1152 = vsub.f32 %v832, %v1088
      %v1153 = vsub.f32 %v833, %v1089
      %v1154 = vmul.f32 %v962, 0.0004838268
      %v1155 = vmul.f32 %v963, 0.0004838268
      %v1156 = vmul.f32 %v964, 0.0004838268
      %v1157 = vmul.f32 %v965, 0.0004838268
      %v1158 = vmul.f32 %v966, 0.0004838268
      %v1159 = vmul.f32 %v967, 0.0004838268
      %v1160 = vmul.f32 %v968, 0.0004838268
      %v1161 = vmul.f32 %v969, 0.0004838268
      %v1162 = vmul.f32 %v970, 0.0004838268
      %v1163 = vmul.f32 %v971, 0.0004838268
      %v1164 = vmul.f32 %v972, 0.0004838268
      %v1165 = vmul.f32 %v973, 0.0004838268
      %v1166 = vmul.f32 %v974, 0.0004838268
      %v1167 = vmul.f32 %v975, 0.0004838268
      %v1168 = vmul.f32 %v976, 0.0004838268
      %v1169 = vmul.f32 %v977, 0.0004838268
      %v1170 = vmul.f32 %v978, 0.0004838268
      %v1171 = vmul.f32 %v979, 0.0004838268
      %v1172 = vmul.f32 %v980, 0.0004838268
      %v1173 = vmul.f32 %v981, 0.0004838268
      %v1174 = vmul.f32 %v982, 0.0004838268
      %v1175 = vmul.f32 %v983, 0.0004838268
      %v1176 = vmul.f32 %v984, 0.0004838268
      %v1177 = vmul.f32 %v985, 0.0004838268
      %v1178 = vmul.f32 %v986, 0.0004838268
      %v1179 = vmul.f32 %v987, 0.0004838268
      %v1180 = vmul.f32 %v988, 0.0004838268
      %v1181 = vmul.f32 %v989, 0.0004838268
      %v1182 = vmul.f32 %v990, 0.0004838268
      %v1183 = vmul.f32 %v991, 0.0004838268
      %v1184 = vmul.f32 %v992, 0.0004838268
      %v1185 = vmul.f32 %v993, 0.0004838268
      %v1186 = vmul.f32 %v994, 0.0004838268
      %v1187 = vmul.f32 %v995, 0.0004838268
      %v1188 = vmul.f32 %v996, 0.0004838268
      %v1189 = vmul.f32 %v997, 0.0004838268
      %v1190 = vmul.f32 %v998, 0.0004838268
      %v1191 = vmul.f32 %v999, 0.0004838268
      %v1192 = vmul.f32 %v1000, 0.0004838268
      %v1193 = vmul.f32 %v1001, 0.0004838268
      %v1194 = vmul.f32 %v1002, 0.0004838268
      %v1195 = vmul.f32 %v1003, 0.0004838268
      %v1196 = vmul.f32 %v1004, 0.0004838268
      %v1197 = vmul.f32 %v1005, 0.0004838268
      %v1198 = vmul.f32 %v1006, 0.0004838268
      %v1199 = vmul.f32 %v1007, 0.0004838268
      %v1200 = vmul.f32 %v1008, 0.0004838268
      %v1201 = vmul.f32 %v1009, 0.0004838268
      %v1202 = vmul.f32 %v1010, 0.0004838268
      %v1203 = vmul.f32 %v1011, 0.0004838268
      %v1204 = vmul.f32 %v1012, 0.0004838268
      %v1205 = vmul.f32 %v1013, 0.0004838268
      %v1206 = vmul.f32 %v1014, 0.0004838268
      %v1207 = vmul.f32 %v1015, 0.0004838268
      %v1208 = vmul.f32 %v1016, 0.0004838268
      %v1209 = vmul.f32 %v1017, 0.0004838268
      %v1210 = vmul.f32 %v1018, 0.0004838268
      %v1211 = vmul.f32 %v1019, 0.0004838268
      %v1212 = vmul.f32 %v1020, 0.0004838268
      %v1213 = vmul.f32 %v1021, 0.0004838268
      %v1214 = vmul.f32 %v1022, 0.0004838268
      %v1215 = vmul.f32 %v1023, 0.0004838268
      %v1216 = vmul.f32 %v1024, 0.0004838268
      %v1217 = vmul.f32 %v1025, 0.0004838268
      %v1218 = vsub.f32 %v1090, %v1154
      %v1219 = vsub.f32 %v1091, %v1155
      %v1220 = vsub.f32 %v1092, %v1156
      %v1221 = vsub.f32 %v1093, %v1157
      %v1222 = vsub.f32 %v1094, %v1158
      %v1223 = vsub.f32 %v1095, %v1159
      %v1224 = vsub.f32 %v1096, %v1160
      %v1225 = vsub.f32 %v1097, %v1161
      %v1226 = vsub.f32 %v1098, %v1162
      %v1227 = vsub.f32 %v1099, %v1163
      %v1228 = vsub.f32 %v1100, %v1164
      %v1229 = vsub.f32 %v1101, %v1165
      %v1230 = vsub.f32 %v1102, %v1166
      %v1231 = vsub.f32 %v1103, %v1167
      %v1232 = vsub.f32 %v1104, %v1168
      %v1233 = vsub.f32 %v1105, %v1169
      %v1234 = vsub.f32 %v1106, %v1170
      %v1235 = vsub.f32 %v1107, %v1171
      %v1236 = vsub.f32 %v1108, %v1172
      %v1237 = vsub.f32 %v1109, %v1173
      %v1238 = vsub.f32 %v1110, %v1174
      %v1239 = vsub.f32 %v1111, %v1175
      %v1240 = vsub.f32 %v1112, %v1176
      %v1241 = vsub.f32 %v1113, %v1177
      %v1242 = vsub.f32 %v1114, %v1178
      %v1243 = vsub.f32 %v1115, %v1179
      %v1244 = vsub.f32 %v1116, %v1180
      %v1245 = vsub.f32 %v1117, %v1181
      %v1246 = vsub.f32 %v1118, %v1182
      %v1247 = vsub.f32 %v1119, %v1183
      %v1248 = vsub.f32 %v1120, %v1184
      %v1249 = vsub.f32 %v1121, %v1185
      %v1250 = vsub.f32 %v1122, %v1186
      %v1251 = vsub.f32 %v1123, %v1187
      %v1252 = vsub.f32 %v1124, %v1188
      %v1253 = vsub.f32 %v1125, %v1189
      %v1254 = vsub.f32 %v1126, %v1190
      %v1255 = vsub.f32 %v1127, %v1191
      %v1256 = vsub.f32 %v1128, %v1192
      %v1257 = vsub.f32 %v1129, %v1193
      %v1258 = vsub.f32 %v1130, %v1194
      %v1259 = vsub.f32 %v1131, %v1195
      %v1260 = vsub.f32 %v1132, %v1196
      %v1261 = vsub.f32 %v1133, %v1197
      %v1262 = vsub.f32 %v1134, %v1198
      %v1263 = vsub.f32 %v1135, %v1199
      %v1264 = vsub.f32 %v1136, %v1200
      %v1265 = vsub.f32 %v1137, %v1201
      %v1266 = vsub.f32 %v1138, %v1202
      %v1267 = vsub.f32 %v1139, %v1203
      %v1268 = vsub.f32 %v1140, %v1204
      %v1269 = vsub.f32 %v1141, %v1205
      %v1270 = vsub.f32 %v1142, %v1206
      %v1271 = vsub.f32 %v1143, %v1207
      %v1272 = vsub.f32 %v1144, %v1208
      %v1273 = vsub.f32 %v1145, %v1209
      %v1274 = vsub.f32 %v1146, %v1210
      %v1275 = vsub.f32 %v1147, %v1211
      %v1276 = vsub.f32 %v1148, %v1212
      %v1277 = vsub.f32 %v1149, %v1213
      %v1278 = vsub.f32 %v1150, %v1214
      %v1279 = vsub.f32 %v1151, %v1215
      %v1280 = vsub.f32 %v1152, %v1216
      %v1281 = vsub.f32 %v1153, %v1217
      %v1282 = vmul.f32 %v962, 2.563283e-12
      %v1283 = vmul.f32 %v963, 2.563283e-12
      %v1284 = vmul.f32 %v964, 2.563283e-12
      %v1285 = vmul.f32 %v965, 2.563283e-12
      %v1286 = vmul.f32 %v966, 2.563283e-12
      %v1287 = vmul.f32 %v967, 2.563283e-12
      %v1288 = vmul.f32 %v968, 2.563283e-12
      %v1289 = vmul.f32 %v969, 2.563283e-12
      %v1290 = vmul.f32 %v970, 2.563283e-12
      %v1291 = vmul.f32 %v971, 2.563283e-12
      %v1292 = vmul.f32 %v972, 2.563283e-12
      %v1293 = vmul.f32 %v973, 2.563283e-12
      %v1294 = vmul.f32 %v974, 2.563283e-12
      %v1295 = vmul.f32 %v975, 2.563283e-12
      %v1296 = vmul.f32 %v976, 2.563283e-12
      %v1297 = vmul.f32 %v977, 2.563283e-12
      %v1298 = vmul.f32 %v978, 2.563283e-12
      %v1299 = vmul.f32 %v979, 2.563283e-12
      %v1300 = vmul.f32 %v980, 2.563283e-12
      %v1301 = vmul.f32 %v981, 2.563283e-12
      %v1302 = vmul.f32 %v982, 2.563283e-12
      %v1303 = vmul.f32 %v983, 2.563283e-12
      %v1304 = vmul.f32 %v984, 2.563283e-12
      %v1305 = vmul.f32 %v985, 2.563283e-12
      %v1306 = vmul.f32 %v986, 2.563283e-12
      %v1307 = vmul.f32 %v987, 2.563283e-12
      %v1308 = vmul.f32 %v988, 2.563283e-12
      %v1309 = vmul.f32 %v989, 2.563283e-12
      %v1310 = vmul.f32 %v990, 2.563283e-12
      %v1311 = vmul.f32 %v991, 2.563283e-12
      %v1312 = vmul.f32 %v992, 2.563283e-12
      %v1313 = vmul.f32 %v993, 2.563283e-12
      %v1314 = vmul.f32 %v994, 2.563283e-12
      %v1315 = vmul.f32 %v995, 2.563283e-12
      %v1316 = vmul.f32 %v996, 2.563283e-12
      %v1317 = vmul.f32 %v997, 2.563283e-12
      %v1318 = vmul.f32 %v998, 2.563283e-12
      %v1319 = vmul.f32 %v999, 2.563283e-12
      %v1320 = vmul.f32 %v1000, 2.563283e-12
      %v1321 = vmul.f32 %v1001, 2.563283e-12
      %v1322 = vmul.f32 %v1002, 2.563283e-12
      %v1323 = vmul.f32 %v1003, 2.563283e-12
      %v1324 = vmul.f32 %v1004, 2.563283e-12
      %v1325 = vmul.f32 %v1005, 2.563283e-12
      %v1326 = vmul.f32 %v1006, 2.563283e-12
      %v1327 = vmul.f32 %v1007, 2.563283e-12
      %v1328 = vmul.f32 %v1008, 2.563283e-12
      %v1329 = vmul.f32 %v1009, 2.563283e-12
      %v1330 = vmul.f32 %v1010, 2.563283e-12
      %v1331 = vmul.f32 %v1011, 2.563283e-12
      %v1332 = vmul.f32 %v1012, 2.563283e-12
      %v1333 = vmul.f32 %v1013, 2.563283e-12
      %v1334 = vmul.f32 %v1014, 2.563283e-12
      %v1335 = vmul.f32 %v1015, 2.563283e-12
      %v1336 = vmul.f32 %v1016, 2.563283e-12
      %v1337 = vmul.f32 %v1017, 2.563283e-12
      %v1338 = vmul.f32 %v1018, 2.563283e-12
      %v1339 = vmul.f32 %v1019, 2.563283e-12
      %v1340 = vmul.f32 %v1020, 2.563283e-12
      %v1341 = vmul.f32 %v1021, 2.563283e-12
      %v1342 = vmul.f32 %v1022, 2.563283e-12
      %v1343 = vmul.f32 %v1023, 2.563283e-12
      %v1344 = vmul.f32 %v1024, 2.563283e-12
      %v1345 = vmul.f32 %v1025, 2.563283e-12
      %v1346 = vsub.f32 %v1218, %v1282
      %v1347 = vsub.f32 %v1219, %v1283
      %v1348 = vsub.f32 %v1220, %v1284
      %v1349 = vsub.f32 %v1221, %v1285
      %v1350 = vsub.f32 %v1222, %v1286
      %v1351 = vsub.f32 %v1223, %v1287
      %v1352 = vsub.f32 %v1224, %v1288
      %v1353 = vsub.f32 %v1225, %v1289
      %v1354 = vsub.f32 %v1226, %v1290
      %v1355 = vsub.f32 %v1227, %v1291
      %v1356 = vsub.f32 %v1228, %v1292
      %v1357 = vsub.f32 %v1229, %v1293
      %v1358 = vsub.f32 %v1230, %v1294
      %v1359 = vsub.f32 %v1231, %v1295
      %v1360 = vsub.f32 %v1232, %v1296
      %v1361 = vsub.f32 %v1233, %v1297
      %v1362 = vsub.f32 %v1234, %v1298
      %v1363 = vsub.f32 %v1235, %v1299
      %v1364 = vsub.f32 %v1236, %v1300
      %v1365 = vsub.f32 %v1237, %v1301
      %v1366 = vsub.f32 %v1238, %v1302
      %v1367 = vsub.f32 %v1239, %v1303
      %v1368 = vsub.f32 %v1240, %v1304
      %v1369 = vsub.f32 %v1241, %v1305
      %v1370 = vsub.f32 %v1242, %v1306
      %v1371 = vsub.f32 %v1243, %v1307
      %v1372 = vsub.f32 %v1244, %v1308
      %v1373 = vsub.f32 %v1245, %v1309
      %v1374 = vsub.f32 %v1246, %v1310
      %v1375 = vsub.f32 %v1247, %v1311
      %v1376 = vsub.f32 %v1248, %v1312
      %v1377 = vsub.f32 %v1249, %v1313
      %v1378 = vsub.f32 %v1250, %v1314
      %v1379 = vsub.f32 %v1251, %v1315
      %v1380 = vsub.f32 %v1252, %v1316
      %v1381 = vsub.f32 %v1253, %v1317
      %v1382 = vsub.f32 %v1254, %v1318
      %v1383 = vsub.f32 %v1255, %v1319
      %v1384 = vsub.f32 %v1256, %v1320
      %v1385 = vsub.f32 %v1257, %v1321
      %v1386 = vsub.f32 %v1258, %v1322
      %v1387 = vsub.f32 %v1259, %v1323
      %v1388 = vsub.f32 %v1260, %v1324
      %v1389 = vsub.f32 %v1261, %v1325
      %v1390 = vsub.f32 %v1262, %v1326
      %v1391 = vsub.f32 %v1263, %v1327
      %v1392 = vsub.f32 %v1264, %v1328
      %v1393 = vsub.f32 %v1265, %v1329
      %v1394 = vsub.f32 %v1266, %v1330
      %v1395 = vsub.f32 %v1267, %v1331
      %v1396 = vsub.f32 %v1268, %v1332
      %v1397 = vsub.f32 %v1269, %v1333
      %v1398 = vsub.f32 %v1270, %v1334
      %v1399 = vsub.f32 %v1271, %v1335
      %v1400 = vsub.f32 %v1272, %v1336
      %v1401 = vsub.f32 %v1273, %v1337
      %v1402 = vsub.f32 %v1274, %v1338
      %v1403 = vsub.f32 %v1275, %v1339
      %v1404 = vsub.f32 %v1276, %v1340
      %v1405 = vsub.f32 %v1277, %v1341
      %v1406 = vsub.f32 %v1278, %v1342
      %v1407 = vsub.f32 %v1279, %v1343
      %v1408 = vsub.f32 %v1280, %v1344
      %v1409 = vsub.f32 %v1281, %v1345
      %v1410 = vmul.f32 %v1346, %v1346
      %v1411 = vmul.f32 %v1347, %v1347
      %v1412 = vmul.f32 %v1348, %v1348
      %v1413 = vmul.f32 %v1349, %v1349
      %v1414 = vmul.f32 %v1350, %v1350
      %v1415 = vmul.f32 %v1351, %v1351
      %v1416 = vmul.f32 %v1352, %v1352
      %v1417 = vmul.f32 %v1353, %v1353
      %v1418 = vmul.f32 %v1354, %v1354
      %v1419 = vmul.f32 %v1355, %v1355
      %v1420 = vmul.f32 %v1356, %v1356
      %v1421 = vmul.f32 %v1357, %v1357
      %v1422 = vmul.f32 %v1358, %v1358
      %v1423 = vmul.f32 %v1359, %v1359
      %v1424 = vmul.f32 %v1360, %v1360
      %v1425 = vmul.f32 %v1361, %v1361
      %v1426 = vmul.f32 %v1362, %v1362
      %v1427 = vmul.f32 %v1363, %v1363
      %v1428 = vmul.f32 %v1364, %v1364
      %v1429 = vmul.f32 %v1365, %v1365
      %v1430 = vmul.f32 %v1366, %v1366
      %v1431 = vmul.f32 %v1367, %v1367
      %v1432 = vmul.f32 %v1368, %v1368
      %v1433 = vmul.f32 %v1369, %v1369
      %v1434 = vmul.f32 %v1370, %v1370
      %v1435 = vmul.f32 %v1371, %v1371
      %v1436 = vmul.f32 %v1372, %v1372
      %v1437 = vmul.f32 %v1373, %v1373
      %v1438 = vmul.f32 %v1374, %v1374
      %v1439 = vmul.f32 %v1375, %v1375
      %v1440 = vmul.f32 %v1376, %v1376
      %v1441 = vmul.f32 %v1377, %v1377
      %v1442 = vmul.f32 %v1378, %v1378
      %v1443 = vmul.f32 %v1379, %v1379
      %v1444 = vmul.f32 %v1380, %v1380
      %v1445 = vmul.f32 %v1381, %v1381
      %v1446 = vmul.f32 %v1382, %v1382
      %v1447 = vmul.f32 %v1383, %v1383
      %v1448 = vmul.f32 %v1384, %v1384
      %v1449 = vmul.f32 %v1385, %v1385
      %v1450 = vmul.f32 %v1386, %v1386
      %v1451 = vmul.f32 %v1387, %v1387
      %v1452 = vmul.f32 %v1388, %v1388
      %v1453 = vmul.f32 %v1389, %v1389
      %v1454 = vmul.f32 %v1390, %v1390
      %v1455 = vmul.f32 %v1391, %v1391
      %v1456 = vmul.f32 %v1392, %v1392
      %v1457 = vmul.f32 %v1393, %v1393
      %v1458 = vmul.f32 %v1394, %v1394
      %v1459 = vmul.f32 %v1395, %v1395
      %v1460 = vmul.f32 %v1396, %v1396
      %v1461 = vmul.f32 %v1397, %v1397
      %v1462 = vmul.f32 %v1398, %v1398
      %v1463 = vmul.f32 %v1399, %v1399
      %v1464 = vmul.f32 %v1400, %v1400
      %v1465 = vmul.f32 %v1401, %v1401
      %v1466 = vmul.f32 %v1402, %v1402
      %v1467 = vmul.f32 %v1403, %v1403
      %v1468 = vmul.f32 %v1404, %v1404
      %v1469 = vmul.f32 %v1405, %v1405
      %v1470 = vmul.f32 %v1406, %v1406
      %v1471 = vmul.f32 %v1407, %v1407
      %v1472 = vmul.f32 %v1408, %v1408
      %v1473 = vmul.f32 %v1409, %v1409
      %v1474 = vmul.f32 %v1346, %v1410
      %v1475 = vmul.f32 %v1347, %v1411
      %v1476 = vmul.f32 %v1348, %v1412
      %v1477 = vmul.f32 %v1349, %v1413
      %v1478 = vmul.f32 %v1350, %v1414
      %v1479 = vmul.f32 %v1351, %v1415
      %v1480 = vmul.f32 %v1352, %v1416
      %v1481 = vmul.f32 %v1353, %v1417
      %v1482 = vmul.f32 %v1354, %v1418
      %v1483 = vmul.f32 %v1355, %v1419
      %v1484 = vmul.f32 %v1356, %v1420
      %v1485 = vmul.f32 %v1357, %v1421
      %v1486 = vmul.f32 %v1358, %v1422
      %v1487 = vmul.f32 %v1359, %v1423
      %v1488 = vmul.f32 %v1360, %v1424
      %v1489 = vmul.f32 %v1361, %v1425
      %v1490 = vmul.f32 %v1362, %v1426
      %v1491 = vmul.f32 %v1363, %v1427
      %v1492 = vmul.f32 %v1364, %v1428
      %v1493 = vmul.f32 %v1365, %v1429
      %v1494 = vmul.f32 %v1366, %v1430
      %v1495 = vmul.f32 %v1367, %v1431
      %v1496 = vmul.f32 %v1368, %v1432
      %v1497 = vmul.f32 %v1369, %v1433
      %v1498 = vmul.f32 %v1370, %v1434
      %v1499 = vmul.f32 %v1371, %v1435
      %v1500 = vmul.f32 %v1372, %v1436
      %v1501 = vmul.f32 %v1373, %v1437
      %v1502 = vmul.f32 %v1374, %v1438
      %v1503 = vmul.f32 %v1375, %v1439
      %v1504 = vmul.f32 %v1376, %v1440
      %v1505 = vmul.f32 %v1377, %v1441
      %v1506 = vmul.f32 %v1378, %v1442
      %v1507 = vmul.f32 %v1379, %v1443
      %v1508 = vmul.f32 %v1380, %v1444
      %v1509 = vmul.f32 %v1381, %v1445
      %v1510 = vmul.f32 %v1382, %v1446
      %v1511 = vmul.f32 %v1383, %v1447
      %v1512 = vmul.f32 %v1384, %v1448
      %v1513 = vmul.f32 %v1385, %v1449
      %v1514 = vmul.f32 %v1386, %v1450
      %v1515 = vmul.f32 %v1387, %v1451
      %v1516 = vmul.f32 %v1388, %v1452
      %v1517 = vmul.f32 %v1389, %v1453
      %v1518 = vmul.f32 %v1390, %v1454
      %v1519 = vmul.f32 %v1391, %v1455
      %v1520 = vmul.f32 %v1392, %v1456
      %v1521 = vmul.f32 %v1393, %v1457
      %v1522 = vmul.f32 %v1394, %v1458
      %v1523 = vmul.f32 %v1395, %v1459
      %v1524 = vmul.f32 %v1396, %v1460
      %v1525 = vmul.f32 %v1397, %v1461
      %v1526 = vmul.f32 %v1398, %v1462
      %v1527 = vmul.f32 %v1399, %v1463
      %v1528 = vmul.f32 %v1400, %v1464
      %v1529 = vmul.f32 %v1401, %v1465
      %v1530 = vmul.f32 %v1402, %v1466
      %v1531 = vmul.f32 %v1403, %v1467
      %v1532 = vmul.f32 %v1404, %v1468
      %v1533 = vmul.f32 %v1405, %v1469
      %v1534 = vmul.f32 %v1406, %v1470
      %v1535 = vmul.f32 %v1407, %v1471
      %v1536 = vmul.f32 %v1408, %v1472
      %v1537 = vmul.f32 %v1409, %v1473
      %v1538 = vmul.f32 %v1410, -0.00019515296
      %v1539 = vmul.f32 %v1411, -0.00019515296
      %v1540 = vmul.f32 %v1412, -0.00019515296
      %v1541 = vmul.f32 %v1413, -0.00019515296
      %v1542 = vmul.f32 %v1414, -0.00019515296
      %v1543 = vmul.f32 %v1415, -0.00019515296
      %v1544 = vmul.f32 %v1416, -0.00019515296
      %v1545 = vmul.f32 %v1417, -0.00019515296
      %v1546 = vmul.f32 %v1418, -0.00019515296
      %v1547 = vmul.f32 %v1419, -0.00019515296
      %v1548 = vmul.f32 %v1420, -0.00019515296
      %v1549 = vmul.f32 %v1421, -0.00019515296
      %v1550 = vmul.f32 %v1422, -0.00019515296
      %v1551 = vmul.f32 %v1423, -0.00019515296
      %v1552 = vmul.f32 %v1424, -0.00019515296
      %v1553 = vmul.f32 %v1425, -0.00019515296
      %v1554 = vmul.f32 %v1426, -0.00019515296
      %v1555 = vmul.f32 %v1427, -0.00019515296
      %v1556 = vmul.f32 %v1428, -0.00019515296
      %v1557 = vmul.f32 %v1429, -0.00019515296
      %v1558 = vmul.f32 %v1430, -0.00019515296
      %v1559 = vmul.f32 %v1431, -0.00019515296
      %v1560 = vmul.f32 %v1432, -0.00019515296
      %v1561 = vmul.f32 %v1433, -0.00019515296
      %v1562 = vmul.f32 %v1434, -0.00019515296
      %v1563 = vmul.f32 %v1435, -0.00019515296
      %v1564 = vmul.f32 %v1436, -0.00019515296
      %v1565 = vmul.f32 %v1437, -0.00019515296
      %v1566 = vmul.f32 %v1438, -0.00019515296
      %v1567 = vmul.f32 %v1439, -0.00019515296
      %v1568 = vmul.f32 %v1440, -0.00019515296
      %v1569 = vmul.f32 %v1441, -0.00019515296
      %v1570 = vmul.f32 %v1442, -0.00019515296
      %v1571 = vmul.f32 %v1443, -0.00019515296
      %v1572 = vmul.f32 %v1444, -0.00019515296
      %v1573 = vmul.f32 %v1445, -0.00019515296
      %v1574 = vmul.f32 %v1446, -0.00019515296
      %v1575 = vmul.f32 %v1447, -0.00019515296
      %v1576 = vmul.f32 %v1448, -0.00019515296
      %v1577 = vmul.f32 %v1449, -0.00019515296
      %v1578 = vmul.f32 %v1450, -0.00019515296
      %v1579 = vmul.f32 %v1451, -0.00019515296
      %v1580 = vmul.f32 %v1452, -0.00019515296
      %v1581 = vmul.f32 %v1453, -0.00019515296
      %v1582 = vmul.f32 %v1454, -0.00019515296
      %v1583 = vmul.f32 %v1455, -0.00019515296
      %v1584 = vmul.f32 %v1456, -0.00019515296
      %v1585 = vmul.f32 %v1457, -0.00019515296
      %v1586 = vmul.f32 %v1458, -0.00019515296
      %v1587 = vmul.f32 %v1459, -0.00019515296
      %v1588 = vmul.f32 %v1460, -0.00019515296
      %v1589 = vmul.f32 %v1461, -0.00019515296
      %v1590 = vmul.f32 %v1462, -0.00019515296
      %v1591 = vmul.f32 %v1463, -0.00019515296
      %v1592 = vmul.f32 %v1464, -0.00019515296
      %v1593 = vmul.f32 %v1465, -0.00019515296
      %v1594 = vmul.f32 %v1466, -0.00019515296
      %v1595 = vmul.f32 %v1467, -0.00019515296
      %v1596 = vmul.f32 %v1468, -0.00019515296
      %v1597 = vmul.f32 %v1469, -0.00019515296
      %v1598 = vmul.f32 %v1470, -0.00019515296
      %v1599 = vmul.f32 %v1471, -0.00019515296
      %v1600 = vmul.f32 %v1472, -0.00019515296
      %v1601 = vmul.f32 %v1473, -0.00019515296
      %v1602 = vadd.f32 %v1538, 0.008332161
      %v1603 = vadd.f32 %v1539, 0.008332161
      %v1604 = vadd.f32 %v1540, 0.008332161
      %v1605 = vadd.f32 %v1541, 0.008332161
      %v1606 = vadd.f32 %v1542, 0.008332161
      %v1607 = vadd.f32 %v1543, 0.008332161
      %v1608 = vadd.f32 %v1544, 0.008332161
      %v1609 = vadd.f32 %v1545, 0.008332161
      %v1610 = vadd.f32 %v1546, 0.008332161
      %v1611 = vadd.f32 %v1547, 0.008332161
      %v1612 = vadd.f32 %v1548, 0.008332161
      %v1613 = vadd.f32 %v1549, 0.008332161
      %v1614 = vadd.f32 %v1550, 0.008332161
      %v1615 = vadd.f32 %v1551, 0.008332161
      %v1616 = vadd.f32 %v1552, 0.008332161
      %v1617 = vadd.f32 %v1553, 0.008332161
      %v1618 = vadd.f32 %v1554, 0.008332161
      %v1619 = vadd.f32 %v1555, 0.008332161
      %v1620 = vadd.f32 %v1556, 0.008332161
      %v1621 = vadd.f32 %v1557, 0.008332161
      %v1622 = vadd.f32 %v1558, 0.008332161
      %v1623 = vadd.f32 %v1559, 0.008332161
      %v1624 = vadd.f32 %v1560, 0.008332161
      %v1625 = vadd.f32 %v1561, 0.008332161
      %v1626 = vadd.f32 %v1562, 0.008332161
      %v1627 = vadd.f32 %v1563, 0.008332161
      %v1628 = vadd.f32 %v1564, 0.008332161
      %v1629 = vadd.f32 %v1565, 0.008332161
      %v1630 = vadd.f32 %v1566, 0.008332161
      %v1631 = vadd.f32 %v1567, 0.008332161
      %v1632 = vadd.f32 %v1568, 0.008332161
      %v1633 = vadd.f32 %v1569, 0.008332161
      %v1634 = vadd.f32 %v1570, 0.008332161
      %v1635 = vadd.f32 %v1571, 0.008332161
      %v1636 = vadd.f32 %v1572, 0.008332161
      %v1637 = vadd.f32 %v1573, 0.008332161
      %v1638 = vadd.f32 %v1574, 0.008332161
      %v1639 = vadd.f32 %v1575, 0.008332161
      %v1640 = vadd.f32 %v1576, 0.008332161
      %v1641 = vadd.f32 %v1577, 0.008332161
      %v1642 = vadd.f32 %v1578, 0.008332161
      %v1643 = vadd.f32 %v1579, 0.008332161
      %v1644 = vadd.f32 %v1580, 0.008332161
      %v1645 = vadd.f32 %v1581, 0.008332161
      %v1646 = vadd.f32 %v1582, 0.008332161
      %v1647 = vadd.f32 %v1583, 0.008332161
      %v1648 = vadd.f32 %v1584, 0.008332161
      %v1649 = vadd.f32 %v1585, 0.008332161
      %v1650 = vadd.f32 %v1586, 0.008332161
      %v1651 = vadd.f32 %v1587, 0.008332161
      %v1652 = vadd.f32 %v1588, 0.008332161
      %v1653 = vadd.f32 %v1589, 0.008332161
      %v1654 = vadd.f32 %v1590, 0.008332161
      %v1655 = vadd.f32 %v1591, 0.008332161
      %v1656 = vadd.f32 %v1592, 0.008332161
      %v1657 = vadd.f32 %v1593, 0.008332161
      %v1658 = vadd.f32 %v1594, 0.008332161
      %v1659 = vadd.f32 %v1595, 0.008332161
      %v1660 = vadd.f32 %v1596, 0.008332161
      %v1661 = vadd.f32 %v1597, 0.008332161
      %v1662 = vadd.f32 %v1598, 0.008332161
      %v1663 = vadd.f32 %v1599, 0.008332161
      %v1664 = vadd.f32 %v1600, 0.008332161
      %v1665 = vadd.f32 %v1601, 0.008332161
      %v1666 = vmul.f32 %v1602, %v1410
      %v1667 = vmul.f32 %v1603, %v1411
      %v1668 = vmul.f32 %v1604, %v1412
      %v1669 = vmul.f32 %v1605, %v1413
      %v1670 = vmul.f32 %v1606, %v1414
      %v1671 = vmul.f32 %v1607, %v1415
      %v1672 = vmul.f32 %v1608, %v1416
      %v1673 = vmul.f32 %v1609, %v1417
      %v1674 = vmul.f32 %v1610, %v1418
      %v1675 = vmul.f32 %v1611, %v1419
      %v1676 = vmul.f32 %v1612, %v1420
      %v1677 = vmul.f32 %v1613, %v1421
      %v1678 = vmul.f32 %v1614, %v1422
      %v1679 = vmul.f32 %v1615, %v1423
      %v1680 = vmul.f32 %v1616, %v1424
      %v1681 = vmul.f32 %v1617, %v1425
      %v1682 = vmul.f32 %v1618, %v1426
      %v1683 = vmul.f32 %v1619, %v1427
      %v1684 = vmul.f32 %v1620, %v1428
      %v1685 = vmul.f32 %v1621, %v1429
      %v1686 = vmul.f32 %v1622, %v1430
      %v1687 = vmul.f32 %v1623, %v1431
      %v1688 = vmul.f32 %v1624, %v1432
      %v1689 = vmul.f32 %v1625, %v1433
      %v1690 = vmul.f32 %v1626, %v1434
      %v1691 = vmul.f32 %v1627, %v1435
      %v1692 = vmul.f32 %v1628, %v1436
      %v1693 = vmul.f32 %v1629, %v1437
      %v1694 = vmul.f32 %v1630, %v1438
      %v1695 = vmul.f32 %v1631, %v1439
      %v1696 = vmul.f32 %v1632, %v1440
      %v1697 = vmul.f32 %v1633, %v1441
      %v1698 = vmul.f32 %v1634, %v1442
      %v1699 = vmul.f32 %v1635, %v1443
      %v1700 = vmul.f32 %v1636, %v1444
      %v1701 = vmul.f32 %v1637, %v1445
      %v1702 = vmul.f32 %v1638, %v1446
      %v1703 = vmul.f32 %v1639, %v1447
      %v1704 = vmul.f32 %v1640, %v1448
      %v1705 = vmul.f32 %v1641, %v1449
      %v1706 = vmul.f32 %v1642, %v1450
      %v1707 = vmul.f32 %v1643, %v1451
      %v1708 = vmul.f32 %v1644, %v1452
      %v1709 = vmul.f32 %v1645, %v1453
      %v1710 = vmul.f32 %v1646, %v1454
      %v1711 = vmul.f32 %v1647, %v1455
      %v1712 = vmul.f32 %v1648, %v1456
      %v1713 = vmul.f32 %v1649, %v1457
      %v1714 = vmul.f32 %v1650, %v1458
      %v1715 = vmul.f32 %v1651, %v1459
      %v1716 = vmul.f32 %v1652, %v1460
      %v1717 = vmul.f32 %v1653, %v1461
      %v1718 = vmul.f32 %v1654, %v1462
      %v1719 = vmul.f32 %v1655, %v1463
      %v1720 = vmul.f32 %v1656, %v1464
      %v1721 = vmul.f32 %v1657, %v1465
      %v1722 = vmul.f32 %v1658, %v1466
      %v1723 = vmul.f32 %v1659, %v1467
      %v1724 = vmul.f32 %v1660, %v1468
      %v1725 = vmul.f32 %v1661, %v1469
      %v1726 = vmul.f32 %v1662, %v1470
      %v1727 = vmul.f32 %v1663, %v1471
      %v1728 = vmul.f32 %v1664, %v1472
      %v1729 = vmul.f32 %v1665, %v1473
      %v1730 = vadd.f32 %v1666, -0.16666655
      %v1731 = vadd.f32 %v1667, -0.16666655
      %v1732 = vadd.f32 %v1668, -0.16666655
      %v1733 = vadd.f32 %v1669, -0.16666655
      %v1734 = vadd.f32 %v1670, -0.16666655
      %v1735 = vadd.f32 %v1671, -0.16666655
      %v1736 = vadd.f32 %v1672, -0.16666655
      %v1737 = vadd.f32 %v1673, -0.16666655
      %v1738 = vadd.f32 %v1674, -0.16666655
      %v1739 = vadd.f32 %v1675, -0.16666655
      %v1740 = vadd.f32 %v1676, -0.16666655
      %v1741 = vadd.f32 %v1677, -0.16666655
      %v1742 = vadd.f32 %v1678, -0.16666655
      %v1743 = vadd.f32 %v1679, -0.16666655
      %v1744 = vadd.f32 %v1680, -0.16666655
      %v1745 = vadd.f32 %v1681, -0.16666655
      %v1746 = vadd.f32 %v1682, -0.16666655
      %v1747 = vadd.f32 %v1683, -0.16666655
      %v1748 = vadd.f32 %v1684, -0.16666655
      %v1749 = vadd.f32 %v1685, -0.16666655
      %v1750 = vadd.f32 %v1686, -0.16666655
      %v1751 = vadd.f32 %v1687, -0.16666655
      %v1752 = vadd.f32 %v1688, -0.16666655
      %v1753 = vadd.f32 %v1689, -0.16666655
      %v1754 = vadd.f32 %v1690, -0.16666655
      %v1755 = vadd.f32 %v1691, -0.16666655
      %v1756 = vadd.f32 %v1692, -0.16666655
      %v1757 = vadd.f32 %v1693, -0.16666655
      %v1758 = vadd.f32 %v1694, -0.16666655
      %v1759 = vadd.f32 %v1695, -0.16666655
      %v1760 = vadd.f32 %v1696, -0.16666655
      %v1761 = vadd.f32 %v1697, -0.16666655
      %v1762 = vadd.f32 %v1698, -0.16666655
      %v1763 = vadd.f32 %v1699, -0.16666655
      %v1764 = vadd.f32 %v1700, -0.16666655
      %v1765 = vadd.f32 %v1701, -0.16666655
      %v1766 = vadd.f32 %v1702, -0.16666655
      %v1767 = vadd.f32 %v1703, -0.16666655
      %v1768 = vadd.f32 %v1704, -0.16666655
      %v1769 = vadd.f32 %v1705, -0.16666655
      %v1770 = vadd.f32 %v1706, -0.16666655
      %v1771 = vadd.f32 %v1707, -0.16666655
      %v1772 = vadd.f32 %v1708, -0.16666655
      %v1773 = vadd.f32 %v1709, -0.16666655
      %v1774 = vadd.f32 %v1710, -0.16666655
      %v1775 = vadd.f32 %v1711, -0.16666655
      %v1776 = vadd.f32 %v1712, -0.16666655
      %v1777 = vadd.f32 %v1713, -0.16666655
      %v1778 = vadd.f32 %v1714, -0.16666655
      %v1779 = vadd.f32 %v1715, -0.16666655
      %v1780 = vadd.f32 %v1716, -0.16666655
      %v1781 = vadd.f32 %v1717, -0.16666655
      %v1782 = vadd.f32 %v1718, -0.16666655
      %v1783 = vadd.f32 %v1719, -0.16666655
      %v1784 = vadd.f32 %v1720, -0.16666655
      %v1785 = vadd.f32 %v1721, -0.16666655
      %v1786 = vadd.f32 %v1722, -0.16666655
      %v1787 = vadd.f32 %v1723, -0.16666655
      %v1788 = vadd.f32 %v1724, -0.16666655
      %v1789 = vadd.f32 %v1725, -0.16666655
      %v1790 = vadd.f32 %v1726, -0.16666655
      %v1791 = vadd.f32 %v1727, -0.16666655
      %v1792 = vadd.f32 %v1728, -0.16666655
      %v1793 = vadd.f32 %v1729, -0.16666655
      %v1794 = vmul.f32 %v1474, %v1730
      %v1795 = vmul.f32 %v1475, %v1731
      %v1796 = vmul.f32 %v1476, %v1732
      %v1797 = vmul.f32 %v1477, %v1733
      %v1798 = vmul.f32 %v1478, %v1734
      %v1799 = vmul.f32 %v1479, %v1735
      %v1800 = vmul.f32 %v1480, %v1736
      %v1801 = vmul.f32 %v1481, %v1737
      %v1802 = vmul.f32 %v1482, %v1738
      %v1803 = vmul.f32 %v1483, %v1739
      %v1804 = vmul.f32 %v1484, %v1740
      %v1805 = vmul.f32 %v1485, %v1741
      %v1806 = vmul.f32 %v1486, %v1742
      %v1807 = vmul.f32 %v1487, %v1743
      %v1808 = vmul.f32 %v1488, %v1744
      %v1809 = vmul.f32 %v1489, %v1745
      %v1810 = vmul.f32 %v1490, %v1746
      %v1811 = vmul.f32 %v1491, %v1747
      %v1812 = vmul.f32 %v1492, %v1748
      %v1813 = vmul.f32 %v1493, %v1749
      %v1814 = vmul.f32 %v1494, %v1750
      %v1815 = vmul.f32 %v1495, %v1751
      %v1816 = vmul.f32 %v1496, %v1752
      %v1817 = vmul.f32 %v1497, %v1753
      %v1818 = vmul.f32 %v1498, %v1754
      %v1819 = vmul.f32 %v1499, %v1755
      %v1820 = vmul.f32 %v1500, %v1756
      %v1821 = vmul.f32 %v1501, %v1757
      %v1822 = vmul.f32 %v1502, %v1758
      %v1823 = vmul.f32 %v1503, %v1759
      %v1824 = vmul.f32 %v1504, %v1760
      %v1825 = vmul.f32 %v1505, %v1761
      %v1826 = vmul.f32 %v1506, %v1762
      %v1827 = vmul.f32 %v1507, %v1763
      %v1828 = vmul.f32 %v1508, %v1764
      %v1829 = vmul.f32 %v1509, %v1765
      %v1830 = vmul.f32 %v1510, %v1766
      %v1831 = vmul.f32 %v1511, %v1767
      %v1832 = vmul.f32 %v1512, %v1768
      %v1833 = vmul.f32 %v1513, %v1769
      %v1834 = vmul.f32 %v1514, %v1770
      %v1835 = vmul.f32 %v1515, %v1771
      %v1836 = vmul.f32 %v1516, %v1772
      %v1837 = vmul.f32 %v1517, %v1773
      %v1838 = vmul.f32 %v1518, %v1774
      %v1839 = vmul.f32 %v1519, %v1775
      %v1840 = vmul.f32 %v1520, %v1776
      %v1841 = vmul.f32 %v1521, %v1777
      %v1842 = vmul.f32 %v1522, %v1778
      %v1843 = vmul.f32 %v1523, %v1779
      %v1844 = vmul.f32 %v1524, %v1780
      %v1845 = vmul.f32 %v1525, %v1781
      %v1846 = vmul.f32 %v1526, %v1782
      %v1847 = vmul.f32 %v1527, %v1783
      %v1848 = vmul.f32 %v1528, %v1784
      %v1849 = vmul.f32 %v1529, %v1785
      %v1850 = vmul.f32 %v1530, %v1786
      %v1851 = vmul.f32 %v1531, %v1787
      %v1852 = vmul.f32 %v1532, %v1788
      %v1853 = vmul.f32 %v1533, %v1789
      %v1854 = vmul.f32 %v1534, %v1790
      %v1855 = vmul.f32 %v1535, %v1791
      %v1856 = vmul.f32 %v1536, %v1792
      %v1857 = vmul.f32 %v1537, %v1793
      %v1858 = vadd.f32 %v1346, %v1794
      %v1859 = vadd.f32 %v1347, %v1795
      %v1860 = vadd.f32 %v1348, %v1796
      %v1861 = vadd.f32 %v1349, %v1797
      %v1862 = vadd.f32 %v1350, %v1798
      %v1863 = vadd.f32 %v1351, %v1799
      %v1864 = vadd.f32 %v1352, %v1800
      %v1865 = vadd.f32 %v1353, %v1801
      %v1866 = vadd.f32 %v1354, %v1802
      %v1867 = vadd.f32 %v1355, %v1803
      %v1868 = vadd.f32 %v1356, %v1804
      %v1869 = vadd.f32 %v1357, %v1805
      %v1870 = vadd.f32 %v1358, %v1806
      %v1871 = vadd.f32 %v1359, %v1807
      %v1872 = vadd.f32 %v1360, %v1808
      %v1873 = vadd.f32 %v1361, %v1809
      %v1874 = vadd.f32 %v1362, %v1810
      %v1875 = vadd.f32 %v1363, %v1811
      %v1876 = vadd.f32 %v1364, %v1812
      %v1877 = vadd.f32 %v1365, %v1813
      %v1878 = vadd.f32 %v1366, %v1814
      %v1879 = vadd.f32 %v1367, %v1815
      %v1880 = vadd.f32 %v1368, %v1816
      %v1881 = vadd.f32 %v1369, %v1817
      %v1882 = vadd.f32 %v1370, %v1818
      %v1883 = vadd.f32 %v1371, %v1819
      %v1884 = vadd.f32 %v1372, %v1820
      %v1885 = vadd.f32 %v1373, %v1821
      %v1886 = vadd.f32 %v1374, %v1822
      %v1887 = vadd.f32 %v1375, %v1823
      %v1888 = vadd.f32 %v1376, %v1824
      %v1889 = vadd.f32 %v1377, %v1825
      %v1890 = vadd.f32 %v1378, %v1826
      %v1891 = vadd.f32 %v1379, %v1827
      %v1892 = vadd.f32 %v1380, %v1828
      %v1893 = vadd.f32 %v1381, %v1829
      %v1894 = vadd.f32 %v1382, %v1830
      %v1895 = vadd.f32 %v1383, %v1831
      %v1896 = vadd.f32 %v1384, %v1832
      %v1897 = vadd.f32 %v1385, %v1833
      %v1898 = vadd.f32 %v1386, %v1834
      %v1899 = vadd.f32 %v1387, %v1835
      %v1900 = vadd.f32 %v1388, %v1836
      %v1901 = vadd.f32 %v1389, %v1837
      %v1902 = vadd.f32 %v1390, %v1838
      %v1903 = vadd.f32 %v1391, %v1839
      %v1904 = vadd.f32 %v1392, %v1840
      %v1905 = vadd.f32 %v1393, %v1841
      %v1906 = vadd.f32 %v1394, %v1842
      %v1907 = vadd.f32 %v1395, %v1843
      %v1908 = vadd.f32 %v1396, %v1844
      %v1909 = vadd.f32 %v1397, %v1845
      %v1910 = vadd.f32 %v1398, %v1846
      %v1911 = vadd.f32 %v1399, %v1847
      %v1912 = vadd.f32 %v1400, %v1848
      %v1913 = vadd.f32 %v1401, %v1849
      %v1914 = vadd.f32 %v1402, %v1850
      %v1915 = vadd.f32 %v1403, %v1851
      %v1916 = vadd.f32 %v1404, %v1852
      %v1917 = vadd.f32 %v1405, %v1853
      %v1918 = vadd.f32 %v1406, %v1854
      %v1919 = vadd.f32 %v1407, %v1855
      %v1920 = vadd.f32 %v1408, %v1856
      %v1921 = vadd.f32 %v1409, %v1857
      %v1922 = vmul.f32 %v1410, 0.5
      %v1923 = vmul.f32 %v1411, 0.5
      %v1924 = vmul.f32 %v1412, 0.5
      %v1925 = vmul.f32 %v1413, 0.5
      %v1926 = vmul.f32 %v1414, 0.5
      %v1927 = vmul.f32 %v1415, 0.5
      %v1928 = vmul.f32 %v1416, 0.5
      %v1929 = vmul.f32 %v1417, 0.5
      %v1930 = vmul.f32 %v1418, 0.5
      %v1931 = vmul.f32 %v1419, 0.5
      %v1932 = vmul.f32 %v1420, 0.5
      %v1933 = vmul.f32 %v1421, 0.5
      %v1934 = vmul.f32 %v1422, 0.5
      %v1935 = vmul.f32 %v1423, 0.5
      %v1936 = vmul.f32 %v1424, 0.5
      %v1937 = vmul.f32 %v1425, 0.5
      %v1938 = vmul.f32 %v1426, 0.5
      %v1939 = vmul.f32 %v1427, 0.5
      %v1940 = vmul.f32 %v1428, 0.5
      %v1941 = vmul.f32 %v1429, 0.5
      %v1942 = vmul.f32 %v1430, 0.5
      %v1943 = vmul.f32 %v1431, 0.5
      %v1944 = vmul.f32 %v1432, 0.5
      %v1945 = vmul.f32 %v1433, 0.5
      %v1946 = vmul.f32 %v1434, 0.5
      %v1947 = vmul.f32 %v1435, 0.5
      %v1948 = vmul.f32 %v1436, 0.5
      %v1949 = vmul.f32 %v1437, 0.5
      %v1950 = vmul.f32 %v1438, 0.5
      %v1951 = vmul.f32 %v1439, 0.5
      %v1952 = vmul.f32 %v1440, 0.5
      %v1953 = vmul.f32 %v1441, 0.5
      %v1954 = vmul.f32 %v1442, 0.5
      %v1955 = vmul.f32 %v1443, 0.5
      %v1956 = vmul.f32 %v1444, 0.5
      %v1957 = vmul.f32 %v1445, 0.5
      %v1958 = vmul.f32 %v1446, 0.5
      %v1959 = vmul.f32 %v1447, 0.5
      %v1960 = vmul.f32 %v1448, 0.5
      %v1961 = vmul.f32 %v1449, 0.5
      %v1962 = vmul.f32 %v1450, 0.5
      %v1963 = vmul.f32 %v1451, 0.5
      %v1964 = vmul.f32 %v1452, 0.5
      %v1965 = vmul.f32 %v1453, 0.5
      %v1966 = vmul.f32 %v1454, 0.5
      %v1967 = vmul.f32 %v1455, 0.5
      %v1968 = vmul.f32 %v1456, 0.5
      %v1969 = vmul.f32 %v1457, 0.5
      %v1970 = vmul.f32 %v1458, 0.5
      %v1971 = vmul.f32 %v1459, 0.5
      %v1972 = vmul.f32 %v1460, 0.5
      %v1973 = vmul.f32 %v1461, 0.5
      %v1974 = vmul.f32 %v1462, 0.5
      %v1975 = vmul.f32 %v1463, 0.5
      %v1976 = vmul.f32 %v1464, 0.5
      %v1977 = vmul.f32 %v1465, 0.5
      %v1978 = vmul.f32 %v1466, 0.5
      %v1979 = vmul.f32 %v1467, 0.5
      %v1980 = vmul.f32 %v1468, 0.5
      %v1981 = vmul.f32 %v1469, 0.5
      %v1982 = vmul.f32 %v1470, 0.5
      %v1983 = vmul.f32 %v1471, 0.5
      %v1984 = vmul.f32 %v1472, 0.5
      %v1985 = vmul.f32 %v1473, 0.5
      %v1986 = vsub.f32 1.0, %v1922
      %v1987 = vsub.f32 1.0, %v1923
      %v1988 = vsub.f32 1.0, %v1924
      %v1989 = vsub.f32 1.0, %v1925
      %v1990 = vsub.f32 1.0, %v1926
      %v1991 = vsub.f32 1.0, %v1927
      %v1992 = vsub.f32 1.0, %v1928
      %v1993 = vsub.f32 1.0, %v1929
      %v1994 = vsub.f32 1.0, %v1930
      %v1995 = vsub.f32 1.0, %v1931
      %v1996 = vsub.f32 1.0, %v1932
      %v1997 = vsub.f32 1.0, %v1933
      %v1998 = vsub.f32 1.0, %v1934
      %v1999 = vsub.f32 1.0, %v1935
      %v2000 = vsub.f32 1.0, %v1936
      %v2001 = vsub.f32 1.0, %v1937
      %v2002 = vsub.f32 1.0, %v1938
      %v2003 = vsub.f32 1.0, %v1939
      %v2004 = vsub.f32 1.0, %v1940
      %v2005 = vsub.f32 1.0, %v1941
      %v2006 = vsub.f32 1.0, %v1942
      %v2007 = vsub.f32 1.0, %v1943
      %v2008 = vsub.f32 1.0, %v1944
      %v2009 = vsub.f32 1.0, %v1945
      %v2010 = vsub.f32 1.0, %v1946
      %v2011 = vsub.f32 1.0, %v1947
      %v2012 = vsub.f32 1.0, %v1948
      %v2013 = vsub.f32 1.0, %v1949
      %v2014 = vsub.f32 1.0, %v1950
      %v2015 = vsub.f32 1.0, %v1951
      %v2016 = vsub.f32 1.0, %v1952
      %v2017 = vsub.f32 1.0, %v1953
      %v2018 = vsub.f32 1.0, %v1954
      %v2019 = vsub.f32 1.0, %v1955
      %v2020 = vsub.f32 1.0, %v1956
      %v2021 = vsub.f32 1.0, %v1957
      %v2022 = vsub.f32 1.0, %v1958
      %v2023 = vsub.f32 1.0, %v1959
      %v2024 = vsub.f32 1.0, %v1960
      %v2025 = vsub.f32 1.0, %v1961
      %v2026 = vsub.f32 1.0, %v1962
      %v2027 = vsub.f32 1.0, %v1963
      %v2028 = vsub.f32 1.0, %v1964
      %v2029 = vsub.f32 1.0, %v1965
      %v2030 = vsub.f32 1.0, %v1966
      %v2031 = vsub.f32 1.0, %v1967
      %v2032 = vsub.f32 1.0, %v1968
      %v2033 = vsub.f32 1.0, %v1969
      %v2034 = vsub.f32 1.0, %v1970
      %v2035 = vsub.f32 1.0, %v1971
      %v2036 = vsub.f32 1.0, %v1972
      %v2037 = vsub.f32 1.0, %v1973
      %v2038 = vsub.f32 1.0, %v1974
      %v2039 = vsub.f32 1.0, %v1975
      %v2040 = vsub.f32 1.0, %v1976
      %v2041 = vsub.f32 1.0, %v1977
      %v2042 = vsub.f32 1.0, %v1978
      %v2043 = vsub.f32 1.0, %v1979
      %v2044 = vsub.f32 1.0, %v1980
      %v2045 = vsub.f32 1.0, %v1981
      %v2046 = vsub.f32 1.0, %v1982
      %v2047 = vsub.f32 1.0, %v1983
      %v2048 = vsub.f32 1.0, %v1984
      %v2049 = vsub.f32 1.0, %v1985
      %v2050 = vmul.f32 %v1410, %v1410
      %v2051 = vmul.f32 %v1411, %v1411
      %v2052 = vmul.f32 %v1412, %v1412
      %v2053 = vmul.f32 %v1413, %v1413
      %v2054 = vmul.f32 %v1414, %v1414
      %v2055 = vmul.f32 %v1415, %v1415
      %v2056 = vmul.f32 %v1416, %v1416
      %v2057 = vmul.f32 %v1417, %v1417
      %v2058 = vmul.f32 %v1418, %v1418
      %v2059 = vmul.f32 %v1419, %v1419
      %v2060 = vmul.f32 %v1420, %v1420
      %v2061 = vmul.f32 %v1421, %v1421
      %v2062 = vmul.f32 %v1422, %v1422
      %v2063 = vmul.f32 %v1423, %v1423
      %v2064 = vmul.f32 %v1424, %v1424
      %v2065 = vmul.f32 %v1425, %v1425
      %v2066 = vmul.f32 %v1426, %v1426
      %v2067 = vmul.f32 %v1427, %v1427
      %v2068 = vmul.f32 %v1428, %v1428
      %v2069 = vmul.f32 %v1429, %v1429
      %v2070 = vmul.f32 %v1430, %v1430
      %v2071 = vmul.f32 %v1431, %v1431
      %v2072 = vmul.f32 %v1432, %v1432
      %v2073 = vmul.f32 %v1433, %v1433
      %v2074 = vmul.f32 %v1434, %v1434
      %v2075 = vmul.f32 %v1435, %v1435
      %v2076 = vmul.f32 %v1436, %v1436
      %v2077 = vmul.f32 %v1437, %v1437
      %v2078 = vmul.f32 %v1438, %v1438
      %v2079 = vmul.f32 %v1439, %v1439
      %v2080 = vmul.f32 %v1440, %v1440
      %v2081 = vmul.f32 %v1441, %v1441
      %v2082 = vmul.f32 %v1442, %v1442
      %v2083 = vmul.f32 %v1443, %v1443
      %v2084 = vmul.f32 %v1444, %v1444
      %v2085 = vmul.f32 %v1445, %v1445
      %v2086 = vmul.f32 %v1446, %v1446
      %v2087 = vmul.f32 %v1447, %v1447
      %v2088 = vmul.f32 %v1448, %v1448
      %v2089 = vmul.f32 %v1449, %v1449
      %v2090 = vmul.f32 %v1450, %v1450
      %v2091 = vmul.f32 %v1451, %v1451
      %v2092 = vmul.f32 %v1452, %v1452
      %v2093 = vmul.f32 %v1453, %v1453
      %v2094 = vmul.f32 %v1454, %v1454
      %v2095 = vmul.f32 %v1455, %v1455
      %v2096 = vmul.f32 %v1456, %v1456
      %v2097 = vmul.f32 %v1457, %v1457
      %v2098 = vmul.f32 %v1458, %v1458
      %v2099 = vmul.f32 %v1459, %v1459
      %v2100 = vmul.f32 %v1460, %v1460
      %v2101 = vmul.f32 %v1461, %v1461
      %v2102 = vmul.f32 %v1462, %v1462
      %v2103 = vmul.f32 %v1463, %v1463
      %v2104 = vmul.f32 %v1464, %v1464
      %v2105 = vmul.f32 %v1465, %v1465
      %v2106 = vmul.f32 %v1466, %v1466
      %v2107 = vmul.f32 %v1467, %v1467
      %v2108 = vmul.f32 %v1468, %v1468
      %v2109 = vmul.f32 %v1469, %v1469
      %v2110 = vmul.f32 %v1470, %v1470
      %v2111 = vmul.f32 %v1471, %v1471
      %v2112 = vmul.f32 %v1472, %v1472
      %v2113 = vmul.f32 %v1473, %v1473
      %v2114 = vmul.f32 %v1410, 2.4433157e-05
      %v2115 = vmul.f32 %v1411, 2.4433157e-05
      %v2116 = vmul.f32 %v1412, 2.4433157e-05
      %v2117 = vmul.f32 %v1413, 2.4433157e-05
      %v2118 = vmul.f32 %v1414, 2.4433157e-05
      %v2119 = vmul.f32 %v1415, 2.4433157e-05
      %v2120 = vmul.f32 %v1416, 2.4433157e-05
      %v2121 = vmul.f32 %v1417, 2.4433157e-05
      %v2122 = vmul.f32 %v1418, 2.4433157e-05
      %v2123 = vmul.f32 %v1419, 2.4433157e-05
      %v2124 = vmul.f32 %v1420, 2.4433157e-05
      %v2125 = vmul.f32 %v1421, 2.4433157e-05
      %v2126 = vmul.f32 %v1422, 2.4433157e-05
      %v2127 = vmul.f32 %v1423, 2.4433157e-05
      %v2128 = vmul.f32 %v1424, 2.4433157e-05
      %v2129 = vmul.f32 %v1425, 2.4433157e-05
      %v2130 = vmul.f32 %v1426, 2.4433157e-05
      %v2131 = vmul.f32 %v1427, 2.4433157e-05
      %v2132 = vmul.f32 %v1428, 2.4433157e-05
      %v2133 = vmul.f32 %v1429, 2.4433157e-05
      %v2134 = vmul.f32 %v1430, 2.4433157e-05
      %v2135 = vmul.f32 %v1431, 2.4433157e-05
      %v2136 = vmul.f32 %v1432, 2.4433157e-05
      %v2137 = vmul.f32 %v1433, 2.4433157e-05
      %v2138 = vmul.f32 %v1434, 2.4433157e-05
      %v2139 = vmul.f32 %v1435, 2.4433157e-05
      %v2140 = vmul.f32 %v1436, 2.4433157e-05
      %v2141 = vmul.f32 %v1437, 2.4433157e-05
      %v2142 = vmul.f32 %v1438, 2.4433157e-05
      %v2143 = vmul.f32 %v1439, 2.4433157e-05
      %v2144 = vmul.f32 %v1440, 2.4433157e-05
      %v2145 = vmul.f32 %v1441, 2.4433157e-05
      %v2146 = vmul.f32 %v1442, 2.4433157e-05
      %v2147 = vmul.f32 %v1443, 2.4433157e-05
      %v2148 = vmul.f32 %v1444, 2.4433157e-05
      %v2149 = vmul.f32 %v1445, 2.4433157e-05
      %v2150 = vmul.f32 %v1446, 2.4433157e-05
      %v2151 = vmul.f32 %v1447, 2.4433157e-05
      %v2152 = vmul.f32 %v1448, 2.4433157e-05
      %v2153 = vmul.f32 %v1449, 2.4433157e-05
      %v2154 = vmul.f32 %v1450, 2.4433157e-05
      %v2155 = vmul.f32 %v1451, 2.4433157e-05
      %v2156 = vmul.f32 %v1452, 2.4433157e-05
      %v2157 = vmul.f32 %v1453, 2.4433157e-05
      %v2158 = vmul.f32 %v1454, 2.4433157e-05
      %v2159 = vmul.f32 %v1455, 2.4433157e-05
      %v2160 = vmul.f32 %v1456, 2.4433157e-05
      %v2161 = vmul.f32 %v1457, 2.4433157e-05
      %v2162 = vmul.f32 %v1458, 2.4433157e-05
      %v2163 = vmul.f32 %v1459, 2.4433157e-05
      %v2164 = vmul.f32 %v1460, 2.4433157e-05
      %v2165 = vmul.f32 %v1461, 2.4433157e-05
      %v2166 = vmul.f32 %v1462, 2.4433157e-05
      %v2167 = vmul.f32 %v1463, 2.4433157e-05
      %v2168 = vmul.f32 %v1464, 2.4433157e-05
      %v2169 = vmul.f32 %v1465, 2.4433157e-05
      %v2170 = vmul.f32 %v1466, 2.4433157e-05
      %v2171 = vmul.f32 %v1467, 2.4433157e-05
      %v2172 = vmul.f32 %v1468, 2.4433157e-05
      %v2173 = vmul.f32 %v1469, 2.4433157e-05
      %v2174 = vmul.f32 %v1470, 2.4433157e-05
      %v2175 = vmul.f32 %v1471, 2.4433157e-05
      %v2176 = vmul.f32 %v1472, 2.4433157e-05
      %v2177 = vmul.f32 %v1473, 2.4433157e-05
      %v2178 = vadd.f32 %v2114, -0.0013887316
      %v2179 = vadd.f32 %v2115, -0.0013887316
      %v2180 = vadd.f32 %v2116, -0.0013887316
      %v2181 = vadd.f32 %v2117, -0.0013887316
      %v2182 = vadd.f32 %v2118, -0.0013887316
      %v2183 = vadd.f32 %v2119, -0.0013887316
      %v2184 = vadd.f32 %v2120, -0.0013887316
      %v2185 = vadd.f32 %v2121, -0.0013887316
      %v2186 = vadd.f32 %v2122, -0.0013887316
      %v2187 = vadd.f32 %v2123, -0.0013887316
      %v2188 = vadd.f32 %v2124, -0.0013887316
      %v2189 = vadd.f32 %v2125, -0.0013887316
      %v2190 = vadd.f32 %v2126, -0.0013887316
      %v2191 = vadd.f32 %v2127, -0.0013887316
      %v2192 = vadd.f32 %v2128, -0.0013887316
      %v2193 = vadd.f32 %v2129, -0.0013887316
      %v2194 = vadd.f32 %v2130, -0.0013887316
      %v2195 = vadd.f32 %v2131, -0.0013887316
      %v2196 = vadd.f32 %v2132, -0.0013887316
      %v2197 = vadd.f32 %v2133, -0.0013887316
      %v2198 = vadd.f32 %v2134, -0.0013887316
      %v2199 = vadd.f32 %v2135, -0.0013887316
      %v2200 = vadd.f32 %v2136, -0.0013887316
      %v2201 = vadd.f32 %v2137, -0.0013887316
      %v2202 = vadd.f32 %v2138, -0.0013887316
      %v2203 = vadd.f32 %v2139, -0.0013887316
      %v2204 = vadd.f32 %v2140, -0.0013887316
      %v2205 = vadd.f32 %v2141, -0.0013887316
      %v2206 = vadd.f32 %v2142, -0.0013887316
      %v2207 = vadd.f32 %v2143, -0.0013887316
      %v2208 = vadd.f32 %v2144, -0.0013887316
      %v2209 = vadd.f32 %v2145, -0.0013887316
      %v2210 = vadd.f32 %v2146, -0.0013887316
      %v2211 = vadd.f32 %v2147, -0.0013887316
      %v2212 = vadd.f32 %v2148, -0.0013887316
      %v2213 = vadd.f32 %v2149, -0.0013887316
      %v2214 = vadd.f32 %v2150, -0.0013887316
      %v2215 = vadd.f32 %v2151, -0.0013887316
      %v2216 = vadd.f32 %v2152, -0.0013887316
      %v2217 = vadd.f32 %v2153, -0.0013887316
      %v2218 = vadd.f32 %v2154, -0.0013887316
      %v2219 = vadd.f32 %v2155, -0.0013887316
      %v2220 = vadd.f32 %v2156, -0.0013887316
      %v2221 = vadd.f32 %v2157, -0.0013887316
      %v2222 = vadd.f32 %v2158, -0.0013887316
      %v2223 = vadd.f32 %v2159, -0.0013887316
      %v2224 = vadd.f32 %v2160, -0.0013887316
      %v2225 = vadd.f32 %v2161, -0.0013887316
      %v2226 = vadd.f32 %v2162, -0.0013887316
      %v2227 = vadd.f32 %v2163, -0.0013887316
      %v2228 = vadd.f32 %v2164, -0.0013887316
      %v2229 = vadd.f32 %v2165, -0.0013887316
      %v2230 = vadd.f32 %v2166, -0.0013887316
      %v2231 = vadd.f32 %v2167, -0.0013887316
      %v2232 = vadd.f32 %v2168, -0.0013887316
      %v2233 = vadd.f32 %v2169, -0.0013887316
      %v2234 = vadd.f32 %v2170, -0.0013887316
      %v2235 = vadd.f32 %v2171, -0.0013887316
      %v2236 = vadd.f32 %v2172, -0.0013887316
      %v2237 = vadd.f32 %v2173, -0.0013887316
      %v2238 = vadd.f32 %v2174, -0.0013887316
      %v2239 = vadd.f32 %v2175, -0.0013887316
      %v2240 = vadd.f32 %v2176, -0.0013887316
      %v2241 = vadd.f32 %v2177, -0.0013887316
      %v2242 = vmul.f32 %v2178, %v1410
      %v2243 = vmul.f32 %v2179, %v1411
      %v2244 = vmul.f32 %v2180, %v1412
      %v2245 = vmul.f32 %v2181, %v1413
      %v2246 = vmul.f32 %v2182, %v1414
      %v2247 = vmul.f32 %v2183, %v1415
      %v2248 = vmul.f32 %v2184, %v1416
      %v2249 = vmul.f32 %v2185, %v1417
      %v2250 = vmul.f32 %v2186, %v1418
      %v2251 = vmul.f32 %v2187, %v1419
      %v2252 = vmul.f32 %v2188, %v1420
      %v2253 = vmul.f32 %v2189, %v1421
      %v2254 = vmul.f32 %v2190, %v1422
      %v2255 = vmul.f32 %v2191, %v1423
      %v2256 = vmul.f32 %v2192, %v1424
      %v2257 = vmul.f32 %v2193, %v1425
      %v2258 = vmul.f32 %v2194, %v1426
      %v2259 = vmul.f32 %v2195, %v1427
      %v2260 = vmul.f32 %v2196, %v1428
      %v2261 = vmul.f32 %v2197, %v1429
      %v2262 = vmul.f32 %v2198, %v1430
      %v2263 = vmul.f32 %v2199, %v1431
      %v2264 = vmul.f32 %v2200, %v1432
      %v2265 = vmul.f32 %v2201, %v1433
      %v2266 = vmul.f32 %v2202, %v1434
      %v2267 = vmul.f32 %v2203, %v1435
      %v2268 = vmul.f32 %v2204, %v1436
      %v2269 = vmul.f32 %v2205, %v1437
      %v2270 = vmul.f32 %v2206, %v1438
      %v2271 = vmul.f32 %v2207, %v1439
      %v2272 = vmul.f32 %v2208, %v1440
      %v2273 = vmul.f32 %v2209, %v1441
      %v2274 = vmul.f32 %v2210, %v1442
      %v2275 = vmul.f32 %v2211, %v1443
      %v2276 = vmul.f32 %v2212, %v1444
      %v2277 = vmul.f32 %v2213, %v1445
      %v2278 = vmul.f32 %v2214, %v1446
      %v2279 = vmul.f32 %v2215, %v1447
      %v2280 = vmul.f32 %v2216, %v1448
      %v2281 = vmul.f32 %v2217, %v1449
      %v2282 = vmul.f32 %v2218, %v1450
      %v2283 = vmul.f32 %v2219, %v1451
      %v2284 = vmul.f32 %v2220, %v1452
      %v2285 = vmul.f32 %v2221, %v1453
      %v2286 = vmul.f32 %v2222, %v1454
      %v2287 = vmul.f32 %v2223, %v1455
      %v2288 = vmul.f32 %v2224, %v1456
      %v2289 = vmul.f32 %v2225, %v1457
      %v2290 = vmul.f32 %v2226, %v1458
      %v2291 = vmul.f32 %v2227, %v1459
      %v2292 = vmul.f32 %v2228, %v1460
      %v2293 = vmul.f32 %v2229, %v1461
      %v2294 = vmul.f32 %v2230, %v1462
      %v2295 = vmul.f32 %v2231, %v1463
      %v2296 = vmul.f32 %v2232, %v1464
      %v2297 = vmul.f32 %v2233, %v1465
      %v2298 = vmul.f32 %v2234, %v1466
      %v2299 = vmul.f32 %v2235, %v1467
      %v2300 = vmul.f32 %v2236, %v1468
      %v2301 = vmul.f32 %v2237, %v1469
      %v2302 = vmul.f32 %v2238, %v1470
      %v2303 = vmul.f32 %v2239, %v1471
      %v2304 = vmul.f32 %v2240, %v1472
      %v2305 = vmul.f32 %v2241, %v1473
      %v2306 = vadd.f32 %v2242, 0.041666646
      %v2307 = vadd.f32 %v2243, 0.041666646
      %v2308 = vadd.f32 %v2244, 0.041666646
      %v2309 = vadd.f32 %v2245, 0.041666646
      %v2310 = vadd.f32 %v2246, 0.041666646
      %v2311 = vadd.f32 %v2247, 0.041666646
      %v2312 = vadd.f32 %v2248, 0.041666646
      %v2313 = vadd.f32 %v2249, 0.041666646
      %v2314 = vadd.f32 %v2250, 0.041666646
      %v2315 = vadd.f32 %v2251, 0.041666646
      %v2316 = vadd.f32 %v2252, 0.041666646
      %v2317 = vadd.f32 %v2253, 0.041666646
      %v2318 = vadd.f32 %v2254, 0.041666646
      %v2319 = vadd.f32 %v2255, 0.041666646
      %v2320 = vadd.f32 %v2256, 0.041666646
      %v2321 = vadd.f32 %v2257, 0.041666646
      %v2322 = vadd.f32 %v2258, 0.041666646
      %v2323 = vadd.f32 %v2259, 0.041666646
      %v2324 = vadd.f32 %v2260, 0.041666646
      %v2325 = vadd.f32 %v2261, 0.041666646
      %v2326 = vadd.f32 %v2262, 0.041666646
      %v2327 = vadd.f32 %v2263, 0.041666646
      %v2328 = vadd.f32 %v2264, 0.041666646
      %v2329 = vadd.f32 %v2265, 0.041666646
      %v2330 = vadd.f32 %v2266, 0.041666646
      %v2331 = vadd.f32 %v2267, 0.041666646
      %v2332 = vadd.f32 %v2268, 0.041666646
      %v2333 = vadd.f32 %v2269, 0.041666646
      %v2334 = vadd.f32 %v2270, 0.041666646
      %v2335 = vadd.f32 %v2271, 0.041666646
      %v2336 = vadd.f32 %v2272, 0.041666646
      %v2337 = vadd.f32 %v2273, 0.041666646
      %v2338 = vadd.f32 %v2274, 0.041666646
      %v2339 = vadd.f32 %v2275, 0.041666646
      %v2340 = vadd.f32 %v2276, 0.041666646
      %v2341 = vadd.f32 %v2277, 0.041666646
      %v2342 = vadd.f32 %v2278, 0.041666646
      %v2343 = vadd.f32 %v2279, 0.041666646
      %v2344 = vadd.f32 %v2280, 0.041666646
      %v2345 = vadd.f32 %v2281, 0.041666646
      %v2346 = vadd.f32 %v2282, 0.041666646
      %v2347 = vadd.f32 %v2283, 0.041666646
      %v2348 = vadd.f32 %v2284, 0.041666646
      %v2349 = vadd.f32 %v2285, 0.041666646
      %v2350 = vadd.f32 %v2286, 0.041666646
      %v2351 = vadd.f32 %v2287, 0.041666646
      %v2352 = vadd.f32 %v2288, 0.041666646
      %v2353 = vadd.f32 %v2289, 0.041666646
      %v2354 = vadd.f32 %v2290, 0.041666646
      %v2355 = vadd.f32 %v2291, 0.041666646
      %v2356 = vadd.f32 %v2292, 0.041666646
      %v2357 = vadd.f32 %v2293, 0.041666646
      %v2358 = vadd.f32 %v2294, 0.041666646
      %v2359 = vadd.f32 %v2295, 0.041666646
      %v2360 = vadd.f32 %v2296, 0.041666646
      %v2361 = vadd.f32 %v2297, 0.041666646
      %v2362 = vadd.f32 %v2298, 0.041666646
      %v2363 = vadd.f32 %v2299, 0.041666646
      %v2364 = vadd.f32 %v2300, 0.041666646
      %v2365 = vadd.f32 %v2301, 0.041666646
      %v2366 = vadd.f32 %v2302, 0.041666646
      %v2367 = vadd.f32 %v2303, 0.041666646
      %v2368 = vadd.f32 %v2304, 0.041666646
      %v2369 = vadd.f32 %v2305, 0.041666646
      %v2370 = vmul.f32 %v2050, %v2306
      %v2371 = vmul.f32 %v2051, %v2307
      %v2372 = vmul.f32 %v2052, %v2308
      %v2373 = vmul.f32 %v2053, %v2309
      %v2374 = vmul.f32 %v2054, %v2310
      %v2375 = vmul.f32 %v2055, %v2311
      %v2376 = vmul.f32 %v2056, %v2312
      %v2377 = vmul.f32 %v2057, %v2313
      %v2378 = vmul.f32 %v2058, %v2314
      %v2379 = vmul.f32 %v2059, %v2315
      %v2380 = vmul.f32 %v2060, %v2316
      %v2381 = vmul.f32 %v2061, %v2317
      %v2382 = vmul.f32 %v2062, %v2318
      %v2383 = vmul.f32 %v2063, %v2319
      %v2384 = vmul.f32 %v2064, %v2320
      %v2385 = vmul.f32 %v2065, %v2321
      %v2386 = vmul.f32 %v2066, %v2322
      %v2387 = vmul.f32 %v2067, %v2323
      %v2388 = vmul.f32 %v2068, %v2324
      %v2389 = vmul.f32 %v2069, %v2325
      %v2390 = vmul.f32 %v2070, %v2326
      %v2391 = vmul.f32 %v2071, %v2327
      %v2392 = vmul.f32 %v2072, %v2328
      %v2393 = vmul.f32 %v2073, %v2329
      %v2394 = vmul.f32 %v2074, %v2330
      %v2395 = vmul.f32 %v2075, %v2331
      %v2396 = vmul.f32 %v2076, %v2332
      %v2397 = vmul.f32 %v2077, %v2333
      %v2398 = vmul.f32 %v2078, %v2334
      %v2399 = vmul.f32 %v2079, %v2335
      %v2400 = vmul.f32 %v2080, %v2336
      %v2401 = vmul.f32 %v2081, %v2337
      %v2402 = vmul.f32 %v2082, %v2338
      %v2403 = vmul.f32 %v2083, %v2339
      %v2404 = vmul.f32 %v2084, %v2340
      %v2405 = vmul.f32 %v2085, %v2341
      %v2406 = vmul.f32 %v2086, %v2342
      %v2407 = vmul.f32 %v2087, %v2343
      %v2408 = vmul.f32 %v2088, %v2344
      %v2409 = vmul.f32 %v2089, %v2345
      %v2410 = vmul.f32 %v2090, %v2346
      %v2411 = vmul.f32 %v2091, %v2347
      %v2412 = vmul.f32 %v2092, %v2348
      %v2413 = vmul.f32 %v2093, %v2349
      %v2414 = vmul.f32 %v2094, %v2350
      %v2415 = vmul.f32 %v2095, %v2351
      %v2416 = vmul.f32 %v2096, %v2352
      %v2417 = vmul.f32 %v2097, %v2353
      %v2418 = vmul.f32 %v2098, %v2354
      %v2419 = vmul.f32 %v2099, %v2355
      %v2420 = vmul.f32 %v2100, %v2356
      %v2421 = vmul.f32 %v2101, %v2357
      %v2422 = vmul.f32 %v2102, %v2358
      %v2423 = vmul.f32 %v2103, %v2359
      %v2424 = vmul.f32 %v2104, %v2360
      %v2425 = vmul.f32 %v2105, %v2361
      %v2426 = vmul.f32 %v2106, %v2362
      %v2427 = vmul.f32 %v2107, %v2363
      %v2428 = vmul.f32 %v2108, %v2364
      %v2429 = vmul.f32 %v2109, %v2365
      %v2430 = vmul.f32 %v2110, %v2366
      %v2431 = vmul.f32 %v2111, %v2367
      %v2432 = vmul.f32 %v2112, %v2368
      %v2433 = vmul.f32 %v2113, %v2369
      %v2434 = vadd.f32 %v1986, %v2370
      %v2435 = vadd.f32 %v1987, %v2371
      %v2436 = vadd.f32 %v1988, %v2372
      %v2437 = vadd.f32 %v1989, %v2373
      %v2438 = vadd.f32 %v1990, %v2374
      %v2439 = vadd.f32 %v1991, %v2375
      %v2440 = vadd.f32 %v1992, %v2376
      %v2441 = vadd.f32 %v1993, %v2377
      %v2442 = vadd.f32 %v1994, %v2378
      %v2443 = vadd.f32 %v1995, %v2379
      %v2444 = vadd.f32 %v1996, %v2380
      %v2445 = vadd.f32 %v1997, %v2381
      %v2446 = vadd.f32 %v1998, %v2382
      %v2447 = vadd.f32 %v1999, %v2383
      %v2448 = vadd.f32 %v2000, %v2384
      %v2449 = vadd.f32 %v2001, %v2385
      %v2450 = vadd.f32 %v2002, %v2386
      %v2451 = vadd.f32 %v2003, %v2387
      %v2452 = vadd.f32 %v2004, %v2388
      %v2453 = vadd.f32 %v2005, %v2389
      %v2454 = vadd.f32 %v2006, %v2390
      %v2455 = vadd.f32 %v2007, %v2391
      %v2456 = vadd.f32 %v2008, %v2392
      %v2457 = vadd.f32 %v2009, %v2393
      %v2458 = vadd.f32 %v2010, %v2394
      %v2459 = vadd.f32 %v2011, %v2395
      %v2460 = vadd.f32 %v2012, %v2396
      %v2461 = vadd.f32 %v2013, %v2397
      %v2462 = vadd.f32 %v2014, %v2398
      %v2463 = vadd.f32 %v2015, %v2399
      %v2464 = vadd.f32 %v2016, %v2400
      %v2465 = vadd.f32 %v2017, %v2401
      %v2466 = vadd.f32 %v2018, %v2402
      %v2467 = vadd.f32 %v2019, %v2403
      %v2468 = vadd.f32 %v2020, %v2404
      %v2469 = vadd.f32 %v2021, %v2405
      %v2470 = vadd.f32 %v2022, %v2406
      %v2471 = vadd.f32 %v2023, %v2407
      %v2472 = vadd.f32 %v2024, %v2408
      %v2473 = vadd.f32 %v2025, %v2409
      %v2474 = vadd.f32 %v2026, %v2410
      %v2475 = vadd.f32 %v2027, %v2411
      %v2476 = vadd.f32 %v2028, %v2412
      %v2477 = vadd.f32 %v2029, %v2413
      %v2478 = vadd.f32 %v2030, %v2414
      %v2479 = vadd.f32 %v2031, %v2415
      %v2480 = vadd.f32 %v2032, %v2416
      %v2481 = vadd.f32 %v2033, %v2417
      %v2482 = vadd.f32 %v2034, %v2418
      %v2483 = vadd.f32 %v2035, %v2419
      %v2484 = vadd.f32 %v2036, %v2420
      %v2485 = vadd.f32 %v2037, %v2421
      %v2486 = vadd.f32 %v2038, %v2422
      %v2487 = vadd.f32 %v2039, %v2423
      %v2488 = vadd.f32 %v2040, %v2424
      %v2489 = vadd.f32 %v2041, %v2425
      %v2490 = vadd.f32 %v2042, %v2426
      %v2491 = vadd.f32 %v2043, %v2427
      %v2492 = vadd.f32 %v2044, %v2428
      %v2493 = vadd.f32 %v2045, %v2429
      %v2494 = vadd.f32 %v2046, %v2430
      %v2495 = vadd.f32 %v2047, %v2431
      %v2496 = vadd.f32 %v2048, %v2432
      %v2497 = vadd.f32 %v2049, %v2433
      %v2498 = vmul.f32 %v962, 0.25
      %v2499 = vmul.f32 %v963, 0.25
      %v2500 = vmul.f32 %v964, 0.25
      %v2501 = vmul.f32 %v965, 0.25
      %v2502 = vmul.f32 %v966, 0.25
      %v2503 = vmul.f32 %v967, 0.25
      %v2504 = vmul.f32 %v968, 0.25
      %v2505 = vmul.f32 %v969, 0.25
      %v2506 = vmul.f32 %v970, 0.25
      %v2507 = vmul.f32 %v971, 0.25
      %v2508 = vmul.f32 %v972, 0.25
      %v2509 = vmul.f32 %v973, 0.25
      %v2510 = vmul.f32 %v974, 0.25
      %v2511 = vmul.f32 %v975, 0.25
      %v2512 = vmul.f32 %v976, 0.25
      %v2513 = vmul.f32 %v977, 0.25
      %v2514 = vmul.f32 %v978, 0.25
      %v2515 = vmul.f32 %v979, 0.25
      %v2516 = vmul.f32 %v980, 0.25
      %v2517 = vmul.f32 %v981, 0.25
      %v2518 = vmul.f32 %v982, 0.25
      %v2519 = vmul.f32 %v983, 0.25
      %v2520 = vmul.f32 %v984, 0.25
      %v2521 = vmul.f32 %v985, 0.25
      %v2522 = vmul.f32 %v986, 0.25
      %v2523 = vmul.f32 %v987, 0.25
      %v2524 = vmul.f32 %v988, 0.25
      %v2525 = vmul.f32 %v989, 0.25
      %v2526 = vmul.f32 %v990, 0.25
      %v2527 = vmul.f32 %v991, 0.25
      %v2528 = vmul.f32 %v992, 0.25
      %v2529 = vmul.f32 %v993, 0.25
      %v2530 = vmul.f32 %v994, 0.25
      %v2531 = vmul.f32 %v995, 0.25
      %v2532 = vmul.f32 %v996, 0.25
      %v2533 = vmul.f32 %v997, 0.25
      %v2534 = vmul.f32 %v998, 0.25
      %v2535 = vmul.f32 %v999, 0.25
      %v2536 = vmul.f32 %v1000, 0.25
      %v2537 = vmul.f32 %v1001, 0.25
      %v2538 = vmul.f32 %v1002, 0.25
      %v2539 = vmul.f32 %v1003, 0.25
      %v2540 = vmul.f32 %v1004, 0.25
      %v2541 = vmul.f32 %v1005, 0.25
      %v2542 = vmul.f32 %v1006, 0.25
      %v2543 = vmul.f32 %v1007, 0.25
      %v2544 = vmul.f32 %v1008, 0.25
      %v2545 = vmul.f32 %v1009, 0.25
      %v2546 = vmul.f32 %v1010, 0.25
      %v2547 = vmul.f32 %v1011, 0.25
      %v2548 = vmul.f32 %v1012, 0.25
      %v2549 = vmul.f32 %v1013, 0.25
      %v2550 = vmul.f32 %v1014, 0.25
      %v2551 = vmul.f32 %v1015, 0.25
      %v2552 = vmul.f32 %v1016, 0.25
      %v2553 = vmul.f32 %v1017, 0.25
      %v2554 = vmul.f32 %v1018, 0.25
      %v2555 = vmul.f32 %v1019, 0.25
      %v2556 = vmul.f32 %v1020, 0.25
      %v2557 = vmul.f32 %v1021, 0.25
      %v2558 = vmul.f32 %v1022, 0.25
      %v2559 = vmul.f32 %v1023, 0.25
      %v2560 = vmul.f32 %v1024, 0.25
      %v2561 = vmul.f32 %v1025, 0.25
      %v2562 = vfloor.f32 %v2498
      %v2563 = vfloor.f32 %v2499
      %v2564 = vfloor.f32 %v2500
      %v2565 = vfloor.f32 %v2501
      %v2566 = vfloor.f32 %v2502
      %v2567 = vfloor.f32 %v2503
      %v2568 = vfloor.f32 %v2504
      %v2569 = vfloor.f32 %v2505
      %v2570 = vfloor.f32 %v2506
      %v2571 = vfloor.f32 %v2507
      %v2572 = vfloor.f32 %v2508
      %v2573 = vfloor.f32 %v2509
      %v2574 = vfloor.f32 %v2510
      %v2575 = vfloor.f32 %v2511
      %v2576 = vfloor.f32 %v2512
      %v2577 = vfloor.f32 %v2513
      %v2578 = vfloor.f32 %v2514
      %v2579 = vfloor.f32 %v2515
      %v2580 = vfloor.f32 %v2516
      %v2581 = vfloor.f32 %v2517
      %v2582 = vfloor.f32 %v2518
      %v2583 = vfloor.f32 %v2519
      %v2584 = vfloor.f32 %v2520
      %v2585 = vfloor.f32 %v2521
      %v2586 = vfloor.f32 %v2522
      %v2587 = vfloor.f32 %v2523
      %v2588 = vfloor.f32 %v2524
      %v2589 = vfloor.f32 %v2525
      %v2590 = vfloor.f32 %v2526
      %v2591 = vfloor.f32 %v2527
      %v2592 = vfloor.f32 %v2528
      %v2593 = vfloor.f32 %v2529
      %v2594 = vfloor.f32 %v2530
      %v2595 = vfloor.f32 %v2531
      %v2596 = vfloor.f32 %v2532
      %v2597 = vfloor.f32 %v2533
      %v2598 = vfloor.f32 %v2534
      %v2599 = vfloor.f32 %v2535
      %v2600 = vfloor.f32 %v2536
      %v2601 = vfloor.f32 %v2537
      %v2602 = vfloor.f32 %v2538
      %v2603 = vfloor.f32 %v2539
      %v2604 = vfloor.f32 %v2540
      %v2605 = vfloor.f32 %v2541
      %v2606 = vfloor.f32 %v2542
      %v2607 = vfloor.f32 %v2543
      %v2608 = vfloor.f32 %v2544
      %v2609 = vfloor.f32 %v2545
      %v2610 = vfloor.f32 %v2546
      %v2611 = vfloor.f32 %v2547
      %v2612 = vfloor.f32 %v2548
      %v2613 = vfloor.f32 %v2549
      %v2614 = vfloor.f32 %v2550
      %v2615 = vfloor.f32 %v2551
      %v2616 = vfloor.f32 %v2552
      %v2617 = vfloor.f32 %v2553
      %v2618 = vfloor.f32 %v2554
      %v2619 = vfloor.f32 %v2555
      %v2620 = vfloor.f32 %v2556
      %v2621 = vfloor.f32 %v2557
      %v2622 = vfloor.f32 %v2558
      %v2623 = vfloor.f32 %v2559
      %v2624 = vfloor.f32 %v2560
      %v2625 = vfloor.f32 %v2561
      %v2626 = vmul.f32 %v2562, 4.0
      %v2627 = vmul.f32 %v2563, 4.0
      %v2628 = vmul.f32 %v2564, 4.0
      %v2629 = vmul.f32 %v2565, 4.0
      %v2630 = vmul.f32 %v2566, 4.0
      %v2631 = vmul.f32 %v2567, 4.0
      %v2632 = vmul.f32 %v2568, 4.0
      %v2633 = vmul.f32 %v2569, 4.0
      %v2634 = vmul.f32 %v2570, 4.0
      %v2635 = vmul.f32 %v2571, 4.0
      %v2636 = vmul.f32 %v2572, 4.0
      %v2637 = vmul.f32 %v2573, 4.0
      %v2638 = vmul.f32 %v2574, 4.0
      %v2639 = vmul.f32 %v2575, 4.0
      %v2640 = vmul.f32 %v2576, 4.0
      %v2641 = vmul.f32 %v2577, 4.0
      %v2642 = vmul.f32 %v2578, 4.0
      %v2643 = vmul.f32 %v2579, 4.0
      %v2644 = vmul.f32 %v2580, 4.0
      %v2645 = vmul.f32 %v2581, 4.0
      %v2646 = vmul.f32 %v2582, 4.0
      %v2647 = vmul.f32 %v2583, 4.0
      %v2648 = vmul.f32 %v2584, 4.0
      %v2649 = vmul.f32 %v2585, 4.0
      %v2650 = vmul.f32 %v2586, 4.0
      %v2651 = vmul.f32 %v2587, 4.0
      %v2652 = vmul.f32 %v2588, 4.0
      %v2653 = vmul.f32 %v2589, 4.0
      %v2654 = vmul.f32 %v2590, 4.0
      %v2655 = vmul.f32 %v2591, 4.0
      %v2656 = vmul.f32 %v2592, 4.0
      %v2657 = vmul.f32 %v2593, 4.0
      %v2658 = vmul.f32 %v2594, 4.0
      %v2659 = vmul.f32 %v2595, 4.0
      %v2660 = vmul.f32 %v2596, 4.0
      %v2661 = vmul.f32 %v2597, 4.0
      %v2662 = vmul.f32 %v2598, 4.0
      %v2663 = vmul.f32 %v2599, 4.0
      %v2664 = vmul.f32 %v2600, 4.0
      %v2665 = vmul.f32 %v2601, 4.0
      %v2666 = vmul.f32 %v2602, 4.0
      %v2667 = vmul.f32 %v2603, 4.0
      %v2668 = vmul.f32 %v2604, 4.0
      %v2669 = vmul.f32 %v2605, 4.0
      %v2670 = vmul.f32 %v2606, 4.0
      %v2671 = vmul.f32 %v2607, 4.0
      %v2672 = vmul.f32 %v2608, 4.0
      %v2673 = vmul.f32 %v2609, 4.0
      %v2674 = vmul.f32 %v2610, 4.0
      %v2675 = vmul.f32 %v2611, 4.0
      %v2676 = vmul.f32 %v2612, 4.0
      %v2677 = vmul.f32 %v2613, 4.0
      %v2678 = vmul.f32 %v2614, 4.0
      %v2679 = vmul.f32 %v2615, 4.0
      %v2680 = vmul.f32 %v2616, 4.0
      %v2681 = vmul.f32 %v2617, 4.0
      %v2682 = vmul.f32 %v2618, 4.0
      %v2683 = vmul.f32 %v2619, 4.0
      %v2684 = vmul.f32 %v2620, 4.0
      %v2685 = vmul.f32 %v2621, 4.0
      %v2686 = vmul.f32 %v2622, 4.0
      %v2687 = vmul.f32 %v2623, 4.0
      %v2688 = vmul.f32 %v2624, 4.0
      %v2689 = vmul.f32 %v2625, 4.0
      %v2690 = vsub.f32 %v962, %v2626
      %v2691 = vsub.f32 %v963, %v2627
      %v2692 = vsub.f32 %v964, %v2628
      %v2693 = vsub.f32 %v965, %v2629
      %v2694 = vsub.f32 %v966, %v2630
      %v2695 = vsub.f32 %v967, %v2631
      %v2696 = vsub.f32 %v968, %v2632
      %v2697 = vsub.f32 %v969, %v2633
      %v2698 = vsub.f32 %v970, %v2634
      %v2699 = vsub.f32 %v971, %v2635
      %v2700 = vsub.f32 %v972, %v2636
      %v2701 = vsub.f32 %v973, %v2637
      %v2702 = vsub.f32 %v974, %v2638
      %v2703 = vsub.f32 %v975, %v2639
      %v2704 = vsub.f32 %v976, %v2640
      %v2705 = vsub.f32 %v977, %v2641
      %v2706 = vsub.f32 %v978, %v2642
      %v2707 = vsub.f32 %v979, %v2643
      %v2708 = vsub.f32 %v980, %v2644
      %v2709 = vsub.f32 %v981, %v2645
      %v2710 = vsub.f32 %v982, %v2646
      %v2711 = vsub.f32 %v983, %v2647
      %v2712 = vsub.f32 %v984, %v2648
      %v2713 = vsub.f32 %v985, %v2649
      %v2714 = vsub.f32 %v986, %v2650
      %v2715 = vsub.f32 %v987, %v2651
      %v2716 = vsub.f32 %v988, %v2652
      %v2717 = vsub.f32 %v989, %v2653
      %v2718 = vsub.f32 %v990, %v2654
      %v2719 = vsub.f32 %v991, %v2655
      %v2720 = vsub.f32 %v992, %v2656
      %v2721 = vsub.f32 %v993, %v2657
      %v2722 = vsub.f32 %v994, %v2658
      %v2723 = vsub.f32 %v995, %v2659
      %v2724 = vsub.f32 %v996, %v2660
      %v2725 = vsub.f32 %v997, %v2661
      %v2726 = vsub.f32 %v998, %v2662
      %v2727 = vsub.f32 %v999, %v2663
      %v2728 = vsub.f32 %v1000, %v2664
      %v2729 = vsub.f32 %v1001, %v2665
      %v2730 = vsub.f32 %v1002, %v2666
      %v2731 = vsub.f32 %v1003, %v2667
      %v2732 = vsub.f32 %v1004, %v2668
      %v2733 = vsub.f32 %v1005, %v2669
      %v2734 = vsub.f32 %v1006, %v2670
      %v2735 = vsub.f32 %v1007, %v2671
      %v2736 = vsub.f32 %v1008, %v2672
      %v2737 = vsub.f32 %v1009, %v2673
      %v2738 = vsub.f32 %v1010, %v2674
      %v2739 = vsub.f32 %v1011, %v2675
      %v2740 = vsub.f32 %v1012, %v2676
      %v2741 = vsub.f32 %v1013, %v2677
      %v2742 = vsub.f32 %v1014, %v2678
      %v2743 = vsub.f32 %v1015, %v2679
      %v2744 = vsub.f32 %v1016, %v2680
      %v2745 = vsub.f32 %v1017, %v2681
      %v2746 = vsub.f32 %v1018, %v2682
      %v2747 = vsub.f32 %v1019, %v2683
      %v2748 = vsub.f32 %v1020, %v2684
      %v2749 = vsub.f32 %v1021, %v2685
      %v2750 = vsub.f32 %v1022, %v2686
      %v2751 = vsub.f32 %v1023, %v2687
      %v2752 = vsub.f32 %v1024, %v2688
      %v2753 = vsub.f32 %v1025, %v2689
      %vm2754 = vcmp.eq.f32.partialorder %v2690, 1.0
      %vm2755 = vcmp.eq.f32.partialorder %v2691, 1.0
      %vm2756 = vcmp.eq.f32.partialorder %v2692, 1.0
      %vm2757 = vcmp.eq.f32.partialorder %v2693, 1.0
      %vm2758 = vcmp.eq.f32.partialorder %v2694, 1.0
      %vm2759 = vcmp.eq.f32.partialorder %v2695, 1.0
      %vm2760 = vcmp.eq.f32.partialorder %v2696, 1.0
      %vm2761 = vcmp.eq.f32.partialorder %v2697, 1.0
      %vm2762 = vcmp.eq.f32.partialorder %v2698, 1.0
      %vm2763 = vcmp.eq.f32.partialorder %v2699, 1.0
      %vm2764 = vcmp.eq.f32.partialorder %v2700, 1.0
      %vm2765 = vcmp.eq.f32.partialorder %v2701, 1.0
      %vm2766 = vcmp.eq.f32.partialorder %v2702, 1.0
      %vm2767 = vcmp.eq.f32.partialorder %v2703, 1.0
      %vm2768 = vcmp.eq.f32.partialorder %v2704, 1.0
      %vm2769 = vcmp.eq.f32.partialorder %v2705, 1.0
      %vm2770 = vcmp.eq.f32.partialorder %v2706, 1.0
      %vm2771 = vcmp.eq.f32.partialorder %v2707, 1.0
      %vm2772 = vcmp.eq.f32.partialorder %v2708, 1.0
      %vm2773 = vcmp.eq.f32.partialorder %v2709, 1.0
      %vm2774 = vcmp.eq.f32.partialorder %v2710, 1.0
      %vm2775 = vcmp.eq.f32.partialorder %v2711, 1.0
      %vm2776 = vcmp.eq.f32.partialorder %v2712, 1.0
      %vm2777 = vcmp.eq.f32.partialorder %v2713, 1.0
      %vm2778 = vcmp.eq.f32.partialorder %v2714, 1.0
      %vm2779 = vcmp.eq.f32.partialorder %v2715, 1.0
      %vm2780 = vcmp.eq.f32.partialorder %v2716, 1.0
      %vm2781 = vcmp.eq.f32.partialorder %v2717, 1.0
      %vm2782 = vcmp.eq.f32.partialorder %v2718, 1.0
      %vm2783 = vcmp.eq.f32.partialorder %v2719, 1.0
      %vm2784 = vcmp.eq.f32.partialorder %v2720, 1.0
      %vm2785 = vcmp.eq.f32.partialorder %v2721, 1.0
      %vm2786 = vcmp.eq.f32.partialorder %v2722, 1.0
      %vm2787 = vcmp.eq.f32.partialorder %v2723, 1.0
      %vm2788 = vcmp.eq.f32.partialorder %v2724, 1.0
      %vm2789 = vcmp.eq.f32.partialorder %v2725, 1.0
      %vm2790 = vcmp.eq.f32.partialorder %v2726, 1.0
      %vm2791 = vcmp.eq.f32.partialorder %v2727, 1.0
      %vm2792 = vcmp.eq.f32.partialorder %v2728, 1.0
      %vm2793 = vcmp.eq.f32.partialorder %v2729, 1.0
      %vm2794 = vcmp.eq.f32.partialorder %v2730, 1.0
      %vm2795 = vcmp.eq.f32.partialorder %v2731, 1.0
      %vm2796 = vcmp.eq.f32.partialorder %v2732, 1.0
      %vm2797 = vcmp.eq.f32.partialorder %v2733, 1.0
      %vm2798 = vcmp.eq.f32.partialorder %v2734, 1.0
      %vm2799 = vcmp.eq.f32.partialorder %v2735, 1.0
      %vm2800 = vcmp.eq.f32.partialorder %v2736, 1.0
      %vm2801 = vcmp.eq.f32.partialorder %v2737, 1.0
      %vm2802 = vcmp.eq.f32.partialorder %v2738, 1.0
      %vm2803 = vcmp.eq.f32.partialorder %v2739, 1.0
      %vm2804 = vcmp.eq.f32.partialorder %v2740, 1.0
      %vm2805 = vcmp.eq.f32.partialorder %v2741, 1.0
      %vm2806 = vcmp.eq.f32.partialorder %v2742, 1.0
      %vm2807 = vcmp.eq.f32.partialorder %v2743, 1.0
      %vm2808 = vcmp.eq.f32.partialorder %v2744, 1.0
      %vm2809 = vcmp.eq.f32.partialorder %v2745, 1.0
      %vm2810 = vcmp.eq.f32.partialorder %v2746, 1.0
      %vm2811 = vcmp.eq.f32.partialorder %v2747, 1.0
      %vm2812 = vcmp.eq.f32.partialorder %v2748, 1.0
      %vm2813 = vcmp.eq.f32.partialorder %v2749, 1.0
      %vm2814 = vcmp.eq.f32.partialorder %v2750, 1.0
      %vm2815 = vcmp.eq.f32.partialorder %v2751, 1.0
      %vm2816 = vcmp.eq.f32.partialorder %v2752, 1.0
      %vm2817 = vcmp.eq.f32.partialorder %v2753, 1.0
      %vm2818 = vcmp.eq.f32.partialorder %v2690, 2.0
      %vm2819 = vcmp.eq.f32.partialorder %v2691, 2.0
      %vm2820 = vcmp.eq.f32.partialorder %v2692, 2.0
      %vm2821 = vcmp.eq.f32.partialorder %v2693, 2.0
      %vm2822 = vcmp.eq.f32.partialorder %v2694, 2.0
      %vm2823 = vcmp.eq.f32.partialorder %v2695, 2.0
      %vm2824 = vcmp.eq.f32.partialorder %v2696, 2.0
      %vm2825 = vcmp.eq.f32.partialorder %v2697, 2.0
      %vm2826 = vcmp.eq.f32.partialorder %v2698, 2.0
      %vm2827 = vcmp.eq.f32.partialorder %v2699, 2.0
      %vm2828 = vcmp.eq.f32.partialorder %v2700, 2.0
      %vm2829 = vcmp.eq.f32.partialorder %v2701, 2.0
      %vm2830 = vcmp.eq.f32.partialorder %v2702, 2.0
      %vm2831 = vcmp.eq.f32.partialorder %v2703, 2.0
      %vm2832 = vcmp.eq.f32.partialorder %v2704, 2.0
      %vm2833 = vcmp.eq.f32.partialorder %v2705, 2.0
      %vm2834 = vcmp.eq.f32.partialorder %v2706, 2.0
      %vm2835 = vcmp.eq.f32.partialorder %v2707, 2.0
      %vm2836 = vcmp.eq.f32.partialorder %v2708, 2.0
      %vm2837 = vcmp.eq.f32.partialorder %v2709, 2.0
      %vm2838 = vcmp.eq.f32.partialorder %v2710, 2.0
      %vm2839 = vcmp.eq.f32.partialorder %v2711, 2.0
      %vm2840 = vcmp.eq.f32.partialorder %v2712, 2.0
      %vm2841 = vcmp.eq.f32.partialorder %v2713, 2.0
      %vm2842 = vcmp.eq.f32.partialorder %v2714, 2.0
      %vm2843 = vcmp.eq.f32.partialorder %v2715, 2.0
      %vm2844 = vcmp.eq.f32.partialorder %v2716, 2.0
      %vm2845 = vcmp.eq.f32.partialorder %v2717, 2.0
      %vm2846 = vcmp.eq.f32.partialorder %v2718, 2.0
      %vm2847 = vcmp.eq.f32.partialorder %v2719, 2.0
      %vm2848 = vcmp.eq.f32.partialorder %v2720, 2.0
      %vm2849 = vcmp.eq.f32.partialorder %v2721, 2.0
      %vm2850 = vcmp.eq.f32.partialorder %v2722, 2.0
      %vm2851 = vcmp.eq.f32.partialorder %v2723, 2.0
      %vm2852 = vcmp.eq.f32.partialorder %v2724, 2.0
      %vm2853 = vcmp.eq.f32.partialorder %v2725, 2.0
      %vm2854 = vcmp.eq.f32.partialorder %v2726, 2.0
      %vm2855 = vcmp.eq.f32.partialorder %v2727, 2.0
      %vm2856 = vcmp.eq.f32.partialorder %v2728, 2.0
      %vm2857 = vcmp.eq.f32.partialorder %v2729, 2.0
      %vm2858 = vcmp.eq.f32.partialorder %v2730, 2.0
      %vm2859 = vcmp.eq.f32.partialorder %v2731, 2.0
      %vm2860 = vcmp.eq.f32.partialorder %v2732, 2.0
      %vm2861 = vcmp.eq.f32.partialorder %v2733, 2.0
      %vm2862 = vcmp.eq.f32.partialorder %v2734, 2.0
      %vm2863 = vcmp.eq.f32.partialorder %v2735, 2.0
      %vm2864 = vcmp.eq.f32.partialorder %v2736, 2.0
      %vm2865 = vcmp.eq.f32.partialorder %v2737, 2.0
      %vm2866 = vcmp.eq.f32.partialorder %v2738, 2.0
      %vm2867 = vcmp.eq.f32.partialorder %v2739, 2.0
      %vm2868 = vcmp.eq.f32.partialorder %v2740, 2.0
      %vm2869 = vcmp.eq.f32.partialorder %v2741, 2.0
      %vm2870 = vcmp.eq.f32.partialorder %v2742, 2.0
      %vm2871 = vcmp.eq.f32.partialorder %v2743, 2.0
      %vm2872 = vcmp.eq.f32.partialorder %v2744, 2.0
      %vm2873 = vcmp.eq.f32.partialorder %v2745, 2.0
      %vm2874 = vcmp.eq.f32.partialorder %v2746, 2.0
      %vm2875 = vcmp.eq.f32.partialorder %v2747, 2.0
      %vm2876 = vcmp.eq.f32.partialorder %v2748, 2.0
      %vm2877 = vcmp.eq.f32.partialorder %v2749, 2.0
      %vm2878 = vcmp.eq.f32.partialorder %v2750, 2.0
      %vm2879 = vcmp.eq.f32.partialorder %v2751, 2.0
      %vm2880 = vcmp.eq.f32.partialorder %v2752, 2.0
      %vm2881 = vcmp.eq.f32.partialorder %v2753, 2.0
      %vm2882 = vcmp.eq.f32.partialorder %v2690, 3.0
      %vm2883 = vcmp.eq.f32.partialorder %v2691, 3.0
      %vm2884 = vcmp.eq.f32.partialorder %v2692, 3.0
      %vm2885 = vcmp.eq.f32.partialorder %v2693, 3.0
      %vm2886 = vcmp.eq.f32.partialorder %v2694, 3.0
      %vm2887 = vcmp.eq.f32.partialorder %v2695, 3.0
      %vm2888 = vcmp.eq.f32.partialorder %v2696, 3.0
      %vm2889 = vcmp.eq.f32.partialorder %v2697, 3.0
      %vm2890 = vcmp.eq.f32.partialorder %v2698, 3.0
      %vm2891 = vcmp.eq.f32.partialorder %v2699, 3.0
      %vm2892 = vcmp.eq.f32.partialorder %v2700, 3.0
      %vm2893 = vcmp.eq.f32.partialorder %v2701, 3.0
      %vm2894 = vcmp.eq.f32.partialorder %v2702, 3.0
      %vm2895 = vcmp.eq.f32.partialorder %v2703, 3.0
      %vm2896 = vcmp.eq.f32.partialorder %v2704, 3.0
      %vm2897 = vcmp.eq.f32.partialorder %v2705, 3.0
      %vm2898 = vcmp.eq.f32.partialorder %v2706, 3.0
      %vm2899 = vcmp.eq.f32.partialorder %v2707, 3.0
      %vm2900 = vcmp.eq.f32.partialorder %v2708, 3.0
      %vm2901 = vcmp.eq.f32.partialorder %v2709, 3.0
      %vm2902 = vcmp.eq.f32.partialorder %v2710, 3.0
      %vm2903 = vcmp.eq.f32.partialorder %v2711, 3.0
      %vm2904 = vcmp.eq.f32.partialorder %v2712, 3.0
      %vm2905 = vcmp.eq.f32.partialorder %v2713, 3.0
      %vm2906 = vcmp.eq.f32.partialorder %v2714, 3.0
      %vm2907 = vcmp.eq.f32.partialorder %v2715, 3.0
      %vm2908 = vcmp.eq.f32.partialorder %v2716, 3.0
      %vm2909 = vcmp.eq.f32.partialorder %v2717, 3.0
      %vm2910 = vcmp.eq.f32.partialorder %v2718, 3.0
      %vm2911 = vcmp.eq.f32.partialorder %v2719, 3.0
      %vm2912 = vcmp.eq.f32.partialorder %v2720, 3.0
      %vm2913 = vcmp.eq.f32.partialorder %v2721, 3.0
      %vm2914 = vcmp.eq.f32.partialorder %v2722, 3.0
      %vm2915 = vcmp.eq.f32.partialorder %v2723, 3.0
      %vm2916 = vcmp.eq.f32.partialorder %v2724, 3.0
      %vm2917 = vcmp.eq.f32.partialorder %v2725, 3.0
      %vm2918 = vcmp.eq.f32.partialorder %v2726, 3.0
      %vm2919 = vcmp.eq.f32.partialorder %v2727, 3.0
      %vm2920 = vcmp.eq.f32.partialorder %v2728, 3.0
      %vm2921 = vcmp.eq.f32.partialorder %v2729, 3.0
      %vm2922 = vcmp.eq.f32.partialorder %v2730, 3.0
      %vm2923 = vcmp.eq.f32.partialorder %v2731, 3.0
      %vm2924 = vcmp.eq.f32.partialorder %v2732, 3.0
      %vm2925 = vcmp.eq.f32.partialorder %v2733, 3.0
      %vm2926 = vcmp.eq.f32.partialorder %v2734, 3.0
      %vm2927 = vcmp.eq.f32.partialorder %v2735, 3.0
      %vm2928 = vcmp.eq.f32.partialorder %v2736, 3.0
      %vm2929 = vcmp.eq.f32.partialorder %v2737, 3.0
      %vm2930 = vcmp.eq.f32.partialorder %v2738, 3.0
      %vm2931 = vcmp.eq.f32.partialorder %v2739, 3.0
      %vm2932 = vcmp.eq.f32.partialorder %v2740, 3.0
      %vm2933 = vcmp.eq.f32.partialorder %v2741, 3.0
      %vm2934 = vcmp.eq.f32.partialorder %v2742, 3.0
      %vm2935 = vcmp.eq.f32.partialorder %v2743, 3.0
      %vm2936 = vcmp.eq.f32.partialorder %v2744, 3.0
      %vm2937 = vcmp.eq.f32.partialorder %v2745, 3.0
      %vm2938 = vcmp.eq.f32.partialorder %v2746, 3.0
      %vm2939 = vcmp.eq.f32.partialorder %v2747, 3.0
      %vm2940 = vcmp.eq.f32.partialorder %v2748, 3.0
      %vm2941 = vcmp.eq.f32.partialorder %v2749, 3.0
      %vm2942 = vcmp.eq.f32.partialorder %v2750, 3.0
      %vm2943 = vcmp.eq.f32.partialorder %v2751, 3.0
      %vm2944 = vcmp.eq.f32.partialorder %v2752, 3.0
      %vm2945 = vcmp.eq.f32.partialorder %v2753, 3.0
      %v2946 = vsub.f32 0.0, %v1858
      %v2947 = vsub.f32 0.0, %v1859
      %v2948 = vsub.f32 0.0, %v1860
      %v2949 = vsub.f32 0.0, %v1861
      %v2950 = vsub.f32 0.0, %v1862
      %v2951 = vsub.f32 0.0, %v1863
      %v2952 = vsub.f32 0.0, %v1864
      %v2953 = vsub.f32 0.0, %v1865
      %v2954 = vsub.f32 0.0, %v1866
      %v2955 = vsub.f32 0.0, %v1867
      %v2956 = vsub.f32 0.0, %v1868
      %v2957 = vsub.f32 0.0, %v1869
      %v2958 = vsub.f32 0.0, %v1870
      %v2959 = vsub.f32 0.0, %v1871
      %v2960 = vsub.f32 0.0, %v1872
      %v2961 = vsub.f32 0.0, %v1873
      %v2962 = vsub.f32 0.0, %v1874
      %v2963 = vsub.f32 0.0, %v1875
      %v2964 = vsub.f32 0.0, %v1876
      %v2965 = vsub.f32 0.0, %v1877
      %v2966 = vsub.f32 0.0, %v1878
      %v2967 = vsub.f32 0.0, %v1879
      %v2968 = vsub.f32 0.0, %v1880
      %v2969 = vsub.f32 0.0, %v1881
      %v2970 = vsub.f32 0.0, %v1882
      %v2971 = vsub.f32 0.0, %v1883
      %v2972 = vsub.f32 0.0, %v1884
      %v2973 = vsub.f32 0.0, %v1885
      %v2974 = vsub.f32 0.0, %v1886
      %v2975 = vsub.f32 0.0, %v1887
      %v2976 = vsub.f32 0.0, %v1888
      %v2977 = vsub.f32 0.0, %v1889
      %v2978 = vsub.f32 0.0, %v1890
      %v2979 = vsub.f32 0.0, %v1891
      %v2980 = vsub.f32 0.0, %v1892
      %v2981 = vsub.f32 0.0, %v1893
      %v2982 = vsub.f32 0.0, %v1894
      %v2983 = vsub.f32 0.0, %v1895
      %v2984 = vsub.f32 0.0, %v1896
      %v2985 = vsub.f32 0.0, %v1897
      %v2986 = vsub.f32 0.0, %v1898
      %v2987 = vsub.f32 0.0, %v1899
      %v2988 = vsub.f32 0.0, %v1900
      %v2989 = vsub.f32 0.0, %v1901
      %v2990 = vsub.f32 0.0, %v1902
      %v2991 = vsub.f32 0.0, %v1903
      %v2992 = vsub.f32 0.0, %v1904
      %v2993 = vsub.f32 0.0, %v1905
      %v2994 = vsub.f32 0.0, %v1906
      %v2995 = vsub.f32 0.0, %v1907
      %v2996 = vsub.f32 0.0, %v1908
      %v2997 = vsub.f32 0.0, %v1909
      %v2998 = vsub.f32 0.0, %v1910
      %v2999 = vsub.f32 0.0, %v1911
      %v3000 = vsub.f32 0.0, %v1912
      %v3001 = vsub.f32 0.0, %v1913
      %v3002 = vsub.f32 0.0, %v1914
      %v3003 = vsub.f32 0.0, %v1915
      %v3004 = vsub.f32 0.0, %v1916
      %v3005 = vsub.f32 0.0, %v1917
      %v3006 = vsub.f32 0.0, %v1918
      %v3007 = vsub.f32 0.0, %v1919
      %v3008 = vsub.f32 0.0, %v1920
      %v3009 = vsub.f32 0.0, %v1921
      %v3010 = vsub.f32 0.0, %v2434
      %v3011 = vsub.f32 0.0, %v2435
      %v3012 = vsub.f32 0.0, %v2436
      %v3013 = vsub.f32 0.0, %v2437
      %v3014 = vsub.f32 0.0, %v2438
      %v3015 = vsub.f32 0.0, %v2439
      %v3016 = vsub.f32 0.0, %v2440
      %v3017 = vsub.f32 0.0, %v2441
      %v3018 = vsub.f32 0.0, %v2442
      %v3019 = vsub.f32 0.0, %v2443
      %v3020 = vsub.f32 0.0, %v2444
      %v3021 = vsub.f32 0.0, %v2445
      %v3022 = vsub.f32 0.0, %v2446
      %v3023 = vsub.f32 0.0, %v2447
      %v3024 = vsub.f32 0.0, %v2448
      %v3025 = vsub.f32 0.0, %v2449
      %v3026 = vsub.f32 0.0, %v2450
      %v3027 = vsub.f32 0.0, %v2451
      %v3028 = vsub.f32 0.0, %v2452
      %v3029 = vsub.f32 0.0, %v2453
      %v3030 = vsub.f32 0.0, %v2454
      %v3031 = vsub.f32 0.0, %v2455
      %v3032 = vsub.f32 0.0, %v2456
      %v3033 = vsub.f32 0.0, %v2457
      %v3034 = vsub.f32 0.0, %v2458
      %v3035 = vsub.f32 0.0, %v2459
      %v3036 = vsub.f32 0.0, %v2460
      %v3037 = vsub.f32 0.0, %v2461
      %v3038 = vsub.f32 0.0, %v2462
      %v3039 = vsub.f32 0.0, %v2463
      %v3040 = vsub.f32 0.0, %v2464
      %v3041 = vsub.f32 0.0, %v2465
      %v3042 = vsub.f32 0.0, %v2466
      %v3043 = vsub.f32 0.0, %v2467
      %v3044 = vsub.f32 0.0, %v2468
      %v3045 = vsub.f32 0.0, %v2469
      %v3046 = vsub.f32 0.0, %v2470
      %v3047 = vsub.f32 0.0, %v2471
      %v3048 = vsub.f32 0.0, %v2472
      %v3049 = vsub.f32 0.0, %v2473
      %v3050 = vsub.f32 0.0, %v2474
      %v3051 = vsub.f32 0.0, %v2475
      %v3052 = vsub.f32 0.0, %v2476
      %v3053 = vsub.f32 0.0, %v2477
      %v3054 = vsub.f32 0.0, %v2478
      %v3055 = vsub.f32 0.0, %v2479
      %v3056 = vsub.f32 0.0, %v2480
      %v3057 = vsub.f32 0.0, %v2481
      %v3058 = vsub.f32 0.0, %v2482
      %v3059 = vsub.f32 0.0, %v2483
      %v3060 = vsub.f32 0.0, %v2484
      %v3061 = vsub.f32 0.0, %v2485
      %v3062 = vsub.f32 0.0, %v2486
      %v3063 = vsub.f32 0.0, %v2487
      %v3064 = vsub.f32 0.0, %v2488
      %v3065 = vsub.f32 0.0, %v2489
      %v3066 = vsub.f32 0.0, %v2490
      %v3067 = vsub.f32 0.0, %v2491
      %v3068 = vsub.f32 0.0, %v2492
      %v3069 = vsub.f32 0.0, %v2493
      %v3070 = vsub.f32 0.0, %v2494
      %v3071 = vsub.f32 0.0, %v2495
      %v3072 = vsub.f32 0.0, %v2496
      %v3073 = vsub.f32 0.0, %v2497
      %v3074 = vsel %vm2882, %v3010, %v1858
      %v3075 = vsel %vm2883, %v3011, %v1859
      %v3076 = vsel %vm2884, %v3012, %v1860
      %v3077 = vsel %vm2885, %v3013, %v1861
      %v3078 = vsel %vm2886, %v3014, %v1862
      %v3079 = vsel %vm2887, %v3015, %v1863
      %v3080 = vsel %vm2888, %v3016, %v1864
      %v3081 = vsel %vm2889, %v3017, %v1865
      %v3082 = vsel %vm2890, %v3018, %v1866
      %v3083 = vsel %vm2891, %v3019, %v1867
      %v3084 = vsel %vm2892, %v3020, %v1868
      %v3085 = vsel %vm2893, %v3021, %v1869
      %v3086 = vsel %vm2894, %v3022, %v1870
      %v3087 = vsel %vm2895, %v3023, %v1871
      %v3088 = vsel %vm2896, %v3024, %v1872
      %v3089 = vsel %vm2897, %v3025, %v1873
      %v3090 = vsel %vm2898, %v3026, %v1874
      %v3091 = vsel %vm2899, %v3027, %v1875
      %v3092 = vsel %vm2900, %v3028, %v1876
      %v3093 = vsel %vm2901, %v3029, %v1877
      %v3094 = vsel %vm2902, %v3030, %v1878
      %v3095 = vsel %vm2903, %v3031, %v1879
      %v3096 = vsel %vm2904, %v3032, %v1880
      %v3097 = vsel %vm2905, %v3033, %v1881
      %v3098 = vsel %vm2906, %v3034, %v1882
      %v3099 = vsel %vm2907, %v3035, %v1883
      %v3100 = vsel %vm2908, %v3036, %v1884
      %v3101 = vsel %vm2909, %v3037, %v1885
      %v3102 = vsel %vm2910, %v3038, %v1886
      %v3103 = vsel %vm2911, %v3039, %v1887
      %v3104 = vsel %vm2912, %v3040, %v1888
      %v3105 = vsel %vm2913, %v3041, %v1889
      %v3106 = vsel %vm2914, %v3042, %v1890
      %v3107 = vsel %vm2915, %v3043, %v1891
      %v3108 = vsel %vm2916, %v3044, %v1892
      %v3109 = vsel %vm2917, %v3045, %v1893
      %v3110 = vsel %vm2918, %v3046, %v1894
      %v3111 = vsel %vm2919, %v3047, %v1895
      %v3112 = vsel %vm2920, %v3048, %v1896
      %v3113 = vsel %vm2921, %v3049, %v1897
      %v3114 = vsel %vm2922, %v3050, %v1898
      %v3115 = vsel %vm2923, %v3051, %v1899
      %v3116 = vsel %vm2924, %v3052, %v1900
      %v3117 = vsel %vm2925, %v3053, %v1901
      %v3118 = vsel %vm2926, %v3054, %v1902
      %v3119 = vsel %vm2927, %v3055, %v1903
      %v3120 = vsel %vm2928, %v3056, %v1904
      %v3121 = vsel %vm2929, %v3057, %v1905
      %v3122 = vsel %vm2930, %v3058, %v1906
      %v3123 = vsel %vm2931, %v3059, %v1907
      %v3124 = vsel %vm2932, %v3060, %v1908
      %v3125 = vsel %vm2933, %v3061, %v1909
      %v3126 = vsel %vm2934, %v3062, %v1910
      %v3127 = vsel %vm2935, %v3063, %v1911
      %v3128 = vsel %vm2936, %v3064, %v1912
      %v3129 = vsel %vm2937, %v3065, %v1913
      %v3130 = vsel %vm2938, %v3066, %v1914
      %v3131 = vsel %vm2939, %v3067, %v1915
      %v3132 = vsel %vm2940, %v3068, %v1916
      %v3133 = vsel %vm2941, %v3069, %v1917
      %v3134 = vsel %vm2942, %v3070, %v1918
      %v3135 = vsel %vm2943, %v3071, %v1919
      %v3136 = vsel %vm2944, %v3072, %v1920
      %v3137 = vsel %vm2945, %v3073, %v1921
      %v3138 = vsel %vm2818, %v2946, %v3074
      %v3139 = vsel %vm2819, %v2947, %v3075
      %v3140 = vsel %vm2820, %v2948, %v3076
      %v3141 = vsel %vm2821, %v2949, %v3077
      %v3142 = vsel %vm2822, %v2950, %v3078
      %v3143 = vsel %vm2823, %v2951, %v3079
      %v3144 = vsel %vm2824, %v2952, %v3080
      %v3145 = vsel %vm2825, %v2953, %v3081
      %v3146 = vsel %vm2826, %v2954, %v3082
      %v3147 = vsel %vm2827, %v2955, %v3083
      %v3148 = vsel %vm2828, %v2956, %v3084
      %v3149 = vsel %vm2829, %v2957, %v3085
      %v3150 = vsel %vm2830, %v2958, %v3086
      %v3151 = vsel %vm2831, %v2959, %v3087
      %v3152 = vsel %vm2832, %v2960, %v3088
      %v3153 = vsel %vm2833, %v2961, %v3089
      %v3154 = vsel %vm2834, %v2962, %v3090
      %v3155 = vsel %vm2835, %v2963, %v3091
      %v3156 = vsel %vm2836, %v2964, %v3092
      %v3157 = vsel %vm2837, %v2965, %v3093
      %v3158 = vsel %vm2838, %v2966, %v3094
      %v3159 = vsel %vm2839, %v2967, %v3095
      %v3160 = vsel %vm2840, %v2968, %v3096
      %v3161 = vsel %vm2841, %v2969, %v3097
      %v3162 = vsel %vm2842, %v2970, %v3098
      %v3163 = vsel %vm2843, %v2971, %v3099
      %v3164 = vsel %vm2844, %v2972, %v3100
      %v3165 = vsel %vm2845, %v2973, %v3101
      %v3166 = vsel %vm2846, %v2974, %v3102
      %v3167 = vsel %vm2847, %v2975, %v3103
      %v3168 = vsel %vm2848, %v2976, %v3104
      %v3169 = vsel %vm2849, %v2977, %v3105
      %v3170 = vsel %vm2850, %v2978, %v3106
      %v3171 = vsel %vm2851, %v2979, %v3107
      %v3172 = vsel %vm2852, %v2980, %v3108
      %v3173 = vsel %vm2853, %v2981, %v3109
      %v3174 = vsel %vm2854, %v2982, %v3110
      %v3175 = vsel %vm2855, %v2983, %v3111
      %v3176 = vsel %vm2856, %v2984, %v3112
      %v3177 = vsel %vm2857, %v2985, %v3113
      %v3178 = vsel %vm2858, %v2986, %v3114
      %v3179 = vsel %vm2859, %v2987, %v3115
      %v3180 = vsel %vm2860, %v2988, %v3116
      %v3181 = vsel %vm2861, %v2989, %v3117
      %v3182 = vsel %vm2862, %v2990, %v3118
      %v3183 = vsel %vm2863, %v2991, %v3119
      %v3184 = vsel %vm2864, %v2992, %v3120
      %v3185 = vsel %vm2865, %v2993, %v3121
      %v3186 = vsel %vm2866, %v2994, %v3122
      %v3187 = vsel %vm2867, %v2995, %v3123
      %v3188 = vsel %vm2868, %v2996, %v3124
      %v3189 = vsel %vm2869, %v2997, %v3125
      %v3190 = vsel %vm2870, %v2998, %v3126
      %v3191 = vsel %vm2871, %v2999, %v3127
      %v3192 = vsel %vm2872, %v3000, %v3128
      %v3193 = vsel %vm2873, %v3001, %v3129
      %v3194 = vsel %vm2874, %v3002, %v3130
      %v3195 = vsel %vm2875, %v3003, %v3131
      %v3196 = vsel %vm2876, %v3004, %v3132
      %v3197 = vsel %vm2877, %v3005, %v3133
      %v3198 = vsel %vm2878, %v3006, %v3134
      %v3199 = vsel %vm2879, %v3007, %v3135
      %v3200 = vsel %vm2880, %v3008, %v3136
      %v3201 = vsel %vm2881, %v3009, %v3137
      %v3202 = vsel %vm2754, %v2434, %v3138
      %v3203 = vsel %vm2755, %v2435, %v3139
      %v3204 = vsel %vm2756, %v2436, %v3140
      %v3205 = vsel %vm2757, %v2437, %v3141
      %v3206 = vsel %vm2758, %v2438, %v3142
      %v3207 = vsel %vm2759, %v2439, %v3143
      %v3208 = vsel %vm2760, %v2440, %v3144
      %v3209 = vsel %vm2761, %v2441, %v3145
      %v3210 = vsel %vm2762, %v2442, %v3146
      %v3211 = vsel %vm2763, %v2443, %v3147
      %v3212 = vsel %vm2764, %v2444, %v3148
      %v3213 = vsel %vm2765, %v2445, %v3149
      %v3214 = vsel %vm2766, %v2446, %v3150
      %v3215 = vsel %vm2767, %v2447, %v3151
      %v3216 = vsel %vm2768, %v2448, %v3152
      %v3217 = vsel %vm2769, %v2449, %v3153
      %v3218 = vsel %vm2770, %v2450, %v3154
      %v3219 = vsel %vm2771, %v2451, %v3155
      %v3220 = vsel %vm2772, %v2452, %v3156
      %v3221 = vsel %vm2773, %v2453, %v3157
      %v3222 = vsel %vm2774, %v2454, %v3158
      %v3223 = vsel %vm2775, %v2455, %v3159
      %v3224 = vsel %vm2776, %v2456, %v3160
      %v3225 = vsel %vm2777, %v2457, %v3161
      %v3226 = vsel %vm2778, %v2458, %v3162
      %v3227 = vsel %vm2779, %v2459, %v3163
      %v3228 = vsel %vm2780, %v2460, %v3164
      %v3229 = vsel %vm2781, %v2461, %v3165
      %v3230 = vsel %vm2782, %v2462, %v3166
      %v3231 = vsel %vm2783, %v2463, %v3167
      %v3232 = vsel %vm2784, %v2464, %v3168
      %v3233 = vsel %vm2785, %v2465, %v3169
      %v3234 = vsel %vm2786, %v2466, %v3170
      %v3235 = vsel %vm2787, %v2467, %v3171
      %v3236 = vsel %vm2788, %v2468, %v3172
      %v3237 = vsel %vm2789, %v2469, %v3173
      %v3238 = vsel %vm2790, %v2470, %v3174
      %v3239 = vsel %vm2791, %v2471, %v3175
      %v3240 = vsel %vm2792, %v2472, %v3176
      %v3241 = vsel %vm2793, %v2473, %v3177
      %v3242 = vsel %vm2794, %v2474, %v3178
      %v3243 = vsel %vm2795, %v2475, %v3179
      %v3244 = vsel %vm2796, %v2476, %v3180
      %v3245 = vsel %vm2797, %v2477, %v3181
      %v3246 = vsel %vm2798, %v2478, %v3182
      %v3247 = vsel %vm2799, %v2479, %v3183
      %v3248 = vsel %vm2800, %v2480, %v3184
      %v3249 = vsel %vm2801, %v2481, %v3185
      %v3250 = vsel %vm2802, %v2482, %v3186
      %v3251 = vsel %vm2803, %v2483, %v3187
      %v3252 = vsel %vm2804, %v2484, %v3188
      %v3253 = vsel %vm2805, %v2485, %v3189
      %v3254 = vsel %vm2806, %v2486, %v3190
      %v3255 = vsel %vm2807, %v2487, %v3191
      %v3256 = vsel %vm2808, %v2488, %v3192
      %v3257 = vsel %vm2809, %v2489, %v3193
      %v3258 = vsel %vm2810, %v2490, %v3194
      %v3259 = vsel %vm2811, %v2491, %v3195
      %v3260 = vsel %vm2812, %v2492, %v3196
      %v3261 = vsel %vm2813, %v2493, %v3197
      %v3262 = vsel %vm2814, %v2494, %v3198
      %v3263 = vsel %vm2815, %v2495, %v3199
      %v3264 = vsel %vm2816, %v2496, %v3200
      %v3265 = vsel %vm2817, %v2497, %v3201
      %v3266 = vsel %vm2882, %v1858, %v2434
      %v3267 = vsel %vm2883, %v1859, %v2435
      %v3268 = vsel %vm2884, %v1860, %v2436
      %v3269 = vsel %vm2885, %v1861, %v2437
      %v3270 = vsel %vm2886, %v1862, %v2438
      %v3271 = vsel %vm2887, %v1863, %v2439
      %v3272 = vsel %vm2888, %v1864, %v2440
      %v3273 = vsel %vm2889, %v1865, %v2441
      %v3274 = vsel %vm2890, %v1866, %v2442
      %v3275 = vsel %vm2891, %v1867, %v2443
      %v3276 = vsel %vm2892, %v1868, %v2444
      %v3277 = vsel %vm2893, %v1869, %v2445
      %v3278 = vsel %vm2894, %v1870, %v2446
      %v3279 = vsel %vm2895, %v1871, %v2447
      %v3280 = vsel %vm2896, %v1872, %v2448
      %v3281 = vsel %vm2897, %v1873, %v2449
      %v3282 = vsel %vm2898, %v1874, %v2450
      %v3283 = vsel %vm2899, %v1875, %v2451
      %v3284 = vsel %vm2900, %v1876, %v2452
      %v3285 = vsel %vm2901, %v1877, %v2453
      %v3286 = vsel %vm2902, %v1878, %v2454
      %v3287 = vsel %vm2903, %v1879, %v2455
      %v3288 = vsel %vm2904, %v1880, %v2456
      %v3289 = vsel %vm2905, %v1881, %v2457
      %v3290 = vsel %vm2906, %v1882, %v2458
      %v3291 = vsel %vm2907, %v1883, %v2459
      %v3292 = vsel %vm2908, %v1884, %v2460
      %v3293 = vsel %vm2909, %v1885, %v2461
      %v3294 = vsel %vm2910, %v1886, %v2462
      %v3295 = vsel %vm2911, %v1887, %v2463
      %v3296 = vsel %vm2912, %v1888, %v2464
      %v3297 = vsel %vm2913, %v1889, %v2465
      %v3298 = vsel %vm2914, %v1890, %v2466
      %v3299 = vsel %vm2915, %v1891, %v2467
      %v3300 = vsel %vm2916, %v1892, %v2468
      %v3301 = vsel %vm2917, %v1893, %v2469
      %v3302 = vsel %vm2918, %v1894, %v2470
      %v3303 = vsel %vm2919, %v1895, %v2471
      %v3304 = vsel %vm2920, %v1896, %v2472
      %v3305 = vsel %vm2921, %v1897, %v2473
      %v3306 = vsel %vm2922, %v1898, %v2474
      %v3307 = vsel %vm2923, %v1899, %v2475
      %v3308 = vsel %vm2924, %v1900, %v2476
      %v3309 = vsel %vm2925, %v1901, %v2477
      %v3310 = vsel %vm2926, %v1902, %v2478
      %v3311 = vsel %vm2927, %v1903, %v2479
      %v3312 = vsel %vm2928, %v1904, %v2480
      %v3313 = vsel %vm2929, %v1905, %v2481
      %v3314 = vsel %vm2930, %v1906, %v2482
      %v3315 = vsel %vm2931, %v1907, %v2483
      %v3316 = vsel %vm2932, %v1908, %v2484
      %v3317 = vsel %vm2933, %v1909, %v2485
      %v3318 = vsel %vm2934, %v1910, %v2486
      %v3319 = vsel %vm2935, %v1911, %v2487
      %v3320 = vsel %vm2936, %v1912, %v2488
      %v3321 = vsel %vm2937, %v1913, %v2489
      %v3322 = vsel %vm2938, %v1914, %v2490
      %v3323 = vsel %vm2939, %v1915, %v2491
      %v3324 = vsel %vm2940, %v1916, %v2492
      %v3325 = vsel %vm2941, %v1917, %v2493
      %v3326 = vsel %vm2942, %v1918, %v2494
      %v3327 = vsel %vm2943, %v1919, %v2495
      %v3328 = vsel %vm2944, %v1920, %v2496
      %v3329 = vsel %vm2945, %v1921, %v2497
      %v3330 = vsel %vm2818, %v3010, %v3266
      %v3331 = vsel %vm2819, %v3011, %v3267
      %v3332 = vsel %vm2820, %v3012, %v3268
      %v3333 = vsel %vm2821, %v3013, %v3269
      %v3334 = vsel %vm2822, %v3014, %v3270
      %v3335 = vsel %vm2823, %v3015, %v3271
      %v3336 = vsel %vm2824, %v3016, %v3272
      %v3337 = vsel %vm2825, %v3017, %v3273
      %v3338 = vsel %vm2826, %v3018, %v3274
      %v3339 = vsel %vm2827, %v3019, %v3275
      %v3340 = vsel %vm2828, %v3020, %v3276
      %v3341 = vsel %vm2829, %v3021, %v3277
      %v3342 = vsel %vm2830, %v3022, %v3278
      %v3343 = vsel %vm2831, %v3023, %v3279
      %v3344 = vsel %vm2832, %v3024, %v3280
      %v3345 = vsel %vm2833, %v3025, %v3281
      %v3346 = vsel %vm2834, %v3026, %v3282
      %v3347 = vsel %vm2835, %v3027, %v3283
      %v3348 = vsel %vm2836, %v3028, %v3284
      %v3349 = vsel %vm2837, %v3029, %v3285
      %v3350 = vsel %vm2838, %v3030, %v3286
      %v3351 = vsel %vm2839, %v3031, %v3287
      %v3352 = vsel %vm2840, %v3032, %v3288
      %v3353 = vsel %vm2841, %v3033, %v3289
      %v3354 = vsel %vm2842, %v3034, %v3290
      %v3355 = vsel %vm2843, %v3035, %v3291
      %v3356 = vsel %vm2844, %v3036, %v3292
      %v3357 = vsel %vm2845, %v3037, %v3293
      %v3358 = vsel %vm2846, %v3038, %v3294
      %v3359 = vsel %vm2847, %v3039, %v3295
      %v3360 = vsel %vm2848, %v3040, %v3296
      %v3361 = vsel %vm2849, %v3041, %v3297
      %v3362 = vsel %vm2850, %v3042, %v3298
      %v3363 = vsel %vm2851, %v3043, %v3299
      %v3364 = vsel %vm2852, %v3044, %v3300
      %v3365 = vsel %vm2853, %v3045, %v3301
      %v3366 = vsel %vm2854, %v3046, %v3302
      %v3367 = vsel %vm2855, %v3047, %v3303
      %v3368 = vsel %vm2856, %v3048, %v3304
      %v3369 = vsel %vm2857, %v3049, %v3305
      %v3370 = vsel %vm2858, %v3050, %v3306
      %v3371 = vsel %vm2859, %v3051, %v3307
      %v3372 = vsel %vm2860, %v3052, %v3308
      %v3373 = vsel %vm2861, %v3053, %v3309
      %v3374 = vsel %vm2862, %v3054, %v3310
      %v3375 = vsel %vm2863, %v3055, %v3311
      %v3376 = vsel %vm2864, %v3056, %v3312
      %v3377 = vsel %vm2865, %v3057, %v3313
      %v3378 = vsel %vm2866, %v3058, %v3314
      %v3379 = vsel %vm2867, %v3059, %v3315
      %v3380 = vsel %vm2868, %v3060, %v3316
      %v3381 = vsel %vm2869, %v3061, %v3317
      %v3382 = vsel %vm2870, %v3062, %v3318
      %v3383 = vsel %vm2871, %v3063, %v3319
      %v3384 = vsel %vm2872, %v3064, %v3320
      %v3385 = vsel %vm2873, %v3065, %v3321
      %v3386 = vsel %vm2874, %v3066, %v3322
      %v3387 = vsel %vm2875, %v3067, %v3323
      %v3388 = vsel %vm2876, %v3068, %v3324
      %v3389 = vsel %vm2877, %v3069, %v3325
      %v3390 = vsel %vm2878, %v3070, %v3326
      %v3391 = vsel %vm2879, %v3071, %v3327
      %v3392 = vsel %vm2880, %v3072, %v3328
      %v3393 = vsel %vm2881, %v3073, %v3329
      %v3394 = vsel %vm2754, %v2946, %v3330
      %v3395 = vsel %vm2755, %v2947, %v3331
      %v3396 = vsel %vm2756, %v2948, %v3332
      %v3397 = vsel %vm2757, %v2949, %v3333
      %v3398 = vsel %vm2758, %v2950, %v3334
      %v3399 = vsel %vm2759, %v2951, %v3335
      %v3400 = vsel %vm2760, %v2952, %v3336
      %v3401 = vsel %vm2761, %v2953, %v3337
      %v3402 = vsel %vm2762, %v2954, %v3338
      %v3403 = vsel %vm2763, %v2955, %v3339
      %v3404 = vsel %vm2764, %v2956, %v3340
      %v3405 = vsel %vm2765, %v2957, %v3341
      %v3406 = vsel %vm2766, %v2958, %v3342
      %v3407 = vsel %vm2767, %v2959, %v3343
      %v3408 = vsel %vm2768, %v2960, %v3344
      %v3409 = vsel %vm2769, %v2961, %v3345
      %v3410 = vsel %vm2770, %v2962, %v3346
      %v3411 = vsel %vm2771, %v2963, %v3347
      %v3412 = vsel %vm2772, %v2964, %v3348
      %v3413 = vsel %vm2773, %v2965, %v3349
      %v3414 = vsel %vm2774, %v2966, %v3350
      %v3415 = vsel %vm2775, %v2967, %v3351
      %v3416 = vsel %vm2776, %v2968, %v3352
      %v3417 = vsel %vm2777, %v2969, %v3353
      %v3418 = vsel %vm2778, %v2970, %v3354
      %v3419 = vsel %vm2779, %v2971, %v3355
      %v3420 = vsel %vm2780, %v2972, %v3356
      %v3421 = vsel %vm2781, %v2973, %v3357
      %v3422 = vsel %vm2782, %v2974, %v3358
      %v3423 = vsel %vm2783, %v2975, %v3359
      %v3424 = vsel %vm2784, %v2976, %v3360
      %v3425 = vsel %vm2785, %v2977, %v3361
      %v3426 = vsel %vm2786, %v2978, %v3362
      %v3427 = vsel %vm2787, %v2979, %v3363
      %v3428 = vsel %vm2788, %v2980, %v3364
      %v3429 = vsel %vm2789, %v2981, %v3365
      %v3430 = vsel %vm2790, %v2982, %v3366
      %v3431 = vsel %vm2791, %v2983, %v3367
      %v3432 = vsel %vm2792, %v2984, %v3368
      %v3433 = vsel %vm2793, %v2985, %v3369
      %v3434 = vsel %vm2794, %v2986, %v3370
      %v3435 = vsel %vm2795, %v2987, %v3371
      %v3436 = vsel %vm2796, %v2988, %v3372
      %v3437 = vsel %vm2797, %v2989, %v3373
      %v3438 = vsel %vm2798, %v2990, %v3374
      %v3439 = vsel %vm2799, %v2991, %v3375
      %v3440 = vsel %vm2800, %v2992, %v3376
      %v3441 = vsel %vm2801, %v2993, %v3377
      %v3442 = vsel %vm2802, %v2994, %v3378
      %v3443 = vsel %vm2803, %v2995, %v3379
      %v3444 = vsel %vm2804, %v2996, %v3380
      %v3445 = vsel %vm2805, %v2997, %v3381
      %v3446 = vsel %vm2806, %v2998, %v3382
      %v3447 = vsel %vm2807, %v2999, %v3383
      %v3448 = vsel %vm2808, %v3000, %v3384
      %v3449 = vsel %vm2809, %v3001, %v3385
      %v3450 = vsel %vm2810, %v3002, %v3386
      %v3451 = vsel %vm2811, %v3003, %v3387
      %v3452 = vsel %vm2812, %v3004, %v3388
      %v3453 = vsel %vm2813, %v3005, %v3389
      %v3454 = vsel %vm2814, %v3006, %v3390
      %v3455 = vsel %vm2815, %v3007, %v3391
      %v3456 = vsel %vm2816, %v3008, %v3392
      %v3457 = vsel %vm2817, %v3009, %v3393
      %3458 = vset.pattern.permute.xlu0 4
      %3459 = vperm.xlu0 %3458, %v209
      %v3460 = vpop.permute.xlu0 %3459
      %3462 = vset.pattern.permute.xlu0 4
      %3463 = vperm.xlu0 %3462, %v210
      %v3464 = vpop.permute.xlu0 %3463
      %3466 = vset.pattern.permute.xlu0 4
      %3467 = vperm.xlu0 %3466, %v211
      %v3468 = vpop.permute.xlu0 %3467
      %3470 = vset.pattern.permute.xlu0 4
      %3471 = vperm.xlu0 %3470, %v212
      %v3472 = vpop.permute.xlu0 %3471
      %vm3474 = vcmask 261120
      %v3476 = vsel %vm3474, %v213, 0
      %v3479 = vsel %vm3474, %v214, 0
      %v3482 = vsel %vm3474, %v215, 0
      %v3485 = vsel %vm3474, %v216, 0
      %3487 = vmatpush.msra.mxu0 0.0
      %3488 = vmatpush.msra.mxu0 0.0
      %3489 = vmatpush.msra.mxu0 0.0
      %3490 = vmatpush.msra.mxu0 0.0
      %3491 = vmatpush.msra.mxu0 0.0
      %3492 = vmatpush.msra.mxu0 0.0
      %3493 = vmatpush.msra.mxu0 0.0
      %3494 = vmatpush.msra.mxu0 0.0
      %3495 = vmatpush.msra.mxu0 0.0
      %3496 = vmatpush.msra.mxu0 0.0
      %3497 = vmatpush.msra.mxu0 0.0
      %3498 = vmatpush.msra.mxu0 0.0
      %3499 = vmatpush.msra.mxu0 %v3250
      %3500 = vmatpush.msra.mxu0 %v3234
      %3501 = vmatpush.msra.mxu0 %v3218
      %3502 = vmatpush.msra.mxu0 %v3202
      %3503 = vmatmul.f32.gmra.mxu0 %v3476
      %v3504 = vpop.f32.mrf.mxu0
      %v3505 = vadd.f32 %v3460, %v3504
      %3506 = vmatmul.f32.gmra.mxu0 %v3479
      %v3507 = vpop.f32.mrf.mxu0
      %v3508 = vadd.f32 %v3464, %v3507
      %3509 = vmatmul.f32.gmra.mxu0 %v3482
      %v3510 = vpop.f32.mrf.mxu0
      %v3511 = vadd.f32 %v3468, %v3510
      %3512 = vmatmul.f32.gmra.mxu0 %v3485
      %v3513 = vpop.f32.mrf.mxu0
      %v3514 = vadd.f32 %v3472, %v3513
      %3515 = vdwg.mxu0
      %3516 = vmatpush.msra.mxu0 0.0
      %3517 = vmatpush.msra.mxu0 0.0
      %3518 = vmatpush.msra.mxu0 0.0
      %3519 = vmatpush.msra.mxu0 0.0
      %3520 = vmatpush.msra.mxu0 0.0
      %3521 = vmatpush.msra.mxu0 0.0
      %3522 = vmatpush.msra.mxu0 0.0
      %3523 = vmatpush.msra.mxu0 0.0
      %3524 = vmatpush.msra.mxu0 0.0
      %3525 = vmatpush.msra.mxu0 0.0
      %3526 = vmatpush.msra.mxu0 0.0
      %3527 = vmatpush.msra.mxu0 0.0
      %3528 = vmatpush.msra.mxu0 %v3251
      %3529 = vmatpush.msra.mxu0 %v3235
      %3530 = vmatpush.msra.mxu0 %v3219
      %3531 = vmatpush.msra.mxu0 %v3203
      %3532 = vmatmul.f32.gmra.mxu0 %v3476
      %v3533 = vpop.f32.mrf.mxu0
      %v3534 = vadd.f32 %v3460, %v3533
      %3535 = vmatmul.f32.gmra.mxu0 %v3479
      %v3536 = vpop.f32.mrf.mxu0
      %v3537 = vadd.f32 %v3464, %v3536
      %3538 = vmatmul.f32.gmra.mxu0 %v3482
      %v3539 = vpop.f32.mrf.mxu0
      %v3540 = vadd.f32 %v3468, %v3539
      %3541 = vmatmul.f32.gmra.mxu0 %v3485
      %v3542 = vpop.f32.mrf.mxu0
      %v3543 = vadd.f32 %v3472, %v3542
      %3544 = vdwg.mxu0
      %3545 = vmatpush.msra.mxu0 0.0
      %3546 = vmatpush.msra.mxu0 0.0
      %3547 = vmatpush.msra.mxu0 0.0
      %3548 = vmatpush.msra.mxu0 0.0
      %3549 = vmatpush.msra.mxu0 0.0
      %3550 = vmatpush.msra.mxu0 0.0
      %3551 = vmatpush.msra.mxu0 0.0
      %3552 = vmatpush.msra.mxu0 0.0
      %3553 = vmatpush.msra.mxu0 0.0
      %3554 = vmatpush.msra.mxu0 0.0
      %3555 = vmatpush.msra.mxu0 0.0
      %3556 = vmatpush.msra.mxu0 0.0
      %3557 = vmatpush.msra.mxu0 %v3252
      %3558 = vmatpush.msra.mxu0 %v3236
      %3559 = vmatpush.msra.mxu0 %v3220
      %3560 = vmatpush.msra.mxu0 %v3204
      %3561 = vmatmul.f32.gmra.mxu0 %v3476
      %v3562 = vpop.f32.mrf.mxu0
      %v3563 = vadd.f32 %v3460, %v3562
      %3564 = vmatmul.f32.gmra.mxu0 %v3479
      %v3565 = vpop.f32.mrf.mxu0
      %v3566 = vadd.f32 %v3464, %v3565
      %3567 = vmatmul.f32.gmra.mxu0 %v3482
      %v3568 = vpop.f32.mrf.mxu0
      %v3569 = vadd.f32 %v3468, %v3568
      %3570 = vmatmul.f32.gmra.mxu0 %v3485
      %v3571 = vpop.f32.mrf.mxu0
      %v3572 = vadd.f32 %v3472, %v3571
      %3573 = vdwg.mxu0
      %3574 = vmatpush.msra.mxu0 0.0
      %3575 = vmatpush.msra.mxu0 0.0
      %3576 = vmatpush.msra.mxu0 0.0
      %3577 = vmatpush.msra.mxu0 0.0
      %3578 = vmatpush.msra.mxu0 0.0
      %3579 = vmatpush.msra.mxu0 0.0
      %3580 = vmatpush.msra.mxu0 0.0
      %3581 = vmatpush.msra.mxu0 0.0
      %3582 = vmatpush.msra.mxu0 0.0
      %3583 = vmatpush.msra.mxu0 0.0
      %3584 = vmatpush.msra.mxu0 0.0
      %3585 = vmatpush.msra.mxu0 0.0
      %3586 = vmatpush.msra.mxu0 %v3253
      %3587 = vmatpush.msra.mxu0 %v3237
      %3588 = vmatpush.msra.mxu0 %v3221
      %3589 = vmatpush.msra.mxu0 %v3205
      %3590 = vmatmul.f32.gmra.mxu0 %v3476
      %v3591 = vpop.f32.mrf.mxu0
      %v3592 = vadd.f32 %v3460, %v3591
      %3593 = vmatmul.f32.gmra.mxu0 %v3479
      %v3594 = vpop.f32.mrf.mxu0
      %v3595 = vadd.f32 %v3464, %v3594
      %3596 = vmatmul.f32.gmra.mxu0 %v3482
      %v3597 = vpop.f32.mrf.mxu0
      %v3598 = vadd.f32 %v3468, %v3597
      %3599 = vmatmul.f32.gmra.mxu0 %v3485
      %v3600 = vpop.f32.mrf.mxu0
      %v3601 = vadd.f32 %v3472, %v3600
      %3602 = vdwg.mxu0
      %3603 = vmatpush.msra.mxu0 0.0
      %3604 = vmatpush.msra.mxu0 0.0
      %3605 = vmatpush.msra.mxu0 0.0
      %3606 = vmatpush.msra.mxu0 0.0
      %3607 = vmatpush.msra.mxu0 0.0
      %3608 = vmatpush.msra.mxu0 0.0
      %3609 = vmatpush.msra.mxu0 0.0
      %3610 = vmatpush.msra.mxu0 0.0
      %3611 = vmatpush.msra.mxu0 0.0
      %3612 = vmatpush.msra.mxu0 0.0
      %3613 = vmatpush.msra.mxu0 0.0
      %3614 = vmatpush.msra.mxu0 0.0
      %3615 = vmatpush.msra.mxu0 %v3254
      %3616 = vmatpush.msra.mxu0 %v3238
      %3617 = vmatpush.msra.mxu0 %v3222
      %3618 = vmatpush.msra.mxu0 %v3206
      %3619 = vmatmul.f32.gmra.mxu0 %v3476
      %v3620 = vpop.f32.mrf.mxu0
      %v3621 = vadd.f32 %v3460, %v3620
      %3622 = vmatmul.f32.gmra.mxu0 %v3479
      %v3623 = vpop.f32.mrf.mxu0
      %v3624 = vadd.f32 %v3464, %v3623
      %3625 = vmatmul.f32.gmra.mxu0 %v3482
      %v3626 = vpop.f32.mrf.mxu0
      %v3627 = vadd.f32 %v3468, %v3626
      %3628 = vmatmul.f32.gmra.mxu0 %v3485
      %v3629 = vpop.f32.mrf.mxu0
      %v3630 = vadd.f32 %v3472, %v3629
      %3631 = vdwg.mxu0
      %3632 = vmatpush.msra.mxu0 0.0
      %3633 = vmatpush.msra.mxu0 0.0
      %3634 = vmatpush.msra.mxu0 0.0
      %3635 = vmatpush.msra.mxu0 0.0
      %3636 = vmatpush.msra.mxu0 0.0
      %3637 = vmatpush.msra.mxu0 0.0
      %3638 = vmatpush.msra.mxu0 0.0
      %3639 = vmatpush.msra.mxu0 0.0
      %3640 = vmatpush.msra.mxu0 0.0
      %3641 = vmatpush.msra.mxu0 0.0
      %3642 = vmatpush.msra.mxu0 0.0
      %3643 = vmatpush.msra.mxu0 0.0
      %3644 = vmatpush.msra.mxu0 %v3255
      %3645 = vmatpush.msra.mxu0 %v3239
      %3646 = vmatpush.msra.mxu0 %v3223
      %3647 = vmatpush.msra.mxu0 %v3207
      %3648 = vmatmul.f32.gmra.mxu0 %v3476
      %v3649 = vpop.f32.mrf.mxu0
      %v3650 = vadd.f32 %v3460, %v3649
      %3651 = vmatmul.f32.gmra.mxu0 %v3479
      %v3652 = vpop.f32.mrf.mxu0
      %v3653 = vadd.f32 %v3464, %v3652
      %3654 = vmatmul.f32.gmra.mxu0 %v3482
      %v3655 = vpop.f32.mrf.mxu0
      %v3656 = vadd.f32 %v3468, %v3655
      %3657 = vmatmul.f32.gmra.mxu0 %v3485
      %v3658 = vpop.f32.mrf.mxu0
      %v3659 = vadd.f32 %v3472, %v3658
      %3660 = vdwg.mxu0
      %3661 = vmatpush.msra.mxu0 0.0
      %3662 = vmatpush.msra.mxu0 0.0
      %3663 = vmatpush.msra.mxu0 0.0
      %3664 = vmatpush.msra.mxu0 0.0
      %3665 = vmatpush.msra.mxu0 0.0
      %3666 = vmatpush.msra.mxu0 0.0
      %3667 = vmatpush.msra.mxu0 0.0
      %3668 = vmatpush.msra.mxu0 0.0
      %3669 = vmatpush.msra.mxu0 0.0
      %3670 = vmatpush.msra.mxu0 0.0
      %3671 = vmatpush.msra.mxu0 0.0
      %3672 = vmatpush.msra.mxu0 0.0
      %3673 = vmatpush.msra.mxu0 %v3256
      %3674 = vmatpush.msra.mxu0 %v3240
      %3675 = vmatpush.msra.mxu0 %v3224
      %3676 = vmatpush.msra.mxu0 %v3208
      %3677 = vmatmul.f32.gmra.mxu0 %v3476
      %v3678 = vpop.f32.mrf.mxu0
      %v3679 = vadd.f32 %v3460, %v3678
      %3680 = vmatmul.f32.gmra.mxu0 %v3479
      %v3681 = vpop.f32.mrf.mxu0
      %v3682 = vadd.f32 %v3464, %v3681
      %3683 = vmatmul.f32.gmra.mxu0 %v3482
      %v3684 = vpop.f32.mrf.mxu0
      %v3685 = vadd.f32 %v3468, %v3684
      %3686 = vmatmul.f32.gmra.mxu0 %v3485
      %v3687 = vpop.f32.mrf.mxu0
      %v3688 = vadd.f32 %v3472, %v3687
      %3689 = vdwg.mxu0
      %3690 = vmatpush.msra.mxu0 0.0
      %3691 = vmatpush.msra.mxu0 0.0
      %3692 = vmatpush.msra.mxu0 0.0
      %3693 = vmatpush.msra.mxu0 0.0
      %3694 = vmatpush.msra.mxu0 0.0
      %3695 = vmatpush.msra.mxu0 0.0
      %3696 = vmatpush.msra.mxu0 0.0
      %3697 = vmatpush.msra.mxu0 0.0
      %3698 = vmatpush.msra.mxu0 0.0
      %3699 = vmatpush.msra.mxu0 0.0
      %3700 = vmatpush.msra.mxu0 0.0
      %3701 = vmatpush.msra.mxu0 0.0
      %3702 = vmatpush.msra.mxu0 %v3257
      %3703 = vmatpush.msra.mxu0 %v3241
      %3704 = vmatpush.msra.mxu0 %v3225
      %3705 = vmatpush.msra.mxu0 %v3209
      %3706 = vmatmul.f32.gmra.mxu0 %v3476
      %v3707 = vpop.f32.mrf.mxu0
      %v3708 = vadd.f32 %v3460, %v3707
      %3709 = vmatmul.f32.gmra.mxu0 %v3479
      %v3710 = vpop.f32.mrf.mxu0
      %v3711 = vadd.f32 %v3464, %v3710
      %3712 = vmatmul.f32.gmra.mxu0 %v3482
      %v3713 = vpop.f32.mrf.mxu0
      %v3714 = vadd.f32 %v3468, %v3713
      %3715 = vmatmul.f32.gmra.mxu0 %v3485
      %v3716 = vpop.f32.mrf.mxu0
      %v3717 = vadd.f32 %v3472, %v3716
      %3718 = vdwg.mxu0
      %3719 = vmatpush.msra.mxu0 0.0
      %3720 = vmatpush.msra.mxu0 0.0
      %3721 = vmatpush.msra.mxu0 0.0
      %3722 = vmatpush.msra.mxu0 0.0
      %3723 = vmatpush.msra.mxu0 0.0
      %3724 = vmatpush.msra.mxu0 0.0
      %3725 = vmatpush.msra.mxu0 0.0
      %3726 = vmatpush.msra.mxu0 0.0
      %3727 = vmatpush.msra.mxu0 0.0
      %3728 = vmatpush.msra.mxu0 0.0
      %3729 = vmatpush.msra.mxu0 0.0
      %3730 = vmatpush.msra.mxu0 0.0
      %3731 = vmatpush.msra.mxu0 %v3258
      %3732 = vmatpush.msra.mxu0 %v3242
      %3733 = vmatpush.msra.mxu0 %v3226
      %3734 = vmatpush.msra.mxu0 %v3210
      %3735 = vmatmul.f32.gmra.mxu0 %v3476
      %v3736 = vpop.f32.mrf.mxu0
      %v3737 = vadd.f32 %v3460, %v3736
      %3738 = vmatmul.f32.gmra.mxu0 %v3479
      %v3739 = vpop.f32.mrf.mxu0
      %v3740 = vadd.f32 %v3464, %v3739
      %3741 = vmatmul.f32.gmra.mxu0 %v3482
      %v3742 = vpop.f32.mrf.mxu0
      %v3743 = vadd.f32 %v3468, %v3742
      %3744 = vmatmul.f32.gmra.mxu0 %v3485
      %v3745 = vpop.f32.mrf.mxu0
      %v3746 = vadd.f32 %v3472, %v3745
      %3747 = vdwg.mxu0
      %3748 = vmatpush.msra.mxu0 0.0
      %3749 = vmatpush.msra.mxu0 0.0
      %3750 = vmatpush.msra.mxu0 0.0
      %3751 = vmatpush.msra.mxu0 0.0
      %3752 = vmatpush.msra.mxu0 0.0
      %3753 = vmatpush.msra.mxu0 0.0
      %3754 = vmatpush.msra.mxu0 0.0
      %3755 = vmatpush.msra.mxu0 0.0
      %3756 = vmatpush.msra.mxu0 0.0
      %3757 = vmatpush.msra.mxu0 0.0
      %3758 = vmatpush.msra.mxu0 0.0
      %3759 = vmatpush.msra.mxu0 0.0
      %3760 = vmatpush.msra.mxu0 %v3259
      %3761 = vmatpush.msra.mxu0 %v3243
      %3762 = vmatpush.msra.mxu0 %v3227
      %3763 = vmatpush.msra.mxu0 %v3211
      %3764 = vmatmul.f32.gmra.mxu0 %v3476
      %v3765 = vpop.f32.mrf.mxu0
      %v3766 = vadd.f32 %v3460, %v3765
      %3767 = vmatmul.f32.gmra.mxu0 %v3479
      %v3768 = vpop.f32.mrf.mxu0
      %v3769 = vadd.f32 %v3464, %v3768
      %3770 = vmatmul.f32.gmra.mxu0 %v3482
      %v3771 = vpop.f32.mrf.mxu0
      %v3772 = vadd.f32 %v3468, %v3771
      %3773 = vmatmul.f32.gmra.mxu0 %v3485
      %v3774 = vpop.f32.mrf.mxu0
      %v3775 = vadd.f32 %v3472, %v3774
      %3776 = vdwg.mxu0
      %3777 = vmatpush.msra.mxu0 0.0
      %3778 = vmatpush.msra.mxu0 0.0
      %3779 = vmatpush.msra.mxu0 0.0
      %3780 = vmatpush.msra.mxu0 0.0
      %3781 = vmatpush.msra.mxu0 0.0
      %3782 = vmatpush.msra.mxu0 0.0
      %3783 = vmatpush.msra.mxu0 0.0
      %3784 = vmatpush.msra.mxu0 0.0
      %3785 = vmatpush.msra.mxu0 0.0
      %3786 = vmatpush.msra.mxu0 0.0
      %3787 = vmatpush.msra.mxu0 0.0
      %3788 = vmatpush.msra.mxu0 0.0
      %3789 = vmatpush.msra.mxu0 %v3260
      %3790 = vmatpush.msra.mxu0 %v3244
      %3791 = vmatpush.msra.mxu0 %v3228
      %3792 = vmatpush.msra.mxu0 %v3212
      %3793 = vmatmul.f32.gmra.mxu0 %v3476
      %v3794 = vpop.f32.mrf.mxu0
      %v3795 = vadd.f32 %v3460, %v3794
      %3796 = vmatmul.f32.gmra.mxu0 %v3479
      %v3797 = vpop.f32.mrf.mxu0
      %v3798 = vadd.f32 %v3464, %v3797
      %3799 = vmatmul.f32.gmra.mxu0 %v3482
      %v3800 = vpop.f32.mrf.mxu0
      %v3801 = vadd.f32 %v3468, %v3800
      %3802 = vmatmul.f32.gmra.mxu0 %v3485
      %v3803 = vpop.f32.mrf.mxu0
      %v3804 = vadd.f32 %v3472, %v3803
      %3805 = vdwg.mxu0
      %3806 = vmatpush.msra.mxu0 0.0
      %3807 = vmatpush.msra.mxu0 0.0
      %3808 = vmatpush.msra.mxu0 0.0
      %3809 = vmatpush.msra.mxu0 0.0
      %3810 = vmatpush.msra.mxu0 0.0
      %3811 = vmatpush.msra.mxu0 0.0
      %3812 = vmatpush.msra.mxu0 0.0
      %3813 = vmatpush.msra.mxu0 0.0
      %3814 = vmatpush.msra.mxu0 0.0
      %3815 = vmatpush.msra.mxu0 0.0
      %3816 = vmatpush.msra.mxu0 0.0
      %3817 = vmatpush.msra.mxu0 0.0
      %3818 = vmatpush.msra.mxu0 %v3261
      %3819 = vmatpush.msra.mxu0 %v3245
      %3820 = vmatpush.msra.mxu0 %v3229
      %3821 = vmatpush.msra.mxu0 %v3213
      %3822 = vmatmul.f32.gmra.mxu0 %v3476
      %v3823 = vpop.f32.mrf.mxu0
      %v3824 = vadd.f32 %v3460, %v3823
      %3825 = vmatmul.f32.gmra.mxu0 %v3479
      %v3826 = vpop.f32.mrf.mxu0
      %v3827 = vadd.f32 %v3464, %v3826
      %3828 = vmatmul.f32.gmra.mxu0 %v3482
      %v3829 = vpop.f32.mrf.mxu0
      %v3830 = vadd.f32 %v3468, %v3829
      %3831 = vmatmul.f32.gmra.mxu0 %v3485
      %v3832 = vpop.f32.mrf.mxu0
      %v3833 = vadd.f32 %v3472, %v3832
      %3834 = vdwg.mxu0
      %3835 = vmatpush.msra.mxu0 0.0
      %3836 = vmatpush.msra.mxu0 0.0
      %3837 = vmatpush.msra.mxu0 0.0
      %3838 = vmatpush.msra.mxu0 0.0
      %3839 = vmatpush.msra.mxu0 0.0
      %3840 = vmatpush.msra.mxu0 0.0
      %3841 = vmatpush.msra.mxu0 0.0
      %3842 = vmatpush.msra.mxu0 0.0
      %3843 = vmatpush.msra.mxu0 0.0
      %3844 = vmatpush.msra.mxu0 0.0
      %3845 = vmatpush.msra.mxu0 0.0
      %3846 = vmatpush.msra.mxu0 0.0
      %3847 = vmatpush.msra.mxu0 %v3262
      %3848 = vmatpush.msra.mxu0 %v3246
      %3849 = vmatpush.msra.mxu0 %v3230
      %3850 = vmatpush.msra.mxu0 %v3214
      %3851 = vmatmul.f32.gmra.mxu0 %v3476
      %v3852 = vpop.f32.mrf.mxu0
      %v3853 = vadd.f32 %v3460, %v3852
      %3854 = vmatmul.f32.gmra.mxu0 %v3479
      %v3855 = vpop.f32.mrf.mxu0
      %v3856 = vadd.f32 %v3464, %v3855
      %3857 = vmatmul.f32.gmra.mxu0 %v3482
      %v3858 = vpop.f32.mrf.mxu0
      %v3859 = vadd.f32 %v3468, %v3858
      %3860 = vmatmul.f32.gmra.mxu0 %v3485
      %v3861 = vpop.f32.mrf.mxu0
      %v3862 = vadd.f32 %v3472, %v3861
      %3863 = vdwg.mxu0
      %3864 = vmatpush.msra.mxu0 0.0
      %3865 = vmatpush.msra.mxu0 0.0
      %3866 = vmatpush.msra.mxu0 0.0
      %3867 = vmatpush.msra.mxu0 0.0
      %3868 = vmatpush.msra.mxu0 0.0
      %3869 = vmatpush.msra.mxu0 0.0
      %3870 = vmatpush.msra.mxu0 0.0
      %3871 = vmatpush.msra.mxu0 0.0
      %3872 = vmatpush.msra.mxu0 0.0
      %3873 = vmatpush.msra.mxu0 0.0
      %3874 = vmatpush.msra.mxu0 0.0
      %3875 = vmatpush.msra.mxu0 0.0
      %3876 = vmatpush.msra.mxu0 %v3263
      %3877 = vmatpush.msra.mxu0 %v3247
      %3878 = vmatpush.msra.mxu0 %v3231
      %3879 = vmatpush.msra.mxu0 %v3215
      %3880 = vmatmul.f32.gmra.mxu0 %v3476
      %v3881 = vpop.f32.mrf.mxu0
      %v3882 = vadd.f32 %v3460, %v3881
      %3883 = vmatmul.f32.gmra.mxu0 %v3479
      %v3884 = vpop.f32.mrf.mxu0
      %v3885 = vadd.f32 %v3464, %v3884
      %3886 = vmatmul.f32.gmra.mxu0 %v3482
      %v3887 = vpop.f32.mrf.mxu0
      %v3888 = vadd.f32 %v3468, %v3887
      %3889 = vmatmul.f32.gmra.mxu0 %v3485
      %v3890 = vpop.f32.mrf.mxu0
      %v3891 = vadd.f32 %v3472, %v3890
      %3892 = vdwg.mxu0
      %3893 = vmatpush.msra.mxu0 0.0
      %3894 = vmatpush.msra.mxu0 0.0
      %3895 = vmatpush.msra.mxu0 0.0
      %3896 = vmatpush.msra.mxu0 0.0
      %3897 = vmatpush.msra.mxu0 0.0
      %3898 = vmatpush.msra.mxu0 0.0
      %3899 = vmatpush.msra.mxu0 0.0
      %3900 = vmatpush.msra.mxu0 0.0
      %3901 = vmatpush.msra.mxu0 0.0
      %3902 = vmatpush.msra.mxu0 0.0
      %3903 = vmatpush.msra.mxu0 0.0
      %3904 = vmatpush.msra.mxu0 0.0
      %3905 = vmatpush.msra.mxu0 %v3264
      %3906 = vmatpush.msra.mxu0 %v3248
      %3907 = vmatpush.msra.mxu0 %v3232
      %3908 = vmatpush.msra.mxu0 %v3216
      %3909 = vmatmul.f32.gmra.mxu0 %v3476
      %v3910 = vpop.f32.mrf.mxu0
      %v3911 = vadd.f32 %v3460, %v3910
      %3912 = vmatmul.f32.gmra.mxu0 %v3479
      %v3913 = vpop.f32.mrf.mxu0
      %v3914 = vadd.f32 %v3464, %v3913
      %3915 = vmatmul.f32.gmra.mxu0 %v3482
      %v3916 = vpop.f32.mrf.mxu0
      %v3917 = vadd.f32 %v3468, %v3916
      %3918 = vmatmul.f32.gmra.mxu0 %v3485
      %v3919 = vpop.f32.mrf.mxu0
      %v3920 = vadd.f32 %v3472, %v3919
      %3921 = vdwg.mxu0
      %3922 = vmatpush.msra.mxu0 0.0
      %3923 = vmatpush.msra.mxu0 0.0
      %3924 = vmatpush.msra.mxu0 0.0
      %3925 = vmatpush.msra.mxu0 0.0
      %3926 = vmatpush.msra.mxu0 0.0
      %3927 = vmatpush.msra.mxu0 0.0
      %3928 = vmatpush.msra.mxu0 0.0
      %3929 = vmatpush.msra.mxu0 0.0
      %3930 = vmatpush.msra.mxu0 0.0
      %3931 = vmatpush.msra.mxu0 0.0
      %3932 = vmatpush.msra.mxu0 0.0
      %3933 = vmatpush.msra.mxu0 0.0
      %3934 = vmatpush.msra.mxu0 %v3265
      %3935 = vmatpush.msra.mxu0 %v3249
      %3936 = vmatpush.msra.mxu0 %v3233
      %3937 = vmatpush.msra.mxu0 %v3217
      %3938 = vmatmul.f32.gmra.mxu0 %v3476
      %v3939 = vpop.f32.mrf.mxu0
      %v3940 = vadd.f32 %v3460, %v3939
      %3941 = vmatmul.f32.gmra.mxu0 %v3479
      %v3942 = vpop.f32.mrf.mxu0
      %v3943 = vadd.f32 %v3464, %v3942
      %3944 = vmatmul.f32.gmra.mxu0 %v3482
      %v3945 = vpop.f32.mrf.mxu0
      %v3946 = vadd.f32 %v3468, %v3945
      %3947 = vmatmul.f32.gmra.mxu0 %v3485
      %v3948 = vpop.f32.mrf.mxu0
      %v3949 = vadd.f32 %v3472, %v3948
      %3950 = vdwg.mxu0
      %v3951 = vmul.f32 %v3505, 0.63661975
      %v3952 = vmul.f32 %v3534, 0.63661975
      %v3953 = vmul.f32 %v3563, 0.63661975
      %v3954 = vmul.f32 %v3592, 0.63661975
      %v3955 = vmul.f32 %v3621, 0.63661975
      %v3956 = vmul.f32 %v3650, 0.63661975
      %v3957 = vmul.f32 %v3679, 0.63661975
      %v3958 = vmul.f32 %v3708, 0.63661975
      %v3959 = vmul.f32 %v3737, 0.63661975
      %v3960 = vmul.f32 %v3766, 0.63661975
      %v3961 = vmul.f32 %v3795, 0.63661975
      %v3962 = vmul.f32 %v3824, 0.63661975
      %v3963 = vmul.f32 %v3853, 0.63661975
      %v3964 = vmul.f32 %v3882, 0.63661975
      %v3965 = vmul.f32 %v3911, 0.63661975
      %v3966 = vmul.f32 %v3940, 0.63661975
      %v3967 = vmul.f32 %v3508, 0.63661975
      %v3968 = vmul.f32 %v3537, 0.63661975
      %v3969 = vmul.f32 %v3566, 0.63661975
      %v3970 = vmul.f32 %v3595, 0.63661975
      %v3971 = vmul.f32 %v3624, 0.63661975
      %v3972 = vmul.f32 %v3653, 0.63661975
      %v3973 = vmul.f32 %v3682, 0.63661975
      %v3974 = vmul.f32 %v3711, 0.63661975
      %v3975 = vmul.f32 %v3740, 0.63661975
      %v3976 = vmul.f32 %v3769, 0.63661975
      %v3977 = vmul.f32 %v3798, 0.63661975
      %v3978 = vmul.f32 %v3827, 0.63661975
      %v3979 = vmul.f32 %v3856, 0.63661975
      %v3980 = vmul.f32 %v3885, 0.63661975
      %v3981 = vmul.f32 %v3914, 0.63661975
      %v3982 = vmul.f32 %v3943, 0.63661975
      %v3983 = vmul.f32 %v3511, 0.63661975
      %v3984 = vmul.f32 %v3540, 0.63661975
      %v3985 = vmul.f32 %v3569, 0.63661975
      %v3986 = vmul.f32 %v3598, 0.63661975
      %v3987 = vmul.f32 %v3627, 0.63661975
      %v3988 = vmul.f32 %v3656, 0.63661975
      %v3989 = vmul.f32 %v3685, 0.63661975
      %v3990 = vmul.f32 %v3714, 0.63661975
      %v3991 = vmul.f32 %v3743, 0.63661975
      %v3992 = vmul.f32 %v3772, 0.63661975
      %v3993 = vmul.f32 %v3801, 0.63661975
      %v3994 = vmul.f32 %v3830, 0.63661975
      %v3995 = vmul.f32 %v3859, 0.63661975
      %v3996 = vmul.f32 %v3888, 0.63661975
      %v3997 = vmul.f32 %v3917, 0.63661975
      %v3998 = vmul.f32 %v3946, 0.63661975
      %v3999 = vmul.f32 %v3514, 0.63661975
      %v4000 = vmul.f32 %v3543, 0.63661975
      %v4001 = vmul.f32 %v3572, 0.63661975
      %v4002 = vmul.f32 %v3601, 0.63661975
      %v4003 = vmul.f32 %v3630, 0.63661975
      %v4004 = vmul.f32 %v3659, 0.63661975
      %v4005 = vmul.f32 %v3688, 0.63661975
      %v4006 = vmul.f32 %v3717, 0.63661975
      %v4007 = vmul.f32 %v3746, 0.63661975
      %v4008 = vmul.f32 %v3775, 0.63661975
      %v4009 = vmul.f32 %v3804, 0.63661975
      %v4010 = vmul.f32 %v3833, 0.63661975
      %v4011 = vmul.f32 %v3862, 0.63661975
      %v4012 = vmul.f32 %v3891, 0.63661975
      %v4013 = vmul.f32 %v3920, 0.63661975
      %v4014 = vmul.f32 %v3949, 0.63661975
      %v4015 = vadd.f32 %v3951, 0.5
      %v4016 = vadd.f32 %v3952, 0.5
      %v4017 = vadd.f32 %v3953, 0.5
      %v4018 = vadd.f32 %v3954, 0.5
      %v4019 = vadd.f32 %v3955, 0.5
      %v4020 = vadd.f32 %v3956, 0.5
      %v4021 = vadd.f32 %v3957, 0.5
      %v4022 = vadd.f32 %v3958, 0.5
      %v4023 = vadd.f32 %v3959, 0.5
      %v4024 = vadd.f32 %v3960, 0.5
      %v4025 = vadd.f32 %v3961, 0.5
      %v4026 = vadd.f32 %v3962, 0.5
      %v4027 = vadd.f32 %v3963, 0.5
      %v4028 = vadd.f32 %v3964, 0.5
      %v4029 = vadd.f32 %v3965, 0.5
      %v4030 = vadd.f32 %v3966, 0.5
      %v4031 = vadd.f32 %v3967, 0.5
      %v4032 = vadd.f32 %v3968, 0.5
      %v4033 = vadd.f32 %v3969, 0.5
      %v4034 = vadd.f32 %v3970, 0.5
      %v4035 = vadd.f32 %v3971, 0.5
      %v4036 = vadd.f32 %v3972, 0.5
      %v4037 = vadd.f32 %v3973, 0.5
      %v4038 = vadd.f32 %v3974, 0.5
      %v4039 = vadd.f32 %v3975, 0.5
      %v4040 = vadd.f32 %v3976, 0.5
      %v4041 = vadd.f32 %v3977, 0.5
      %v4042 = vadd.f32 %v3978, 0.5
      %v4043 = vadd.f32 %v3979, 0.5
      %v4044 = vadd.f32 %v3980, 0.5
      %v4045 = vadd.f32 %v3981, 0.5
      %v4046 = vadd.f32 %v3982, 0.5
      %v4047 = vadd.f32 %v3983, 0.5
      %v4048 = vadd.f32 %v3984, 0.5
      %v4049 = vadd.f32 %v3985, 0.5
      %v4050 = vadd.f32 %v3986, 0.5
      %v4051 = vadd.f32 %v3987, 0.5
      %v4052 = vadd.f32 %v3988, 0.5
      %v4053 = vadd.f32 %v3989, 0.5
      %v4054 = vadd.f32 %v3990, 0.5
      %v4055 = vadd.f32 %v3991, 0.5
      %v4056 = vadd.f32 %v3992, 0.5
      %v4057 = vadd.f32 %v3993, 0.5
      %v4058 = vadd.f32 %v3994, 0.5
      %v4059 = vadd.f32 %v3995, 0.5
      %v4060 = vadd.f32 %v3996, 0.5
      %v4061 = vadd.f32 %v3997, 0.5
      %v4062 = vadd.f32 %v3998, 0.5
      %v4063 = vadd.f32 %v3999, 0.5
      %v4064 = vadd.f32 %v4000, 0.5
      %v4065 = vadd.f32 %v4001, 0.5
      %v4066 = vadd.f32 %v4002, 0.5
      %v4067 = vadd.f32 %v4003, 0.5
      %v4068 = vadd.f32 %v4004, 0.5
      %v4069 = vadd.f32 %v4005, 0.5
      %v4070 = vadd.f32 %v4006, 0.5
      %v4071 = vadd.f32 %v4007, 0.5
      %v4072 = vadd.f32 %v4008, 0.5
      %v4073 = vadd.f32 %v4009, 0.5
      %v4074 = vadd.f32 %v4010, 0.5
      %v4075 = vadd.f32 %v4011, 0.5
      %v4076 = vadd.f32 %v4012, 0.5
      %v4077 = vadd.f32 %v4013, 0.5
      %v4078 = vadd.f32 %v4014, 0.5
      %v4079 = vfloor.f32 %v4015
      %v4080 = vfloor.f32 %v4016
      %v4081 = vfloor.f32 %v4017
      %v4082 = vfloor.f32 %v4018
      %v4083 = vfloor.f32 %v4019
      %v4084 = vfloor.f32 %v4020
      %v4085 = vfloor.f32 %v4021
      %v4086 = vfloor.f32 %v4022
      %v4087 = vfloor.f32 %v4023
      %v4088 = vfloor.f32 %v4024
      %v4089 = vfloor.f32 %v4025
      %v4090 = vfloor.f32 %v4026
      %v4091 = vfloor.f32 %v4027
      %v4092 = vfloor.f32 %v4028
      %v4093 = vfloor.f32 %v4029
      %v4094 = vfloor.f32 %v4030
      %v4095 = vfloor.f32 %v4031
      %v4096 = vfloor.f32 %v4032
      %v4097 = vfloor.f32 %v4033
      %v4098 = vfloor.f32 %v4034
      %v4099 = vfloor.f32 %v4035
      %v4100 = vfloor.f32 %v4036
      %v4101 = vfloor.f32 %v4037
      %v4102 = vfloor.f32 %v4038
      %v4103 = vfloor.f32 %v4039
      %v4104 = vfloor.f32 %v4040
      %v4105 = vfloor.f32 %v4041
      %v4106 = vfloor.f32 %v4042
      %v4107 = vfloor.f32 %v4043
      %v4108 = vfloor.f32 %v4044
      %v4109 = vfloor.f32 %v4045
      %v4110 = vfloor.f32 %v4046
      %v4111 = vfloor.f32 %v4047
      %v4112 = vfloor.f32 %v4048
      %v4113 = vfloor.f32 %v4049
      %v4114 = vfloor.f32 %v4050
      %v4115 = vfloor.f32 %v4051
      %v4116 = vfloor.f32 %v4052
      %v4117 = vfloor.f32 %v4053
      %v4118 = vfloor.f32 %v4054
      %v4119 = vfloor.f32 %v4055
      %v4120 = vfloor.f32 %v4056
      %v4121 = vfloor.f32 %v4057
      %v4122 = vfloor.f32 %v4058
      %v4123 = vfloor.f32 %v4059
      %v4124 = vfloor.f32 %v4060
      %v4125 = vfloor.f32 %v4061
      %v4126 = vfloor.f32 %v4062
      %v4127 = vfloor.f32 %v4063
      %v4128 = vfloor.f32 %v4064
      %v4129 = vfloor.f32 %v4065
      %v4130 = vfloor.f32 %v4066
      %v4131 = vfloor.f32 %v4067
      %v4132 = vfloor.f32 %v4068
      %v4133 = vfloor.f32 %v4069
      %v4134 = vfloor.f32 %v4070
      %v4135 = vfloor.f32 %v4071
      %v4136 = vfloor.f32 %v4072
      %v4137 = vfloor.f32 %v4073
      %v4138 = vfloor.f32 %v4074
      %v4139 = vfloor.f32 %v4075
      %v4140 = vfloor.f32 %v4076
      %v4141 = vfloor.f32 %v4077
      %v4142 = vfloor.f32 %v4078
      %v4143 = vmul.f32 %v4079, 1.5703125
      %v4144 = vmul.f32 %v4080, 1.5703125
      %v4145 = vmul.f32 %v4081, 1.5703125
      %v4146 = vmul.f32 %v4082, 1.5703125
      %v4147 = vmul.f32 %v4083, 1.5703125
      %v4148 = vmul.f32 %v4084, 1.5703125
      %v4149 = vmul.f32 %v4085, 1.5703125
      %v4150 = vmul.f32 %v4086, 1.5703125
      %v4151 = vmul.f32 %v4087, 1.5703125
      %v4152 = vmul.f32 %v4088, 1.5703125
      %v4153 = vmul.f32 %v4089, 1.5703125
      %v4154 = vmul.f32 %v4090, 1.5703125
      %v4155 = vmul.f32 %v4091, 1.5703125
      %v4156 = vmul.f32 %v4092, 1.5703125
      %v4157 = vmul.f32 %v4093, 1.5703125
      %v4158 = vmul.f32 %v4094, 1.5703125
      %v4159 = vmul.f32 %v4095, 1.5703125
      %v4160 = vmul.f32 %v4096, 1.5703125
      %v4161 = vmul.f32 %v4097, 1.5703125
      %v4162 = vmul.f32 %v4098, 1.5703125
      %v4163 = vmul.f32 %v4099, 1.5703125
      %v4164 = vmul.f32 %v4100, 1.5703125
      %v4165 = vmul.f32 %v4101, 1.5703125
      %v4166 = vmul.f32 %v4102, 1.5703125
      %v4167 = vmul.f32 %v4103, 1.5703125
      %v4168 = vmul.f32 %v4104, 1.5703125
      %v4169 = vmul.f32 %v4105, 1.5703125
      %v4170 = vmul.f32 %v4106, 1.5703125
      %v4171 = vmul.f32 %v4107, 1.5703125
      %v4172 = vmul.f32 %v4108, 1.5703125
      %v4173 = vmul.f32 %v4109, 1.5703125
      %v4174 = vmul.f32 %v4110, 1.5703125
      %v4175 = vmul.f32 %v4111, 1.5703125
      %v4176 = vmul.f32 %v4112, 1.5703125
      %v4177 = vmul.f32 %v4113, 1.5703125
      %v4178 = vmul.f32 %v4114, 1.5703125
      %v4179 = vmul.f32 %v4115, 1.5703125
      %v4180 = vmul.f32 %v4116, 1.5703125
      %v4181 = vmul.f32 %v4117, 1.5703125
      %v4182 = vmul.f32 %v4118, 1.5703125
      %v4183 = vmul.f32 %v4119, 1.5703125
      %v4184 = vmul.f32 %v4120, 1.5703125
      %v4185 = vmul.f32 %v4121, 1.5703125
      %v4186 = vmul.f32 %v4122, 1.5703125
      %v4187 = vmul.f32 %v4123, 1.5703125
      %v4188 = vmul.f32 %v4124, 1.5703125
      %v4189 = vmul.f32 %v4125, 1.5703125
      %v4190 = vmul.f32 %v4126, 1.5703125
      %v4191 = vmul.f32 %v4127, 1.5703125
      %v4192 = vmul.f32 %v4128, 1.5703125
      %v4193 = vmul.f32 %v4129, 1.5703125
      %v4194 = vmul.f32 %v4130, 1.5703125
      %v4195 = vmul.f32 %v4131, 1.5703125
      %v4196 = vmul.f32 %v4132, 1.5703125
      %v4197 = vmul.f32 %v4133, 1.5703125
      %v4198 = vmul.f32 %v4134, 1.5703125
      %v4199 = vmul.f32 %v4135, 1.5703125
      %v4200 = vmul.f32 %v4136, 1.5703125
      %v4201 = vmul.f32 %v4137, 1.5703125
      %v4202 = vmul.f32 %v4138, 1.5703125
      %v4203 = vmul.f32 %v4139, 1.5703125
      %v4204 = vmul.f32 %v4140, 1.5703125
      %v4205 = vmul.f32 %v4141, 1.5703125
      %v4206 = vmul.f32 %v4142, 1.5703125
      %v4207 = vsub.f32 %v3505, %v4143
      %v4208 = vsub.f32 %v3534, %v4144
      %v4209 = vsub.f32 %v3563, %v4145
      %v4210 = vsub.f32 %v3592, %v4146
      %v4211 = vsub.f32 %v3621, %v4147
      %v4212 = vsub.f32 %v3650, %v4148
      %v4213 = vsub.f32 %v3679, %v4149
      %v4214 = vsub.f32 %v3708, %v4150
      %v4215 = vsub.f32 %v3737, %v4151
      %v4216 = vsub.f32 %v3766, %v4152
      %v4217 = vsub.f32 %v3795, %v4153
      %v4218 = vsub.f32 %v3824, %v4154
      %v4219 = vsub.f32 %v3853, %v4155
      %v4220 = vsub.f32 %v3882, %v4156
      %v4221 = vsub.f32 %v3911, %v4157
      %v4222 = vsub.f32 %v3940, %v4158
      %v4223 = vsub.f32 %v3508, %v4159
      %v4224 = vsub.f32 %v3537, %v4160
      %v4225 = vsub.f32 %v3566, %v4161
      %v4226 = vsub.f32 %v3595, %v4162
      %v4227 = vsub.f32 %v3624, %v4163
      %v4228 = vsub.f32 %v3653, %v4164
      %v4229 = vsub.f32 %v3682, %v4165
      %v4230 = vsub.f32 %v3711, %v4166
      %v4231 = vsub.f32 %v3740, %v4167
      %v4232 = vsub.f32 %v3769, %v4168
      %v4233 = vsub.f32 %v3798, %v4169
      %v4234 = vsub.f32 %v3827, %v4170
      %v4235 = vsub.f32 %v3856, %v4171
      %v4236 = vsub.f32 %v3885, %v4172
      %v4237 = vsub.f32 %v3914, %v4173
      %v4238 = vsub.f32 %v3943, %v4174
      %v4239 = vsub.f32 %v3511, %v4175
      %v4240 = vsub.f32 %v3540, %v4176
      %v4241 = vsub.f32 %v3569, %v4177
      %v4242 = vsub.f32 %v3598, %v4178
      %v4243 = vsub.f32 %v3627, %v4179
      %v4244 = vsub.f32 %v3656, %v4180
      %v4245 = vsub.f32 %v3685, %v4181
      %v4246 = vsub.f32 %v3714, %v4182
      %v4247 = vsub.f32 %v3743, %v4183
      %v4248 = vsub.f32 %v3772, %v4184
      %v4249 = vsub.f32 %v3801, %v4185
      %v4250 = vsub.f32 %v3830, %v4186
      %v4251 = vsub.f32 %v3859, %v4187
      %v4252 = vsub.f32 %v3888, %v4188
      %v4253 = vsub.f32 %v3917, %v4189
      %v4254 = vsub.f32 %v3946, %v4190
      %v4255 = vsub.f32 %v3514, %v4191
      %v4256 = vsub.f32 %v3543, %v4192
      %v4257 = vsub.f32 %v3572, %v4193
      %v4258 = vsub.f32 %v3601, %v4194
      %v4259 = vsub.f32 %v3630, %v4195
      %v4260 = vsub.f32 %v3659, %v4196
      %v4261 = vsub.f32 %v3688, %v4197
      %v4262 = vsub.f32 %v3717, %v4198
      %v4263 = vsub.f32 %v3746, %v4199
      %v4264 = vsub.f32 %v3775, %v4200
      %v4265 = vsub.f32 %v3804, %v4201
      %v4266 = vsub.f32 %v3833, %v4202
      %v4267 = vsub.f32 %v3862, %v4203
      %v4268 = vsub.f32 %v3891, %v4204
      %v4269 = vsub.f32 %v3920, %v4205
      %v4270 = vsub.f32 %v3949, %v4206
      %v4271 = vmul.f32 %v4079, 0.0004838268
      %v4272 = vmul.f32 %v4080, 0.0004838268
      %v4273 = vmul.f32 %v4081, 0.0004838268
      %v4274 = vmul.f32 %v4082, 0.0004838268
      %v4275 = vmul.f32 %v4083, 0.0004838268
      %v4276 = vmul.f32 %v4084, 0.0004838268
      %v4277 = vmul.f32 %v4085, 0.0004838268
      %v4278 = vmul.f32 %v4086, 0.0004838268
      %v4279 = vmul.f32 %v4087, 0.0004838268
      %v4280 = vmul.f32 %v4088, 0.0004838268
      %v4281 = vmul.f32 %v4089, 0.0004838268
      %v4282 = vmul.f32 %v4090, 0.0004838268
      %v4283 = vmul.f32 %v4091, 0.0004838268
      %v4284 = vmul.f32 %v4092, 0.0004838268
      %v4285 = vmul.f32 %v4093, 0.0004838268
      %v4286 = vmul.f32 %v4094, 0.0004838268
      %v4287 = vmul.f32 %v4095, 0.0004838268
      %v4288 = vmul.f32 %v4096, 0.0004838268
      %v4289 = vmul.f32 %v4097, 0.0004838268
      %v4290 = vmul.f32 %v4098, 0.0004838268
      %v4291 = vmul.f32 %v4099, 0.0004838268
      %v4292 = vmul.f32 %v4100, 0.0004838268
      %v4293 = vmul.f32 %v4101, 0.0004838268
      %v4294 = vmul.f32 %v4102, 0.0004838268
      %v4295 = vmul.f32 %v4103, 0.0004838268
      %v4296 = vmul.f32 %v4104, 0.0004838268
      %v4297 = vmul.f32 %v4105, 0.0004838268
      %v4298 = vmul.f32 %v4106, 0.0004838268
      %v4299 = vmul.f32 %v4107, 0.0004838268
      %v4300 = vmul.f32 %v4108, 0.0004838268
      %v4301 = vmul.f32 %v4109, 0.0004838268
      %v4302 = vmul.f32 %v4110, 0.0004838268
      %v4303 = vmul.f32 %v4111, 0.0004838268
      %v4304 = vmul.f32 %v4112, 0.0004838268
      %v4305 = vmul.f32 %v4113, 0.0004838268
      %v4306 = vmul.f32 %v4114, 0.0004838268
      %v4307 = vmul.f32 %v4115, 0.0004838268
      %v4308 = vmul.f32 %v4116, 0.0004838268
      %v4309 = vmul.f32 %v4117, 0.0004838268
      %v4310 = vmul.f32 %v4118, 0.0004838268
      %v4311 = vmul.f32 %v4119, 0.0004838268
      %v4312 = vmul.f32 %v4120, 0.0004838268
      %v4313 = vmul.f32 %v4121, 0.0004838268
      %v4314 = vmul.f32 %v4122, 0.0004838268
      %v4315 = vmul.f32 %v4123, 0.0004838268
      %v4316 = vmul.f32 %v4124, 0.0004838268
      %v4317 = vmul.f32 %v4125, 0.0004838268
      %v4318 = vmul.f32 %v4126, 0.0004838268
      %v4319 = vmul.f32 %v4127, 0.0004838268
      %v4320 = vmul.f32 %v4128, 0.0004838268
      %v4321 = vmul.f32 %v4129, 0.0004838268
      %v4322 = vmul.f32 %v4130, 0.0004838268
      %v4323 = vmul.f32 %v4131, 0.0004838268
      %v4324 = vmul.f32 %v4132, 0.0004838268
      %v4325 = vmul.f32 %v4133, 0.0004838268
      %v4326 = vmul.f32 %v4134, 0.0004838268
      %v4327 = vmul.f32 %v4135, 0.0004838268
      %v4328 = vmul.f32 %v4136, 0.0004838268
      %v4329 = vmul.f32 %v4137, 0.0004838268
      %v4330 = vmul.f32 %v4138, 0.0004838268
      %v4331 = vmul.f32 %v4139, 0.0004838268
      %v4332 = vmul.f32 %v4140, 0.0004838268
      %v4333 = vmul.f32 %v4141, 0.0004838268
      %v4334 = vmul.f32 %v4142, 0.0004838268
      %v4335 = vsub.f32 %v4207, %v4271
      %v4336 = vsub.f32 %v4208, %v4272
      %v4337 = vsub.f32 %v4209, %v4273
      %v4338 = vsub.f32 %v4210, %v4274
      %v4339 = vsub.f32 %v4211, %v4275
      %v4340 = vsub.f32 %v4212, %v4276
      %v4341 = vsub.f32 %v4213, %v4277
      %v4342 = vsub.f32 %v4214, %v4278
      %v4343 = vsub.f32 %v4215, %v4279
      %v4344 = vsub.f32 %v4216, %v4280
      %v4345 = vsub.f32 %v4217, %v4281
      %v4346 = vsub.f32 %v4218, %v4282
      %v4347 = vsub.f32 %v4219, %v4283
      %v4348 = vsub.f32 %v4220, %v4284
      %v4349 = vsub.f32 %v4221, %v4285
      %v4350 = vsub.f32 %v4222, %v4286
      %v4351 = vsub.f32 %v4223, %v4287
      %v4352 = vsub.f32 %v4224, %v4288
      %v4353 = vsub.f32 %v4225, %v4289
      %v4354 = vsub.f32 %v4226, %v4290
      %v4355 = vsub.f32 %v4227, %v4291
      %v4356 = vsub.f32 %v4228, %v4292
      %v4357 = vsub.f32 %v4229, %v4293
      %v4358 = vsub.f32 %v4230, %v4294
      %v4359 = vsub.f32 %v4231, %v4295
      %v4360 = vsub.f32 %v4232, %v4296
      %v4361 = vsub.f32 %v4233, %v4297
      %v4362 = vsub.f32 %v4234, %v4298
      %v4363 = vsub.f32 %v4235, %v4299
      %v4364 = vsub.f32 %v4236, %v4300
      %v4365 = vsub.f32 %v4237, %v4301
      %v4366 = vsub.f32 %v4238, %v4302
      %v4367 = vsub.f32 %v4239, %v4303
      %v4368 = vsub.f32 %v4240, %v4304
      %v4369 = vsub.f32 %v4241, %v4305
      %v4370 = vsub.f32 %v4242, %v4306
      %v4371 = vsub.f32 %v4243, %v4307
      %v4372 = vsub.f32 %v4244, %v4308
      %v4373 = vsub.f32 %v4245, %v4309
      %v4374 = vsub.f32 %v4246, %v4310
      %v4375 = vsub.f32 %v4247, %v4311
      %v4376 = vsub.f32 %v4248, %v4312
      %v4377 = vsub.f32 %v4249, %v4313
      %v4378 = vsub.f32 %v4250, %v4314
      %v4379 = vsub.f32 %v4251, %v4315
      %v4380 = vsub.f32 %v4252, %v4316
      %v4381 = vsub.f32 %v4253, %v4317
      %v4382 = vsub.f32 %v4254, %v4318
      %v4383 = vsub.f32 %v4255, %v4319
      %v4384 = vsub.f32 %v4256, %v4320
      %v4385 = vsub.f32 %v4257, %v4321
      %v4386 = vsub.f32 %v4258, %v4322
      %v4387 = vsub.f32 %v4259, %v4323
      %v4388 = vsub.f32 %v4260, %v4324
      %v4389 = vsub.f32 %v4261, %v4325
      %v4390 = vsub.f32 %v4262, %v4326
      %v4391 = vsub.f32 %v4263, %v4327
      %v4392 = vsub.f32 %v4264, %v4328
      %v4393 = vsub.f32 %v4265, %v4329
      %v4394 = vsub.f32 %v4266, %v4330
      %v4395 = vsub.f32 %v4267, %v4331
      %v4396 = vsub.f32 %v4268, %v4332
      %v4397 = vsub.f32 %v4269, %v4333
      %v4398 = vsub.f32 %v4270, %v4334
      %v4399 = vmul.f32 %v4079, 2.563283e-12
      %v4400 = vmul.f32 %v4080, 2.563283e-12
      %v4401 = vmul.f32 %v4081, 2.563283e-12
      %v4402 = vmul.f32 %v4082, 2.563283e-12
      %v4403 = vmul.f32 %v4083, 2.563283e-12
      %v4404 = vmul.f32 %v4084, 2.563283e-12
      %v4405 = vmul.f32 %v4085, 2.563283e-12
      %v4406 = vmul.f32 %v4086, 2.563283e-12
      %v4407 = vmul.f32 %v4087, 2.563283e-12
      %v4408 = vmul.f32 %v4088, 2.563283e-12
      %v4409 = vmul.f32 %v4089, 2.563283e-12
      %v4410 = vmul.f32 %v4090, 2.563283e-12
      %v4411 = vmul.f32 %v4091, 2.563283e-12
      %v4412 = vmul.f32 %v4092, 2.563283e-12
      %v4413 = vmul.f32 %v4093, 2.563283e-12
      %v4414 = vmul.f32 %v4094, 2.563283e-12
      %v4415 = vmul.f32 %v4095, 2.563283e-12
      %v4416 = vmul.f32 %v4096, 2.563283e-12
      %v4417 = vmul.f32 %v4097, 2.563283e-12
      %v4418 = vmul.f32 %v4098, 2.563283e-12
      %v4419 = vmul.f32 %v4099, 2.563283e-12
      %v4420 = vmul.f32 %v4100, 2.563283e-12
      %v4421 = vmul.f32 %v4101, 2.563283e-12
      %v4422 = vmul.f32 %v4102, 2.563283e-12
      %v4423 = vmul.f32 %v4103, 2.563283e-12
      %v4424 = vmul.f32 %v4104, 2.563283e-12
      %v4425 = vmul.f32 %v4105, 2.563283e-12
      %v4426 = vmul.f32 %v4106, 2.563283e-12
      %v4427 = vmul.f32 %v4107, 2.563283e-12
      %v4428 = vmul.f32 %v4108, 2.563283e-12
      %v4429 = vmul.f32 %v4109, 2.563283e-12
      %v4430 = vmul.f32 %v4110, 2.563283e-12
      %v4431 = vmul.f32 %v4111, 2.563283e-12
      %v4432 = vmul.f32 %v4112, 2.563283e-12
      %v4433 = vmul.f32 %v4113, 2.563283e-12
      %v4434 = vmul.f32 %v4114, 2.563283e-12
      %v4435 = vmul.f32 %v4115, 2.563283e-12
      %v4436 = vmul.f32 %v4116, 2.563283e-12
      %v4437 = vmul.f32 %v4117, 2.563283e-12
      %v4438 = vmul.f32 %v4118, 2.563283e-12
      %v4439 = vmul.f32 %v4119, 2.563283e-12
      %v4440 = vmul.f32 %v4120, 2.563283e-12
      %v4441 = vmul.f32 %v4121, 2.563283e-12
      %v4442 = vmul.f32 %v4122, 2.563283e-12
      %v4443 = vmul.f32 %v4123, 2.563283e-12
      %v4444 = vmul.f32 %v4124, 2.563283e-12
      %v4445 = vmul.f32 %v4125, 2.563283e-12
      %v4446 = vmul.f32 %v4126, 2.563283e-12
      %v4447 = vmul.f32 %v4127, 2.563283e-12
      %v4448 = vmul.f32 %v4128, 2.563283e-12
      %v4449 = vmul.f32 %v4129, 2.563283e-12
      %v4450 = vmul.f32 %v4130, 2.563283e-12
      %v4451 = vmul.f32 %v4131, 2.563283e-12
      %v4452 = vmul.f32 %v4132, 2.563283e-12
      %v4453 = vmul.f32 %v4133, 2.563283e-12
      %v4454 = vmul.f32 %v4134, 2.563283e-12
      %v4455 = vmul.f32 %v4135, 2.563283e-12
      %v4456 = vmul.f32 %v4136, 2.563283e-12
      %v4457 = vmul.f32 %v4137, 2.563283e-12
      %v4458 = vmul.f32 %v4138, 2.563283e-12
      %v4459 = vmul.f32 %v4139, 2.563283e-12
      %v4460 = vmul.f32 %v4140, 2.563283e-12
      %v4461 = vmul.f32 %v4141, 2.563283e-12
      %v4462 = vmul.f32 %v4142, 2.563283e-12
      %v4463 = vsub.f32 %v4335, %v4399
      %v4464 = vsub.f32 %v4336, %v4400
      %v4465 = vsub.f32 %v4337, %v4401
      %v4466 = vsub.f32 %v4338, %v4402
      %v4467 = vsub.f32 %v4339, %v4403
      %v4468 = vsub.f32 %v4340, %v4404
      %v4469 = vsub.f32 %v4341, %v4405
      %v4470 = vsub.f32 %v4342, %v4406
      %v4471 = vsub.f32 %v4343, %v4407
      %v4472 = vsub.f32 %v4344, %v4408
      %v4473 = vsub.f32 %v4345, %v4409
      %v4474 = vsub.f32 %v4346, %v4410
      %v4475 = vsub.f32 %v4347, %v4411
      %v4476 = vsub.f32 %v4348, %v4412
      %v4477 = vsub.f32 %v4349, %v4413
      %v4478 = vsub.f32 %v4350, %v4414
      %v4479 = vsub.f32 %v4351, %v4415
      %v4480 = vsub.f32 %v4352, %v4416
      %v4481 = vsub.f32 %v4353, %v4417
      %v4482 = vsub.f32 %v4354, %v4418
      %v4483 = vsub.f32 %v4355, %v4419
      %v4484 = vsub.f32 %v4356, %v4420
      %v4485 = vsub.f32 %v4357, %v4421
      %v4486 = vsub.f32 %v4358, %v4422
      %v4487 = vsub.f32 %v4359, %v4423
      %v4488 = vsub.f32 %v4360, %v4424
      %v4489 = vsub.f32 %v4361, %v4425
      %v4490 = vsub.f32 %v4362, %v4426
      %v4491 = vsub.f32 %v4363, %v4427
      %v4492 = vsub.f32 %v4364, %v4428
      %v4493 = vsub.f32 %v4365, %v4429
      %v4494 = vsub.f32 %v4366, %v4430
      %v4495 = vsub.f32 %v4367, %v4431
      %v4496 = vsub.f32 %v4368, %v4432
      %v4497 = vsub.f32 %v4369, %v4433
      %v4498 = vsub.f32 %v4370, %v4434
      %v4499 = vsub.f32 %v4371, %v4435
      %v4500 = vsub.f32 %v4372, %v4436
      %v4501 = vsub.f32 %v4373, %v4437
      %v4502 = vsub.f32 %v4374, %v4438
      %v4503 = vsub.f32 %v4375, %v4439
      %v4504 = vsub.f32 %v4376, %v4440
      %v4505 = vsub.f32 %v4377, %v4441
      %v4506 = vsub.f32 %v4378, %v4442
      %v4507 = vsub.f32 %v4379, %v4443
      %v4508 = vsub.f32 %v4380, %v4444
      %v4509 = vsub.f32 %v4381, %v4445
      %v4510 = vsub.f32 %v4382, %v4446
      %v4511 = vsub.f32 %v4383, %v4447
      %v4512 = vsub.f32 %v4384, %v4448
      %v4513 = vsub.f32 %v4385, %v4449
      %v4514 = vsub.f32 %v4386, %v4450
      %v4515 = vsub.f32 %v4387, %v4451
      %v4516 = vsub.f32 %v4388, %v4452
      %v4517 = vsub.f32 %v4389, %v4453
      %v4518 = vsub.f32 %v4390, %v4454
      %v4519 = vsub.f32 %v4391, %v4455
      %v4520 = vsub.f32 %v4392, %v4456
      %v4521 = vsub.f32 %v4393, %v4457
      %v4522 = vsub.f32 %v4394, %v4458
      %v4523 = vsub.f32 %v4395, %v4459
      %v4524 = vsub.f32 %v4396, %v4460
      %v4525 = vsub.f32 %v4397, %v4461
      %v4526 = vsub.f32 %v4398, %v4462
      %v4527 = vmul.f32 %v4463, %v4463
      %v4528 = vmul.f32 %v4464, %v4464
      %v4529 = vmul.f32 %v4465, %v4465
      %v4530 = vmul.f32 %v4466, %v4466
      %v4531 = vmul.f32 %v4467, %v4467
      %v4532 = vmul.f32 %v4468, %v4468
      %v4533 = vmul.f32 %v4469, %v4469
      %v4534 = vmul.f32 %v4470, %v4470
      %v4535 = vmul.f32 %v4471, %v4471
      %v4536 = vmul.f32 %v4472, %v4472
      %v4537 = vmul.f32 %v4473, %v4473
      %v4538 = vmul.f32 %v4474, %v4474
      %v4539 = vmul.f32 %v4475, %v4475
      %v4540 = vmul.f32 %v4476, %v4476
      %v4541 = vmul.f32 %v4477, %v4477
      %v4542 = vmul.f32 %v4478, %v4478
      %v4543 = vmul.f32 %v4479, %v4479
      %v4544 = vmul.f32 %v4480, %v4480
      %v4545 = vmul.f32 %v4481, %v4481
      %v4546 = vmul.f32 %v4482, %v4482
      %v4547 = vmul.f32 %v4483, %v4483
      %v4548 = vmul.f32 %v4484, %v4484
      %v4549 = vmul.f32 %v4485, %v4485
      %v4550 = vmul.f32 %v4486, %v4486
      %v4551 = vmul.f32 %v4487, %v4487
      %v4552 = vmul.f32 %v4488, %v4488
      %v4553 = vmul.f32 %v4489, %v4489
      %v4554 = vmul.f32 %v4490, %v4490
      %v4555 = vmul.f32 %v4491, %v4491
      %v4556 = vmul.f32 %v4492, %v4492
      %v4557 = vmul.f32 %v4493, %v4493
      %v4558 = vmul.f32 %v4494, %v4494
      %v4559 = vmul.f32 %v4495, %v4495
      %v4560 = vmul.f32 %v4496, %v4496
      %v4561 = vmul.f32 %v4497, %v4497
      %v4562 = vmul.f32 %v4498, %v4498
      %v4563 = vmul.f32 %v4499, %v4499
      %v4564 = vmul.f32 %v4500, %v4500
      %v4565 = vmul.f32 %v4501, %v4501
      %v4566 = vmul.f32 %v4502, %v4502
      %v4567 = vmul.f32 %v4503, %v4503
      %v4568 = vmul.f32 %v4504, %v4504
      %v4569 = vmul.f32 %v4505, %v4505
      %v4570 = vmul.f32 %v4506, %v4506
      %v4571 = vmul.f32 %v4507, %v4507
      %v4572 = vmul.f32 %v4508, %v4508
      %v4573 = vmul.f32 %v4509, %v4509
      %v4574 = vmul.f32 %v4510, %v4510
      %v4575 = vmul.f32 %v4511, %v4511
      %v4576 = vmul.f32 %v4512, %v4512
      %v4577 = vmul.f32 %v4513, %v4513
      %v4578 = vmul.f32 %v4514, %v4514
      %v4579 = vmul.f32 %v4515, %v4515
      %v4580 = vmul.f32 %v4516, %v4516
      %v4581 = vmul.f32 %v4517, %v4517
      %v4582 = vmul.f32 %v4518, %v4518
      %v4583 = vmul.f32 %v4519, %v4519
      %v4584 = vmul.f32 %v4520, %v4520
      %v4585 = vmul.f32 %v4521, %v4521
      %v4586 = vmul.f32 %v4522, %v4522
      %v4587 = vmul.f32 %v4523, %v4523
      %v4588 = vmul.f32 %v4524, %v4524
      %v4589 = vmul.f32 %v4525, %v4525
      %v4590 = vmul.f32 %v4526, %v4526
      %v4591 = vmul.f32 %v4463, %v4527
      %v4592 = vmul.f32 %v4464, %v4528
      %v4593 = vmul.f32 %v4465, %v4529
      %v4594 = vmul.f32 %v4466, %v4530
      %v4595 = vmul.f32 %v4467, %v4531
      %v4596 = vmul.f32 %v4468, %v4532
      %v4597 = vmul.f32 %v4469, %v4533
      %v4598 = vmul.f32 %v4470, %v4534
      %v4599 = vmul.f32 %v4471, %v4535
      %v4600 = vmul.f32 %v4472, %v4536
      %v4601 = vmul.f32 %v4473, %v4537
      %v4602 = vmul.f32 %v4474, %v4538
      %v4603 = vmul.f32 %v4475, %v4539
      %v4604 = vmul.f32 %v4476, %v4540
      %v4605 = vmul.f32 %v4477, %v4541
      %v4606 = vmul.f32 %v4478, %v4542
      %v4607 = vmul.f32 %v4479, %v4543
      %v4608 = vmul.f32 %v4480, %v4544
      %v4609 = vmul.f32 %v4481, %v4545
      %v4610 = vmul.f32 %v4482, %v4546
      %v4611 = vmul.f32 %v4483, %v4547
      %v4612 = vmul.f32 %v4484, %v4548
      %v4613 = vmul.f32 %v4485, %v4549
      %v4614 = vmul.f32 %v4486, %v4550
      %v4615 = vmul.f32 %v4487, %v4551
      %v4616 = vmul.f32 %v4488, %v4552
      %v4617 = vmul.f32 %v4489, %v4553
      %v4618 = vmul.f32 %v4490, %v4554
      %v4619 = vmul.f32 %v4491, %v4555
      %v4620 = vmul.f32 %v4492, %v4556
      %v4621 = vmul.f32 %v4493, %v4557
      %v4622 = vmul.f32 %v4494, %v4558
      %v4623 = vmul.f32 %v4495, %v4559
      %v4624 = vmul.f32 %v4496, %v4560
      %v4625 = vmul.f32 %v4497, %v4561
      %v4626 = vmul.f32 %v4498, %v4562
      %v4627 = vmul.f32 %v4499, %v4563
      %v4628 = vmul.f32 %v4500, %v4564
      %v4629 = vmul.f32 %v4501, %v4565
      %v4630 = vmul.f32 %v4502, %v4566
      %v4631 = vmul.f32 %v4503, %v4567
      %v4632 = vmul.f32 %v4504, %v4568
      %v4633 = vmul.f32 %v4505, %v4569
      %v4634 = vmul.f32 %v4506, %v4570
      %v4635 = vmul.f32 %v4507, %v4571
      %v4636 = vmul.f32 %v4508, %v4572
      %v4637 = vmul.f32 %v4509, %v4573
      %v4638 = vmul.f32 %v4510, %v4574
      %v4639 = vmul.f32 %v4511, %v4575
      %v4640 = vmul.f32 %v4512, %v4576
      %v4641 = vmul.f32 %v4513, %v4577
      %v4642 = vmul.f32 %v4514, %v4578
      %v4643 = vmul.f32 %v4515, %v4579
      %v4644 = vmul.f32 %v4516, %v4580
      %v4645 = vmul.f32 %v4517, %v4581
      %v4646 = vmul.f32 %v4518, %v4582
      %v4647 = vmul.f32 %v4519, %v4583
      %v4648 = vmul.f32 %v4520, %v4584
      %v4649 = vmul.f32 %v4521, %v4585
      %v4650 = vmul.f32 %v4522, %v4586
      %v4651 = vmul.f32 %v4523, %v4587
      %v4652 = vmul.f32 %v4524, %v4588
      %v4653 = vmul.f32 %v4525, %v4589
      %v4654 = vmul.f32 %v4526, %v4590
      %v4655 = vmul.f32 %v4527, -0.00019515296
      %v4656 = vmul.f32 %v4528, -0.00019515296
      %v4657 = vmul.f32 %v4529, -0.00019515296
      %v4658 = vmul.f32 %v4530, -0.00019515296
      %v4659 = vmul.f32 %v4531, -0.00019515296
      %v4660 = vmul.f32 %v4532, -0.00019515296
      %v4661 = vmul.f32 %v4533, -0.00019515296
      %v4662 = vmul.f32 %v4534, -0.00019515296
      %v4663 = vmul.f32 %v4535, -0.00019515296
      %v4664 = vmul.f32 %v4536, -0.00019515296
      %v4665 = vmul.f32 %v4537, -0.00019515296
      %v4666 = vmul.f32 %v4538, -0.00019515296
      %v4667 = vmul.f32 %v4539, -0.00019515296
      %v4668 = vmul.f32 %v4540, -0.00019515296
      %v4669 = vmul.f32 %v4541, -0.00019515296
      %v4670 = vmul.f32 %v4542, -0.00019515296
      %v4671 = vmul.f32 %v4543, -0.00019515296
      %v4672 = vmul.f32 %v4544, -0.00019515296
      %v4673 = vmul.f32 %v4545, -0.00019515296
      %v4674 = vmul.f32 %v4546, -0.00019515296
      %v4675 = vmul.f32 %v4547, -0.00019515296
      %v4676 = vmul.f32 %v4548, -0.00019515296
      %v4677 = vmul.f32 %v4549, -0.00019515296
      %v4678 = vmul.f32 %v4550, -0.00019515296
      %v4679 = vmul.f32 %v4551, -0.00019515296
      %v4680 = vmul.f32 %v4552, -0.00019515296
      %v4681 = vmul.f32 %v4553, -0.00019515296
      %v4682 = vmul.f32 %v4554, -0.00019515296
      %v4683 = vmul.f32 %v4555, -0.00019515296
      %v4684 = vmul.f32 %v4556, -0.00019515296
      %v4685 = vmul.f32 %v4557, -0.00019515296
      %v4686 = vmul.f32 %v4558, -0.00019515296
      %v4687 = vmul.f32 %v4559, -0.00019515296
      %v4688 = vmul.f32 %v4560, -0.00019515296
      %v4689 = vmul.f32 %v4561, -0.00019515296
      %v4690 = vmul.f32 %v4562, -0.00019515296
      %v4691 = vmul.f32 %v4563, -0.00019515296
      %v4692 = vmul.f32 %v4564, -0.00019515296
      %v4693 = vmul.f32 %v4565, -0.00019515296
      %v4694 = vmul.f32 %v4566, -0.00019515296
      %v4695 = vmul.f32 %v4567, -0.00019515296
      %v4696 = vmul.f32 %v4568, -0.00019515296
      %v4697 = vmul.f32 %v4569, -0.00019515296
      %v4698 = vmul.f32 %v4570, -0.00019515296
      %v4699 = vmul.f32 %v4571, -0.00019515296
      %v4700 = vmul.f32 %v4572, -0.00019515296
      %v4701 = vmul.f32 %v4573, -0.00019515296
      %v4702 = vmul.f32 %v4574, -0.00019515296
      %v4703 = vmul.f32 %v4575, -0.00019515296
      %v4704 = vmul.f32 %v4576, -0.00019515296
      %v4705 = vmul.f32 %v4577, -0.00019515296
      %v4706 = vmul.f32 %v4578, -0.00019515296
      %v4707 = vmul.f32 %v4579, -0.00019515296
      %v4708 = vmul.f32 %v4580, -0.00019515296
      %v4709 = vmul.f32 %v4581, -0.00019515296
      %v4710 = vmul.f32 %v4582, -0.00019515296
      %v4711 = vmul.f32 %v4583, -0.00019515296
      %v4712 = vmul.f32 %v4584, -0.00019515296
      %v4713 = vmul.f32 %v4585, -0.00019515296
      %v4714 = vmul.f32 %v4586, -0.00019515296
      %v4715 = vmul.f32 %v4587, -0.00019515296
      %v4716 = vmul.f32 %v4588, -0.00019515296
      %v4717 = vmul.f32 %v4589, -0.00019515296
      %v4718 = vmul.f32 %v4590, -0.00019515296
      %v4719 = vadd.f32 %v4655, 0.008332161
      %v4720 = vadd.f32 %v4656, 0.008332161
      %v4721 = vadd.f32 %v4657, 0.008332161
      %v4722 = vadd.f32 %v4658, 0.008332161
      %v4723 = vadd.f32 %v4659, 0.008332161
      %v4724 = vadd.f32 %v4660, 0.008332161
      %v4725 = vadd.f32 %v4661, 0.008332161
      %v4726 = vadd.f32 %v4662, 0.008332161
      %v4727 = vadd.f32 %v4663, 0.008332161
      %v4728 = vadd.f32 %v4664, 0.008332161
      %v4729 = vadd.f32 %v4665, 0.008332161
      %v4730 = vadd.f32 %v4666, 0.008332161
      %v4731 = vadd.f32 %v4667, 0.008332161
      %v4732 = vadd.f32 %v4668, 0.008332161
      %v4733 = vadd.f32 %v4669, 0.008332161
      %v4734 = vadd.f32 %v4670, 0.008332161
      %v4735 = vadd.f32 %v4671, 0.008332161
      %v4736 = vadd.f32 %v4672, 0.008332161
      %v4737 = vadd.f32 %v4673, 0.008332161
      %v4738 = vadd.f32 %v4674, 0.008332161
      %v4739 = vadd.f32 %v4675, 0.008332161
      %v4740 = vadd.f32 %v4676, 0.008332161
      %v4741 = vadd.f32 %v4677, 0.008332161
      %v4742 = vadd.f32 %v4678, 0.008332161
      %v4743 = vadd.f32 %v4679, 0.008332161
      %v4744 = vadd.f32 %v4680, 0.008332161
      %v4745 = vadd.f32 %v4681, 0.008332161
      %v4746 = vadd.f32 %v4682, 0.008332161
      %v4747 = vadd.f32 %v4683, 0.008332161
      %v4748 = vadd.f32 %v4684, 0.008332161
      %v4749 = vadd.f32 %v4685, 0.008332161
      %v4750 = vadd.f32 %v4686, 0.008332161
      %v4751 = vadd.f32 %v4687, 0.008332161
      %v4752 = vadd.f32 %v4688, 0.008332161
      %v4753 = vadd.f32 %v4689, 0.008332161
      %v4754 = vadd.f32 %v4690, 0.008332161
      %v4755 = vadd.f32 %v4691, 0.008332161
      %v4756 = vadd.f32 %v4692, 0.008332161
      %v4757 = vadd.f32 %v4693, 0.008332161
      %v4758 = vadd.f32 %v4694, 0.008332161
      %v4759 = vadd.f32 %v4695, 0.008332161
      %v4760 = vadd.f32 %v4696, 0.008332161
      %v4761 = vadd.f32 %v4697, 0.008332161
      %v4762 = vadd.f32 %v4698, 0.008332161
      %v4763 = vadd.f32 %v4699, 0.008332161
      %v4764 = vadd.f32 %v4700, 0.008332161
      %v4765 = vadd.f32 %v4701, 0.008332161
      %v4766 = vadd.f32 %v4702, 0.008332161
      %v4767 = vadd.f32 %v4703, 0.008332161
      %v4768 = vadd.f32 %v4704, 0.008332161
      %v4769 = vadd.f32 %v4705, 0.008332161
      %v4770 = vadd.f32 %v4706, 0.008332161
      %v4771 = vadd.f32 %v4707, 0.008332161
      %v4772 = vadd.f32 %v4708, 0.008332161
      %v4773 = vadd.f32 %v4709, 0.008332161
      %v4774 = vadd.f32 %v4710, 0.008332161
      %v4775 = vadd.f32 %v4711, 0.008332161
      %v4776 = vadd.f32 %v4712, 0.008332161
      %v4777 = vadd.f32 %v4713, 0.008332161
      %v4778 = vadd.f32 %v4714, 0.008332161
      %v4779 = vadd.f32 %v4715, 0.008332161
      %v4780 = vadd.f32 %v4716, 0.008332161
      %v4781 = vadd.f32 %v4717, 0.008332161
      %v4782 = vadd.f32 %v4718, 0.008332161
      %v4783 = vmul.f32 %v4719, %v4527
      %v4784 = vmul.f32 %v4720, %v4528
      %v4785 = vmul.f32 %v4721, %v4529
      %v4786 = vmul.f32 %v4722, %v4530
      %v4787 = vmul.f32 %v4723, %v4531
      %v4788 = vmul.f32 %v4724, %v4532
      %v4789 = vmul.f32 %v4725, %v4533
      %v4790 = vmul.f32 %v4726, %v4534
      %v4791 = vmul.f32 %v4727, %v4535
      %v4792 = vmul.f32 %v4728, %v4536
      %v4793 = vmul.f32 %v4729, %v4537
      %v4794 = vmul.f32 %v4730, %v4538
      %v4795 = vmul.f32 %v4731, %v4539
      %v4796 = vmul.f32 %v4732, %v4540
      %v4797 = vmul.f32 %v4733, %v4541
      %v4798 = vmul.f32 %v4734, %v4542
      %v4799 = vmul.f32 %v4735, %v4543
      %v4800 = vmul.f32 %v4736, %v4544
      %v4801 = vmul.f32 %v4737, %v4545
      %v4802 = vmul.f32 %v4738, %v4546
      %v4803 = vmul.f32 %v4739, %v4547
      %v4804 = vmul.f32 %v4740, %v4548
      %v4805 = vmul.f32 %v4741, %v4549
      %v4806 = vmul.f32 %v4742, %v4550
      %v4807 = vmul.f32 %v4743, %v4551
      %v4808 = vmul.f32 %v4744, %v4552
      %v4809 = vmul.f32 %v4745, %v4553
      %v4810 = vmul.f32 %v4746, %v4554
      %v4811 = vmul.f32 %v4747, %v4555
      %v4812 = vmul.f32 %v4748, %v4556
      %v4813 = vmul.f32 %v4749, %v4557
      %v4814 = vmul.f32 %v4750, %v4558
      %v4815 = vmul.f32 %v4751, %v4559
      %v4816 = vmul.f32 %v4752, %v4560
      %v4817 = vmul.f32 %v4753, %v4561
      %v4818 = vmul.f32 %v4754, %v4562
      %v4819 = vmul.f32 %v4755, %v4563
      %v4820 = vmul.f32 %v4756, %v4564
      %v4821 = vmul.f32 %v4757, %v4565
      %v4822 = vmul.f32 %v4758, %v4566
      %v4823 = vmul.f32 %v4759, %v4567
      %v4824 = vmul.f32 %v4760, %v4568
      %v4825 = vmul.f32 %v4761, %v4569
      %v4826 = vmul.f32 %v4762, %v4570
      %v4827 = vmul.f32 %v4763, %v4571
      %v4828 = vmul.f32 %v4764, %v4572
      %v4829 = vmul.f32 %v4765, %v4573
      %v4830 = vmul.f32 %v4766, %v4574
      %v4831 = vmul.f32 %v4767, %v4575
      %v4832 = vmul.f32 %v4768, %v4576
      %v4833 = vmul.f32 %v4769, %v4577
      %v4834 = vmul.f32 %v4770, %v4578
      %v4835 = vmul.f32 %v4771, %v4579
      %v4836 = vmul.f32 %v4772, %v4580
      %v4837 = vmul.f32 %v4773, %v4581
      %v4838 = vmul.f32 %v4774, %v4582
      %v4839 = vmul.f32 %v4775, %v4583
      %v4840 = vmul.f32 %v4776, %v4584
      %v4841 = vmul.f32 %v4777, %v4585
      %v4842 = vmul.f32 %v4778, %v4586
      %v4843 = vmul.f32 %v4779, %v4587
      %v4844 = vmul.f32 %v4780, %v4588
      %v4845 = vmul.f32 %v4781, %v4589
      %v4846 = vmul.f32 %v4782, %v4590
      %v4847 = vadd.f32 %v4783, -0.16666655
      %v4848 = vadd.f32 %v4784, -0.16666655
      %v4849 = vadd.f32 %v4785, -0.16666655
      %v4850 = vadd.f32 %v4786, -0.16666655
      %v4851 = vadd.f32 %v4787, -0.16666655
      %v4852 = vadd.f32 %v4788, -0.16666655
      %v4853 = vadd.f32 %v4789, -0.16666655
      %v4854 = vadd.f32 %v4790, -0.16666655
      %v4855 = vadd.f32 %v4791, -0.16666655
      %v4856 = vadd.f32 %v4792, -0.16666655
      %v4857 = vadd.f32 %v4793, -0.16666655
      %v4858 = vadd.f32 %v4794, -0.16666655
      %v4859 = vadd.f32 %v4795, -0.16666655
      %v4860 = vadd.f32 %v4796, -0.16666655
      %v4861 = vadd.f32 %v4797, -0.16666655
      %v4862 = vadd.f32 %v4798, -0.16666655
      %v4863 = vadd.f32 %v4799, -0.16666655
      %v4864 = vadd.f32 %v4800, -0.16666655
      %v4865 = vadd.f32 %v4801, -0.16666655
      %v4866 = vadd.f32 %v4802, -0.16666655
      %v4867 = vadd.f32 %v4803, -0.16666655
      %v4868 = vadd.f32 %v4804, -0.16666655
      %v4869 = vadd.f32 %v4805, -0.16666655
      %v4870 = vadd.f32 %v4806, -0.16666655
      %v4871 = vadd.f32 %v4807, -0.16666655
      %v4872 = vadd.f32 %v4808, -0.16666655
      %v4873 = vadd.f32 %v4809, -0.16666655
      %v4874 = vadd.f32 %v4810, -0.16666655
      %v4875 = vadd.f32 %v4811, -0.16666655
      %v4876 = vadd.f32 %v4812, -0.16666655
      %v4877 = vadd.f32 %v4813, -0.16666655
      %v4878 = vadd.f32 %v4814, -0.16666655
      %v4879 = vadd.f32 %v4815, -0.16666655
      %v4880 = vadd.f32 %v4816, -0.16666655
      %v4881 = vadd.f32 %v4817, -0.16666655
      %v4882 = vadd.f32 %v4818, -0.16666655
      %v4883 = vadd.f32 %v4819, -0.16666655
      %v4884 = vadd.f32 %v4820, -0.16666655
      %v4885 = vadd.f32 %v4821, -0.16666655
      %v4886 = vadd.f32 %v4822, -0.16666655
      %v4887 = vadd.f32 %v4823, -0.16666655
      %v4888 = vadd.f32 %v4824, -0.16666655
      %v4889 = vadd.f32 %v4825, -0.16666655
      %v4890 = vadd.f32 %v4826, -0.16666655
      %v4891 = vadd.f32 %v4827, -0.16666655
      %v4892 = vadd.f32 %v4828, -0.16666655
      %v4893 = vadd.f32 %v4829, -0.16666655
      %v4894 = vadd.f32 %v4830, -0.16666655
      %v4895 = vadd.f32 %v4831, -0.16666655
      %v4896 = vadd.f32 %v4832, -0.16666655
      %v4897 = vadd.f32 %v4833, -0.16666655
      %v4898 = vadd.f32 %v4834, -0.16666655
      %v4899 = vadd.f32 %v4835, -0.16666655
      %v4900 = vadd.f32 %v4836, -0.16666655
      %v4901 = vadd.f32 %v4837, -0.16666655
      %v4902 = vadd.f32 %v4838, -0.16666655
      %v4903 = vadd.f32 %v4839, -0.16666655
      %v4904 = vadd.f32 %v4840, -0.16666655
      %v4905 = vadd.f32 %v4841, -0.16666655
      %v4906 = vadd.f32 %v4842, -0.16666655
      %v4907 = vadd.f32 %v4843, -0.16666655
      %v4908 = vadd.f32 %v4844, -0.16666655
      %v4909 = vadd.f32 %v4845, -0.16666655
      %v4910 = vadd.f32 %v4846, -0.16666655
      %v4911 = vmul.f32 %v4591, %v4847
      %v4912 = vmul.f32 %v4592, %v4848
      %v4913 = vmul.f32 %v4593, %v4849
      %v4914 = vmul.f32 %v4594, %v4850
      %v4915 = vmul.f32 %v4595, %v4851
      %v4916 = vmul.f32 %v4596, %v4852
      %v4917 = vmul.f32 %v4597, %v4853
      %v4918 = vmul.f32 %v4598, %v4854
      %v4919 = vmul.f32 %v4599, %v4855
      %v4920 = vmul.f32 %v4600, %v4856
      %v4921 = vmul.f32 %v4601, %v4857
      %v4922 = vmul.f32 %v4602, %v4858
      %v4923 = vmul.f32 %v4603, %v4859
      %v4924 = vmul.f32 %v4604, %v4860
      %v4925 = vmul.f32 %v4605, %v4861
      %v4926 = vmul.f32 %v4606, %v4862
      %v4927 = vmul.f32 %v4607, %v4863
      %v4928 = vmul.f32 %v4608, %v4864
      %v4929 = vmul.f32 %v4609, %v4865
      %v4930 = vmul.f32 %v4610, %v4866
      %v4931 = vmul.f32 %v4611, %v4867
      %v4932 = vmul.f32 %v4612, %v4868
      %v4933 = vmul.f32 %v4613, %v4869
      %v4934 = vmul.f32 %v4614, %v4870
      %v4935 = vmul.f32 %v4615, %v4871
      %v4936 = vmul.f32 %v4616, %v4872
      %v4937 = vmul.f32 %v4617, %v4873
      %v4938 = vmul.f32 %v4618, %v4874
      %v4939 = vmul.f32 %v4619, %v4875
      %v4940 = vmul.f32 %v4620, %v4876
      %v4941 = vmul.f32 %v4621, %v4877
      %v4942 = vmul.f32 %v4622, %v4878
      %v4943 = vmul.f32 %v4623, %v4879
      %v4944 = vmul.f32 %v4624, %v4880
      %v4945 = vmul.f32 %v4625, %v4881
      %v4946 = vmul.f32 %v4626, %v4882
      %v4947 = vmul.f32 %v4627, %v4883
      %v4948 = vmul.f32 %v4628, %v4884
      %v4949 = vmul.f32 %v4629, %v4885
      %v4950 = vmul.f32 %v4630, %v4886
      %v4951 = vmul.f32 %v4631, %v4887
      %v4952 = vmul.f32 %v4632, %v4888
      %v4953 = vmul.f32 %v4633, %v4889
      %v4954 = vmul.f32 %v4634, %v4890
      %v4955 = vmul.f32 %v4635, %v4891
      %v4956 = vmul.f32 %v4636, %v4892
      %v4957 = vmul.f32 %v4637, %v4893
      %v4958 = vmul.f32 %v4638, %v4894
      %v4959 = vmul.f32 %v4639, %v4895
      %v4960 = vmul.f32 %v4640, %v4896
      %v4961 = vmul.f32 %v4641, %v4897
      %v4962 = vmul.f32 %v4642, %v4898
      %v4963 = vmul.f32 %v4643, %v4899
      %v4964 = vmul.f32 %v4644, %v4900
      %v4965 = vmul.f32 %v4645, %v4901
      %v4966 = vmul.f32 %v4646, %v4902
      %v4967 = vmul.f32 %v4647, %v4903
      %v4968 = vmul.f32 %v4648, %v4904
      %v4969 = vmul.f32 %v4649, %v4905
      %v4970 = vmul.f32 %v4650, %v4906
      %v4971 = vmul.f32 %v4651, %v4907
      %v4972 = vmul.f32 %v4652, %v4908
      %v4973 = vmul.f32 %v4653, %v4909
      %v4974 = vmul.f32 %v4654, %v4910
      %v4975 = vadd.f32 %v4463, %v4911
      %v4976 = vadd.f32 %v4464, %v4912
      %v4977 = vadd.f32 %v4465, %v4913
      %v4978 = vadd.f32 %v4466, %v4914
      %v4979 = vadd.f32 %v4467, %v4915
      %v4980 = vadd.f32 %v4468, %v4916
      %v4981 = vadd.f32 %v4469, %v4917
      %v4982 = vadd.f32 %v4470, %v4918
      %v4983 = vadd.f32 %v4471, %v4919
      %v4984 = vadd.f32 %v4472, %v4920
      %v4985 = vadd.f32 %v4473, %v4921
      %v4986 = vadd.f32 %v4474, %v4922
      %v4987 = vadd.f32 %v4475, %v4923
      %v4988 = vadd.f32 %v4476, %v4924
      %v4989 = vadd.f32 %v4477, %v4925
      %v4990 = vadd.f32 %v4478, %v4926
      %v4991 = vadd.f32 %v4479, %v4927
      %v4992 = vadd.f32 %v4480, %v4928
      %v4993 = vadd.f32 %v4481, %v4929
      %v4994 = vadd.f32 %v4482, %v4930
      %v4995 = vadd.f32 %v4483, %v4931
      %v4996 = vadd.f32 %v4484, %v4932
      %v4997 = vadd.f32 %v4485, %v4933
      %v4998 = vadd.f32 %v4486, %v4934
      %v4999 = vadd.f32 %v4487, %v4935
      %v5000 = vadd.f32 %v4488, %v4936
      %v5001 = vadd.f32 %v4489, %v4937
      %v5002 = vadd.f32 %v4490, %v4938
      %v5003 = vadd.f32 %v4491, %v4939
      %v5004 = vadd.f32 %v4492, %v4940
      %v5005 = vadd.f32 %v4493, %v4941
      %v5006 = vadd.f32 %v4494, %v4942
      %v5007 = vadd.f32 %v4495, %v4943
      %v5008 = vadd.f32 %v4496, %v4944
      %v5009 = vadd.f32 %v4497, %v4945
      %v5010 = vadd.f32 %v4498, %v4946
      %v5011 = vadd.f32 %v4499, %v4947
      %v5012 = vadd.f32 %v4500, %v4948
      %v5013 = vadd.f32 %v4501, %v4949
      %v5014 = vadd.f32 %v4502, %v4950
      %v5015 = vadd.f32 %v4503, %v4951
      %v5016 = vadd.f32 %v4504, %v4952
      %v5017 = vadd.f32 %v4505, %v4953
      %v5018 = vadd.f32 %v4506, %v4954
      %v5019 = vadd.f32 %v4507, %v4955
      %v5020 = vadd.f32 %v4508, %v4956
      %v5021 = vadd.f32 %v4509, %v4957
      %v5022 = vadd.f32 %v4510, %v4958
      %v5023 = vadd.f32 %v4511, %v4959
      %v5024 = vadd.f32 %v4512, %v4960
      %v5025 = vadd.f32 %v4513, %v4961
      %v5026 = vadd.f32 %v4514, %v4962
      %v5027 = vadd.f32 %v4515, %v4963
      %v5028 = vadd.f32 %v4516, %v4964
      %v5029 = vadd.f32 %v4517, %v4965
      %v5030 = vadd.f32 %v4518, %v4966
      %v5031 = vadd.f32 %v4519, %v4967
      %v5032 = vadd.f32 %v4520, %v4968
      %v5033 = vadd.f32 %v4521, %v4969
      %v5034 = vadd.f32 %v4522, %v4970
      %v5035 = vadd.f32 %v4523, %v4971
      %v5036 = vadd.f32 %v4524, %v4972
      %v5037 = vadd.f32 %v4525, %v4973
      %v5038 = vadd.f32 %v4526, %v4974
      %v5039 = vmul.f32 %v4527, 0.5
      %v5040 = vmul.f32 %v4528, 0.5
      %v5041 = vmul.f32 %v4529, 0.5
      %v5042 = vmul.f32 %v4530, 0.5
      %v5043 = vmul.f32 %v4531, 0.5
      %v5044 = vmul.f32 %v4532, 0.5
      %v5045 = vmul.f32 %v4533, 0.5
      %v5046 = vmul.f32 %v4534, 0.5
      %v5047 = vmul.f32 %v4535, 0.5
      %v5048 = vmul.f32 %v4536, 0.5
      %v5049 = vmul.f32 %v4537, 0.5
      %v5050 = vmul.f32 %v4538, 0.5
      %v5051 = vmul.f32 %v4539, 0.5
      %v5052 = vmul.f32 %v4540, 0.5
      %v5053 = vmul.f32 %v4541, 0.5
      %v5054 = vmul.f32 %v4542, 0.5
      %v5055 = vmul.f32 %v4543, 0.5
      %v5056 = vmul.f32 %v4544, 0.5
      %v5057 = vmul.f32 %v4545, 0.5
      %v5058 = vmul.f32 %v4546, 0.5
      %v5059 = vmul.f32 %v4547, 0.5
      %v5060 = vmul.f32 %v4548, 0.5
      %v5061 = vmul.f32 %v4549, 0.5
      %v5062 = vmul.f32 %v4550, 0.5
      %v5063 = vmul.f32 %v4551, 0.5
      %v5064 = vmul.f32 %v4552, 0.5
      %v5065 = vmul.f32 %v4553, 0.5
      %v5066 = vmul.f32 %v4554, 0.5
      %v5067 = vmul.f32 %v4555, 0.5
      %v5068 = vmul.f32 %v4556, 0.5
      %v5069 = vmul.f32 %v4557, 0.5
      %v5070 = vmul.f32 %v4558, 0.5
      %v5071 = vmul.f32 %v4559, 0.5
      %v5072 = vmul.f32 %v4560, 0.5
      %v5073 = vmul.f32 %v4561, 0.5
      %v5074 = vmul.f32 %v4562, 0.5
      %v5075 = vmul.f32 %v4563, 0.5
      %v5076 = vmul.f32 %v4564, 0.5
      %v5077 = vmul.f32 %v4565, 0.5
      %v5078 = vmul.f32 %v4566, 0.5
      %v5079 = vmul.f32 %v4567, 0.5
      %v5080 = vmul.f32 %v4568, 0.5
      %v5081 = vmul.f32 %v4569, 0.5
      %v5082 = vmul.f32 %v4570, 0.5
      %v5083 = vmul.f32 %v4571, 0.5
      %v5084 = vmul.f32 %v4572, 0.5
      %v5085 = vmul.f32 %v4573, 0.5
      %v5086 = vmul.f32 %v4574, 0.5
      %v5087 = vmul.f32 %v4575, 0.5
      %v5088 = vmul.f32 %v4576, 0.5
      %v5089 = vmul.f32 %v4577, 0.5
      %v5090 = vmul.f32 %v4578, 0.5
      %v5091 = vmul.f32 %v4579, 0.5
      %v5092 = vmul.f32 %v4580, 0.5
      %v5093 = vmul.f32 %v4581, 0.5
      %v5094 = vmul.f32 %v4582, 0.5
      %v5095 = vmul.f32 %v4583, 0.5
      %v5096 = vmul.f32 %v4584, 0.5
      %v5097 = vmul.f32 %v4585, 0.5
      %v5098 = vmul.f32 %v4586, 0.5
      %v5099 = vmul.f32 %v4587, 0.5
      %v5100 = vmul.f32 %v4588, 0.5
      %v5101 = vmul.f32 %v4589, 0.5
      %v5102 = vmul.f32 %v4590, 0.5
      %v5103 = vsub.f32 1.0, %v5039
      %v5104 = vsub.f32 1.0, %v5040
      %v5105 = vsub.f32 1.0, %v5041
      %v5106 = vsub.f32 1.0, %v5042
      %v5107 = vsub.f32 1.0, %v5043
      %v5108 = vsub.f32 1.0, %v5044
      %v5109 = vsub.f32 1.0, %v5045
      %v5110 = vsub.f32 1.0, %v5046
      %v5111 = vsub.f32 1.0, %v5047
      %v5112 = vsub.f32 1.0, %v5048
      %v5113 = vsub.f32 1.0, %v5049
      %v5114 = vsub.f32 1.0, %v5050
      %v5115 = vsub.f32 1.0, %v5051
      %v5116 = vsub.f32 1.0, %v5052
      %v5117 = vsub.f32 1.0, %v5053
      %v5118 = vsub.f32 1.0, %v5054
      %v5119 = vsub.f32 1.0, %v5055
      %v5120 = vsub.f32 1.0, %v5056
      %v5121 = vsub.f32 1.0, %v5057
      %v5122 = vsub.f32 1.0, %v5058
      %v5123 = vsub.f32 1.0, %v5059
      %v5124 = vsub.f32 1.0, %v5060
      %v5125 = vsub.f32 1.0, %v5061
      %v5126 = vsub.f32 1.0, %v5062
      %v5127 = vsub.f32 1.0, %v5063
      %v5128 = vsub.f32 1.0, %v5064
      %v5129 = vsub.f32 1.0, %v5065
      %v5130 = vsub.f32 1.0, %v5066
      %v5131 = vsub.f32 1.0, %v5067
      %v5132 = vsub.f32 1.0, %v5068
      %v5133 = vsub.f32 1.0, %v5069
      %v5134 = vsub.f32 1.0, %v5070
      %v5135 = vsub.f32 1.0, %v5071
      %v5136 = vsub.f32 1.0, %v5072
      %v5137 = vsub.f32 1.0, %v5073
      %v5138 = vsub.f32 1.0, %v5074
      %v5139 = vsub.f32 1.0, %v5075
      %v5140 = vsub.f32 1.0, %v5076
      %v5141 = vsub.f32 1.0, %v5077
      %v5142 = vsub.f32 1.0, %v5078
      %v5143 = vsub.f32 1.0, %v5079
      %v5144 = vsub.f32 1.0, %v5080
      %v5145 = vsub.f32 1.0, %v5081
      %v5146 = vsub.f32 1.0, %v5082
      %v5147 = vsub.f32 1.0, %v5083
      %v5148 = vsub.f32 1.0, %v5084
      %v5149 = vsub.f32 1.0, %v5085
      %v5150 = vsub.f32 1.0, %v5086
      %v5151 = vsub.f32 1.0, %v5087
      %v5152 = vsub.f32 1.0, %v5088
      %v5153 = vsub.f32 1.0, %v5089
      %v5154 = vsub.f32 1.0, %v5090
      %v5155 = vsub.f32 1.0, %v5091
      %v5156 = vsub.f32 1.0, %v5092
      %v5157 = vsub.f32 1.0, %v5093
      %v5158 = vsub.f32 1.0, %v5094
      %v5159 = vsub.f32 1.0, %v5095
      %v5160 = vsub.f32 1.0, %v5096
      %v5161 = vsub.f32 1.0, %v5097
      %v5162 = vsub.f32 1.0, %v5098
      %v5163 = vsub.f32 1.0, %v5099
      %v5164 = vsub.f32 1.0, %v5100
      %v5165 = vsub.f32 1.0, %v5101
      %v5166 = vsub.f32 1.0, %v5102
      %v5167 = vmul.f32 %v4527, %v4527
      %v5168 = vmul.f32 %v4528, %v4528
      %v5169 = vmul.f32 %v4529, %v4529
      %v5170 = vmul.f32 %v4530, %v4530
      %v5171 = vmul.f32 %v4531, %v4531
      %v5172 = vmul.f32 %v4532, %v4532
      %v5173 = vmul.f32 %v4533, %v4533
      %v5174 = vmul.f32 %v4534, %v4534
      %v5175 = vmul.f32 %v4535, %v4535
      %v5176 = vmul.f32 %v4536, %v4536
      %v5177 = vmul.f32 %v4537, %v4537
      %v5178 = vmul.f32 %v4538, %v4538
      %v5179 = vmul.f32 %v4539, %v4539
      %v5180 = vmul.f32 %v4540, %v4540
      %v5181 = vmul.f32 %v4541, %v4541
      %v5182 = vmul.f32 %v4542, %v4542
      %v5183 = vmul.f32 %v4543, %v4543
      %v5184 = vmul.f32 %v4544, %v4544
      %v5185 = vmul.f32 %v4545, %v4545
      %v5186 = vmul.f32 %v4546, %v4546
      %v5187 = vmul.f32 %v4547, %v4547
      %v5188 = vmul.f32 %v4548, %v4548
      %v5189 = vmul.f32 %v4549, %v4549
      %v5190 = vmul.f32 %v4550, %v4550
      %v5191 = vmul.f32 %v4551, %v4551
      %v5192 = vmul.f32 %v4552, %v4552
      %v5193 = vmul.f32 %v4553, %v4553
      %v5194 = vmul.f32 %v4554, %v4554
      %v5195 = vmul.f32 %v4555, %v4555
      %v5196 = vmul.f32 %v4556, %v4556
      %v5197 = vmul.f32 %v4557, %v4557
      %v5198 = vmul.f32 %v4558, %v4558
      %v5199 = vmul.f32 %v4559, %v4559
      %v5200 = vmul.f32 %v4560, %v4560
      %v5201 = vmul.f32 %v4561, %v4561
      %v5202 = vmul.f32 %v4562, %v4562
      %v5203 = vmul.f32 %v4563, %v4563
      %v5204 = vmul.f32 %v4564, %v4564
      %v5205 = vmul.f32 %v4565, %v4565
      %v5206 = vmul.f32 %v4566, %v4566
      %v5207 = vmul.f32 %v4567, %v4567
      %v5208 = vmul.f32 %v4568, %v4568
      %v5209 = vmul.f32 %v4569, %v4569
      %v5210 = vmul.f32 %v4570, %v4570
      %v5211 = vmul.f32 %v4571, %v4571
      %v5212 = vmul.f32 %v4572, %v4572
      %v5213 = vmul.f32 %v4573, %v4573
      %v5214 = vmul.f32 %v4574, %v4574
      %v5215 = vmul.f32 %v4575, %v4575
      %v5216 = vmul.f32 %v4576, %v4576
      %v5217 = vmul.f32 %v4577, %v4577
      %v5218 = vmul.f32 %v4578, %v4578
      %v5219 = vmul.f32 %v4579, %v4579
      %v5220 = vmul.f32 %v4580, %v4580
      %v5221 = vmul.f32 %v4581, %v4581
      %v5222 = vmul.f32 %v4582, %v4582
      %v5223 = vmul.f32 %v4583, %v4583
      %v5224 = vmul.f32 %v4584, %v4584
      %v5225 = vmul.f32 %v4585, %v4585
      %v5226 = vmul.f32 %v4586, %v4586
      %v5227 = vmul.f32 %v4587, %v4587
      %v5228 = vmul.f32 %v4588, %v4588
      %v5229 = vmul.f32 %v4589, %v4589
      %v5230 = vmul.f32 %v4590, %v4590
      %v5231 = vmul.f32 %v4527, 2.4433157e-05
      %v5232 = vmul.f32 %v4528, 2.4433157e-05
      %v5233 = vmul.f32 %v4529, 2.4433157e-05
      %v5234 = vmul.f32 %v4530, 2.4433157e-05
      %v5235 = vmul.f32 %v4531, 2.4433157e-05
      %v5236 = vmul.f32 %v4532, 2.4433157e-05
      %v5237 = vmul.f32 %v4533, 2.4433157e-05
      %v5238 = vmul.f32 %v4534, 2.4433157e-05
      %v5239 = vmul.f32 %v4535, 2.4433157e-05
      %v5240 = vmul.f32 %v4536, 2.4433157e-05
      %v5241 = vmul.f32 %v4537, 2.4433157e-05
      %v5242 = vmul.f32 %v4538, 2.4433157e-05
      %v5243 = vmul.f32 %v4539, 2.4433157e-05
      %v5244 = vmul.f32 %v4540, 2.4433157e-05
      %v5245 = vmul.f32 %v4541, 2.4433157e-05
      %v5246 = vmul.f32 %v4542, 2.4433157e-05
      %v5247 = vmul.f32 %v4543, 2.4433157e-05
      %v5248 = vmul.f32 %v4544, 2.4433157e-05
      %v5249 = vmul.f32 %v4545, 2.4433157e-05
      %v5250 = vmul.f32 %v4546, 2.4433157e-05
      %v5251 = vmul.f32 %v4547, 2.4433157e-05
      %v5252 = vmul.f32 %v4548, 2.4433157e-05
      %v5253 = vmul.f32 %v4549, 2.4433157e-05
      %v5254 = vmul.f32 %v4550, 2.4433157e-05
      %v5255 = vmul.f32 %v4551, 2.4433157e-05
      %v5256 = vmul.f32 %v4552, 2.4433157e-05
      %v5257 = vmul.f32 %v4553, 2.4433157e-05
      %v5258 = vmul.f32 %v4554, 2.4433157e-05
      %v5259 = vmul.f32 %v4555, 2.4433157e-05
      %v5260 = vmul.f32 %v4556, 2.4433157e-05
      %v5261 = vmul.f32 %v4557, 2.4433157e-05
      %v5262 = vmul.f32 %v4558, 2.4433157e-05
      %v5263 = vmul.f32 %v4559, 2.4433157e-05
      %v5264 = vmul.f32 %v4560, 2.4433157e-05
      %v5265 = vmul.f32 %v4561, 2.4433157e-05
      %v5266 = vmul.f32 %v4562, 2.4433157e-05
      %v5267 = vmul.f32 %v4563, 2.4433157e-05
      %v5268 = vmul.f32 %v4564, 2.4433157e-05
      %v5269 = vmul.f32 %v4565, 2.4433157e-05
      %v5270 = vmul.f32 %v4566, 2.4433157e-05
      %v5271 = vmul.f32 %v4567, 2.4433157e-05
      %v5272 = vmul.f32 %v4568, 2.4433157e-05
      %v5273 = vmul.f32 %v4569, 2.4433157e-05
      %v5274 = vmul.f32 %v4570, 2.4433157e-05
      %v5275 = vmul.f32 %v4571, 2.4433157e-05
      %v5276 = vmul.f32 %v4572, 2.4433157e-05
      %v5277 = vmul.f32 %v4573, 2.4433157e-05
      %v5278 = vmul.f32 %v4574, 2.4433157e-05
      %v5279 = vmul.f32 %v4575, 2.4433157e-05
      %v5280 = vmul.f32 %v4576, 2.4433157e-05
      %v5281 = vmul.f32 %v4577, 2.4433157e-05
      %v5282 = vmul.f32 %v4578, 2.4433157e-05
      %v5283 = vmul.f32 %v4579, 2.4433157e-05
      %v5284 = vmul.f32 %v4580, 2.4433157e-05
      %v5285 = vmul.f32 %v4581, 2.4433157e-05
      %v5286 = vmul.f32 %v4582, 2.4433157e-05
      %v5287 = vmul.f32 %v4583, 2.4433157e-05
      %v5288 = vmul.f32 %v4584, 2.4433157e-05
      %v5289 = vmul.f32 %v4585, 2.4433157e-05
      %v5290 = vmul.f32 %v4586, 2.4433157e-05
      %v5291 = vmul.f32 %v4587, 2.4433157e-05
      %v5292 = vmul.f32 %v4588, 2.4433157e-05
      %v5293 = vmul.f32 %v4589, 2.4433157e-05
      %v5294 = vmul.f32 %v4590, 2.4433157e-05
      %v5295 = vadd.f32 %v5231, -0.0013887316
      %v5296 = vadd.f32 %v5232, -0.0013887316
      %v5297 = vadd.f32 %v5233, -0.0013887316
      %v5298 = vadd.f32 %v5234, -0.0013887316
      %v5299 = vadd.f32 %v5235, -0.0013887316
      %v5300 = vadd.f32 %v5236, -0.0013887316
      %v5301 = vadd.f32 %v5237, -0.0013887316
      %v5302 = vadd.f32 %v5238, -0.0013887316
      %v5303 = vadd.f32 %v5239, -0.0013887316
      %v5304 = vadd.f32 %v5240, -0.0013887316
      %v5305 = vadd.f32 %v5241, -0.0013887316
      %v5306 = vadd.f32 %v5242, -0.0013887316
      %v5307 = vadd.f32 %v5243, -0.0013887316
      %v5308 = vadd.f32 %v5244, -0.0013887316
      %v5309 = vadd.f32 %v5245, -0.0013887316
      %v5310 = vadd.f32 %v5246, -0.0013887316
      %v5311 = vadd.f32 %v5247, -0.0013887316
      %v5312 = vadd.f32 %v5248, -0.0013887316
      %v5313 = vadd.f32 %v5249, -0.0013887316
      %v5314 = vadd.f32 %v5250, -0.0013887316
      %v5315 = vadd.f32 %v5251, -0.0013887316
      %v5316 = vadd.f32 %v5252, -0.0013887316
      %v5317 = vadd.f32 %v5253, -0.0013887316
      %v5318 = vadd.f32 %v5254, -0.0013887316
      %v5319 = vadd.f32 %v5255, -0.0013887316
      %v5320 = vadd.f32 %v5256, -0.0013887316
      %v5321 = vadd.f32 %v5257, -0.0013887316
      %v5322 = vadd.f32 %v5258, -0.0013887316
      %v5323 = vadd.f32 %v5259, -0.0013887316
      %v5324 = vadd.f32 %v5260, -0.0013887316
      %v5325 = vadd.f32 %v5261, -0.0013887316
      %v5326 = vadd.f32 %v5262, -0.0013887316
      %v5327 = vadd.f32 %v5263, -0.0013887316
      %v5328 = vadd.f32 %v5264, -0.0013887316
      %v5329 = vadd.f32 %v5265, -0.0013887316
      %v5330 = vadd.f32 %v5266, -0.0013887316
      %v5331 = vadd.f32 %v5267, -0.0013887316
      %v5332 = vadd.f32 %v5268, -0.0013887316
      %v5333 = vadd.f32 %v5269, -0.0013887316
      %v5334 = vadd.f32 %v5270, -0.0013887316
      %v5335 = vadd.f32 %v5271, -0.0013887316
      %v5336 = vadd.f32 %v5272, -0.0013887316
      %v5337 = vadd.f32 %v5273, -0.0013887316
      %v5338 = vadd.f32 %v5274, -0.0013887316
      %v5339 = vadd.f32 %v5275, -0.0013887316
      %v5340 = vadd.f32 %v5276, -0.0013887316
      %v5341 = vadd.f32 %v5277, -0.0013887316
      %v5342 = vadd.f32 %v5278, -0.0013887316
      %v5343 = vadd.f32 %v5279, -0.0013887316
      %v5344 = vadd.f32 %v5280, -0.0013887316
      %v5345 = vadd.f32 %v5281, -0.0013887316
      %v5346 = vadd.f32 %v5282, -0.0013887316
      %v5347 = vadd.f32 %v5283, -0.0013887316
      %v5348 = vadd.f32 %v5284, -0.0013887316
      %v5349 = vadd.f32 %v5285, -0.0013887316
      %v5350 = vadd.f32 %v5286, -0.0013887316
      %v5351 = vadd.f32 %v5287, -0.0013887316
      %v5352 = vadd.f32 %v5288, -0.0013887316
      %v5353 = vadd.f32 %v5289, -0.0013887316
      %v5354 = vadd.f32 %v5290, -0.0013887316
      %v5355 = vadd.f32 %v5291, -0.0013887316
      %v5356 = vadd.f32 %v5292, -0.0013887316
      %v5357 = vadd.f32 %v5293, -0.0013887316
      %v5358 = vadd.f32 %v5294, -0.0013887316
      %v5359 = vmul.f32 %v5295, %v4527
      %v5360 = vmul.f32 %v5296, %v4528
      %v5361 = vmul.f32 %v5297, %v4529
      %v5362 = vmul.f32 %v5298, %v4530
      %v5363 = vmul.f32 %v5299, %v4531
      %v5364 = vmul.f32 %v5300, %v4532
      %v5365 = vmul.f32 %v5301, %v4533
      %v5366 = vmul.f32 %v5302, %v4534
      %v5367 = vmul.f32 %v5303, %v4535
      %v5368 = vmul.f32 %v5304, %v4536
      %v5369 = vmul.f32 %v5305, %v4537
      %v5370 = vmul.f32 %v5306, %v4538
      %v5371 = vmul.f32 %v5307, %v4539
      %v5372 = vmul.f32 %v5308, %v4540
      %v5373 = vmul.f32 %v5309, %v4541
      %v5374 = vmul.f32 %v5310, %v4542
      %v5375 = vmul.f32 %v5311, %v4543
      %v5376 = vmul.f32 %v5312, %v4544
      %v5377 = vmul.f32 %v5313, %v4545
      %v5378 = vmul.f32 %v5314, %v4546
      %v5379 = vmul.f32 %v5315, %v4547
      %v5380 = vmul.f32 %v5316, %v4548
      %v5381 = vmul.f32 %v5317, %v4549
      %v5382 = vmul.f32 %v5318, %v4550
      %v5383 = vmul.f32 %v5319, %v4551
      %v5384 = vmul.f32 %v5320, %v4552
      %v5385 = vmul.f32 %v5321, %v4553
      %v5386 = vmul.f32 %v5322, %v4554
      %v5387 = vmul.f32 %v5323, %v4555
      %v5388 = vmul.f32 %v5324, %v4556
      %v5389 = vmul.f32 %v5325, %v4557
      %v5390 = vmul.f32 %v5326, %v4558
      %v5391 = vmul.f32 %v5327, %v4559
      %v5392 = vmul.f32 %v5328, %v4560
      %v5393 = vmul.f32 %v5329, %v4561
      %v5394 = vmul.f32 %v5330, %v4562
      %v5395 = vmul.f32 %v5331, %v4563
      %v5396 = vmul.f32 %v5332, %v4564
      %v5397 = vmul.f32 %v5333, %v4565
      %v5398 = vmul.f32 %v5334, %v4566
      %v5399 = vmul.f32 %v5335, %v4567
      %v5400 = vmul.f32 %v5336, %v4568
      %v5401 = vmul.f32 %v5337, %v4569
      %v5402 = vmul.f32 %v5338, %v4570
      %v5403 = vmul.f32 %v5339, %v4571
      %v5404 = vmul.f32 %v5340, %v4572
      %v5405 = vmul.f32 %v5341, %v4573
      %v5406 = vmul.f32 %v5342, %v4574
      %v5407 = vmul.f32 %v5343, %v4575
      %v5408 = vmul.f32 %v5344, %v4576
      %v5409 = vmul.f32 %v5345, %v4577
      %v5410 = vmul.f32 %v5346, %v4578
      %v5411 = vmul.f32 %v5347, %v4579
      %v5412 = vmul.f32 %v5348, %v4580
      %v5413 = vmul.f32 %v5349, %v4581
      %v5414 = vmul.f32 %v5350, %v4582
      %v5415 = vmul.f32 %v5351, %v4583
      %v5416 = vmul.f32 %v5352, %v4584
      %v5417 = vmul.f32 %v5353, %v4585
      %v5418 = vmul.f32 %v5354, %v4586
      %v5419 = vmul.f32 %v5355, %v4587
      %v5420 = vmul.f32 %v5356, %v4588
      %v5421 = vmul.f32 %v5357, %v4589
      %v5422 = vmul.f32 %v5358, %v4590
      %v5423 = vadd.f32 %v5359, 0.041666646
      %v5424 = vadd.f32 %v5360, 0.041666646
      %v5425 = vadd.f32 %v5361, 0.041666646
      %v5426 = vadd.f32 %v5362, 0.041666646
      %v5427 = vadd.f32 %v5363, 0.041666646
      %v5428 = vadd.f32 %v5364, 0.041666646
      %v5429 = vadd.f32 %v5365, 0.041666646
      %v5430 = vadd.f32 %v5366, 0.041666646
      %v5431 = vadd.f32 %v5367, 0.041666646
      %v5432 = vadd.f32 %v5368, 0.041666646
      %v5433 = vadd.f32 %v5369, 0.041666646
      %v5434 = vadd.f32 %v5370, 0.041666646
      %v5435 = vadd.f32 %v5371, 0.041666646
      %v5436 = vadd.f32 %v5372, 0.041666646
      %v5437 = vadd.f32 %v5373, 0.041666646
      %v5438 = vadd.f32 %v5374, 0.041666646
      %v5439 = vadd.f32 %v5375, 0.041666646
      %v5440 = vadd.f32 %v5376, 0.041666646
      %v5441 = vadd.f32 %v5377, 0.041666646
      %v5442 = vadd.f32 %v5378, 0.041666646
      %v5443 = vadd.f32 %v5379, 0.041666646
      %v5444 = vadd.f32 %v5380, 0.041666646
      %v5445 = vadd.f32 %v5381, 0.041666646
      %v5446 = vadd.f32 %v5382, 0.041666646
      %v5447 = vadd.f32 %v5383, 0.041666646
      %v5448 = vadd.f32 %v5384, 0.041666646
      %v5449 = vadd.f32 %v5385, 0.041666646
      %v5450 = vadd.f32 %v5386, 0.041666646
      %v5451 = vadd.f32 %v5387, 0.041666646
      %v5452 = vadd.f32 %v5388, 0.041666646
      %v5453 = vadd.f32 %v5389, 0.041666646
      %v5454 = vadd.f32 %v5390, 0.041666646
      %v5455 = vadd.f32 %v5391, 0.041666646
      %v5456 = vadd.f32 %v5392, 0.041666646
      %v5457 = vadd.f32 %v5393, 0.041666646
      %v5458 = vadd.f32 %v5394, 0.041666646
      %v5459 = vadd.f32 %v5395, 0.041666646
      %v5460 = vadd.f32 %v5396, 0.041666646
      %v5461 = vadd.f32 %v5397, 0.041666646
      %v5462 = vadd.f32 %v5398, 0.041666646
      %v5463 = vadd.f32 %v5399, 0.041666646
      %v5464 = vadd.f32 %v5400, 0.041666646
      %v5465 = vadd.f32 %v5401, 0.041666646
      %v5466 = vadd.f32 %v5402, 0.041666646
      %v5467 = vadd.f32 %v5403, 0.041666646
      %v5468 = vadd.f32 %v5404, 0.041666646
      %v5469 = vadd.f32 %v5405, 0.041666646
      %v5470 = vadd.f32 %v5406, 0.041666646
      %v5471 = vadd.f32 %v5407, 0.041666646
      %v5472 = vadd.f32 %v5408, 0.041666646
      %v5473 = vadd.f32 %v5409, 0.041666646
      %v5474 = vadd.f32 %v5410, 0.041666646
      %v5475 = vadd.f32 %v5411, 0.041666646
      %v5476 = vadd.f32 %v5412, 0.041666646
      %v5477 = vadd.f32 %v5413, 0.041666646
      %v5478 = vadd.f32 %v5414, 0.041666646
      %v5479 = vadd.f32 %v5415, 0.041666646
      %v5480 = vadd.f32 %v5416, 0.041666646
      %v5481 = vadd.f32 %v5417, 0.041666646
      %v5482 = vadd.f32 %v5418, 0.041666646
      %v5483 = vadd.f32 %v5419, 0.041666646
      %v5484 = vadd.f32 %v5420, 0.041666646
      %v5485 = vadd.f32 %v5421, 0.041666646
      %v5486 = vadd.f32 %v5422, 0.041666646
      %v5487 = vmul.f32 %v5167, %v5423
      %v5488 = vmul.f32 %v5168, %v5424
      %v5489 = vmul.f32 %v5169, %v5425
      %v5490 = vmul.f32 %v5170, %v5426
      %v5491 = vmul.f32 %v5171, %v5427
      %v5492 = vmul.f32 %v5172, %v5428
      %v5493 = vmul.f32 %v5173, %v5429
      %v5494 = vmul.f32 %v5174, %v5430
      %v5495 = vmul.f32 %v5175, %v5431
      %v5496 = vmul.f32 %v5176, %v5432
      %v5497 = vmul.f32 %v5177, %v5433
      %v5498 = vmul.f32 %v5178, %v5434
      %v5499 = vmul.f32 %v5179, %v5435
      %v5500 = vmul.f32 %v5180, %v5436
      %v5501 = vmul.f32 %v5181, %v5437
      %v5502 = vmul.f32 %v5182, %v5438
      %v5503 = vmul.f32 %v5183, %v5439
      %v5504 = vmul.f32 %v5184, %v5440
      %v5505 = vmul.f32 %v5185, %v5441
      %v5506 = vmul.f32 %v5186, %v5442
      %v5507 = vmul.f32 %v5187, %v5443
      %v5508 = vmul.f32 %v5188, %v5444
      %v5509 = vmul.f32 %v5189, %v5445
      %v5510 = vmul.f32 %v5190, %v5446
      %v5511 = vmul.f32 %v5191, %v5447
      %v5512 = vmul.f32 %v5192, %v5448
      %v5513 = vmul.f32 %v5193, %v5449
      %v5514 = vmul.f32 %v5194, %v5450
      %v5515 = vmul.f32 %v5195, %v5451
      %v5516 = vmul.f32 %v5196, %v5452
      %v5517 = vmul.f32 %v5197, %v5453
      %v5518 = vmul.f32 %v5198, %v5454
      %v5519 = vmul.f32 %v5199, %v5455
      %v5520 = vmul.f32 %v5200, %v5456
      %v5521 = vmul.f32 %v5201, %v5457
      %v5522 = vmul.f32 %v5202, %v5458
      %v5523 = vmul.f32 %v5203, %v5459
      %v5524 = vmul.f32 %v5204, %v5460
      %v5525 = vmul.f32 %v5205, %v5461
      %v5526 = vmul.f32 %v5206, %v5462
      %v5527 = vmul.f32 %v5207, %v5463
      %v5528 = vmul.f32 %v5208, %v5464
      %v5529 = vmul.f32 %v5209, %v5465
      %v5530 = vmul.f32 %v5210, %v5466
      %v5531 = vmul.f32 %v5211, %v5467
      %v5532 = vmul.f32 %v5212, %v5468
      %v5533 = vmul.f32 %v5213, %v5469
      %v5534 = vmul.f32 %v5214, %v5470
      %v5535 = vmul.f32 %v5215, %v5471
      %v5536 = vmul.f32 %v5216, %v5472
      %v5537 = vmul.f32 %v5217, %v5473
      %v5538 = vmul.f32 %v5218, %v5474
      %v5539 = vmul.f32 %v5219, %v5475
      %v5540 = vmul.f32 %v5220, %v5476
      %v5541 = vmul.f32 %v5221, %v5477
      %v5542 = vmul.f32 %v5222, %v5478
      %v5543 = vmul.f32 %v5223, %v5479
      %v5544 = vmul.f32 %v5224, %v5480
      %v5545 = vmul.f32 %v5225, %v5481
      %v5546 = vmul.f32 %v5226, %v5482
      %v5547 = vmul.f32 %v5227, %v5483
      %v5548 = vmul.f32 %v5228, %v5484
      %v5549 = vmul.f32 %v5229, %v5485
      %v5550 = vmul.f32 %v5230, %v5486
      %v5551 = vadd.f32 %v5103, %v5487
      %v5552 = vadd.f32 %v5104, %v5488
      %v5553 = vadd.f32 %v5105, %v5489
      %v5554 = vadd.f32 %v5106, %v5490
      %v5555 = vadd.f32 %v5107, %v5491
      %v5556 = vadd.f32 %v5108, %v5492
      %v5557 = vadd.f32 %v5109, %v5493
      %v5558 = vadd.f32 %v5110, %v5494
      %v5559 = vadd.f32 %v5111, %v5495
      %v5560 = vadd.f32 %v5112, %v5496
      %v5561 = vadd.f32 %v5113, %v5497
      %v5562 = vadd.f32 %v5114, %v5498
      %v5563 = vadd.f32 %v5115, %v5499
      %v5564 = vadd.f32 %v5116, %v5500
      %v5565 = vadd.f32 %v5117, %v5501
      %v5566 = vadd.f32 %v5118, %v5502
      %v5567 = vadd.f32 %v5119, %v5503
      %v5568 = vadd.f32 %v5120, %v5504
      %v5569 = vadd.f32 %v5121, %v5505
      %v5570 = vadd.f32 %v5122, %v5506
      %v5571 = vadd.f32 %v5123, %v5507
      %v5572 = vadd.f32 %v5124, %v5508
      %v5573 = vadd.f32 %v5125, %v5509
      %v5574 = vadd.f32 %v5126, %v5510
      %v5575 = vadd.f32 %v5127, %v5511
      %v5576 = vadd.f32 %v5128, %v5512
      %v5577 = vadd.f32 %v5129, %v5513
      %v5578 = vadd.f32 %v5130, %v5514
      %v5579 = vadd.f32 %v5131, %v5515
      %v5580 = vadd.f32 %v5132, %v5516
      %v5581 = vadd.f32 %v5133, %v5517
      %v5582 = vadd.f32 %v5134, %v5518
      %v5583 = vadd.f32 %v5135, %v5519
      %v5584 = vadd.f32 %v5136, %v5520
      %v5585 = vadd.f32 %v5137, %v5521
      %v5586 = vadd.f32 %v5138, %v5522
      %v5587 = vadd.f32 %v5139, %v5523
      %v5588 = vadd.f32 %v5140, %v5524
      %v5589 = vadd.f32 %v5141, %v5525
      %v5590 = vadd.f32 %v5142, %v5526
      %v5591 = vadd.f32 %v5143, %v5527
      %v5592 = vadd.f32 %v5144, %v5528
      %v5593 = vadd.f32 %v5145, %v5529
      %v5594 = vadd.f32 %v5146, %v5530
      %v5595 = vadd.f32 %v5147, %v5531
      %v5596 = vadd.f32 %v5148, %v5532
      %v5597 = vadd.f32 %v5149, %v5533
      %v5598 = vadd.f32 %v5150, %v5534
      %v5599 = vadd.f32 %v5151, %v5535
      %v5600 = vadd.f32 %v5152, %v5536
      %v5601 = vadd.f32 %v5153, %v5537
      %v5602 = vadd.f32 %v5154, %v5538
      %v5603 = vadd.f32 %v5155, %v5539
      %v5604 = vadd.f32 %v5156, %v5540
      %v5605 = vadd.f32 %v5157, %v5541
      %v5606 = vadd.f32 %v5158, %v5542
      %v5607 = vadd.f32 %v5159, %v5543
      %v5608 = vadd.f32 %v5160, %v5544
      %v5609 = vadd.f32 %v5161, %v5545
      %v5610 = vadd.f32 %v5162, %v5546
      %v5611 = vadd.f32 %v5163, %v5547
      %v5612 = vadd.f32 %v5164, %v5548
      %v5613 = vadd.f32 %v5165, %v5549
      %v5614 = vadd.f32 %v5166, %v5550
      %v5615 = vmul.f32 %v4079, 0.25
      %v5616 = vmul.f32 %v4080, 0.25
      %v5617 = vmul.f32 %v4081, 0.25
      %v5618 = vmul.f32 %v4082, 0.25
      %v5619 = vmul.f32 %v4083, 0.25
      %v5620 = vmul.f32 %v4084, 0.25
      %v5621 = vmul.f32 %v4085, 0.25
      %v5622 = vmul.f32 %v4086, 0.25
      %v5623 = vmul.f32 %v4087, 0.25
      %v5624 = vmul.f32 %v4088, 0.25
      %v5625 = vmul.f32 %v4089, 0.25
      %v5626 = vmul.f32 %v4090, 0.25
      %v5627 = vmul.f32 %v4091, 0.25
      %v5628 = vmul.f32 %v4092, 0.25
      %v5629 = vmul.f32 %v4093, 0.25
      %v5630 = vmul.f32 %v4094, 0.25
      %v5631 = vmul.f32 %v4095, 0.25
      %v5632 = vmul.f32 %v4096, 0.25
      %v5633 = vmul.f32 %v4097, 0.25
      %v5634 = vmul.f32 %v4098, 0.25
      %v5635 = vmul.f32 %v4099, 0.25
      %v5636 = vmul.f32 %v4100, 0.25
      %v5637 = vmul.f32 %v4101, 0.25
      %v5638 = vmul.f32 %v4102, 0.25
      %v5639 = vmul.f32 %v4103, 0.25
      %v5640 = vmul.f32 %v4104, 0.25
      %v5641 = vmul.f32 %v4105, 0.25
      %v5642 = vmul.f32 %v4106, 0.25
      %v5643 = vmul.f32 %v4107, 0.25
      %v5644 = vmul.f32 %v4108, 0.25
      %v5645 = vmul.f32 %v4109, 0.25
      %v5646 = vmul.f32 %v4110, 0.25
      %v5647 = vmul.f32 %v4111, 0.25
      %v5648 = vmul.f32 %v4112, 0.25
      %v5649 = vmul.f32 %v4113, 0.25
      %v5650 = vmul.f32 %v4114, 0.25
      %v5651 = vmul.f32 %v4115, 0.25
      %v5652 = vmul.f32 %v4116, 0.25
      %v5653 = vmul.f32 %v4117, 0.25
      %v5654 = vmul.f32 %v4118, 0.25
      %v5655 = vmul.f32 %v4119, 0.25
      %v5656 = vmul.f32 %v4120, 0.25
      %v5657 = vmul.f32 %v4121, 0.25
      %v5658 = vmul.f32 %v4122, 0.25
      %v5659 = vmul.f32 %v4123, 0.25
      %v5660 = vmul.f32 %v4124, 0.25
      %v5661 = vmul.f32 %v4125, 0.25
      %v5662 = vmul.f32 %v4126, 0.25
      %v5663 = vmul.f32 %v4127, 0.25
      %v5664 = vmul.f32 %v4128, 0.25
      %v5665 = vmul.f32 %v4129, 0.25
      %v5666 = vmul.f32 %v4130, 0.25
      %v5667 = vmul.f32 %v4131, 0.25
      %v5668 = vmul.f32 %v4132, 0.25
      %v5669 = vmul.f32 %v4133, 0.25
      %v5670 = vmul.f32 %v4134, 0.25
      %v5671 = vmul.f32 %v4135, 0.25
      %v5672 = vmul.f32 %v4136, 0.25
      %v5673 = vmul.f32 %v4137, 0.25
      %v5674 = vmul.f32 %v4138, 0.25
      %v5675 = vmul.f32 %v4139, 0.25
      %v5676 = vmul.f32 %v4140, 0.25
      %v5677 = vmul.f32 %v4141, 0.25
      %v5678 = vmul.f32 %v4142, 0.25
      %v5679 = vfloor.f32 %v5615
      %v5680 = vfloor.f32 %v5616
      %v5681 = vfloor.f32 %v5617
      %v5682 = vfloor.f32 %v5618
      %v5683 = vfloor.f32 %v5619
      %v5684 = vfloor.f32 %v5620
      %v5685 = vfloor.f32 %v5621
      %v5686 = vfloor.f32 %v5622
      %v5687 = vfloor.f32 %v5623
      %v5688 = vfloor.f32 %v5624
      %v5689 = vfloor.f32 %v5625
      %v5690 = vfloor.f32 %v5626
      %v5691 = vfloor.f32 %v5627
      %v5692 = vfloor.f32 %v5628
      %v5693 = vfloor.f32 %v5629
      %v5694 = vfloor.f32 %v5630
      %v5695 = vfloor.f32 %v5631
      %v5696 = vfloor.f32 %v5632
      %v5697 = vfloor.f32 %v5633
      %v5698 = vfloor.f32 %v5634
      %v5699 = vfloor.f32 %v5635
      %v5700 = vfloor.f32 %v5636
      %v5701 = vfloor.f32 %v5637
      %v5702 = vfloor.f32 %v5638
      %v5703 = vfloor.f32 %v5639
      %v5704 = vfloor.f32 %v5640
      %v5705 = vfloor.f32 %v5641
      %v5706 = vfloor.f32 %v5642
      %v5707 = vfloor.f32 %v5643
      %v5708 = vfloor.f32 %v5644
      %v5709 = vfloor.f32 %v5645
      %v5710 = vfloor.f32 %v5646
      %v5711 = vfloor.f32 %v5647
      %v5712 = vfloor.f32 %v5648
      %v5713 = vfloor.f32 %v5649
      %v5714 = vfloor.f32 %v5650
      %v5715 = vfloor.f32 %v5651
      %v5716 = vfloor.f32 %v5652
      %v5717 = vfloor.f32 %v5653
      %v5718 = vfloor.f32 %v5654
      %v5719 = vfloor.f32 %v5655
      %v5720 = vfloor.f32 %v5656
      %v5721 = vfloor.f32 %v5657
      %v5722 = vfloor.f32 %v5658
      %v5723 = vfloor.f32 %v5659
      %v5724 = vfloor.f32 %v5660
      %v5725 = vfloor.f32 %v5661
      %v5726 = vfloor.f32 %v5662
      %v5727 = vfloor.f32 %v5663
      %v5728 = vfloor.f32 %v5664
      %v5729 = vfloor.f32 %v5665
      %v5730 = vfloor.f32 %v5666
      %v5731 = vfloor.f32 %v5667
      %v5732 = vfloor.f32 %v5668
      %v5733 = vfloor.f32 %v5669
      %v5734 = vfloor.f32 %v5670
      %v5735 = vfloor.f32 %v5671
      %v5736 = vfloor.f32 %v5672
      %v5737 = vfloor.f32 %v5673
      %v5738 = vfloor.f32 %v5674
      %v5739 = vfloor.f32 %v5675
      %v5740 = vfloor.f32 %v5676
      %v5741 = vfloor.f32 %v5677
      %v5742 = vfloor.f32 %v5678
      %v5743 = vmul.f32 %v5679, 4.0
      %v5744 = vmul.f32 %v5680, 4.0
      %v5745 = vmul.f32 %v5681, 4.0
      %v5746 = vmul.f32 %v5682, 4.0
      %v5747 = vmul.f32 %v5683, 4.0
      %v5748 = vmul.f32 %v5684, 4.0
      %v5749 = vmul.f32 %v5685, 4.0
      %v5750 = vmul.f32 %v5686, 4.0
      %v5751 = vmul.f32 %v5687, 4.0
      %v5752 = vmul.f32 %v5688, 4.0
      %v5753 = vmul.f32 %v5689, 4.0
      %v5754 = vmul.f32 %v5690, 4.0
      %v5755 = vmul.f32 %v5691, 4.0
      %v5756 = vmul.f32 %v5692, 4.0
      %v5757 = vmul.f32 %v5693, 4.0
      %v5758 = vmul.f32 %v5694, 4.0
      %v5759 = vmul.f32 %v5695, 4.0
      %v5760 = vmul.f32 %v5696, 4.0
      %v5761 = vmul.f32 %v5697, 4.0
      %v5762 = vmul.f32 %v5698, 4.0
      %v5763 = vmul.f32 %v5699, 4.0
      %v5764 = vmul.f32 %v5700, 4.0
      %v5765 = vmul.f32 %v5701, 4.0
      %v5766 = vmul.f32 %v5702, 4.0
      %v5767 = vmul.f32 %v5703, 4.0
      %v5768 = vmul.f32 %v5704, 4.0
      %v5769 = vmul.f32 %v5705, 4.0
      %v5770 = vmul.f32 %v5706, 4.0
      %v5771 = vmul.f32 %v5707, 4.0
      %v5772 = vmul.f32 %v5708, 4.0
      %v5773 = vmul.f32 %v5709, 4.0
      %v5774 = vmul.f32 %v5710, 4.0
      %v5775 = vmul.f32 %v5711, 4.0
      %v5776 = vmul.f32 %v5712, 4.0
      %v5777 = vmul.f32 %v5713, 4.0
      %v5778 = vmul.f32 %v5714, 4.0
      %v5779 = vmul.f32 %v5715, 4.0
      %v5780 = vmul.f32 %v5716, 4.0
      %v5781 = vmul.f32 %v5717, 4.0
      %v5782 = vmul.f32 %v5718, 4.0
      %v5783 = vmul.f32 %v5719, 4.0
      %v5784 = vmul.f32 %v5720, 4.0
      %v5785 = vmul.f32 %v5721, 4.0
      %v5786 = vmul.f32 %v5722, 4.0
      %v5787 = vmul.f32 %v5723, 4.0
      %v5788 = vmul.f32 %v5724, 4.0
      %v5789 = vmul.f32 %v5725, 4.0
      %v5790 = vmul.f32 %v5726, 4.0
      %v5791 = vmul.f32 %v5727, 4.0
      %v5792 = vmul.f32 %v5728, 4.0
      %v5793 = vmul.f32 %v5729, 4.0
      %v5794 = vmul.f32 %v5730, 4.0
      %v5795 = vmul.f32 %v5731, 4.0
      %v5796 = vmul.f32 %v5732, 4.0
      %v5797 = vmul.f32 %v5733, 4.0
      %v5798 = vmul.f32 %v5734, 4.0
      %v5799 = vmul.f32 %v5735, 4.0
      %v5800 = vmul.f32 %v5736, 4.0
      %v5801 = vmul.f32 %v5737, 4.0
      %v5802 = vmul.f32 %v5738, 4.0
      %v5803 = vmul.f32 %v5739, 4.0
      %v5804 = vmul.f32 %v5740, 4.0
      %v5805 = vmul.f32 %v5741, 4.0
      %v5806 = vmul.f32 %v5742, 4.0
      %v5807 = vsub.f32 %v4079, %v5743
      %v5808 = vsub.f32 %v4080, %v5744
      %v5809 = vsub.f32 %v4081, %v5745
      %v5810 = vsub.f32 %v4082, %v5746
      %v5811 = vsub.f32 %v4083, %v5747
      %v5812 = vsub.f32 %v4084, %v5748
      %v5813 = vsub.f32 %v4085, %v5749
      %v5814 = vsub.f32 %v4086, %v5750
      %v5815 = vsub.f32 %v4087, %v5751
      %v5816 = vsub.f32 %v4088, %v5752
      %v5817 = vsub.f32 %v4089, %v5753
      %v5818 = vsub.f32 %v4090, %v5754
      %v5819 = vsub.f32 %v4091, %v5755
      %v5820 = vsub.f32 %v4092, %v5756
      %v5821 = vsub.f32 %v4093, %v5757
      %v5822 = vsub.f32 %v4094, %v5758
      %v5823 = vsub.f32 %v4095, %v5759
      %v5824 = vsub.f32 %v4096, %v5760
      %v5825 = vsub.f32 %v4097, %v5761
      %v5826 = vsub.f32 %v4098, %v5762
      %v5827 = vsub.f32 %v4099, %v5763
      %v5828 = vsub.f32 %v4100, %v5764
      %v5829 = vsub.f32 %v4101, %v5765
      %v5830 = vsub.f32 %v4102, %v5766
      %v5831 = vsub.f32 %v4103, %v5767
      %v5832 = vsub.f32 %v4104, %v5768
      %v5833 = vsub.f32 %v4105, %v5769
      %v5834 = vsub.f32 %v4106, %v5770
      %v5835 = vsub.f32 %v4107, %v5771
      %v5836 = vsub.f32 %v4108, %v5772
      %v5837 = vsub.f32 %v4109, %v5773
      %v5838 = vsub.f32 %v4110, %v5774
      %v5839 = vsub.f32 %v4111, %v5775
      %v5840 = vsub.f32 %v4112, %v5776
      %v5841 = vsub.f32 %v4113, %v5777
      %v5842 = vsub.f32 %v4114, %v5778
      %v5843 = vsub.f32 %v4115, %v5779
      %v5844 = vsub.f32 %v4116, %v5780
      %v5845 = vsub.f32 %v4117, %v5781
      %v5846 = vsub.f32 %v4118, %v5782
      %v5847 = vsub.f32 %v4119, %v5783
      %v5848 = vsub.f32 %v4120, %v5784
      %v5849 = vsub.f32 %v4121, %v5785
      %v5850 = vsub.f32 %v4122, %v5786
      %v5851 = vsub.f32 %v4123, %v5787
      %v5852 = vsub.f32 %v4124, %v5788
      %v5853 = vsub.f32 %v4125, %v5789
      %v5854 = vsub.f32 %v4126, %v5790
      %v5855 = vsub.f32 %v4127, %v5791
      %v5856 = vsub.f32 %v4128, %v5792
      %v5857 = vsub.f32 %v4129, %v5793
      %v5858 = vsub.f32 %v4130, %v5794
      %v5859 = vsub.f32 %v4131, %v5795
      %v5860 = vsub.f32 %v4132, %v5796
      %v5861 = vsub.f32 %v4133, %v5797
      %v5862 = vsub.f32 %v4134, %v5798
      %v5863 = vsub.f32 %v4135, %v5799
      %v5864 = vsub.f32 %v4136, %v5800
      %v5865 = vsub.f32 %v4137, %v5801
      %v5866 = vsub.f32 %v4138, %v5802
      %v5867 = vsub.f32 %v4139, %v5803
      %v5868 = vsub.f32 %v4140, %v5804
      %v5869 = vsub.f32 %v4141, %v5805
      %v5870 = vsub.f32 %v4142, %v5806
      %vm5871 = vcmp.eq.f32.partialorder %v5807, 1.0
      %vm5872 = vcmp.eq.f32.partialorder %v5808, 1.0
      %vm5873 = vcmp.eq.f32.partialorder %v5809, 1.0
      %vm5874 = vcmp.eq.f32.partialorder %v5810, 1.0
      %vm5875 = vcmp.eq.f32.partialorder %v5811, 1.0
      %vm5876 = vcmp.eq.f32.partialorder %v5812, 1.0
      %vm5877 = vcmp.eq.f32.partialorder %v5813, 1.0
      %vm5878 = vcmp.eq.f32.partialorder %v5814, 1.0
      %vm5879 = vcmp.eq.f32.partialorder %v5815, 1.0
      %vm5880 = vcmp.eq.f32.partialorder %v5816, 1.0
      %vm5881 = vcmp.eq.f32.partialorder %v5817, 1.0
      %vm5882 = vcmp.eq.f32.partialorder %v5818, 1.0
      %vm5883 = vcmp.eq.f32.partialorder %v5819, 1.0
      %vm5884 = vcmp.eq.f32.partialorder %v5820, 1.0
      %vm5885 = vcmp.eq.f32.partialorder %v5821, 1.0
      %vm5886 = vcmp.eq.f32.partialorder %v5822, 1.0
      %vm5887 = vcmp.eq.f32.partialorder %v5823, 1.0
      %vm5888 = vcmp.eq.f32.partialorder %v5824, 1.0
      %vm5889 = vcmp.eq.f32.partialorder %v5825, 1.0
      %vm5890 = vcmp.eq.f32.partialorder %v5826, 1.0
      %vm5891 = vcmp.eq.f32.partialorder %v5827, 1.0
      %vm5892 = vcmp.eq.f32.partialorder %v5828, 1.0
      %vm5893 = vcmp.eq.f32.partialorder %v5829, 1.0
      %vm5894 = vcmp.eq.f32.partialorder %v5830, 1.0
      %vm5895 = vcmp.eq.f32.partialorder %v5831, 1.0
      %vm5896 = vcmp.eq.f32.partialorder %v5832, 1.0
      %vm5897 = vcmp.eq.f32.partialorder %v5833, 1.0
      %vm5898 = vcmp.eq.f32.partialorder %v5834, 1.0
      %vm5899 = vcmp.eq.f32.partialorder %v5835, 1.0
      %vm5900 = vcmp.eq.f32.partialorder %v5836, 1.0
      %vm5901 = vcmp.eq.f32.partialorder %v5837, 1.0
      %vm5902 = vcmp.eq.f32.partialorder %v5838, 1.0
      %vm5903 = vcmp.eq.f32.partialorder %v5839, 1.0
      %vm5904 = vcmp.eq.f32.partialorder %v5840, 1.0
      %vm5905 = vcmp.eq.f32.partialorder %v5841, 1.0
      %vm5906 = vcmp.eq.f32.partialorder %v5842, 1.0
      %vm5907 = vcmp.eq.f32.partialorder %v5843, 1.0
      %vm5908 = vcmp.eq.f32.partialorder %v5844, 1.0
      %vm5909 = vcmp.eq.f32.partialorder %v5845, 1.0
      %vm5910 = vcmp.eq.f32.partialorder %v5846, 1.0
      %vm5911 = vcmp.eq.f32.partialorder %v5847, 1.0
      %vm5912 = vcmp.eq.f32.partialorder %v5848, 1.0
      %vm5913 = vcmp.eq.f32.partialorder %v5849, 1.0
      %vm5914 = vcmp.eq.f32.partialorder %v5850, 1.0
      %vm5915 = vcmp.eq.f32.partialorder %v5851, 1.0
      %vm5916 = vcmp.eq.f32.partialorder %v5852, 1.0
      %vm5917 = vcmp.eq.f32.partialorder %v5853, 1.0
      %vm5918 = vcmp.eq.f32.partialorder %v5854, 1.0
      %vm5919 = vcmp.eq.f32.partialorder %v5855, 1.0
      %vm5920 = vcmp.eq.f32.partialorder %v5856, 1.0
      %vm5921 = vcmp.eq.f32.partialorder %v5857, 1.0
      %vm5922 = vcmp.eq.f32.partialorder %v5858, 1.0
      %vm5923 = vcmp.eq.f32.partialorder %v5859, 1.0
      %vm5924 = vcmp.eq.f32.partialorder %v5860, 1.0
      %vm5925 = vcmp.eq.f32.partialorder %v5861, 1.0
      %vm5926 = vcmp.eq.f32.partialorder %v5862, 1.0
      %vm5927 = vcmp.eq.f32.partialorder %v5863, 1.0
      %vm5928 = vcmp.eq.f32.partialorder %v5864, 1.0
      %vm5929 = vcmp.eq.f32.partialorder %v5865, 1.0
      %vm5930 = vcmp.eq.f32.partialorder %v5866, 1.0
      %vm5931 = vcmp.eq.f32.partialorder %v5867, 1.0
      %vm5932 = vcmp.eq.f32.partialorder %v5868, 1.0
      %vm5933 = vcmp.eq.f32.partialorder %v5869, 1.0
      %vm5934 = vcmp.eq.f32.partialorder %v5870, 1.0
      %vm5935 = vcmp.eq.f32.partialorder %v5807, 2.0
      %vm5936 = vcmp.eq.f32.partialorder %v5808, 2.0
      %vm5937 = vcmp.eq.f32.partialorder %v5809, 2.0
      %vm5938 = vcmp.eq.f32.partialorder %v5810, 2.0
      %vm5939 = vcmp.eq.f32.partialorder %v5811, 2.0
      %vm5940 = vcmp.eq.f32.partialorder %v5812, 2.0
      %vm5941 = vcmp.eq.f32.partialorder %v5813, 2.0
      %vm5942 = vcmp.eq.f32.partialorder %v5814, 2.0
      %vm5943 = vcmp.eq.f32.partialorder %v5815, 2.0
      %vm5944 = vcmp.eq.f32.partialorder %v5816, 2.0
      %vm5945 = vcmp.eq.f32.partialorder %v5817, 2.0
      %vm5946 = vcmp.eq.f32.partialorder %v5818, 2.0
      %vm5947 = vcmp.eq.f32.partialorder %v5819, 2.0
      %vm5948 = vcmp.eq.f32.partialorder %v5820, 2.0
      %vm5949 = vcmp.eq.f32.partialorder %v5821, 2.0
      %vm5950 = vcmp.eq.f32.partialorder %v5822, 2.0
      %vm5951 = vcmp.eq.f32.partialorder %v5823, 2.0
      %vm5952 = vcmp.eq.f32.partialorder %v5824, 2.0
      %vm5953 = vcmp.eq.f32.partialorder %v5825, 2.0
      %vm5954 = vcmp.eq.f32.partialorder %v5826, 2.0
      %vm5955 = vcmp.eq.f32.partialorder %v5827, 2.0
      %vm5956 = vcmp.eq.f32.partialorder %v5828, 2.0
      %vm5957 = vcmp.eq.f32.partialorder %v5829, 2.0
      %vm5958 = vcmp.eq.f32.partialorder %v5830, 2.0
      %vm5959 = vcmp.eq.f32.partialorder %v5831, 2.0
      %vm5960 = vcmp.eq.f32.partialorder %v5832, 2.0
      %vm5961 = vcmp.eq.f32.partialorder %v5833, 2.0
      %vm5962 = vcmp.eq.f32.partialorder %v5834, 2.0
      %vm5963 = vcmp.eq.f32.partialorder %v5835, 2.0
      %vm5964 = vcmp.eq.f32.partialorder %v5836, 2.0
      %vm5965 = vcmp.eq.f32.partialorder %v5837, 2.0
      %vm5966 = vcmp.eq.f32.partialorder %v5838, 2.0
      %vm5967 = vcmp.eq.f32.partialorder %v5839, 2.0
      %vm5968 = vcmp.eq.f32.partialorder %v5840, 2.0
      %vm5969 = vcmp.eq.f32.partialorder %v5841, 2.0
      %vm5970 = vcmp.eq.f32.partialorder %v5842, 2.0
      %vm5971 = vcmp.eq.f32.partialorder %v5843, 2.0
      %vm5972 = vcmp.eq.f32.partialorder %v5844, 2.0
      %vm5973 = vcmp.eq.f32.partialorder %v5845, 2.0
      %vm5974 = vcmp.eq.f32.partialorder %v5846, 2.0
      %vm5975 = vcmp.eq.f32.partialorder %v5847, 2.0
      %vm5976 = vcmp.eq.f32.partialorder %v5848, 2.0
      %vm5977 = vcmp.eq.f32.partialorder %v5849, 2.0
      %vm5978 = vcmp.eq.f32.partialorder %v5850, 2.0
      %vm5979 = vcmp.eq.f32.partialorder %v5851, 2.0
      %vm5980 = vcmp.eq.f32.partialorder %v5852, 2.0
      %vm5981 = vcmp.eq.f32.partialorder %v5853, 2.0
      %vm5982 = vcmp.eq.f32.partialorder %v5854, 2.0
      %vm5983 = vcmp.eq.f32.partialorder %v5855, 2.0
      %vm5984 = vcmp.eq.f32.partialorder %v5856, 2.0
      %vm5985 = vcmp.eq.f32.partialorder %v5857, 2.0
      %vm5986 = vcmp.eq.f32.partialorder %v5858, 2.0
      %vm5987 = vcmp.eq.f32.partialorder %v5859, 2.0
      %vm5988 = vcmp.eq.f32.partialorder %v5860, 2.0
      %vm5989 = vcmp.eq.f32.partialorder %v5861, 2.0
      %vm5990 = vcmp.eq.f32.partialorder %v5862, 2.0
      %vm5991 = vcmp.eq.f32.partialorder %v5863, 2.0
      %vm5992 = vcmp.eq.f32.partialorder %v5864, 2.0
      %vm5993 = vcmp.eq.f32.partialorder %v5865, 2.0
      %vm5994 = vcmp.eq.f32.partialorder %v5866, 2.0
      %vm5995 = vcmp.eq.f32.partialorder %v5867, 2.0
      %vm5996 = vcmp.eq.f32.partialorder %v5868, 2.0
      %vm5997 = vcmp.eq.f32.partialorder %v5869, 2.0
      %vm5998 = vcmp.eq.f32.partialorder %v5870, 2.0
      %vm5999 = vcmp.eq.f32.partialorder %v5807, 3.0
      %vm6000 = vcmp.eq.f32.partialorder %v5808, 3.0
      %vm6001 = vcmp.eq.f32.partialorder %v5809, 3.0
      %vm6002 = vcmp.eq.f32.partialorder %v5810, 3.0
      %vm6003 = vcmp.eq.f32.partialorder %v5811, 3.0
      %vm6004 = vcmp.eq.f32.partialorder %v5812, 3.0
      %vm6005 = vcmp.eq.f32.partialorder %v5813, 3.0
      %vm6006 = vcmp.eq.f32.partialorder %v5814, 3.0
      %vm6007 = vcmp.eq.f32.partialorder %v5815, 3.0
      %vm6008 = vcmp.eq.f32.partialorder %v5816, 3.0
      %vm6009 = vcmp.eq.f32.partialorder %v5817, 3.0
      %vm6010 = vcmp.eq.f32.partialorder %v5818, 3.0
      %vm6011 = vcmp.eq.f32.partialorder %v5819, 3.0
      %vm6012 = vcmp.eq.f32.partialorder %v5820, 3.0
      %vm6013 = vcmp.eq.f32.partialorder %v5821, 3.0
      %vm6014 = vcmp.eq.f32.partialorder %v5822, 3.0
      %vm6015 = vcmp.eq.f32.partialorder %v5823, 3.0
      %vm6016 = vcmp.eq.f32.partialorder %v5824, 3.0
      %vm6017 = vcmp.eq.f32.partialorder %v5825, 3.0
      %vm6018 = vcmp.eq.f32.partialorder %v5826, 3.0
      %vm6019 = vcmp.eq.f32.partialorder %v5827, 3.0
      %vm6020 = vcmp.eq.f32.partialorder %v5828, 3.0
      %vm6021 = vcmp.eq.f32.partialorder %v5829, 3.0
      %vm6022 = vcmp.eq.f32.partialorder %v5830, 3.0
      %vm6023 = vcmp.eq.f32.partialorder %v5831, 3.0
      %vm6024 = vcmp.eq.f32.partialorder %v5832, 3.0
      %vm6025 = vcmp.eq.f32.partialorder %v5833, 3.0
      %vm6026 = vcmp.eq.f32.partialorder %v5834, 3.0
      %vm6027 = vcmp.eq.f32.partialorder %v5835, 3.0
      %vm6028 = vcmp.eq.f32.partialorder %v5836, 3.0
      %vm6029 = vcmp.eq.f32.partialorder %v5837, 3.0
      %vm6030 = vcmp.eq.f32.partialorder %v5838, 3.0
      %vm6031 = vcmp.eq.f32.partialorder %v5839, 3.0
      %vm6032 = vcmp.eq.f32.partialorder %v5840, 3.0
      %vm6033 = vcmp.eq.f32.partialorder %v5841, 3.0
      %vm6034 = vcmp.eq.f32.partialorder %v5842, 3.0
      %vm6035 = vcmp.eq.f32.partialorder %v5843, 3.0
      %vm6036 = vcmp.eq.f32.partialorder %v5844, 3.0
      %vm6037 = vcmp.eq.f32.partialorder %v5845, 3.0
      %vm6038 = vcmp.eq.f32.partialorder %v5846, 3.0
      %vm6039 = vcmp.eq.f32.partialorder %v5847, 3.0
      %vm6040 = vcmp.eq.f32.partialorder %v5848, 3.0
      %vm6041 = vcmp.eq.f32.partialorder %v5849, 3.0
      %vm6042 = vcmp.eq.f32.partialorder %v5850, 3.0
      %vm6043 = vcmp.eq.f32.partialorder %v5851, 3.0
      %vm6044 = vcmp.eq.f32.partialorder %v5852, 3.0
      %vm6045 = vcmp.eq.f32.partialorder %v5853, 3.0
      %vm6046 = vcmp.eq.f32.partialorder %v5854, 3.0
      %vm6047 = vcmp.eq.f32.partialorder %v5855, 3.0
      %vm6048 = vcmp.eq.f32.partialorder %v5856, 3.0
      %vm6049 = vcmp.eq.f32.partialorder %v5857, 3.0
      %vm6050 = vcmp.eq.f32.partialorder %v5858, 3.0
      %vm6051 = vcmp.eq.f32.partialorder %v5859, 3.0
      %vm6052 = vcmp.eq.f32.partialorder %v5860, 3.0
      %vm6053 = vcmp.eq.f32.partialorder %v5861, 3.0
      %vm6054 = vcmp.eq.f32.partialorder %v5862, 3.0
      %vm6055 = vcmp.eq.f32.partialorder %v5863, 3.0
      %vm6056 = vcmp.eq.f32.partialorder %v5864, 3.0
      %vm6057 = vcmp.eq.f32.partialorder %v5865, 3.0
      %vm6058 = vcmp.eq.f32.partialorder %v5866, 3.0
      %vm6059 = vcmp.eq.f32.partialorder %v5867, 3.0
      %vm6060 = vcmp.eq.f32.partialorder %v5868, 3.0
      %vm6061 = vcmp.eq.f32.partialorder %v5869, 3.0
      %vm6062 = vcmp.eq.f32.partialorder %v5870, 3.0
      %v6063 = vsub.f32 0.0, %v4975
      %v6064 = vsub.f32 0.0, %v4976
      %v6065 = vsub.f32 0.0, %v4977
      %v6066 = vsub.f32 0.0, %v4978
      %v6067 = vsub.f32 0.0, %v4979
      %v6068 = vsub.f32 0.0, %v4980
      %v6069 = vsub.f32 0.0, %v4981
      %v6070 = vsub.f32 0.0, %v4982
      %v6071 = vsub.f32 0.0, %v4983
      %v6072 = vsub.f32 0.0, %v4984
      %v6073 = vsub.f32 0.0, %v4985
      %v6074 = vsub.f32 0.0, %v4986
      %v6075 = vsub.f32 0.0, %v4987
      %v6076 = vsub.f32 0.0, %v4988
      %v6077 = vsub.f32 0.0, %v4989
      %v6078 = vsub.f32 0.0, %v4990
      %v6079 = vsub.f32 0.0, %v4991
      %v6080 = vsub.f32 0.0, %v4992
      %v6081 = vsub.f32 0.0, %v4993
      %v6082 = vsub.f32 0.0, %v4994
      %v6083 = vsub.f32 0.0, %v4995
      %v6084 = vsub.f32 0.0, %v4996
      %v6085 = vsub.f32 0.0, %v4997
      %v6086 = vsub.f32 0.0, %v4998
      %v6087 = vsub.f32 0.0, %v4999
      %v6088 = vsub.f32 0.0, %v5000
      %v6089 = vsub.f32 0.0, %v5001
      %v6090 = vsub.f32 0.0, %v5002
      %v6091 = vsub.f32 0.0, %v5003
      %v6092 = vsub.f32 0.0, %v5004
      %v6093 = vsub.f32 0.0, %v5005
      %v6094 = vsub.f32 0.0, %v5006
      %v6095 = vsub.f32 0.0, %v5007
      %v6096 = vsub.f32 0.0, %v5008
      %v6097 = vsub.f32 0.0, %v5009
      %v6098 = vsub.f32 0.0, %v5010
      %v6099 = vsub.f32 0.0, %v5011
      %v6100 = vsub.f32 0.0, %v5012
      %v6101 = vsub.f32 0.0, %v5013
      %v6102 = vsub.f32 0.0, %v5014
      %v6103 = vsub.f32 0.0, %v5015
      %v6104 = vsub.f32 0.0, %v5016
      %v6105 = vsub.f32 0.0, %v5017
      %v6106 = vsub.f32 0.0, %v5018
      %v6107 = vsub.f32 0.0, %v5019
      %v6108 = vsub.f32 0.0, %v5020
      %v6109 = vsub.f32 0.0, %v5021
      %v6110 = vsub.f32 0.0, %v5022
      %v6111 = vsub.f32 0.0, %v5023
      %v6112 = vsub.f32 0.0, %v5024
      %v6113 = vsub.f32 0.0, %v5025
      %v6114 = vsub.f32 0.0, %v5026
      %v6115 = vsub.f32 0.0, %v5027
      %v6116 = vsub.f32 0.0, %v5028
      %v6117 = vsub.f32 0.0, %v5029
      %v6118 = vsub.f32 0.0, %v5030
      %v6119 = vsub.f32 0.0, %v5031
      %v6120 = vsub.f32 0.0, %v5032
      %v6121 = vsub.f32 0.0, %v5033
      %v6122 = vsub.f32 0.0, %v5034
      %v6123 = vsub.f32 0.0, %v5035
      %v6124 = vsub.f32 0.0, %v5036
      %v6125 = vsub.f32 0.0, %v5037
      %v6126 = vsub.f32 0.0, %v5038
      %v6127 = vsub.f32 0.0, %v5551
      %v6128 = vsub.f32 0.0, %v5552
      %v6129 = vsub.f32 0.0, %v5553
      %v6130 = vsub.f32 0.0, %v5554
      %v6131 = vsub.f32 0.0, %v5555
      %v6132 = vsub.f32 0.0, %v5556
      %v6133 = vsub.f32 0.0, %v5557
      %v6134 = vsub.f32 0.0, %v5558
      %v6135 = vsub.f32 0.0, %v5559
      %v6136 = vsub.f32 0.0, %v5560
      %v6137 = vsub.f32 0.0, %v5561
      %v6138 = vsub.f32 0.0, %v5562
      %v6139 = vsub.f32 0.0, %v5563
      %v6140 = vsub.f32 0.0, %v5564
      %v6141 = vsub.f32 0.0, %v5565
      %v6142 = vsub.f32 0.0, %v5566
      %v6143 = vsub.f32 0.0, %v5567
      %v6144 = vsub.f32 0.0, %v5568
      %v6145 = vsub.f32 0.0, %v5569
      %v6146 = vsub.f32 0.0, %v5570
      %v6147 = vsub.f32 0.0, %v5571
      %v6148 = vsub.f32 0.0, %v5572
      %v6149 = vsub.f32 0.0, %v5573
      %v6150 = vsub.f32 0.0, %v5574
      %v6151 = vsub.f32 0.0, %v5575
      %v6152 = vsub.f32 0.0, %v5576
      %v6153 = vsub.f32 0.0, %v5577
      %v6154 = vsub.f32 0.0, %v5578
      %v6155 = vsub.f32 0.0, %v5579
      %v6156 = vsub.f32 0.0, %v5580
      %v6157 = vsub.f32 0.0, %v5581
      %v6158 = vsub.f32 0.0, %v5582
      %v6159 = vsub.f32 0.0, %v5583
      %v6160 = vsub.f32 0.0, %v5584
      %v6161 = vsub.f32 0.0, %v5585
      %v6162 = vsub.f32 0.0, %v5586
      %v6163 = vsub.f32 0.0, %v5587
      %v6164 = vsub.f32 0.0, %v5588
      %v6165 = vsub.f32 0.0, %v5589
      %v6166 = vsub.f32 0.0, %v5590
      %v6167 = vsub.f32 0.0, %v5591
      %v6168 = vsub.f32 0.0, %v5592
      %v6169 = vsub.f32 0.0, %v5593
      %v6170 = vsub.f32 0.0, %v5594
      %v6171 = vsub.f32 0.0, %v5595
      %v6172 = vsub.f32 0.0, %v5596
      %v6173 = vsub.f32 0.0, %v5597
      %v6174 = vsub.f32 0.0, %v5598
      %v6175 = vsub.f32 0.0, %v5599
      %v6176 = vsub.f32 0.0, %v5600
      %v6177 = vsub.f32 0.0, %v5601
      %v6178 = vsub.f32 0.0, %v5602
      %v6179 = vsub.f32 0.0, %v5603
      %v6180 = vsub.f32 0.0, %v5604
      %v6181 = vsub.f32 0.0, %v5605
      %v6182 = vsub.f32 0.0, %v5606
      %v6183 = vsub.f32 0.0, %v5607
      %v6184 = vsub.f32 0.0, %v5608
      %v6185 = vsub.f32 0.0, %v5609
      %v6186 = vsub.f32 0.0, %v5610
      %v6187 = vsub.f32 0.0, %v5611
      %v6188 = vsub.f32 0.0, %v5612
      %v6189 = vsub.f32 0.0, %v5613
      %v6190 = vsub.f32 0.0, %v5614
      %v6191 = vsel %vm5999, %v4975, %v5551
      %v6192 = vsel %vm6000, %v4976, %v5552
      %v6193 = vsel %vm6001, %v4977, %v5553
      %v6194 = vsel %vm6002, %v4978, %v5554
      %v6195 = vsel %vm6003, %v4979, %v5555
      %v6196 = vsel %vm6004, %v4980, %v5556
      %v6197 = vsel %vm6005, %v4981, %v5557
      %v6198 = vsel %vm6006, %v4982, %v5558
      %v6199 = vsel %vm6007, %v4983, %v5559
      %v6200 = vsel %vm6008, %v4984, %v5560
      %v6201 = vsel %vm6009, %v4985, %v5561
      %v6202 = vsel %vm6010, %v4986, %v5562
      %v6203 = vsel %vm6011, %v4987, %v5563
      %v6204 = vsel %vm6012, %v4988, %v5564
      %v6205 = vsel %vm6013, %v4989, %v5565
      %v6206 = vsel %vm6014, %v4990, %v5566
      %v6207 = vsel %vm6015, %v4991, %v5567
      %v6208 = vsel %vm6016, %v4992, %v5568
      %v6209 = vsel %vm6017, %v4993, %v5569
      %v6210 = vsel %vm6018, %v4994, %v5570
      %v6211 = vsel %vm6019, %v4995, %v5571
      %v6212 = vsel %vm6020, %v4996, %v5572
      %v6213 = vsel %vm6021, %v4997, %v5573
      %v6214 = vsel %vm6022, %v4998, %v5574
      %v6215 = vsel %vm6023, %v4999, %v5575
      %v6216 = vsel %vm6024, %v5000, %v5576
      %v6217 = vsel %vm6025, %v5001, %v5577
      %v6218 = vsel %vm6026, %v5002, %v5578
      %v6219 = vsel %vm6027, %v5003, %v5579
      %v6220 = vsel %vm6028, %v5004, %v5580
      %v6221 = vsel %vm6029, %v5005, %v5581
      %v6222 = vsel %vm6030, %v5006, %v5582
      %v6223 = vsel %vm6031, %v5007, %v5583
      %v6224 = vsel %vm6032, %v5008, %v5584
      %v6225 = vsel %vm6033, %v5009, %v5585
      %v6226 = vsel %vm6034, %v5010, %v5586
      %v6227 = vsel %vm6035, %v5011, %v5587
      %v6228 = vsel %vm6036, %v5012, %v5588
      %v6229 = vsel %vm6037, %v5013, %v5589
      %v6230 = vsel %vm6038, %v5014, %v5590
      %v6231 = vsel %vm6039, %v5015, %v5591
      %v6232 = vsel %vm6040, %v5016, %v5592
      %v6233 = vsel %vm6041, %v5017, %v5593
      %v6234 = vsel %vm6042, %v5018, %v5594
      %v6235 = vsel %vm6043, %v5019, %v5595
      %v6236 = vsel %vm6044, %v5020, %v5596
      %v6237 = vsel %vm6045, %v5021, %v5597
      %v6238 = vsel %vm6046, %v5022, %v5598
      %v6239 = vsel %vm6047, %v5023, %v5599
      %v6240 = vsel %vm6048, %v5024, %v5600
      %v6241 = vsel %vm6049, %v5025, %v5601
      %v6242 = vsel %vm6050, %v5026, %v5602
      %v6243 = vsel %vm6051, %v5027, %v5603
      %v6244 = vsel %vm6052, %v5028, %v5604
      %v6245 = vsel %vm6053, %v5029, %v5605
      %v6246 = vsel %vm6054, %v5030, %v5606
      %v6247 = vsel %vm6055, %v5031, %v5607
      %v6248 = vsel %vm6056, %v5032, %v5608
      %v6249 = vsel %vm6057, %v5033, %v5609
      %v6250 = vsel %vm6058, %v5034, %v5610
      %v6251 = vsel %vm6059, %v5035, %v5611
      %v6252 = vsel %vm6060, %v5036, %v5612
      %v6253 = vsel %vm6061, %v5037, %v5613
      %v6254 = vsel %vm6062, %v5038, %v5614
      %v6255 = vsel %vm5935, %v6127, %v6191
      %v6256 = vsel %vm5936, %v6128, %v6192
      %v6257 = vsel %vm5937, %v6129, %v6193
      %v6258 = vsel %vm5938, %v6130, %v6194
      %v6259 = vsel %vm5939, %v6131, %v6195
      %v6260 = vsel %vm5940, %v6132, %v6196
      %v6261 = vsel %vm5941, %v6133, %v6197
      %v6262 = vsel %vm5942, %v6134, %v6198
      %v6263 = vsel %vm5943, %v6135, %v6199
      %v6264 = vsel %vm5944, %v6136, %v6200
      %v6265 = vsel %vm5945, %v6137, %v6201
      %v6266 = vsel %vm5946, %v6138, %v6202
      %v6267 = vsel %vm5947, %v6139, %v6203
      %v6268 = vsel %vm5948, %v6140, %v6204
      %v6269 = vsel %vm5949, %v6141, %v6205
      %v6270 = vsel %vm5950, %v6142, %v6206
      %v6271 = vsel %vm5951, %v6143, %v6207
      %v6272 = vsel %vm5952, %v6144, %v6208
      %v6273 = vsel %vm5953, %v6145, %v6209
      %v6274 = vsel %vm5954, %v6146, %v6210
      %v6275 = vsel %vm5955, %v6147, %v6211
      %v6276 = vsel %vm5956, %v6148, %v6212
      %v6277 = vsel %vm5957, %v6149, %v6213
      %v6278 = vsel %vm5958, %v6150, %v6214
      %v6279 = vsel %vm5959, %v6151, %v6215
      %v6280 = vsel %vm5960, %v6152, %v6216
      %v6281 = vsel %vm5961, %v6153, %v6217
      %v6282 = vsel %vm5962, %v6154, %v6218
      %v6283 = vsel %vm5963, %v6155, %v6219
      %v6284 = vsel %vm5964, %v6156, %v6220
      %v6285 = vsel %vm5965, %v6157, %v6221
      %v6286 = vsel %vm5966, %v6158, %v6222
      %v6287 = vsel %vm5967, %v6159, %v6223
      %v6288 = vsel %vm5968, %v6160, %v6224
      %v6289 = vsel %vm5969, %v6161, %v6225
      %v6290 = vsel %vm5970, %v6162, %v6226
      %v6291 = vsel %vm5971, %v6163, %v6227
      %v6292 = vsel %vm5972, %v6164, %v6228
      %v6293 = vsel %vm5973, %v6165, %v6229
      %v6294 = vsel %vm5974, %v6166, %v6230
      %v6295 = vsel %vm5975, %v6167, %v6231
      %v6296 = vsel %vm5976, %v6168, %v6232
      %v6297 = vsel %vm5977, %v6169, %v6233
      %v6298 = vsel %vm5978, %v6170, %v6234
      %v6299 = vsel %vm5979, %v6171, %v6235
      %v6300 = vsel %vm5980, %v6172, %v6236
      %v6301 = vsel %vm5981, %v6173, %v6237
      %v6302 = vsel %vm5982, %v6174, %v6238
      %v6303 = vsel %vm5983, %v6175, %v6239
      %v6304 = vsel %vm5984, %v6176, %v6240
      %v6305 = vsel %vm5985, %v6177, %v6241
      %v6306 = vsel %vm5986, %v6178, %v6242
      %v6307 = vsel %vm5987, %v6179, %v6243
      %v6308 = vsel %vm5988, %v6180, %v6244
      %v6309 = vsel %vm5989, %v6181, %v6245
      %v6310 = vsel %vm5990, %v6182, %v6246
      %v6311 = vsel %vm5991, %v6183, %v6247
      %v6312 = vsel %vm5992, %v6184, %v6248
      %v6313 = vsel %vm5993, %v6185, %v6249
      %v6314 = vsel %vm5994, %v6186, %v6250
      %v6315 = vsel %vm5995, %v6187, %v6251
      %v6316 = vsel %vm5996, %v6188, %v6252
      %v6317 = vsel %vm5997, %v6189, %v6253
      %v6318 = vsel %vm5998, %v6190, %v6254
      %v6319 = vsel %vm5871, %v6063, %v6255
      %v6320 = vsel %vm5872, %v6064, %v6256
      %v6321 = vsel %vm5873, %v6065, %v6257
      %v6322 = vsel %vm5874, %v6066, %v6258
      %v6323 = vsel %vm5875, %v6067, %v6259
      %v6324 = vsel %vm5876, %v6068, %v6260
      %v6325 = vsel %vm5877, %v6069, %v6261
      %v6326 = vsel %vm5878, %v6070, %v6262
      %v6327 = vsel %vm5879, %v6071, %v6263
      %v6328 = vsel %vm5880, %v6072, %v6264
      %v6329 = vsel %vm5881, %v6073, %v6265
      %v6330 = vsel %vm5882, %v6074, %v6266
      %v6331 = vsel %vm5883, %v6075, %v6267
      %v6332 = vsel %vm5884, %v6076, %v6268
      %v6333 = vsel %vm5885, %v6077, %v6269
      %v6334 = vsel %vm5886, %v6078, %v6270
      %v6335 = vsel %vm5887, %v6079, %v6271
      %v6336 = vsel %vm5888, %v6080, %v6272
      %v6337 = vsel %vm5889, %v6081, %v6273
      %v6338 = vsel %vm5890, %v6082, %v6274
      %v6339 = vsel %vm5891, %v6083, %v6275
      %v6340 = vsel %vm5892, %v6084, %v6276
      %v6341 = vsel %vm5893, %v6085, %v6277
      %v6342 = vsel %vm5894, %v6086, %v6278
      %v6343 = vsel %vm5895, %v6087, %v6279
      %v6344 = vsel %vm5896, %v6088, %v6280
      %v6345 = vsel %vm5897, %v6089, %v6281
      %v6346 = vsel %vm5898, %v6090, %v6282
      %v6347 = vsel %vm5899, %v6091, %v6283
      %v6348 = vsel %vm5900, %v6092, %v6284
      %v6349 = vsel %vm5901, %v6093, %v6285
      %v6350 = vsel %vm5902, %v6094, %v6286
      %v6351 = vsel %vm5903, %v6095, %v6287
      %v6352 = vsel %vm5904, %v6096, %v6288
      %v6353 = vsel %vm5905, %v6097, %v6289
      %v6354 = vsel %vm5906, %v6098, %v6290
      %v6355 = vsel %vm5907, %v6099, %v6291
      %v6356 = vsel %vm5908, %v6100, %v6292
      %v6357 = vsel %vm5909, %v6101, %v6293
      %v6358 = vsel %vm5910, %v6102, %v6294
      %v6359 = vsel %vm5911, %v6103, %v6295
      %v6360 = vsel %vm5912, %v6104, %v6296
      %v6361 = vsel %vm5913, %v6105, %v6297
      %v6362 = vsel %vm5914, %v6106, %v6298
      %v6363 = vsel %vm5915, %v6107, %v6299
      %v6364 = vsel %vm5916, %v6108, %v6300
      %v6365 = vsel %vm5917, %v6109, %v6301
      %v6366 = vsel %vm5918, %v6110, %v6302
      %v6367 = vsel %vm5919, %v6111, %v6303
      %v6368 = vsel %vm5920, %v6112, %v6304
      %v6369 = vsel %vm5921, %v6113, %v6305
      %v6370 = vsel %vm5922, %v6114, %v6306
      %v6371 = vsel %vm5923, %v6115, %v6307
      %v6372 = vsel %vm5924, %v6116, %v6308
      %v6373 = vsel %vm5925, %v6117, %v6309
      %v6374 = vsel %vm5926, %v6118, %v6310
      %v6375 = vsel %vm5927, %v6119, %v6311
      %v6376 = vsel %vm5928, %v6120, %v6312
      %v6377 = vsel %vm5929, %v6121, %v6313
      %v6378 = vsel %vm5930, %v6122, %v6314
      %v6379 = vsel %vm5931, %v6123, %v6315
      %v6380 = vsel %vm5932, %v6124, %v6316
      %v6381 = vsel %vm5933, %v6125, %v6317
      %v6382 = vsel %vm5934, %v6126, %v6318
      %v6384 = vsel %vm3474, %v217, 0
      %v6387 = vsel %vm3474, %v218, 0
      %v6390 = vsel %vm3474, %v219, 0
      %v6393 = vsel %vm3474, %v220, 0
      %v6396 = vsel %vm3474, %v221, 0
      %v6399 = vsel %vm3474, %v222, 0
      %v6402 = vsel %vm3474, %v223, 0
      %v6405 = vsel %vm3474, %v224, 0
      %v6408 = vsel %vm3474, %v225, 0
      %v6411 = vsel %vm3474, %v226, 0
      %v6414 = vsel %vm3474, %v227, 0
      %v6417 = vsel %vm3474, %v228, 0
      %6419 = vmatpush.msra.mxu0 0.0
      %6420 = vmatpush.msra.mxu0 0.0
      %6421 = vmatpush.msra.mxu0 0.0
      %6422 = vmatpush.msra.mxu0 0.0
      %6423 = vmatpush.msra.mxu0 0.0
      %6424 = vmatpush.msra.mxu0 0.0
      %6425 = vmatpush.msra.mxu0 0.0
      %6426 = vmatpush.msra.mxu0 0.0
      %6427 = vmatpush.msra.mxu0 0.0
      %6428 = vmatpush.msra.mxu0 0.0
      %6429 = vmatpush.msra.mxu0 0.0
      %6430 = vmatpush.msra.mxu0 0.0
      %6431 = vmatpush.msra.mxu0 %v3442
      %6432 = vmatpush.msra.mxu0 %v3426
      %6433 = vmatpush.msra.mxu0 %v3410
      %6434 = vmatpush.msra.mxu0 %v3394
      %6435 = vmatmul.f32.gmra.mxu0 %v6384
      %v6436 = vpop.f32.mrf.mxu0
      %v6437 = vadd.f32 0.0, %v6436
      %6438 = vmatmul.f32.gmra.mxu0 %v6387
      %v6439 = vpop.f32.mrf.mxu0
      %v6440 = vadd.f32 0.0, %v6439
      %6441 = vmatmul.f32.gmra.mxu0 %v6390
      %v6442 = vpop.f32.mrf.mxu0
      %v6443 = vadd.f32 0.0, %v6442
      %6444 = vmatmul.f32.gmra.mxu0 %v6393
      %v6445 = vpop.f32.mrf.mxu0
      %v6446 = vadd.f32 0.0, %v6445
      %6447 = vmatmul.f32.gmra.mxu0 %v6396
      %v6448 = vpop.f32.mrf.mxu0
      %v6449 = vadd.f32 0.0, %v6448
      %6450 = vmatmul.f32.gmra.mxu0 %v6399
      %v6451 = vpop.f32.mrf.mxu0
      %v6452 = vadd.f32 0.0, %v6451
      %6453 = vmatmul.f32.gmra.mxu0 %v6402
      %v6454 = vpop.f32.mrf.mxu0
      %v6455 = vadd.f32 0.0, %v6454
      %6456 = vmatmul.f32.gmra.mxu0 %v6405
      %v6457 = vpop.f32.mrf.mxu0
      %v6458 = vadd.f32 0.0, %v6457
      %6459 = vmatmul.f32.gmra.mxu0 %v6408
      %v6460 = vpop.f32.mrf.mxu0
      %v6461 = vadd.f32 0.0, %v6460
      %6462 = vmatmul.f32.gmra.mxu0 %v6411
      %v6463 = vpop.f32.mrf.mxu0
      %v6464 = vadd.f32 0.0, %v6463
      %6465 = vmatmul.f32.gmra.mxu0 %v6414
      %v6466 = vpop.f32.mrf.mxu0
      %v6467 = vadd.f32 0.0, %v6466
      %6468 = vmatmul.f32.gmra.mxu0 %v6417
      %v6469 = vpop.f32.mrf.mxu0
      %v6470 = vadd.f32 0.0, %v6469
      %6471 = vdwg.mxu0
      %6472 = vmatpush.msra.mxu0 0.0
      %6473 = vmatpush.msra.mxu0 0.0
      %6474 = vmatpush.msra.mxu0 0.0
      %6475 = vmatpush.msra.mxu0 0.0
      %6476 = vmatpush.msra.mxu0 0.0
      %6477 = vmatpush.msra.mxu0 0.0
      %6478 = vmatpush.msra.mxu0 0.0
      %6479 = vmatpush.msra.mxu0 0.0
      %6480 = vmatpush.msra.mxu0 0.0
      %6481 = vmatpush.msra.mxu0 0.0
      %6482 = vmatpush.msra.mxu0 0.0
      %6483 = vmatpush.msra.mxu0 0.0
      %6484 = vmatpush.msra.mxu0 %v3443
      %6485 = vmatpush.msra.mxu0 %v3427
      %6486 = vmatpush.msra.mxu0 %v3411
      %6487 = vmatpush.msra.mxu0 %v3395
      %6488 = vmatmul.f32.gmra.mxu0 %v6384
      %v6489 = vpop.f32.mrf.mxu0
      %v6490 = vadd.f32 0.0, %v6489
      %6491 = vmatmul.f32.gmra.mxu0 %v6387
      %v6492 = vpop.f32.mrf.mxu0
      %v6493 = vadd.f32 0.0, %v6492
      %6494 = vmatmul.f32.gmra.mxu0 %v6390
      %v6495 = vpop.f32.mrf.mxu0
      %v6496 = vadd.f32 0.0, %v6495
      %6497 = vmatmul.f32.gmra.mxu0 %v6393
      %v6498 = vpop.f32.mrf.mxu0
      %v6499 = vadd.f32 0.0, %v6498
      %6500 = vmatmul.f32.gmra.mxu0 %v6396
      %v6501 = vpop.f32.mrf.mxu0
      %v6502 = vadd.f32 0.0, %v6501
      %6503 = vmatmul.f32.gmra.mxu0 %v6399
      %v6504 = vpop.f32.mrf.mxu0
      %v6505 = vadd.f32 0.0, %v6504
      %6506 = vmatmul.f32.gmra.mxu0 %v6402
      %v6507 = vpop.f32.mrf.mxu0
      %v6508 = vadd.f32 0.0, %v6507
      %6509 = vmatmul.f32.gmra.mxu0 %v6405
      %v6510 = vpop.f32.mrf.mxu0
      %v6511 = vadd.f32 0.0, %v6510
      %6512 = vmatmul.f32.gmra.mxu0 %v6408
      %v6513 = vpop.f32.mrf.mxu0
      %v6514 = vadd.f32 0.0, %v6513
      %6515 = vmatmul.f32.gmra.mxu0 %v6411
      %v6516 = vpop.f32.mrf.mxu0
      %v6517 = vadd.f32 0.0, %v6516
      %6518 = vmatmul.f32.gmra.mxu0 %v6414
      %v6519 = vpop.f32.mrf.mxu0
      %v6520 = vadd.f32 0.0, %v6519
      %6521 = vmatmul.f32.gmra.mxu0 %v6417
      %v6522 = vpop.f32.mrf.mxu0
      %v6523 = vadd.f32 0.0, %v6522
      %6524 = vdwg.mxu0
      %6525 = vmatpush.msra.mxu0 0.0
      %6526 = vmatpush.msra.mxu0 0.0
      %6527 = vmatpush.msra.mxu0 0.0
      %6528 = vmatpush.msra.mxu0 0.0
      %6529 = vmatpush.msra.mxu0 0.0
      %6530 = vmatpush.msra.mxu0 0.0
      %6531 = vmatpush.msra.mxu0 0.0
      %6532 = vmatpush.msra.mxu0 0.0
      %6533 = vmatpush.msra.mxu0 0.0
      %6534 = vmatpush.msra.mxu0 0.0
      %6535 = vmatpush.msra.mxu0 0.0
      %6536 = vmatpush.msra.mxu0 0.0
      %6537 = vmatpush.msra.mxu0 %v3444
      %6538 = vmatpush.msra.mxu0 %v3428
      %6539 = vmatpush.msra.mxu0 %v3412
      %6540 = vmatpush.msra.mxu0 %v3396
      %6541 = vmatmul.f32.gmra.mxu0 %v6384
      %v6542 = vpop.f32.mrf.mxu0
      %v6543 = vadd.f32 0.0, %v6542
      %6544 = vmatmul.f32.gmra.mxu0 %v6387
      %v6545 = vpop.f32.mrf.mxu0
      %v6546 = vadd.f32 0.0, %v6545
      %6547 = vmatmul.f32.gmra.mxu0 %v6390
      %v6548 = vpop.f32.mrf.mxu0
      %v6549 = vadd.f32 0.0, %v6548
      %6550 = vmatmul.f32.gmra.mxu0 %v6393
      %v6551 = vpop.f32.mrf.mxu0
      %v6552 = vadd.f32 0.0, %v6551
      %6553 = vmatmul.f32.gmra.mxu0 %v6396
      %v6554 = vpop.f32.mrf.mxu0
      %v6555 = vadd.f32 0.0, %v6554
      %6556 = vmatmul.f32.gmra.mxu0 %v6399
      %v6557 = vpop.f32.mrf.mxu0
      %v6558 = vadd.f32 0.0, %v6557
      %6559 = vmatmul.f32.gmra.mxu0 %v6402
      %v6560 = vpop.f32.mrf.mxu0
      %v6561 = vadd.f32 0.0, %v6560
      %6562 = vmatmul.f32.gmra.mxu0 %v6405
      %v6563 = vpop.f32.mrf.mxu0
      %v6564 = vadd.f32 0.0, %v6563
      %6565 = vmatmul.f32.gmra.mxu0 %v6408
      %v6566 = vpop.f32.mrf.mxu0
      %v6567 = vadd.f32 0.0, %v6566
      %6568 = vmatmul.f32.gmra.mxu0 %v6411
      %v6569 = vpop.f32.mrf.mxu0
      %v6570 = vadd.f32 0.0, %v6569
      %6571 = vmatmul.f32.gmra.mxu0 %v6414
      %v6572 = vpop.f32.mrf.mxu0
      %v6573 = vadd.f32 0.0, %v6572
      %6574 = vmatmul.f32.gmra.mxu0 %v6417
      %v6575 = vpop.f32.mrf.mxu0
      %v6576 = vadd.f32 0.0, %v6575
      %6577 = vdwg.mxu0
      %6578 = vmatpush.msra.mxu0 0.0
      %6579 = vmatpush.msra.mxu0 0.0
      %6580 = vmatpush.msra.mxu0 0.0
      %6581 = vmatpush.msra.mxu0 0.0
      %6582 = vmatpush.msra.mxu0 0.0
      %6583 = vmatpush.msra.mxu0 0.0
      %6584 = vmatpush.msra.mxu0 0.0
      %6585 = vmatpush.msra.mxu0 0.0
      %6586 = vmatpush.msra.mxu0 0.0
      %6587 = vmatpush.msra.mxu0 0.0
      %6588 = vmatpush.msra.mxu0 0.0
      %6589 = vmatpush.msra.mxu0 0.0
      %6590 = vmatpush.msra.mxu0 %v3445
      %6591 = vmatpush.msra.mxu0 %v3429
      %6592 = vmatpush.msra.mxu0 %v3413
      %6593 = vmatpush.msra.mxu0 %v3397
      %6594 = vmatmul.f32.gmra.mxu0 %v6384
      %v6595 = vpop.f32.mrf.mxu0
      %v6596 = vadd.f32 0.0, %v6595
      %6597 = vmatmul.f32.gmra.mxu0 %v6387
      %v6598 = vpop.f32.mrf.mxu0
      %v6599 = vadd.f32 0.0, %v6598
      %6600 = vmatmul.f32.gmra.mxu0 %v6390
      %v6601 = vpop.f32.mrf.mxu0
      %v6602 = vadd.f32 0.0, %v6601
      %6603 = vmatmul.f32.gmra.mxu0 %v6393
      %v6604 = vpop.f32.mrf.mxu0
      %v6605 = vadd.f32 0.0, %v6604
      %6606 = vmatmul.f32.gmra.mxu0 %v6396
      %v6607 = vpop.f32.mrf.mxu0
      %v6608 = vadd.f32 0.0, %v6607
      %6609 = vmatmul.f32.gmra.mxu0 %v6399
      %v6610 = vpop.f32.mrf.mxu0
      %v6611 = vadd.f32 0.0, %v6610
      %6612 = vmatmul.f32.gmra.mxu0 %v6402
      %v6613 = vpop.f32.mrf.mxu0
      %v6614 = vadd.f32 0.0, %v6613
      %6615 = vmatmul.f32.gmra.mxu0 %v6405
      %v6616 = vpop.f32.mrf.mxu0
      %v6617 = vadd.f32 0.0, %v6616
      %6618 = vmatmul.f32.gmra.mxu0 %v6408
      %v6619 = vpop.f32.mrf.mxu0
      %v6620 = vadd.f32 0.0, %v6619
      %6621 = vmatmul.f32.gmra.mxu0 %v6411
      %v6622 = vpop.f32.mrf.mxu0
      %v6623 = vadd.f32 0.0, %v6622
      %6624 = vmatmul.f32.gmra.mxu0 %v6414
      %v6625 = vpop.f32.mrf.mxu0
      %v6626 = vadd.f32 0.0, %v6625
      %6627 = vmatmul.f32.gmra.mxu0 %v6417
      %v6628 = vpop.f32.mrf.mxu0
      %v6629 = vadd.f32 0.0, %v6628
      %6630 = vdwg.mxu0
      %6631 = vmatpush.msra.mxu0 0.0
      %6632 = vmatpush.msra.mxu0 0.0
      %6633 = vmatpush.msra.mxu0 0.0
      %6634 = vmatpush.msra.mxu0 0.0
      %6635 = vmatpush.msra.mxu0 0.0
      %6636 = vmatpush.msra.mxu0 0.0
      %6637 = vmatpush.msra.mxu0 0.0
      %6638 = vmatpush.msra.mxu0 0.0
      %6639 = vmatpush.msra.mxu0 0.0
      %6640 = vmatpush.msra.mxu0 0.0
      %6641 = vmatpush.msra.mxu0 0.0
      %6642 = vmatpush.msra.mxu0 0.0
      %6643 = vmatpush.msra.mxu0 %v3446
      %6644 = vmatpush.msra.mxu0 %v3430
      %6645 = vmatpush.msra.mxu0 %v3414
      %6646 = vmatpush.msra.mxu0 %v3398
      %6647 = vmatmul.f32.gmra.mxu0 %v6384
      %v6648 = vpop.f32.mrf.mxu0
      %v6649 = vadd.f32 0.0, %v6648
      %6650 = vmatmul.f32.gmra.mxu0 %v6387
      %v6651 = vpop.f32.mrf.mxu0
      %v6652 = vadd.f32 0.0, %v6651
      %6653 = vmatmul.f32.gmra.mxu0 %v6390
      %v6654 = vpop.f32.mrf.mxu0
      %v6655 = vadd.f32 0.0, %v6654
      %6656 = vmatmul.f32.gmra.mxu0 %v6393
      %v6657 = vpop.f32.mrf.mxu0
      %v6658 = vadd.f32 0.0, %v6657
      %6659 = vmatmul.f32.gmra.mxu0 %v6396
      %v6660 = vpop.f32.mrf.mxu0
      %v6661 = vadd.f32 0.0, %v6660
      %6662 = vmatmul.f32.gmra.mxu0 %v6399
      %v6663 = vpop.f32.mrf.mxu0
      %v6664 = vadd.f32 0.0, %v6663
      %6665 = vmatmul.f32.gmra.mxu0 %v6402
      %v6666 = vpop.f32.mrf.mxu0
      %v6667 = vadd.f32 0.0, %v6666
      %6668 = vmatmul.f32.gmra.mxu0 %v6405
      %v6669 = vpop.f32.mrf.mxu0
      %v6670 = vadd.f32 0.0, %v6669
      %6671 = vmatmul.f32.gmra.mxu0 %v6408
      %v6672 = vpop.f32.mrf.mxu0
      %v6673 = vadd.f32 0.0, %v6672
      %6674 = vmatmul.f32.gmra.mxu0 %v6411
      %v6675 = vpop.f32.mrf.mxu0
      %v6676 = vadd.f32 0.0, %v6675
      %6677 = vmatmul.f32.gmra.mxu0 %v6414
      %v6678 = vpop.f32.mrf.mxu0
      %v6679 = vadd.f32 0.0, %v6678
      %6680 = vmatmul.f32.gmra.mxu0 %v6417
      %v6681 = vpop.f32.mrf.mxu0
      %v6682 = vadd.f32 0.0, %v6681
      %6683 = vdwg.mxu0
      %6684 = vmatpush.msra.mxu0 0.0
      %6685 = vmatpush.msra.mxu0 0.0
      %6686 = vmatpush.msra.mxu0 0.0
      %6687 = vmatpush.msra.mxu0 0.0
      %6688 = vmatpush.msra.mxu0 0.0
      %6689 = vmatpush.msra.mxu0 0.0
      %6690 = vmatpush.msra.mxu0 0.0
      %6691 = vmatpush.msra.mxu0 0.0
      %6692 = vmatpush.msra.mxu0 0.0
      %6693 = vmatpush.msra.mxu0 0.0
      %6694 = vmatpush.msra.mxu0 0.0
      %6695 = vmatpush.msra.mxu0 0.0
      %6696 = vmatpush.msra.mxu0 %v3447
      %6697 = vmatpush.msra.mxu0 %v3431
      %6698 = vmatpush.msra.mxu0 %v3415
      %6699 = vmatpush.msra.mxu0 %v3399
      %6700 = vmatmul.f32.gmra.mxu0 %v6384
      %v6701 = vpop.f32.mrf.mxu0
      %v6702 = vadd.f32 0.0, %v6701
      %6703 = vmatmul.f32.gmra.mxu0 %v6387
      %v6704 = vpop.f32.mrf.mxu0
      %v6705 = vadd.f32 0.0, %v6704
      %6706 = vmatmul.f32.gmra.mxu0 %v6390
      %v6707 = vpop.f32.mrf.mxu0
      %v6708 = vadd.f32 0.0, %v6707
      %6709 = vmatmul.f32.gmra.mxu0 %v6393
      %v6710 = vpop.f32.mrf.mxu0
      %v6711 = vadd.f32 0.0, %v6710
      %6712 = vmatmul.f32.gmra.mxu0 %v6396
      %v6713 = vpop.f32.mrf.mxu0
      %v6714 = vadd.f32 0.0, %v6713
      %6715 = vmatmul.f32.gmra.mxu0 %v6399
      %v6716 = vpop.f32.mrf.mxu0
      %v6717 = vadd.f32 0.0, %v6716
      %6718 = vmatmul.f32.gmra.mxu0 %v6402
      %v6719 = vpop.f32.mrf.mxu0
      %v6720 = vadd.f32 0.0, %v6719
      %6721 = vmatmul.f32.gmra.mxu0 %v6405
      %v6722 = vpop.f32.mrf.mxu0
      %v6723 = vadd.f32 0.0, %v6722
      %6724 = vmatmul.f32.gmra.mxu0 %v6408
      %v6725 = vpop.f32.mrf.mxu0
      %v6726 = vadd.f32 0.0, %v6725
      %6727 = vmatmul.f32.gmra.mxu0 %v6411
      %v6728 = vpop.f32.mrf.mxu0
      %v6729 = vadd.f32 0.0, %v6728
      %6730 = vmatmul.f32.gmra.mxu0 %v6414
      %v6731 = vpop.f32.mrf.mxu0
      %v6732 = vadd.f32 0.0, %v6731
      %6733 = vmatmul.f32.gmra.mxu0 %v6417
      %v6734 = vpop.f32.mrf.mxu0
      %v6735 = vadd.f32 0.0, %v6734
      %6736 = vdwg.mxu0
      %6737 = vmatpush.msra.mxu0 0.0
      %6738 = vmatpush.msra.mxu0 0.0
      %6739 = vmatpush.msra.mxu0 0.0
      %6740 = vmatpush.msra.mxu0 0.0
      %6741 = vmatpush.msra.mxu0 0.0
      %6742 = vmatpush.msra.mxu0 0.0
      %6743 = vmatpush.msra.mxu0 0.0
      %6744 = vmatpush.msra.mxu0 0.0
      %6745 = vmatpush.msra.mxu0 0.0
      %6746 = vmatpush.msra.mxu0 0.0
      %6747 = vmatpush.msra.mxu0 0.0
      %6748 = vmatpush.msra.mxu0 0.0
      %6749 = vmatpush.msra.mxu0 %v3448
      %6750 = vmatpush.msra.mxu0 %v3432
      %6751 = vmatpush.msra.mxu0 %v3416
      %6752 = vmatpush.msra.mxu0 %v3400
      %6753 = vmatmul.f32.gmra.mxu0 %v6384
      %v6754 = vpop.f32.mrf.mxu0
      %v6755 = vadd.f32 0.0, %v6754
      %6756 = vmatmul.f32.gmra.mxu0 %v6387
      %v6757 = vpop.f32.mrf.mxu0
      %v6758 = vadd.f32 0.0, %v6757
      %6759 = vmatmul.f32.gmra.mxu0 %v6390
      %v6760 = vpop.f32.mrf.mxu0
      %v6761 = vadd.f32 0.0, %v6760
      %6762 = vmatmul.f32.gmra.mxu0 %v6393
      %v6763 = vpop.f32.mrf.mxu0
      %v6764 = vadd.f32 0.0, %v6763
      %6765 = vmatmul.f32.gmra.mxu0 %v6396
      %v6766 = vpop.f32.mrf.mxu0
      %v6767 = vadd.f32 0.0, %v6766
      %6768 = vmatmul.f32.gmra.mxu0 %v6399
      %v6769 = vpop.f32.mrf.mxu0
      %v6770 = vadd.f32 0.0, %v6769
      %6771 = vmatmul.f32.gmra.mxu0 %v6402
      %v6772 = vpop.f32.mrf.mxu0
      %v6773 = vadd.f32 0.0, %v6772
      %6774 = vmatmul.f32.gmra.mxu0 %v6405
      %v6775 = vpop.f32.mrf.mxu0
      %v6776 = vadd.f32 0.0, %v6775
      %6777 = vmatmul.f32.gmra.mxu0 %v6408
      %v6778 = vpop.f32.mrf.mxu0
      %v6779 = vadd.f32 0.0, %v6778
      %6780 = vmatmul.f32.gmra.mxu0 %v6411
      %v6781 = vpop.f32.mrf.mxu0
      %v6782 = vadd.f32 0.0, %v6781
      %6783 = vmatmul.f32.gmra.mxu0 %v6414
      %v6784 = vpop.f32.mrf.mxu0
      %v6785 = vadd.f32 0.0, %v6784
      %6786 = vmatmul.f32.gmra.mxu0 %v6417
      %v6787 = vpop.f32.mrf.mxu0
      %v6788 = vadd.f32 0.0, %v6787
      %6789 = vdwg.mxu0
      %6790 = vmatpush.msra.mxu0 0.0
      %6791 = vmatpush.msra.mxu0 0.0
      %6792 = vmatpush.msra.mxu0 0.0
      %6793 = vmatpush.msra.mxu0 0.0
      %6794 = vmatpush.msra.mxu0 0.0
      %6795 = vmatpush.msra.mxu0 0.0
      %6796 = vmatpush.msra.mxu0 0.0
      %6797 = vmatpush.msra.mxu0 0.0
      %6798 = vmatpush.msra.mxu0 0.0
      %6799 = vmatpush.msra.mxu0 0.0
      %6800 = vmatpush.msra.mxu0 0.0
      %6801 = vmatpush.msra.mxu0 0.0
      %6802 = vmatpush.msra.mxu0 %v3449
      %6803 = vmatpush.msra.mxu0 %v3433
      %6804 = vmatpush.msra.mxu0 %v3417
      %6805 = vmatpush.msra.mxu0 %v3401
      %6806 = vmatmul.f32.gmra.mxu0 %v6384
      %v6807 = vpop.f32.mrf.mxu0
      %v6808 = vadd.f32 0.0, %v6807
      %6809 = vmatmul.f32.gmra.mxu0 %v6387
      %v6810 = vpop.f32.mrf.mxu0
      %v6811 = vadd.f32 0.0, %v6810
      %6812 = vmatmul.f32.gmra.mxu0 %v6390
      %v6813 = vpop.f32.mrf.mxu0
      %v6814 = vadd.f32 0.0, %v6813
      %6815 = vmatmul.f32.gmra.mxu0 %v6393
      %v6816 = vpop.f32.mrf.mxu0
      %v6817 = vadd.f32 0.0, %v6816
      %6818 = vmatmul.f32.gmra.mxu0 %v6396
      %v6819 = vpop.f32.mrf.mxu0
      %v6820 = vadd.f32 0.0, %v6819
      %6821 = vmatmul.f32.gmra.mxu0 %v6399
      %v6822 = vpop.f32.mrf.mxu0
      %v6823 = vadd.f32 0.0, %v6822
      %6824 = vmatmul.f32.gmra.mxu0 %v6402
      %v6825 = vpop.f32.mrf.mxu0
      %v6826 = vadd.f32 0.0, %v6825
      %6827 = vmatmul.f32.gmra.mxu0 %v6405
      %v6828 = vpop.f32.mrf.mxu0
      %v6829 = vadd.f32 0.0, %v6828
      %6830 = vmatmul.f32.gmra.mxu0 %v6408
      %v6831 = vpop.f32.mrf.mxu0
      %v6832 = vadd.f32 0.0, %v6831
      %6833 = vmatmul.f32.gmra.mxu0 %v6411
      %v6834 = vpop.f32.mrf.mxu0
      %v6835 = vadd.f32 0.0, %v6834
      %6836 = vmatmul.f32.gmra.mxu0 %v6414
      %v6837 = vpop.f32.mrf.mxu0
      %v6838 = vadd.f32 0.0, %v6837
      %6839 = vmatmul.f32.gmra.mxu0 %v6417
      %v6840 = vpop.f32.mrf.mxu0
      %v6841 = vadd.f32 0.0, %v6840
      %6842 = vdwg.mxu0
      %6843 = vmatpush.msra.mxu0 0.0
      %6844 = vmatpush.msra.mxu0 0.0
      %6845 = vmatpush.msra.mxu0 0.0
      %6846 = vmatpush.msra.mxu0 0.0
      %6847 = vmatpush.msra.mxu0 0.0
      %6848 = vmatpush.msra.mxu0 0.0
      %6849 = vmatpush.msra.mxu0 0.0
      %6850 = vmatpush.msra.mxu0 0.0
      %6851 = vmatpush.msra.mxu0 0.0
      %6852 = vmatpush.msra.mxu0 0.0
      %6853 = vmatpush.msra.mxu0 0.0
      %6854 = vmatpush.msra.mxu0 0.0
      %6855 = vmatpush.msra.mxu0 %v3450
      %6856 = vmatpush.msra.mxu0 %v3434
      %6857 = vmatpush.msra.mxu0 %v3418
      %6858 = vmatpush.msra.mxu0 %v3402
      %6859 = vmatmul.f32.gmra.mxu0 %v6384
      %v6860 = vpop.f32.mrf.mxu0
      %v6861 = vadd.f32 0.0, %v6860
      %6862 = vmatmul.f32.gmra.mxu0 %v6387
      %v6863 = vpop.f32.mrf.mxu0
      %v6864 = vadd.f32 0.0, %v6863
      %6865 = vmatmul.f32.gmra.mxu0 %v6390
      %v6866 = vpop.f32.mrf.mxu0
      %v6867 = vadd.f32 0.0, %v6866
      %6868 = vmatmul.f32.gmra.mxu0 %v6393
      %v6869 = vpop.f32.mrf.mxu0
      %v6870 = vadd.f32 0.0, %v6869
      %6871 = vmatmul.f32.gmra.mxu0 %v6396
      %v6872 = vpop.f32.mrf.mxu0
      %v6873 = vadd.f32 0.0, %v6872
      %6874 = vmatmul.f32.gmra.mxu0 %v6399
      %v6875 = vpop.f32.mrf.mxu0
      %v6876 = vadd.f32 0.0, %v6875
      %6877 = vmatmul.f32.gmra.mxu0 %v6402
      %v6878 = vpop.f32.mrf.mxu0
      %v6879 = vadd.f32 0.0, %v6878
      %6880 = vmatmul.f32.gmra.mxu0 %v6405
      %v6881 = vpop.f32.mrf.mxu0
      %v6882 = vadd.f32 0.0, %v6881
      %6883 = vmatmul.f32.gmra.mxu0 %v6408
      %v6884 = vpop.f32.mrf.mxu0
      %v6885 = vadd.f32 0.0, %v6884
      %6886 = vmatmul.f32.gmra.mxu0 %v6411
      %v6887 = vpop.f32.mrf.mxu0
      %v6888 = vadd.f32 0.0, %v6887
      %6889 = vmatmul.f32.gmra.mxu0 %v6414
      %v6890 = vpop.f32.mrf.mxu0
      %v6891 = vadd.f32 0.0, %v6890
      %6892 = vmatmul.f32.gmra.mxu0 %v6417
      %v6893 = vpop.f32.mrf.mxu0
      %v6894 = vadd.f32 0.0, %v6893
      %6895 = vdwg.mxu0
      %6896 = vmatpush.msra.mxu0 0.0
      %6897 = vmatpush.msra.mxu0 0.0
      %6898 = vmatpush.msra.mxu0 0.0
      %6899 = vmatpush.msra.mxu0 0.0
      %6900 = vmatpush.msra.mxu0 0.0
      %6901 = vmatpush.msra.mxu0 0.0
      %6902 = vmatpush.msra.mxu0 0.0
      %6903 = vmatpush.msra.mxu0 0.0
      %6904 = vmatpush.msra.mxu0 0.0
      %6905 = vmatpush.msra.mxu0 0.0
      %6906 = vmatpush.msra.mxu0 0.0
      %6907 = vmatpush.msra.mxu0 0.0
      %6908 = vmatpush.msra.mxu0 %v3451
      %6909 = vmatpush.msra.mxu0 %v3435
      %6910 = vmatpush.msra.mxu0 %v3419
      %6911 = vmatpush.msra.mxu0 %v3403
      %6912 = vmatmul.f32.gmra.mxu0 %v6384
      %v6913 = vpop.f32.mrf.mxu0
      %v6914 = vadd.f32 0.0, %v6913
      %6915 = vmatmul.f32.gmra.mxu0 %v6387
      %v6916 = vpop.f32.mrf.mxu0
      %v6917 = vadd.f32 0.0, %v6916
      %6918 = vmatmul.f32.gmra.mxu0 %v6390
      %v6919 = vpop.f32.mrf.mxu0
      %v6920 = vadd.f32 0.0, %v6919
      %6921 = vmatmul.f32.gmra.mxu0 %v6393
      %v6922 = vpop.f32.mrf.mxu0
      %v6923 = vadd.f32 0.0, %v6922
      %6924 = vmatmul.f32.gmra.mxu0 %v6396
      %v6925 = vpop.f32.mrf.mxu0
      %v6926 = vadd.f32 0.0, %v6925
      %6927 = vmatmul.f32.gmra.mxu0 %v6399
      %v6928 = vpop.f32.mrf.mxu0
      %v6929 = vadd.f32 0.0, %v6928
      %6930 = vmatmul.f32.gmra.mxu0 %v6402
      %v6931 = vpop.f32.mrf.mxu0
      %v6932 = vadd.f32 0.0, %v6931
      %6933 = vmatmul.f32.gmra.mxu0 %v6405
      %v6934 = vpop.f32.mrf.mxu0
      %v6935 = vadd.f32 0.0, %v6934
      %6936 = vmatmul.f32.gmra.mxu0 %v6408
      %v6937 = vpop.f32.mrf.mxu0
      %v6938 = vadd.f32 0.0, %v6937
      %6939 = vmatmul.f32.gmra.mxu0 %v6411
      %v6940 = vpop.f32.mrf.mxu0
      %v6941 = vadd.f32 0.0, %v6940
      %6942 = vmatmul.f32.gmra.mxu0 %v6414
      %v6943 = vpop.f32.mrf.mxu0
      %v6944 = vadd.f32 0.0, %v6943
      %6945 = vmatmul.f32.gmra.mxu0 %v6417
      %v6946 = vpop.f32.mrf.mxu0
      %v6947 = vadd.f32 0.0, %v6946
      %6948 = vdwg.mxu0
      %6949 = vmatpush.msra.mxu0 0.0
      %6950 = vmatpush.msra.mxu0 0.0
      %6951 = vmatpush.msra.mxu0 0.0
      %6952 = vmatpush.msra.mxu0 0.0
      %6953 = vmatpush.msra.mxu0 0.0
      %6954 = vmatpush.msra.mxu0 0.0
      %6955 = vmatpush.msra.mxu0 0.0
      %6956 = vmatpush.msra.mxu0 0.0
      %6957 = vmatpush.msra.mxu0 0.0
      %6958 = vmatpush.msra.mxu0 0.0
      %6959 = vmatpush.msra.mxu0 0.0
      %6960 = vmatpush.msra.mxu0 0.0
      %6961 = vmatpush.msra.mxu0 %v3452
      %6962 = vmatpush.msra.mxu0 %v3436
      %6963 = vmatpush.msra.mxu0 %v3420
      %6964 = vmatpush.msra.mxu0 %v3404
      %6965 = vmatmul.f32.gmra.mxu0 %v6384
      %v6966 = vpop.f32.mrf.mxu0
      %v6967 = vadd.f32 0.0, %v6966
      %6968 = vmatmul.f32.gmra.mxu0 %v6387
      %v6969 = vpop.f32.mrf.mxu0
      %v6970 = vadd.f32 0.0, %v6969
      %6971 = vmatmul.f32.gmra.mxu0 %v6390
      %v6972 = vpop.f32.mrf.mxu0
      %v6973 = vadd.f32 0.0, %v6972
      %6974 = vmatmul.f32.gmra.mxu0 %v6393
      %v6975 = vpop.f32.mrf.mxu0
      %v6976 = vadd.f32 0.0, %v6975
      %6977 = vmatmul.f32.gmra.mxu0 %v6396
      %v6978 = vpop.f32.mrf.mxu0
      %v6979 = vadd.f32 0.0, %v6978
      %6980 = vmatmul.f32.gmra.mxu0 %v6399
      %v6981 = vpop.f32.mrf.mxu0
      %v6982 = vadd.f32 0.0, %v6981
      %6983 = vmatmul.f32.gmra.mxu0 %v6402
      %v6984 = vpop.f32.mrf.mxu0
      %v6985 = vadd.f32 0.0, %v6984
      %6986 = vmatmul.f32.gmra.mxu0 %v6405
      %v6987 = vpop.f32.mrf.mxu0
      %v6988 = vadd.f32 0.0, %v6987
      %6989 = vmatmul.f32.gmra.mxu0 %v6408
      %v6990 = vpop.f32.mrf.mxu0
      %v6991 = vadd.f32 0.0, %v6990
      %6992 = vmatmul.f32.gmra.mxu0 %v6411
      %v6993 = vpop.f32.mrf.mxu0
      %v6994 = vadd.f32 0.0, %v6993
      %6995 = vmatmul.f32.gmra.mxu0 %v6414
      %v6996 = vpop.f32.mrf.mxu0
      %v6997 = vadd.f32 0.0, %v6996
      %6998 = vmatmul.f32.gmra.mxu0 %v6417
      %v6999 = vpop.f32.mrf.mxu0
      %v7000 = vadd.f32 0.0, %v6999
      %7001 = vdwg.mxu0
      %7002 = vmatpush.msra.mxu0 0.0
      %7003 = vmatpush.msra.mxu0 0.0
      %7004 = vmatpush.msra.mxu0 0.0
      %7005 = vmatpush.msra.mxu0 0.0
      %7006 = vmatpush.msra.mxu0 0.0
      %7007 = vmatpush.msra.mxu0 0.0
      %7008 = vmatpush.msra.mxu0 0.0
      %7009 = vmatpush.msra.mxu0 0.0
      %7010 = vmatpush.msra.mxu0 0.0
      %7011 = vmatpush.msra.mxu0 0.0
      %7012 = vmatpush.msra.mxu0 0.0
      %7013 = vmatpush.msra.mxu0 0.0
      %7014 = vmatpush.msra.mxu0 %v3453
      %7015 = vmatpush.msra.mxu0 %v3437
      %7016 = vmatpush.msra.mxu0 %v3421
      %7017 = vmatpush.msra.mxu0 %v3405
      %7018 = vmatmul.f32.gmra.mxu0 %v6384
      %v7019 = vpop.f32.mrf.mxu0
      %v7020 = vadd.f32 0.0, %v7019
      %7021 = vmatmul.f32.gmra.mxu0 %v6387
      %v7022 = vpop.f32.mrf.mxu0
      %v7023 = vadd.f32 0.0, %v7022
      %7024 = vmatmul.f32.gmra.mxu0 %v6390
      %v7025 = vpop.f32.mrf.mxu0
      %v7026 = vadd.f32 0.0, %v7025
      %7027 = vmatmul.f32.gmra.mxu0 %v6393
      %v7028 = vpop.f32.mrf.mxu0
      %v7029 = vadd.f32 0.0, %v7028
      %7030 = vmatmul.f32.gmra.mxu0 %v6396
      %v7031 = vpop.f32.mrf.mxu0
      %v7032 = vadd.f32 0.0, %v7031
      %7033 = vmatmul.f32.gmra.mxu0 %v6399
      %v7034 = vpop.f32.mrf.mxu0
      %v7035 = vadd.f32 0.0, %v7034
      %7036 = vmatmul.f32.gmra.mxu0 %v6402
      %v7037 = vpop.f32.mrf.mxu0
      %v7038 = vadd.f32 0.0, %v7037
      %7039 = vmatmul.f32.gmra.mxu0 %v6405
      %v7040 = vpop.f32.mrf.mxu0
      %v7041 = vadd.f32 0.0, %v7040
      %7042 = vmatmul.f32.gmra.mxu0 %v6408
      %v7043 = vpop.f32.mrf.mxu0
      %v7044 = vadd.f32 0.0, %v7043
      %7045 = vmatmul.f32.gmra.mxu0 %v6411
      %v7046 = vpop.f32.mrf.mxu0
      %v7047 = vadd.f32 0.0, %v7046
      %7048 = vmatmul.f32.gmra.mxu0 %v6414
      %v7049 = vpop.f32.mrf.mxu0
      %v7050 = vadd.f32 0.0, %v7049
      %7051 = vmatmul.f32.gmra.mxu0 %v6417
      %v7052 = vpop.f32.mrf.mxu0
      %v7053 = vadd.f32 0.0, %v7052
      %7054 = vdwg.mxu0
      %7055 = vmatpush.msra.mxu0 0.0
      %7056 = vmatpush.msra.mxu0 0.0
      %7057 = vmatpush.msra.mxu0 0.0
      %7058 = vmatpush.msra.mxu0 0.0
      %7059 = vmatpush.msra.mxu0 0.0
      %7060 = vmatpush.msra.mxu0 0.0
      %7061 = vmatpush.msra.mxu0 0.0
      %7062 = vmatpush.msra.mxu0 0.0
      %7063 = vmatpush.msra.mxu0 0.0
      %7064 = vmatpush.msra.mxu0 0.0
      %7065 = vmatpush.msra.mxu0 0.0
      %7066 = vmatpush.msra.mxu0 0.0
      %7067 = vmatpush.msra.mxu0 %v3454
      %7068 = vmatpush.msra.mxu0 %v3438
      %7069 = vmatpush.msra.mxu0 %v3422
      %7070 = vmatpush.msra.mxu0 %v3406
      %7071 = vmatmul.f32.gmra.mxu0 %v6384
      %v7072 = vpop.f32.mrf.mxu0
      %v7073 = vadd.f32 0.0, %v7072
      %7074 = vmatmul.f32.gmra.mxu0 %v6387
      %v7075 = vpop.f32.mrf.mxu0
      %v7076 = vadd.f32 0.0, %v7075
      %7077 = vmatmul.f32.gmra.mxu0 %v6390
      %v7078 = vpop.f32.mrf.mxu0
      %v7079 = vadd.f32 0.0, %v7078
      %7080 = vmatmul.f32.gmra.mxu0 %v6393
      %v7081 = vpop.f32.mrf.mxu0
      %v7082 = vadd.f32 0.0, %v7081
      %7083 = vmatmul.f32.gmra.mxu0 %v6396
      %v7084 = vpop.f32.mrf.mxu0
      %v7085 = vadd.f32 0.0, %v7084
      %7086 = vmatmul.f32.gmra.mxu0 %v6399
      %v7087 = vpop.f32.mrf.mxu0
      %v7088 = vadd.f32 0.0, %v7087
      %7089 = vmatmul.f32.gmra.mxu0 %v6402
      %v7090 = vpop.f32.mrf.mxu0
      %v7091 = vadd.f32 0.0, %v7090
      %7092 = vmatmul.f32.gmra.mxu0 %v6405
      %v7093 = vpop.f32.mrf.mxu0
      %v7094 = vadd.f32 0.0, %v7093
      %7095 = vmatmul.f32.gmra.mxu0 %v6408
      %v7096 = vpop.f32.mrf.mxu0
      %v7097 = vadd.f32 0.0, %v7096
      %7098 = vmatmul.f32.gmra.mxu0 %v6411
      %v7099 = vpop.f32.mrf.mxu0
      %v7100 = vadd.f32 0.0, %v7099
      %7101 = vmatmul.f32.gmra.mxu0 %v6414
      %v7102 = vpop.f32.mrf.mxu0
      %v7103 = vadd.f32 0.0, %v7102
      %7104 = vmatmul.f32.gmra.mxu0 %v6417
      %v7105 = vpop.f32.mrf.mxu0
      %v7106 = vadd.f32 0.0, %v7105
      %7107 = vdwg.mxu0
      %7108 = vmatpush.msra.mxu0 0.0
      %7109 = vmatpush.msra.mxu0 0.0
      %7110 = vmatpush.msra.mxu0 0.0
      %7111 = vmatpush.msra.mxu0 0.0
      %7112 = vmatpush.msra.mxu0 0.0
      %7113 = vmatpush.msra.mxu0 0.0
      %7114 = vmatpush.msra.mxu0 0.0
      %7115 = vmatpush.msra.mxu0 0.0
      %7116 = vmatpush.msra.mxu0 0.0
      %7117 = vmatpush.msra.mxu0 0.0
      %7118 = vmatpush.msra.mxu0 0.0
      %7119 = vmatpush.msra.mxu0 0.0
      %7120 = vmatpush.msra.mxu0 %v3455
      %7121 = vmatpush.msra.mxu0 %v3439
      %7122 = vmatpush.msra.mxu0 %v3423
      %7123 = vmatpush.msra.mxu0 %v3407
      %7124 = vmatmul.f32.gmra.mxu0 %v6384
      %v7125 = vpop.f32.mrf.mxu0
      %v7126 = vadd.f32 0.0, %v7125
      %7127 = vmatmul.f32.gmra.mxu0 %v6387
      %v7128 = vpop.f32.mrf.mxu0
      %v7129 = vadd.f32 0.0, %v7128
      %7130 = vmatmul.f32.gmra.mxu0 %v6390
      %v7131 = vpop.f32.mrf.mxu0
      %v7132 = vadd.f32 0.0, %v7131
      %7133 = vmatmul.f32.gmra.mxu0 %v6393
      %v7134 = vpop.f32.mrf.mxu0
      %v7135 = vadd.f32 0.0, %v7134
      %7136 = vmatmul.f32.gmra.mxu0 %v6396
      %v7137 = vpop.f32.mrf.mxu0
      %v7138 = vadd.f32 0.0, %v7137
      %7139 = vmatmul.f32.gmra.mxu0 %v6399
      %v7140 = vpop.f32.mrf.mxu0
      %v7141 = vadd.f32 0.0, %v7140
      %7142 = vmatmul.f32.gmra.mxu0 %v6402
      %v7143 = vpop.f32.mrf.mxu0
      %v7144 = vadd.f32 0.0, %v7143
      %7145 = vmatmul.f32.gmra.mxu0 %v6405
      %v7146 = vpop.f32.mrf.mxu0
      %v7147 = vadd.f32 0.0, %v7146
      %7148 = vmatmul.f32.gmra.mxu0 %v6408
      %v7149 = vpop.f32.mrf.mxu0
      %v7150 = vadd.f32 0.0, %v7149
      %7151 = vmatmul.f32.gmra.mxu0 %v6411
      %v7152 = vpop.f32.mrf.mxu0
      %v7153 = vadd.f32 0.0, %v7152
      %7154 = vmatmul.f32.gmra.mxu0 %v6414
      %v7155 = vpop.f32.mrf.mxu0
      %v7156 = vadd.f32 0.0, %v7155
      %7157 = vmatmul.f32.gmra.mxu0 %v6417
      %v7158 = vpop.f32.mrf.mxu0
      %v7159 = vadd.f32 0.0, %v7158
      %7160 = vdwg.mxu0
      %7161 = vmatpush.msra.mxu0 0.0
      %7162 = vmatpush.msra.mxu0 0.0
      %7163 = vmatpush.msra.mxu0 0.0
      %7164 = vmatpush.msra.mxu0 0.0
      %7165 = vmatpush.msra.mxu0 0.0
      %7166 = vmatpush.msra.mxu0 0.0
      %7167 = vmatpush.msra.mxu0 0.0
      %7168 = vmatpush.msra.mxu0 0.0
      %7169 = vmatpush.msra.mxu0 0.0
      %7170 = vmatpush.msra.mxu0 0.0
      %7171 = vmatpush.msra.mxu0 0.0
      %7172 = vmatpush.msra.mxu0 0.0
      %7173 = vmatpush.msra.mxu0 %v3456
      %7174 = vmatpush.msra.mxu0 %v3440
      %7175 = vmatpush.msra.mxu0 %v3424
      %7176 = vmatpush.msra.mxu0 %v3408
      %7177 = vmatmul.f32.gmra.mxu0 %v6384
      %v7178 = vpop.f32.mrf.mxu0
      %v7179 = vadd.f32 0.0, %v7178
      %7180 = vmatmul.f32.gmra.mxu0 %v6387
      %v7181 = vpop.f32.mrf.mxu0
      %v7182 = vadd.f32 0.0, %v7181
      %7183 = vmatmul.f32.gmra.mxu0 %v6390
      %v7184 = vpop.f32.mrf.mxu0
      %v7185 = vadd.f32 0.0, %v7184
      %7186 = vmatmul.f32.gmra.mxu0 %v6393
      %v7187 = vpop.f32.mrf.mxu0
      %v7188 = vadd.f32 0.0, %v7187
      %7189 = vmatmul.f32.gmra.mxu0 %v6396
      %v7190 = vpop.f32.mrf.mxu0
      %v7191 = vadd.f32 0.0, %v7190
      %7192 = vmatmul.f32.gmra.mxu0 %v6399
      %v7193 = vpop.f32.mrf.mxu0
      %v7194 = vadd.f32 0.0, %v7193
      %7195 = vmatmul.f32.gmra.mxu0 %v6402
      %v7196 = vpop.f32.mrf.mxu0
      %v7197 = vadd.f32 0.0, %v7196
      %7198 = vmatmul.f32.gmra.mxu0 %v6405
      %v7199 = vpop.f32.mrf.mxu0
      %v7200 = vadd.f32 0.0, %v7199
      %7201 = vmatmul.f32.gmra.mxu0 %v6408
      %v7202 = vpop.f32.mrf.mxu0
      %v7203 = vadd.f32 0.0, %v7202
      %7204 = vmatmul.f32.gmra.mxu0 %v6411
      %v7205 = vpop.f32.mrf.mxu0
      %v7206 = vadd.f32 0.0, %v7205
      %7207 = vmatmul.f32.gmra.mxu0 %v6414
      %v7208 = vpop.f32.mrf.mxu0
      %v7209 = vadd.f32 0.0, %v7208
      %7210 = vmatmul.f32.gmra.mxu0 %v6417
      %v7211 = vpop.f32.mrf.mxu0
      %v7212 = vadd.f32 0.0, %v7211
      %7213 = vdwg.mxu0
      %7214 = vmatpush.msra.mxu0 0.0
      %7215 = vmatpush.msra.mxu0 0.0
      %7216 = vmatpush.msra.mxu0 0.0
      %7217 = vmatpush.msra.mxu0 0.0
      %7218 = vmatpush.msra.mxu0 0.0
      %7219 = vmatpush.msra.mxu0 0.0
      %7220 = vmatpush.msra.mxu0 0.0
      %7221 = vmatpush.msra.mxu0 0.0
      %7222 = vmatpush.msra.mxu0 0.0
      %7223 = vmatpush.msra.mxu0 0.0
      %7224 = vmatpush.msra.mxu0 0.0
      %7225 = vmatpush.msra.mxu0 0.0
      %7226 = vmatpush.msra.mxu0 %v3457
      %7227 = vmatpush.msra.mxu0 %v3441
      %7228 = vmatpush.msra.mxu0 %v3425
      %7229 = vmatpush.msra.mxu0 %v3409
      %7230 = vmatmul.f32.gmra.mxu0 %v6384
      %v7231 = vpop.f32.mrf.mxu0
      %v7232 = vadd.f32 0.0, %v7231
      %7233 = vmatmul.f32.gmra.mxu0 %v6387
      %v7234 = vpop.f32.mrf.mxu0
      %v7235 = vadd.f32 0.0, %v7234
      %7236 = vmatmul.f32.gmra.mxu0 %v6390
      %v7237 = vpop.f32.mrf.mxu0
      %v7238 = vadd.f32 0.0, %v7237
      %7239 = vmatmul.f32.gmra.mxu0 %v6393
      %v7240 = vpop.f32.mrf.mxu0
      %v7241 = vadd.f32 0.0, %v7240
      %7242 = vmatmul.f32.gmra.mxu0 %v6396
      %v7243 = vpop.f32.mrf.mxu0
      %v7244 = vadd.f32 0.0, %v7243
      %7245 = vmatmul.f32.gmra.mxu0 %v6399
      %v7246 = vpop.f32.mrf.mxu0
      %v7247 = vadd.f32 0.0, %v7246
      %7248 = vmatmul.f32.gmra.mxu0 %v6402
      %v7249 = vpop.f32.mrf.mxu0
      %v7250 = vadd.f32 0.0, %v7249
      %7251 = vmatmul.f32.gmra.mxu0 %v6405
      %v7252 = vpop.f32.mrf.mxu0
      %v7253 = vadd.f32 0.0, %v7252
      %7254 = vmatmul.f32.gmra.mxu0 %v6408
      %v7255 = vpop.f32.mrf.mxu0
      %v7256 = vadd.f32 0.0, %v7255
      %7257 = vmatmul.f32.gmra.mxu0 %v6411
      %v7258 = vpop.f32.mrf.mxu0
      %v7259 = vadd.f32 0.0, %v7258
      %7260 = vmatmul.f32.gmra.mxu0 %v6414
      %v7261 = vpop.f32.mrf.mxu0
      %v7262 = vadd.f32 0.0, %v7261
      %7263 = vmatmul.f32.gmra.mxu0 %v6417
      %v7264 = vpop.f32.mrf.mxu0
      %v7265 = vadd.f32 0.0, %v7264
      %7266 = vdwg.mxu0
      %v7267 = vmul.f32 %v6437, %v6319
      %v7268 = vmul.f32 %v6490, %v6320
      %v7269 = vmul.f32 %v6543, %v6321
      %v7270 = vmul.f32 %v6596, %v6322
      %v7271 = vmul.f32 %v6649, %v6323
      %v7272 = vmul.f32 %v6702, %v6324
      %v7273 = vmul.f32 %v6755, %v6325
      %v7274 = vmul.f32 %v6808, %v6326
      %v7275 = vmul.f32 %v6861, %v6327
      %v7276 = vmul.f32 %v6914, %v6328
      %v7277 = vmul.f32 %v6967, %v6329
      %v7278 = vmul.f32 %v7020, %v6330
      %v7279 = vmul.f32 %v7073, %v6331
      %v7280 = vmul.f32 %v7126, %v6332
      %v7281 = vmul.f32 %v7179, %v6333
      %v7282 = vmul.f32 %v7232, %v6334
      %v7283 = vmul.f32 %v6440, %v6335
      %v7284 = vmul.f32 %v6493, %v6336
      %v7285 = vmul.f32 %v6546, %v6337
      %v7286 = vmul.f32 %v6599, %v6338
      %v7287 = vmul.f32 %v6652, %v6339
      %v7288 = vmul.f32 %v6705, %v6340
      %v7289 = vmul.f32 %v6758, %v6341
      %v7290 = vmul.f32 %v6811, %v6342
      %v7291 = vmul.f32 %v6864, %v6343
      %v7292 = vmul.f32 %v6917, %v6344
      %v7293 = vmul.f32 %v6970, %v6345
      %v7294 = vmul.f32 %v7023, %v6346
      %v7295 = vmul.f32 %v7076, %v6347
      %v7296 = vmul.f32 %v7129, %v6348
      %v7297 = vmul.f32 %v7182, %v6349
      %v7298 = vmul.f32 %v7235, %v6350
      %v7299 = vmul.f32 %v6443, %v6351
      %v7300 = vmul.f32 %v6496, %v6352
      %v7301 = vmul.f32 %v6549, %v6353
      %v7302 = vmul.f32 %v6602, %v6354
      %v7303 = vmul.f32 %v6655, %v6355
      %v7304 = vmul.f32 %v6708, %v6356
      %v7305 = vmul.f32 %v6761, %v6357
      %v7306 = vmul.f32 %v6814, %v6358
      %v7307 = vmul.f32 %v6867, %v6359
      %v7308 = vmul.f32 %v6920, %v6360
      %v7309 = vmul.f32 %v6973, %v6361
      %v7310 = vmul.f32 %v7026, %v6362
      %v7311 = vmul.f32 %v7079, %v6363
      %v7312 = vmul.f32 %v7132, %v6364
      %v7313 = vmul.f32 %v7185, %v6365
      %v7314 = vmul.f32 %v7238, %v6366
      %v7315 = vmul.f32 %v6446, %v6367
      %v7316 = vmul.f32 %v6499, %v6368
      %v7317 = vmul.f32 %v6552, %v6369
      %v7318 = vmul.f32 %v6605, %v6370
      %v7319 = vmul.f32 %v6658, %v6371
      %v7320 = vmul.f32 %v6711, %v6372
      %v7321 = vmul.f32 %v6764, %v6373
      %v7322 = vmul.f32 %v6817, %v6374
      %v7323 = vmul.f32 %v6870, %v6375
      %v7324 = vmul.f32 %v6923, %v6376
      %v7325 = vmul.f32 %v6976, %v6377
      %v7326 = vmul.f32 %v7029, %v6378
      %v7327 = vmul.f32 %v7082, %v6379
      %v7328 = vmul.f32 %v7135, %v6380
      %v7329 = vmul.f32 %v7188, %v6381
      %v7330 = vmul.f32 %v7241, %v6382
      %v7331 = vmul.f32 %v6449, %v6319
      %v7332 = vmul.f32 %v6502, %v6320
      %v7333 = vmul.f32 %v6555, %v6321
      %v7334 = vmul.f32 %v6608, %v6322
      %v7335 = vmul.f32 %v6661, %v6323
      %v7336 = vmul.f32 %v6714, %v6324
      %v7337 = vmul.f32 %v6767, %v6325
      %v7338 = vmul.f32 %v6820, %v6326
      %v7339 = vmul.f32 %v6873, %v6327
      %v7340 = vmul.f32 %v6926, %v6328
      %v7341 = vmul.f32 %v6979, %v6329
      %v7342 = vmul.f32 %v7032, %v6330
      %v7343 = vmul.f32 %v7085, %v6331
      %v7344 = vmul.f32 %v7138, %v6332
      %v7345 = vmul.f32 %v7191, %v6333
      %v7346 = vmul.f32 %v7244, %v6334
      %v7347 = vmul.f32 %v6452, %v6335
      %v7348 = vmul.f32 %v6505, %v6336
      %v7349 = vmul.f32 %v6558, %v6337
      %v7350 = vmul.f32 %v6611, %v6338
      %v7351 = vmul.f32 %v6664, %v6339
      %v7352 = vmul.f32 %v6717, %v6340
      %v7353 = vmul.f32 %v6770, %v6341
      %v7354 = vmul.f32 %v6823, %v6342
      %v7355 = vmul.f32 %v6876, %v6343
      %v7356 = vmul.f32 %v6929, %v6344
      %v7357 = vmul.f32 %v6982, %v6345
      %v7358 = vmul.f32 %v7035, %v6346
      %v7359 = vmul.f32 %v7088, %v6347
      %v7360 = vmul.f32 %v7141, %v6348
      %v7361 = vmul.f32 %v7194, %v6349
      %v7362 = vmul.f32 %v7247, %v6350
      %v7363 = vmul.f32 %v6455, %v6351
      %v7364 = vmul.f32 %v6508, %v6352
      %v7365 = vmul.f32 %v6561, %v6353
      %v7366 = vmul.f32 %v6614, %v6354
      %v7367 = vmul.f32 %v6667, %v6355
      %v7368 = vmul.f32 %v6720, %v6356
      %v7369 = vmul.f32 %v6773, %v6357
      %v7370 = vmul.f32 %v6826, %v6358
      %v7371 = vmul.f32 %v6879, %v6359
      %v7372 = vmul.f32 %v6932, %v6360
      %v7373 = vmul.f32 %v6985, %v6361
      %v7374 = vmul.f32 %v7038, %v6362
      %v7375 = vmul.f32 %v7091, %v6363
      %v7376 = vmul.f32 %v7144, %v6364
      %v7377 = vmul.f32 %v7197, %v6365
      %v7378 = vmul.f32 %v7250, %v6366
      %v7379 = vmul.f32 %v6458, %v6367
      %v7380 = vmul.f32 %v6511, %v6368
      %v7381 = vmul.f32 %v6564, %v6369
      %v7382 = vmul.f32 %v6617, %v6370
      %v7383 = vmul.f32 %v6670, %v6371
      %v7384 = vmul.f32 %v6723, %v6372
      %v7385 = vmul.f32 %v6776, %v6373
      %v7386 = vmul.f32 %v6829, %v6374
      %v7387 = vmul.f32 %v6882, %v6375
      %v7388 = vmul.f32 %v6935, %v6376
      %v7389 = vmul.f32 %v6988, %v6377
      %v7390 = vmul.f32 %v7041, %v6378
      %v7391 = vmul.f32 %v7094, %v6379
      %v7392 = vmul.f32 %v7147, %v6380
      %v7393 = vmul.f32 %v7200, %v6381
      %v7394 = vmul.f32 %v7253, %v6382
      %v7395 = vmul.f32 %v6461, %v6319
      %v7396 = vmul.f32 %v6514, %v6320
      %v7397 = vmul.f32 %v6567, %v6321
      %v7398 = vmul.f32 %v6620, %v6322
      %v7399 = vmul.f32 %v6673, %v6323
      %v7400 = vmul.f32 %v6726, %v6324
      %v7401 = vmul.f32 %v6779, %v6325
      %v7402 = vmul.f32 %v6832, %v6326
      %v7403 = vmul.f32 %v6885, %v6327
      %v7404 = vmul.f32 %v6938, %v6328
      %v7405 = vmul.f32 %v6991, %v6329
      %v7406 = vmul.f32 %v7044, %v6330
      %v7407 = vmul.f32 %v7097, %v6331
      %v7408 = vmul.f32 %v7150, %v6332
      %v7409 = vmul.f32 %v7203, %v6333
      %v7410 = vmul.f32 %v7256, %v6334
      %v7411 = vmul.f32 %v6464, %v6335
      %v7412 = vmul.f32 %v6517, %v6336
      %v7413 = vmul.f32 %v6570, %v6337
      %v7414 = vmul.f32 %v6623, %v6338
      %v7415 = vmul.f32 %v6676, %v6339
      %v7416 = vmul.f32 %v6729, %v6340
      %v7417 = vmul.f32 %v6782, %v6341
      %v7418 = vmul.f32 %v6835, %v6342
      %v7419 = vmul.f32 %v6888, %v6343
      %v7420 = vmul.f32 %v6941, %v6344
      %v7421 = vmul.f32 %v6994, %v6345
      %v7422 = vmul.f32 %v7047, %v6346
      %v7423 = vmul.f32 %v7100, %v6347
      %v7424 = vmul.f32 %v7153, %v6348
      %v7425 = vmul.f32 %v7206, %v6349
      %v7426 = vmul.f32 %v7259, %v6350
      %v7427 = vmul.f32 %v6467, %v6351
      %v7428 = vmul.f32 %v6520, %v6352
      %v7429 = vmul.f32 %v6573, %v6353
      %v7430 = vmul.f32 %v6626, %v6354
      %v7431 = vmul.f32 %v6679, %v6355
      %v7432 = vmul.f32 %v6732, %v6356
      %v7433 = vmul.f32 %v6785, %v6357
      %v7434 = vmul.f32 %v6838, %v6358
      %v7435 = vmul.f32 %v6891, %v6359
      %v7436 = vmul.f32 %v6944, %v6360
      %v7437 = vmul.f32 %v6997, %v6361
      %v7438 = vmul.f32 %v7050, %v6362
      %v7439 = vmul.f32 %v7103, %v6363
      %v7440 = vmul.f32 %v7156, %v6364
      %v7441 = vmul.f32 %v7209, %v6365
      %v7442 = vmul.f32 %v7262, %v6366
      %v7443 = vmul.f32 %v6470, %v6367
      %v7444 = vmul.f32 %v6523, %v6368
      %v7445 = vmul.f32 %v6576, %v6369
      %v7446 = vmul.f32 %v6629, %v6370
      %v7447 = vmul.f32 %v6682, %v6371
      %v7448 = vmul.f32 %v6735, %v6372
      %v7449 = vmul.f32 %v6788, %v6373
      %v7450 = vmul.f32 %v6841, %v6374
      %v7451 = vmul.f32 %v6894, %v6375
      %v7452 = vmul.f32 %v6947, %v6376
      %v7453 = vmul.f32 %v7000, %v6377
      %v7454 = vmul.f32 %v7053, %v6378
      %v7455 = vmul.f32 %v7106, %v6379
      %v7456 = vmul.f32 %v7159, %v6380
      %v7457 = vmul.f32 %v7212, %v6381
      %v7458 = vmul.f32 %v7265, %v6382
      %vm7459 = vcmask 785408
      %v7461 = vsel %vm7459, %v229, 0
      %7463 = vmatpush.msra.mxu0 0.0
      %7464 = vmatpush.msra.mxu0 0.0
      %7465 = vmatpush.msra.mxu0 0.0
      %7466 = vmatpush.msra.mxu0 0.0
      %7467 = vmatpush.msra.mxu0 %v7443
      %7468 = vmatpush.msra.mxu0 %v7427
      %7469 = vmatpush.msra.mxu0 %v7411
      %7470 = vmatpush.msra.mxu0 %v7395
      %7471 = vmatpush.msra.mxu0 %v7379
      %7472 = vmatpush.msra.mxu0 %v7363
      %7473 = vmatpush.msra.mxu0 %v7347
      %7474 = vmatpush.msra.mxu0 %v7331
      %7475 = vmatpush.msra.mxu0 %v7315
      %7476 = vmatpush.msra.mxu0 %v7299
      %7477 = vmatpush.msra.mxu0 %v7283
      %7478 = vmatpush.msra.mxu0 %v7267
      %7479 = vmatmul.f32.gmra.mxu0 %v7461
      %v7480 = vpop.f32.mrf.mxu0
      %v7481 = vadd.f32 0.0, %v7480
      %7482 = vdwg.mxu0
      %7483 = vmatpush.msra.mxu0 0.0
      %7484 = vmatpush.msra.mxu0 0.0
      %7485 = vmatpush.msra.mxu0 0.0
      %7486 = vmatpush.msra.mxu0 0.0
      %7487 = vmatpush.msra.mxu0 %v7444
      %7488 = vmatpush.msra.mxu0 %v7428
      %7489 = vmatpush.msra.mxu0 %v7412
      %7490 = vmatpush.msra.mxu0 %v7396
      %7491 = vmatpush.msra.mxu0 %v7380
      %7492 = vmatpush.msra.mxu0 %v7364
      %7493 = vmatpush.msra.mxu0 %v7348
      %7494 = vmatpush.msra.mxu0 %v7332
      %7495 = vmatpush.msra.mxu0 %v7316
      %7496 = vmatpush.msra.mxu0 %v7300
      %7497 = vmatpush.msra.mxu0 %v7284
      %7498 = vmatpush.msra.mxu0 %v7268
      %7499 = vmatmul.f32.gmra.mxu0 %v7461
      %v7500 = vpop.f32.mrf.mxu0
      %v7501 = vadd.f32 0.0, %v7500
      %7502 = vdwg.mxu0
      %7503 = vmatpush.msra.mxu0 0.0
      %7504 = vmatpush.msra.mxu0 0.0
      %7505 = vmatpush.msra.mxu0 0.0
      %7506 = vmatpush.msra.mxu0 0.0
      %7507 = vmatpush.msra.mxu0 %v7445
      %7508 = vmatpush.msra.mxu0 %v7429
      %7509 = vmatpush.msra.mxu0 %v7413
      %7510 = vmatpush.msra.mxu0 %v7397
      %7511 = vmatpush.msra.mxu0 %v7381
      %7512 = vmatpush.msra.mxu0 %v7365
      %7513 = vmatpush.msra.mxu0 %v7349
      %7514 = vmatpush.msra.mxu0 %v7333
      %7515 = vmatpush.msra.mxu0 %v7317
      %7516 = vmatpush.msra.mxu0 %v7301
      %7517 = vmatpush.msra.mxu0 %v7285
      %7518 = vmatpush.msra.mxu0 %v7269
      %7519 = vmatmul.f32.gmra.mxu0 %v7461
      %v7520 = vpop.f32.mrf.mxu0
      %v7521 = vadd.f32 0.0, %v7520
      %7522 = vdwg.mxu0
      %7523 = vmatpush.msra.mxu0 0.0
      %7524 = vmatpush.msra.mxu0 0.0
      %7525 = vmatpush.msra.mxu0 0.0
      %7526 = vmatpush.msra.mxu0 0.0
      %7527 = vmatpush.msra.mxu0 %v7446
      %7528 = vmatpush.msra.mxu0 %v7430
      %7529 = vmatpush.msra.mxu0 %v7414
      %7530 = vmatpush.msra.mxu0 %v7398
      %7531 = vmatpush.msra.mxu0 %v7382
      %7532 = vmatpush.msra.mxu0 %v7366
      %7533 = vmatpush.msra.mxu0 %v7350
      %7534 = vmatpush.msra.mxu0 %v7334
      %7535 = vmatpush.msra.mxu0 %v7318
      %7536 = vmatpush.msra.mxu0 %v7302
      %7537 = vmatpush.msra.mxu0 %v7286
      %7538 = vmatpush.msra.mxu0 %v7270
      %7539 = vmatmul.f32.gmra.mxu0 %v7461
      %v7540 = vpop.f32.mrf.mxu0
      %v7541 = vadd.f32 0.0, %v7540
      %7542 = vdwg.mxu0
      %7543 = vmatpush.msra.mxu0 0.0
      %7544 = vmatpush.msra.mxu0 0.0
      %7545 = vmatpush.msra.mxu0 0.0
      %7546 = vmatpush.msra.mxu0 0.0
      %7547 = vmatpush.msra.mxu0 %v7447
      %7548 = vmatpush.msra.mxu0 %v7431
      %7549 = vmatpush.msra.mxu0 %v7415
      %7550 = vmatpush.msra.mxu0 %v7399
      %7551 = vmatpush.msra.mxu0 %v7383
      %7552 = vmatpush.msra.mxu0 %v7367
      %7553 = vmatpush.msra.mxu0 %v7351
      %7554 = vmatpush.msra.mxu0 %v7335
      %7555 = vmatpush.msra.mxu0 %v7319
      %7556 = vmatpush.msra.mxu0 %v7303
      %7557 = vmatpush.msra.mxu0 %v7287
      %7558 = vmatpush.msra.mxu0 %v7271
      %7559 = vmatmul.f32.gmra.mxu0 %v7461
      %v7560 = vpop.f32.mrf.mxu0
      %v7561 = vadd.f32 0.0, %v7560
      %7562 = vdwg.mxu0
      %7563 = vmatpush.msra.mxu0 0.0
      %7564 = vmatpush.msra.mxu0 0.0
      %7565 = vmatpush.msra.mxu0 0.0
      %7566 = vmatpush.msra.mxu0 0.0
      %7567 = vmatpush.msra.mxu0 %v7448
      %7568 = vmatpush.msra.mxu0 %v7432
      %7569 = vmatpush.msra.mxu0 %v7416
      %7570 = vmatpush.msra.mxu0 %v7400
      %7571 = vmatpush.msra.mxu0 %v7384
      %7572 = vmatpush.msra.mxu0 %v7368
      %7573 = vmatpush.msra.mxu0 %v7352
      %7574 = vmatpush.msra.mxu0 %v7336
      %7575 = vmatpush.msra.mxu0 %v7320
      %7576 = vmatpush.msra.mxu0 %v7304
      %7577 = vmatpush.msra.mxu0 %v7288
      %7578 = vmatpush.msra.mxu0 %v7272
      %7579 = vmatmul.f32.gmra.mxu0 %v7461
      %v7580 = vpop.f32.mrf.mxu0
      %v7581 = vadd.f32 0.0, %v7580
      %7582 = vdwg.mxu0
      %7583 = vmatpush.msra.mxu0 0.0
      %7584 = vmatpush.msra.mxu0 0.0
      %7585 = vmatpush.msra.mxu0 0.0
      %7586 = vmatpush.msra.mxu0 0.0
      %7587 = vmatpush.msra.mxu0 %v7449
      %7588 = vmatpush.msra.mxu0 %v7433
      %7589 = vmatpush.msra.mxu0 %v7417
      %7590 = vmatpush.msra.mxu0 %v7401
      %7591 = vmatpush.msra.mxu0 %v7385
      %7592 = vmatpush.msra.mxu0 %v7369
      %7593 = vmatpush.msra.mxu0 %v7353
      %7594 = vmatpush.msra.mxu0 %v7337
      %7595 = vmatpush.msra.mxu0 %v7321
      %7596 = vmatpush.msra.mxu0 %v7305
      %7597 = vmatpush.msra.mxu0 %v7289
      %7598 = vmatpush.msra.mxu0 %v7273
      %7599 = vmatmul.f32.gmra.mxu0 %v7461
      %v7600 = vpop.f32.mrf.mxu0
      %v7601 = vadd.f32 0.0, %v7600
      %7602 = vdwg.mxu0
      %7603 = vmatpush.msra.mxu0 0.0
      %7604 = vmatpush.msra.mxu0 0.0
      %7605 = vmatpush.msra.mxu0 0.0
      %7606 = vmatpush.msra.mxu0 0.0
      %7607 = vmatpush.msra.mxu0 %v7450
      %7608 = vmatpush.msra.mxu0 %v7434
      %7609 = vmatpush.msra.mxu0 %v7418
      %7610 = vmatpush.msra.mxu0 %v7402
      %7611 = vmatpush.msra.mxu0 %v7386
      %7612 = vmatpush.msra.mxu0 %v7370
      %7613 = vmatpush.msra.mxu0 %v7354
      %7614 = vmatpush.msra.mxu0 %v7338
      %7615 = vmatpush.msra.mxu0 %v7322
      %7616 = vmatpush.msra.mxu0 %v7306
      %7617 = vmatpush.msra.mxu0 %v7290
      %7618 = vmatpush.msra.mxu0 %v7274
      %7619 = vmatmul.f32.gmra.mxu0 %v7461
      %v7620 = vpop.f32.mrf.mxu0
      %v7621 = vadd.f32 0.0, %v7620
      %7622 = vdwg.mxu0
      %7623 = vmatpush.msra.mxu0 0.0
      %7624 = vmatpush.msra.mxu0 0.0
      %7625 = vmatpush.msra.mxu0 0.0
      %7626 = vmatpush.msra.mxu0 0.0
      %7627 = vmatpush.msra.mxu0 %v7451
      %7628 = vmatpush.msra.mxu0 %v7435
      %7629 = vmatpush.msra.mxu0 %v7419
      %7630 = vmatpush.msra.mxu0 %v7403
      %7631 = vmatpush.msra.mxu0 %v7387
      %7632 = vmatpush.msra.mxu0 %v7371
      %7633 = vmatpush.msra.mxu0 %v7355
      %7634 = vmatpush.msra.mxu0 %v7339
      %7635 = vmatpush.msra.mxu0 %v7323
      %7636 = vmatpush.msra.mxu0 %v7307
      %7637 = vmatpush.msra.mxu0 %v7291
      %7638 = vmatpush.msra.mxu0 %v7275
      %7639 = vmatmul.f32.gmra.mxu0 %v7461
      %v7640 = vpop.f32.mrf.mxu0
      %v7641 = vadd.f32 0.0, %v7640
      %7642 = vdwg.mxu0
      %7643 = vmatpush.msra.mxu0 0.0
      %7644 = vmatpush.msra.mxu0 0.0
      %7645 = vmatpush.msra.mxu0 0.0
      %7646 = vmatpush.msra.mxu0 0.0
      %7647 = vmatpush.msra.mxu0 %v7452
      %7648 = vmatpush.msra.mxu0 %v7436
      %7649 = vmatpush.msra.mxu0 %v7420
      %7650 = vmatpush.msra.mxu0 %v7404
      %7651 = vmatpush.msra.mxu0 %v7388
      %7652 = vmatpush.msra.mxu0 %v7372
      %7653 = vmatpush.msra.mxu0 %v7356
      %7654 = vmatpush.msra.mxu0 %v7340
      %7655 = vmatpush.msra.mxu0 %v7324
      %7656 = vmatpush.msra.mxu0 %v7308
      %7657 = vmatpush.msra.mxu0 %v7292
      %7658 = vmatpush.msra.mxu0 %v7276
      %7659 = vmatmul.f32.gmra.mxu0 %v7461
      %v7660 = vpop.f32.mrf.mxu0
      %v7661 = vadd.f32 0.0, %v7660
      %7662 = vdwg.mxu0
      %7663 = vmatpush.msra.mxu0 0.0
      %7664 = vmatpush.msra.mxu0 0.0
      %7665 = vmatpush.msra.mxu0 0.0
      %7666 = vmatpush.msra.mxu0 0.0
      %7667 = vmatpush.msra.mxu0 %v7453
      %7668 = vmatpush.msra.mxu0 %v7437
      %7669 = vmatpush.msra.mxu0 %v7421
      %7670 = vmatpush.msra.mxu0 %v7405
      %7671 = vmatpush.msra.mxu0 %v7389
      %7672 = vmatpush.msra.mxu0 %v7373
      %7673 = vmatpush.msra.mxu0 %v7357
      %7674 = vmatpush.msra.mxu0 %v7341
      %7675 = vmatpush.msra.mxu0 %v7325
      %7676 = vmatpush.msra.mxu0 %v7309
      %7677 = vmatpush.msra.mxu0 %v7293
      %7678 = vmatpush.msra.mxu0 %v7277
      %7679 = vmatmul.f32.gmra.mxu0 %v7461
      %v7680 = vpop.f32.mrf.mxu0
      %v7681 = vadd.f32 0.0, %v7680
      %7682 = vdwg.mxu0
      %7683 = vmatpush.msra.mxu0 0.0
      %7684 = vmatpush.msra.mxu0 0.0
      %7685 = vmatpush.msra.mxu0 0.0
      %7686 = vmatpush.msra.mxu0 0.0
      %7687 = vmatpush.msra.mxu0 %v7454
      %7688 = vmatpush.msra.mxu0 %v7438
      %7689 = vmatpush.msra.mxu0 %v7422
      %7690 = vmatpush.msra.mxu0 %v7406
      %7691 = vmatpush.msra.mxu0 %v7390
      %7692 = vmatpush.msra.mxu0 %v7374
      %7693 = vmatpush.msra.mxu0 %v7358
      %7694 = vmatpush.msra.mxu0 %v7342
      %7695 = vmatpush.msra.mxu0 %v7326
      %7696 = vmatpush.msra.mxu0 %v7310
      %7697 = vmatpush.msra.mxu0 %v7294
      %7698 = vmatpush.msra.mxu0 %v7278
      %7699 = vmatmul.f32.gmra.mxu0 %v7461
      %v7700 = vpop.f32.mrf.mxu0
      %v7701 = vadd.f32 0.0, %v7700
      %7702 = vdwg.mxu0
      %7703 = vmatpush.msra.mxu0 0.0
      %7704 = vmatpush.msra.mxu0 0.0
      %7705 = vmatpush.msra.mxu0 0.0
      %7706 = vmatpush.msra.mxu0 0.0
      %7707 = vmatpush.msra.mxu0 %v7455
      %7708 = vmatpush.msra.mxu0 %v7439
      %7709 = vmatpush.msra.mxu0 %v7423
      %7710 = vmatpush.msra.mxu0 %v7407
      %7711 = vmatpush.msra.mxu0 %v7391
      %7712 = vmatpush.msra.mxu0 %v7375
      %7713 = vmatpush.msra.mxu0 %v7359
      %7714 = vmatpush.msra.mxu0 %v7343
      %7715 = vmatpush.msra.mxu0 %v7327
      %7716 = vmatpush.msra.mxu0 %v7311
      %7717 = vmatpush.msra.mxu0 %v7295
      %7718 = vmatpush.msra.mxu0 %v7279
      %7719 = vmatmul.f32.gmra.mxu0 %v7461
      %v7720 = vpop.f32.mrf.mxu0
      %v7721 = vadd.f32 0.0, %v7720
      %7722 = vdwg.mxu0
      %7723 = vmatpush.msra.mxu0 0.0
      %7724 = vmatpush.msra.mxu0 0.0
      %7725 = vmatpush.msra.mxu0 0.0
      %7726 = vmatpush.msra.mxu0 0.0
      %7727 = vmatpush.msra.mxu0 %v7456
      %7728 = vmatpush.msra.mxu0 %v7440
      %7729 = vmatpush.msra.mxu0 %v7424
      %7730 = vmatpush.msra.mxu0 %v7408
      %7731 = vmatpush.msra.mxu0 %v7392
      %7732 = vmatpush.msra.mxu0 %v7376
      %7733 = vmatpush.msra.mxu0 %v7360
      %7734 = vmatpush.msra.mxu0 %v7344
      %7735 = vmatpush.msra.mxu0 %v7328
      %7736 = vmatpush.msra.mxu0 %v7312
      %7737 = vmatpush.msra.mxu0 %v7296
      %7738 = vmatpush.msra.mxu0 %v7280
      %7739 = vmatmul.f32.gmra.mxu0 %v7461
      %v7740 = vpop.f32.mrf.mxu0
      %v7741 = vadd.f32 0.0, %v7740
      %7742 = vdwg.mxu0
      %7743 = vmatpush.msra.mxu0 0.0
      %7744 = vmatpush.msra.mxu0 0.0
      %7745 = vmatpush.msra.mxu0 0.0
      %7746 = vmatpush.msra.mxu0 0.0
      %7747 = vmatpush.msra.mxu0 %v7457
      %7748 = vmatpush.msra.mxu0 %v7441
      %7749 = vmatpush.msra.mxu0 %v7425
      %7750 = vmatpush.msra.mxu0 %v7409
      %7751 = vmatpush.msra.mxu0 %v7393
      %7752 = vmatpush.msra.mxu0 %v7377
      %7753 = vmatpush.msra.mxu0 %v7361
      %7754 = vmatpush.msra.mxu0 %v7345
      %7755 = vmatpush.msra.mxu0 %v7329
      %7756 = vmatpush.msra.mxu0 %v7313
      %7757 = vmatpush.msra.mxu0 %v7297
      %7758 = vmatpush.msra.mxu0 %v7281
      %7759 = vmatmul.f32.gmra.mxu0 %v7461
      %v7760 = vpop.f32.mrf.mxu0
      %v7761 = vadd.f32 0.0, %v7760
      %7762 = vdwg.mxu0
      %7763 = vmatpush.msra.mxu0 0.0
      %7764 = vmatpush.msra.mxu0 0.0
      %7765 = vmatpush.msra.mxu0 0.0
      %7766 = vmatpush.msra.mxu0 0.0
      %7767 = vmatpush.msra.mxu0 %v7458
      %7768 = vmatpush.msra.mxu0 %v7442
      %7769 = vmatpush.msra.mxu0 %v7426
      %7770 = vmatpush.msra.mxu0 %v7410
      %7771 = vmatpush.msra.mxu0 %v7394
      %7772 = vmatpush.msra.mxu0 %v7378
      %7773 = vmatpush.msra.mxu0 %v7362
      %7774 = vmatpush.msra.mxu0 %v7346
      %7775 = vmatpush.msra.mxu0 %v7330
      %7776 = vmatpush.msra.mxu0 %v7314
      %7777 = vmatpush.msra.mxu0 %v7298
      %7778 = vmatpush.msra.mxu0 %v7282
      %7779 = vmatmul.f32.gmra.mxu0 %v7461
      %v7780 = vpop.f32.mrf.mxu0
      %v7781 = vadd.f32 0.0, %v7780
      %7782 = vdwg.mxu0
      %v7799 = vrot.slane %v7501, 4
      %v7800 = vrot.slane %v7541, 4
      %v7801 = vrot.slane %v7581, 4
      %v7802 = vrot.slane %v7621, 4
      %v7803 = vrot.slane %v7661, 4
      %v7804 = vrot.slane %v7701, 4
      %v7805 = vrot.slane %v7741, 4
      %v7806 = vrot.slane %v7781, 4
      %vm7807 = vcmask 1043456
      %v7808 = vsel %vm7807, %v7481, %v7799
      %v7809 = vsel %vm7807, %v7521, %v7800
      %v7810 = vsel %vm7807, %v7561, %v7801
      %v7811 = vsel %vm7807, %v7601, %v7802
      %v7812 = vsel %vm7807, %v7641, %v7803
      %v7813 = vsel %vm7807, %v7681, %v7804
      %v7814 = vsel %vm7807, %v7721, %v7805
      %v7815 = vsel %vm7807, %v7761, %v7806
      %7824 = vst [vmem:[%s199] sm:$0x77] %v7808
      %7825 = vst [vmem:[%s199 + $0x8] sm:$0x77] %v7809
      %7826 = vst [vmem:[%s199 + $0x10] sm:$0x77] %v7810
      %7827 = vst [vmem:[%s199 + $0x18] sm:$0x77] %v7811
      %7828 = vst [vmem:[%s199 + $0x20] sm:$0x77] %v7812
      %7829 = vst [vmem:[%s199 + $0x28] sm:$0x77] %v7813
      %7830 = vst [vmem:[%s199 + $0x30] sm:$0x77] %v7814
      %7831 = vst [vmem:[%s199 + $0x38] sm:$0x77] %v7815
      %s7832 = smul.u32 16, %s15
      %p7833 = scmp.lt.s32.totalorder %s7832, 63
      %s7834 = scalar_select %p7833, %s7832, 63
      %s7835 = smul.addr %s7834, 4
      %s7836 = scalar_lea.vmem %s4, %s7835
      // Predicated region
      $region37: #{div_siren_forward.1} parent=35 // pred_check
        %p7837 = pneg %p122
      $region38: #{div_siren_forward.1} parent=35 // pred_check_branch
        %7839 = sbr.rel (%p7837) target = $region40
      $region39: #{div_siren_forward.1} parent=35 // pred_region
        %s7840 = smul.u32 16, %s15
      $region40: #{div_siren_forward.1} parent=35 // pred_fallthru
        _
    $region36: #{div_siren_forward.1} parent=5 // pred_fallthru
      _
    %p7841 = scmp.le.s32.totalorder 2, %s10
    // Predicated region
    $region41: #{div_siren_forward.1} parent=5 // pred_check
      %p7842 = pneg %p7841
    $region42: #{div_siren_forward.1} parent=5 // pred_check_branch
      %7844 = sbr.rel (%p7842) target = $region44
    $region43: #{div_siren_forward.1} parent=5 // pred_region
      %s7845 = ssub.s32 %s10, 2
      // Predicated region
      $region45: #{div_siren_forward.1} parent=43 // pred_check
        %p7846 = pneg %p128
      $region46: #{div_siren_forward.1} parent=43 // pred_check_branch
        %7848 = sbr.rel (%p7846) target = $region48
      $region47: #{div_siren_forward.1} parent=43 // pred_region
        %s7849 = smul.u32 16, %s16
        %p7850 = scmp.lt.s32.totalorder %s7849, 63
        %s7851 = scalar_select %p7850, %s7849, 63
        %s7852 = smul.addr %s7851, 4
        %s7853 = scalar_lea.vmem %s4, %s7852
      $region48: #{div_siren_forward.1} parent=43 // pred_fallthru
        _
    $region44: #{div_siren_forward.1} parent=5 // pred_fallthru
      _
  $region6: #{div_siren_forward.1} parent=0 // loop_footer
    %s14 = sadd.s32 1, %s10
  $region7: #{div_siren_forward.1} parent=0 // loop_footer_branch
    %9 = sbr.rel target = $region3
  $region8: #{div_siren_forward.1} parent=0 // loop_exit
    _

</llo_original>
